<compile_context>
chip_gen: v7x
topology: tpu7x:2x2x1
jax: 0.10.0
libtpu: 0.0.40
codegen_flags: <defaults>
</compile_context>

<pallas_src>
import functools

import jax
import jax.numpy as jnp
from jax.experimental import pallas as pl
from jax.experimental.pallas import tpu as pltpu


# ---------------------------------------------------------------------------
# Pallas kernel: fused  y = relu?(x @ w + b), bf16 MXU inputs, f32 accumulate.
# Tiled over rows (grid axis 0, "parallel" for megacore sharding).
# ---------------------------------------------------------------------------
def _linear_kernel(x_ref, w_ref, b_ref, o_ref, *, relu):
    acc = jnp.dot(x_ref[...], w_ref[...], preferred_element_type=jnp.float32)
    acc = acc + b_ref[...]
    if relu:
        acc = jnp.maximum(acc, 0.0)
    o_ref[...] = acc


def _round_up(x, m):
    return ((x + m - 1) // m) * m


def pallas_linear(x, w, b, *, relu=False, tile_m=512):
    """x: (M, K), w: (K, N), b: (N,) -> (M, N) f32."""
    M, K = x.shape
    Kw, N = w.shape
    assert K == Kw, (K, Kw)
    # Single full-size block for small M (avoids padding to tile_m); otherwise
    # tile at tile_m so large layers expose >=2 parallel grid steps.
    tm = tile_m if M > tile_m else _round_up(M, 16)
    Mp = _round_up(M, tm)
    xb = x.astype(jnp.bfloat16)
    if Mp != M:
        xb = jnp.pad(xb, ((0, Mp - M), (0, 0)))
    out = pl.pallas_call(
        functools.partial(_linear_kernel, relu=relu),
        out_shape=jax.ShapeDtypeStruct((Mp, N), jnp.float32),
        grid=(Mp // tm,),
        in_specs=[
            pl.BlockSpec((tm, K), lambda i: (i, 0)),   # row tile of activations
            pl.BlockSpec((K, N), lambda i: (0, 0)),    # full weight, resident
            pl.BlockSpec((1, N), lambda i: (0, 0)),    # bias row (f32)
        ],
        out_specs=pl.BlockSpec((tm, N), lambda i: (i, 0)),
        compiler_params=pltpu.CompilerParams(dimension_semantics=("parallel",)),
    )(xb, w.astype(jnp.bfloat16), b.reshape(1, N).astype(jnp.float32))
    return out[:M] if Mp != M else out


# ---------------------------------------------------------------------------
# Conv block (Conv2d k=3 s=2 p=1 -> BN(eval, default stats) -> ReLU), NHWC,
# as im2col + the fused Pallas matmul kernel.
# ---------------------------------------------------------------------------
def _im2col_nhwc(x, k=3, stride=2, pad=1):
    B, H, W, C = x.shape
    xp = jnp.pad(x, ((0, 0), (pad, pad), (pad, pad), (0, 0)))
    Ho = (H + 2 * pad - k) // stride + 1
    Wo = (W + 2 * pad - k) // stride + 1
    cols = [xp[:, dh:dh + stride * Ho:stride, dw:dw + stride * Wo:stride, :]
            for dh in range(k) for dw in range(k)]
    patches = jnp.stack(cols, axis=3)                  # (B, Ho, Wo, k*k, C)
    return patches.reshape(B * Ho * Wo, k * k * C), Ho, Wo


def conv_block_nhwc(x, w_mat, b_vec):
    # x: (B, H, W, C) NHWC; w_mat: (k*k*Cin, Cout) with BN scale pre-folded.
    B = x.shape[0]
    patches, Ho, Wo = _im2col_nhwc(x)
    y = pallas_linear(patches, w_mat, b_vec, relu=True)
    return y.reshape(B, Ho, Wo, -1)                    # stays NHWC — no transpose


# ---------------------------------------------------------------------------
# Deterministic parameter construction (shapes follow the module __init__).
# ---------------------------------------------------------------------------
def _init_linear(key, fan_in, fan_out):
    kw, kb = jax.random.split(key)
    w = jax.random.normal(kw, (fan_in, fan_out), jnp.float32) * jnp.sqrt(2.0 / fan_in)
    b = jax.random.normal(kb, (fan_out,), jnp.float32) * 0.01
    return w, b


def _init_conv(key, cin, cout, k=3):
    kw, kb = jax.random.split(key)
    w = jax.random.normal(kw, (cout, cin, k, k), jnp.float32) * jnp.sqrt(2.0 / (cin * k * k))
    b = jax.random.normal(kb, (cout,), jnp.float32) * 0.01
    return w, b


def init_sascl_params(key, *, image_size, set_size, conv_channels, conv_output_dim,
                      attr_heads, attr_net_hidden_dims, attr_output_dim,
                      rel_heads, rel_net_hidden_dims, attr_branches, total_rules):
    keys = jax.random.split(key, 2 + len(conv_channels) + attr_branches)
    ki = iter(keys)

    convs = [_init_conv(next(ki), conv_channels[i], conv_channels[i + 1])
             for i in range(len(conv_channels) - 1)]

    feat_hw = image_size
    for _ in range(len(conv_channels) - 1):
        feat_hw = (feat_hw + 2 - 3) // 2 + 1
    vision_lin = _init_linear(next(ki), conv_channels[-1] * feat_hw * feat_hw,
                              conv_output_dim)

    attr_in = conv_output_dim // attr_heads
    attr_out = attr_output_dim // attr_heads
    rel_in = set_size * (attr_output_dim // rel_heads)

    branches = []
    for _ in range(attr_branches):
        bkeys = jax.random.split(next(ki), 8)
        dims = [attr_in] + list(attr_net_hidden_dims) + [attr_out]
        attr_mlp = [_init_linear(bkeys[j], dims[j], dims[j + 1])
                    for j in range(len(dims) - 1)]
        rdims = [rel_in] + list(rel_net_hidden_dims)
        rel_mlp = [_init_linear(bkeys[4 + j], rdims[j], rdims[j + 1])
                   for j in range(len(rdims) - 1)]
        final = _init_linear(bkeys[7], rel_heads * rel_net_hidden_dims[-1], total_rules)
        branches.append(dict(attr_mlp=attr_mlp, rel_mlp=rel_mlp, final=final))

    config = dict(attr_heads=attr_heads, rel_heads=rel_heads,
                  attr_branches=attr_branches, total_rules=total_rules)
    return dict(convs=convs, vision_lin=vision_lin, branches=branches), config


# ---------------------------------------------------------------------------
# One-time weight preparation: BN fold, im2col weight layout, branch batching.
# ---------------------------------------------------------------------------
def _block_diag(mats):
    rows = sum(m.shape[0] for m in mats)
    cols = sum(m.shape[1] for m in mats)
    out = jnp.zeros((rows, cols), mats[0].dtype)
    r = c = 0
    for m in mats:
        out = out.at[r:r + m.shape[0], c:c + m.shape[1]].set(m)
        r += m.shape[0]
        c += m.shape[1]
    return out


def _batch_branch_mlp(per_branch_layers, first_layer_shared):
    """Pack per-branch [(w, b), ...] layer lists into single lane-dense layers."""
    n_layers = len(per_branch_layers[0])
    packed = []
    for li in range(n_layers):
        ws = [layers[li][0] for layers in per_branch_layers]
        bs = [layers[li][1] for layers in per_branch_layers]
        if li == 0 and first_layer_shared:
            w = jnp.concatenate(ws, axis=1)   # same input for every branch -> concat N
        else:
            w = _block_diag(ws)               # branch-blocked columns -> block-diagonal
        b = jnp.concatenate(bs, axis=0)
        packed.append((w.astype(jnp.bfloat16), b.astype(jnp.float32)))
    return packed


def prepare_sascl_params(params, bn_eps=1e-5):
    # BN eval-mode with default stats (gamma=1, beta=0, mean=0, var=1) folds to a
    # uniform 1/sqrt(1+eps) scale on conv weight and bias.
    scale = 1.0 / jnp.sqrt(1.0 + bn_eps)
    convs = []
    for w, b in params["convs"]:
        cout, cin, kh, kw = w.shape
        w_mat = jnp.transpose(w, (2, 3, 1, 0)).reshape(kh * kw * cin, cout)
        convs.append(((w_mat * scale).astype(jnp.bfloat16),
                      (b * scale).astype(jnp.float32)))

    wv, bv = params["vision_lin"]
    vision = (wv.astype(jnp.bfloat16), bv.astype(jnp.float32))

    branches = params["branches"]
    attr_mlp = _batch_branch_mlp([br["attr_mlp"] for br in branches], True)
    rel_mlp = _batch_branch_mlp([br["rel_mlp"] for br in branches], False)
    final = _batch_branch_mlp([[br["final"]] for br in branches], False)[0]
    return dict(convs=convs, vision_lin=vision,
                attr_mlp=attr_mlp, rel_mlp=rel_mlp, final=final)


# ---------------------------------------------------------------------------
# Forward pass (mirrors SASCL.forward; all branches computed in one pass).
# ---------------------------------------------------------------------------
def sascl_forward(prep, config, sets):
    # sets: (b, m, n, c, h, w) -> logits (b, m, attr_branches, total_rules)
    b, m, n, c, h, w = sets.shape
    attr_heads = config["attr_heads"]
    rel_heads = config["rel_heads"]
    nb = config["attr_branches"]

    # ---- vision ConvNet, NHWC end to end ----
    x = sets.reshape(b * m * n, c, h, w).transpose(0, 2, 3, 1).astype(jnp.float32)
    for w_mat, b_vec in prep["convs"]:
        x = conv_block_nhwc(x, w_mat, b_vec)
    # flatten in (C, Hf, Wf) order to match the NCHW .view of the reference
    x = x.transpose(0, 3, 1, 2).reshape(b * m * n, -1)
    wv, bv = prep["vision_lin"]
    features = pallas_linear(x, wv, bv, relu=False)          # (b*m*n, conv_output_dim)

    # ---- attribute scattering: attr_heads folded into M, branches into N ----
    z = features.reshape(b * m * n * attr_heads, -1)          # (rows, attr_in)
    n_attr = len(prep["attr_mlp"])
    for li, (wl, bl) in enumerate(prep["attr_mlp"]):
        z = pallas_linear(z, wl, bl, relu=(li < n_attr - 1))
    attr_out = z.shape[1] // nb
    attr_output_dim = attr_heads * attr_out
    per = attr_output_dim // rel_heads

    # ---- relation scattering: branch-blocked columns feed block-diag rel MLP ----
    t = z.reshape(b * m, n, attr_heads, nb, attr_out)
    t = jnp.moveaxis(t, 3, 2)                                 # (bm, n, nb, heads, k)
    t = t.reshape(b * m, n, nb, attr_output_dim)              # d = head*attr_out + k
    t = t.transpose(0, 2, 3, 1)                               # (bm, nb, d, n)
    t = t.reshape(b * m, nb, rel_heads, per, n)
    r = t.transpose(0, 2, 1, 3, 4).reshape(b * m * rel_heads, nb * per * n)
    n_rel = len(prep["rel_mlp"])
    for li, (wl, bl) in enumerate(prep["rel_mlp"]):
        r = pallas_linear(r, wl, bl, relu=(li < n_rel - 1))

    # ---- final rule heads, all branches block-diagonal ----
    rel_last = r.shape[1] // nb
    t = r.reshape(b * m, rel_heads, nb, rel_last)
    f_in = t.transpose(0, 2, 1, 3).reshape(b * m, nb * rel_heads * rel_last)
    wf, bf = prep["final"]
    logits = pallas_linear(f_in, wf, bf, relu=False)          # (b*m, nb*total_rules)
    return logits.reshape(b, m, nb, config["total_rules"])


# ---------------------------------------------------------------------------
if __name__ == "__main__":
    # Small shapes consistent with the module (spatial size scaled down 160 -> 32).
    image_size = 32
    set_size = 9
    b, m = 2, 3
    cfg = dict(image_size=image_size, set_size=set_size,
               conv_channels=[1, 16, 16, 32, 32, 32], conv_output_dim=80,
               attr_heads=10, attr_net_hidden_dims=[64], attr_output_dim=40,
               rel_heads=40, rel_net_hidden_dims=[23, 5],
               attr_branches=10, total_rules=4)

    key = jax.random.PRNGKey(0)
    pkey, dkey = jax.random.split(key)
    params, config = init_sascl_params(pkey, **cfg)
    prep = prepare_sascl_params(params)

    sets = jax.random.normal(dkey, (b, m, set_size, 1, image_size, image_size),
                             jnp.float32)

    fwd = jax.jit(lambda p, s: sascl_forward(p, config, s))
    logits = fwd(prep, sets)
    logits = jax.block_until_ready(logits)

    assert logits.shape == (b, m, cfg["attr_branches"], cfg["total_rules"]), logits.shape
    assert bool(jnp.all(jnp.isfinite(logits)))
    print("KERNEL_OK")
</pallas_src>

<mosaic_0001>
module attributes {stable_mosaic.version = 11 : i64} {
  func.func @_linear_kernel(%arg0: i32, %arg1: memref<512x9xbf16, #tpu.memory_space<vmem>>, %arg2: memref<9x16xbf16, #tpu.memory_space<vmem>>, %arg3: memref<1x16xf32, #tpu.memory_space<vmem>>, %arg4: memref<512x16xf32, #tpu.memory_space<vmem>>) attributes {dimension_semantics = [#tpu.dimension_semantics<parallel>], iteration_bounds = array<i64: 27>, scalar_prefetch = 0 : i64, scratch_operands = 0 : i64, tpu.core_type = #tpu.core_type<tc>, window_params = [{transform_indices = @transform_0, window_bounds = array<i64: 512, 9>}, {pipeline_mode = #tpu.pipeline_mode<synchronous>, transform_indices = @transform_1, window_bounds = array<i64: 9, 16>}, {pipeline_mode = #tpu.pipeline_mode<synchronous>, transform_indices = @transform_2, window_bounds = array<i64: 1, 16>}, {transform_indices = @transform_3, window_bounds = array<i64: 512, 16>}]} {
    %c0 = arith.constant 0 : index
    %c0_0 = arith.constant 0 : index
    %0 = vector.load %arg1[%c0, %c0_0] : memref<512x9xbf16, #tpu.memory_space<vmem>>, vector<512x9xbf16>
    %c0_1 = arith.constant 0 : index
    %c0_2 = arith.constant 0 : index
    %1 = vector.load %arg2[%c0_1, %c0_2] : memref<9x16xbf16, #tpu.memory_space<vmem>>, vector<9x16xbf16>
    %cst = arith.constant dense<0.000000e+00> : vector<512x16xf32>
    %2 = tpu.matmul %0, %1, %cst {dimension_numbers = #tpu.dot_dimension_numbers<[1], [0], [0], [1], [0, 0, 1, 1], [], []>} : vector<512x9xbf16>, vector<9x16xbf16>, vector<512x16xf32> -> vector<512x16xf32>
    %c0_3 = arith.constant 0 : index
    %c0_4 = arith.constant 0 : index
    %3 = vector.load %arg3[%c0_3, %c0_4] : memref<1x16xf32, #tpu.memory_space<vmem>>, vector<1x16xf32>
    %4 = vector.broadcast %3 : vector<1x16xf32> to vector<512x16xf32>
    %5 = arith.addf %2, %4 : vector<512x16xf32>
    %cst_5 = arith.constant 0.000000e+00 : f32
    %6 = vector.broadcast %cst_5 : f32 to vector<512x16xf32>
    %7 = arith.maximumf %5, %6 : vector<512x16xf32>
    %c0_6 = arith.constant 0 : index
    %c0_7 = arith.constant 0 : index
    %8 = vector.load %arg4[%c0_6, %c0_7] : memref<512x16xf32, #tpu.memory_space<vmem>>, vector<512x16xf32>
    tpu.vector_store %arg4[%c0_6, %c0_7], %7 {strides = array<i32>} : memref<512x16xf32, #tpu.memory_space<vmem>>, vector<512x16xf32>,
    return
  }
  func.func @transform_0(%arg0: i32) -> (i32, i32) {
    %c0_i32 = arith.constant 0 : i32
    %c0_i32_0 = arith.constant 0 : i32
    return %arg0, %c0_i32 : i32, i32
  }
  func.func @transform_1(%arg0: i32) -> (i32, i32) {
    %c0_i32 = arith.constant 0 : i32
    %c0_i32_0 = arith.constant 0 : i32
    %c0_i32_1 = arith.constant 0 : i32
    return %c0_i32, %c0_i32_0 : i32, i32
  }
  func.func @transform_2(%arg0: i32) -> (i32, i32) {
    %c0_i32 = arith.constant 0 : i32
    %c0_i32_0 = arith.constant 0 : i32
    %c0_i32_1 = arith.constant 0 : i32
    return %c0_i32, %c0_i32_0 : i32, i32
  }
  func.func @transform_3(%arg0: i32) -> (i32, i32) {
    %c0_i32 = arith.constant 0 : i32
    %c0_i32_0 = arith.constant 0 : i32
    return %arg0, %c0_i32 : i32, i32
  }
}

module attributes {stable_mosaic.version = 11 : i64} {
  func.func @_linear_kernel(%arg0: i32, %arg1: memref<512x144xbf16, #tpu.memory_space<vmem>>, %arg2: memref<144x16xbf16, #tpu.memory_space<vmem>>, %arg3: memref<1x16xf32, #tpu.memory_space<vmem>>, %arg4: memref<512x16xf32, #tpu.memory_space<vmem>>) attributes {dimension_semantics = [#tpu.dimension_semantics<parallel>], iteration_bounds = array<i64: 7>, scalar_prefetch = 0 : i64, scratch_operands = 0 : i64, tpu.core_type = #tpu.core_type<tc>, window_params = [{transform_indices = @transform_0, window_bounds = array<i64: 512, 144>}, {pipeline_mode = #tpu.pipeline_mode<synchronous>, transform_indices = @transform_1, window_bounds = array<i64: 144, 16>}, {pipeline_mode = #tpu.pipeline_mode<synchronous>, transform_indices = @transform_2, window_bounds = array<i64: 1, 16>}, {transform_indices = @transform_3, window_bounds = array<i64: 512, 16>}]} {
    %c0 = arith.constant 0 : index
    %c0_0 = arith.constant 0 : index
    %0 = vector.load %arg1[%c0, %c0_0] : memref<512x144xbf16, #tpu.memory_space<vmem>>, vector<512x144xbf16>
    %c0_1 = arith.constant 0 : index
    %c0_2 = arith.constant 0 : index
    %1 = vector.load %arg2[%c0_1, %c0_2] : memref<144x16xbf16, #tpu.memory_space<vmem>>, vector<144x16xbf16>
    %cst = arith.constant dense<0.000000e+00> : vector<512x16xf32>
    %2 = tpu.matmul %0, %1, %cst {dimension_numbers = #tpu.dot_dimension_numbers<[1], [0], [0], [1], [0, 0, 1, 1], [], []>} : vector<512x144xbf16>, vector<144x16xbf16>, vector<512x16xf32> -> vector<512x16xf32>
    %c0_3 = arith.constant 0 : index
    %c0_4 = arith.constant 0 : index
    %3 = vector.load %arg3[%c0_3, %c0_4] : memref<1x16xf32, #tpu.memory_space<vmem>>, vector<1x16xf32>
    %4 = vector.broadcast %3 : vector<1x16xf32> to vector<512x16xf32>
    %5 = arith.addf %2, %4 : vector<512x16xf32>
    %cst_5 = arith.constant 0.000000e+00 : f32
    %6 = vector.broadcast %cst_5 : f32 to vector<512x16xf32>
    %7 = arith.maximumf %5, %6 : vector<512x16xf32>
    %c0_6 = arith.constant 0 : index
    %c0_7 = arith.constant 0 : index
    %8 = vector.load %arg4[%c0_6, %c0_7] : memref<512x16xf32, #tpu.memory_space<vmem>>, vector<512x16xf32>
    tpu.vector_store %arg4[%c0_6, %c0_7], %7 {strides = array<i32>} : memref<512x16xf32, #tpu.memory_space<vmem>>, vector<512x16xf32>,
    return
  }
  func.func @transform_0(%arg0: i32) -> (i32, i32) {
    %c0_i32 = arith.constant 0 : i32
    %c0_i32_0 = arith.constant 0 : i32
    return %arg0, %c0_i32 : i32, i32
  }
  func.func @transform_1(%arg0: i32) -> (i32, i32) {
    %c0_i32 = arith.constant 0 : i32
    %c0_i32_0 = arith.constant 0 : i32
    %c0_i32_1 = arith.constant 0 : i32
    return %c0_i32, %c0_i32_0 : i32, i32
  }
  func.func @transform_2(%arg0: i32) -> (i32, i32) {
    %c0_i32 = arith.constant 0 : i32
    %c0_i32_0 = arith.constant 0 : i32
    %c0_i32_1 = arith.constant 0 : i32
    return %c0_i32, %c0_i32_0 : i32, i32
  }
  func.func @transform_3(%arg0: i32) -> (i32, i32) {
    %c0_i32 = arith.constant 0 : i32
    %c0_i32_0 = arith.constant 0 : i32
    return %arg0, %c0_i32 : i32, i32
  }
}

module attributes {stable_mosaic.version = 11 : i64} {
  func.func @_linear_kernel(%arg0: i32, %arg1: memref<512x144xbf16, #tpu.memory_space<vmem>>, %arg2: memref<144x32xbf16, #tpu.memory_space<vmem>>, %arg3: memref<1x32xf32, #tpu.memory_space<vmem>>, %arg4: memref<512x32xf32, #tpu.memory_space<vmem>>) attributes {dimension_semantics = [#tpu.dimension_semantics<parallel>], iteration_bounds = array<i64: 2>, scalar_prefetch = 0 : i64, scratch_operands = 0 : i64, tpu.core_type = #tpu.core_type<tc>, window_params = [{transform_indices = @transform_0, window_bounds = array<i64: 512, 144>}, {pipeline_mode = #tpu.pipeline_mode<synchronous>, transform_indices = @transform_1, window_bounds = array<i64: 144, 32>}, {pipeline_mode = #tpu.pipeline_mode<synchronous>, transform_indices = @transform_2, window_bounds = array<i64: 1, 32>}, {transform_indices = @transform_3, window_bounds = array<i64: 512, 32>}]} {
    %c0 = arith.constant 0 : index
    %c0_0 = arith.constant 0 : index
    %0 = vector.load %arg1[%c0, %c0_0] : memref<512x144xbf16, #tpu.memory_space<vmem>>, vector<512x144xbf16>
    %c0_1 = arith.constant 0 : index
    %c0_2 = arith.constant 0 : index
    %1 = vector.load %arg2[%c0_1, %c0_2] : memref<144x32xbf16, #tpu.memory_space<vmem>>, vector<144x32xbf16>
    %cst = arith.constant dense<0.000000e+00> : vector<512x32xf32>
    %2 = tpu.matmul %0, %1, %cst {dimension_numbers = #tpu.dot_dimension_numbers<[1], [0], [0], [1], [0, 0, 1, 1], [], []>} : vector<512x144xbf16>, vector<144x32xbf16>, vector<512x32xf32> -> vector<512x32xf32>
    %c0_3 = arith.constant 0 : index
    %c0_4 = arith.constant 0 : index
    %3 = vector.load %arg3[%c0_3, %c0_4] : memref<1x32xf32, #tpu.memory_space<vmem>>, vector<1x32xf32>
    %4 = vector.broadcast %3 : vector<1x32xf32> to vector<512x32xf32>
    %5 = arith.addf %2, %4 : vector<512x32xf32>
    %cst_5 = arith.constant 0.000000e+00 : f32
    %6 = vector.broadcast %cst_5 : f32 to vector<512x32xf32>
    %7 = arith.maximumf %5, %6 : vector<512x32xf32>
    %c0_6 = arith.constant 0 : index
    %c0_7 = arith.constant 0 : index
    %8 = vector.load %arg4[%c0_6, %c0_7] : memref<512x32xf32, #tpu.memory_space<vmem>>, vector<512x32xf32>
    tpu.vector_store %arg4[%c0_6, %c0_7], %7 {strides = array<i32>} : memref<512x32xf32, #tpu.memory_space<vmem>>, vector<512x32xf32>,
    return
  }
  func.func @transform_0(%arg0: i32) -> (i32, i32) {
    %c0_i32 = arith.constant 0 : i32
    %c0_i32_0 = arith.constant 0 : i32
    return %arg0, %c0_i32 : i32, i32
  }
  func.func @transform_1(%arg0: i32) -> (i32, i32) {
    %c0_i32 = arith.constant 0 : i32
    %c0_i32_0 = arith.constant 0 : i32
    %c0_i32_1 = arith.constant 0 : i32
    return %c0_i32, %c0_i32_0 : i32, i32
  }
  func.func @transform_2(%arg0: i32) -> (i32, i32) {
    %c0_i32 = arith.constant 0 : i32
    %c0_i32_0 = arith.constant 0 : i32
    %c0_i32_1 = arith.constant 0 : i32
    return %c0_i32, %c0_i32_0 : i32, i32
  }
  func.func @transform_3(%arg0: i32) -> (i32, i32) {
    %c0_i32 = arith.constant 0 : i32
    %c0_i32_0 = arith.constant 0 : i32
    return %arg0, %c0_i32 : i32, i32
  }
}

module attributes {stable_mosaic.version = 11 : i64} {
  func.func @_linear_kernel(%arg0: i32, %arg1: memref<224x288xbf16, #tpu.memory_space<vmem>>, %arg2: memref<288x32xbf16, #tpu.memory_space<vmem>>, %arg3: memref<1x32xf32, #tpu.memory_space<vmem>>, %arg4: memref<224x32xf32, #tpu.memory_space<vmem>>) attributes {dimension_semantics = [#tpu.dimension_semantics<parallel>], iteration_bounds = array<i64: 1>, scalar_prefetch = 0 : i64, scratch_operands = 0 : i64, tpu.core_type = #tpu.core_type<tc>, window_params = [{transform_indices = @transform_0, window_bounds = array<i64: 224, 288>}, {pipeline_mode = #tpu.pipeline_mode<synchronous>, transform_indices = @transform_1, window_bounds = array<i64: 288, 32>}, {pipeline_mode = #tpu.pipeline_mode<synchronous>, transform_indices = @transform_2, window_bounds = array<i64: 1, 32>}, {transform_indices = @transform_3, window_bounds = array<i64: 224, 32>}]} {
    %c0 = arith.constant 0 : index
    %c0_0 = arith.constant 0 : index
    %0 = vector.load %arg1[%c0, %c0_0] : memref<224x288xbf16, #tpu.memory_space<vmem>>, vector<224x288xbf16>
    %c0_1 = arith.constant 0 : index
    %c0_2 = arith.constant 0 : index
    %1 = vector.load %arg2[%c0_1, %c0_2] : memref<288x32xbf16, #tpu.memory_space<vmem>>, vector<288x32xbf16>
    %cst = arith.constant dense<0.000000e+00> : vector<224x32xf32>
    %2 = tpu.matmul %0, %1, %cst {dimension_numbers = #tpu.dot_dimension_numbers<[1], [0], [0], [1], [0, 0, 1, 1], [], []>} : vector<224x288xbf16>, vector<288x32xbf16>, vector<224x32xf32> -> vector<224x32xf32>
    %c0_3 = arith.constant 0 : index
    %c0_4 = arith.constant 0 : index
    %3 = vector.load %arg3[%c0_3, %c0_4] : memref<1x32xf32, #tpu.memory_space<vmem>>, vector<1x32xf32>
    %4 = vector.broadcast %3 : vector<1x32xf32> to vector<224x32xf32>
    %5 = arith.addf %2, %4 : vector<224x32xf32>
    %cst_5 = arith.constant 0.000000e+00 : f32
    %6 = vector.broadcast %cst_5 : f32 to vector<224x32xf32>
    %7 = arith.maximumf %5, %6 : vector<224x32xf32>
    %c0_6 = arith.constant 0 : index
    %c0_7 = arith.constant 0 : index
    %8 = vector.load %arg4[%c0_6, %c0_7] : memref<224x32xf32, #tpu.memory_space<vmem>>, vector<224x32xf32>
    tpu.vector_store %arg4[%c0_6, %c0_7], %7 {strides = array<i32>} : memref<224x32xf32, #tpu.memory_space<vmem>>, vector<224x32xf32>,
    return
  }
  func.func @transform_0(%arg0: i32) -> (i32, i32) {
    %c0_i32 = arith.constant 0 : i32
    %c0_i32_0 = arith.constant 0 : i32
    return %arg0, %c0_i32 : i32, i32
  }
  func.func @transform_1(%arg0: i32) -> (i32, i32) {
    %c0_i32 = arith.constant 0 : i32
    %c0_i32_0 = arith.constant 0 : i32
    %c0_i32_1 = arith.constant 0 : i32
    return %c0_i32, %c0_i32_0 : i32, i32
  }
  func.func @transform_2(%arg0: i32) -> (i32, i32) {
    %c0_i32 = arith.constant 0 : i32
    %c0_i32_0 = arith.constant 0 : i32
    %c0_i32_1 = arith.constant 0 : i32
    return %c0_i32, %c0_i32_0 : i32, i32
  }
  func.func @transform_3(%arg0: i32) -> (i32, i32) {
    %c0_i32 = arith.constant 0 : i32
    %c0_i32_0 = arith.constant 0 : i32
    return %arg0, %c0_i32 : i32, i32
  }
}

module attributes {stable_mosaic.version = 11 : i64} {
  func.func @_linear_kernel(%arg0: i32, %arg1: memref<64x288xbf16, #tpu.memory_space<vmem>>, %arg2: memref<288x32xbf16, #tpu.memory_space<vmem>>, %arg3: memref<1x32xf32, #tpu.memory_space<vmem>>, %arg4: memref<64x32xf32, #tpu.memory_space<vmem>>) attributes {dimension_semantics = [#tpu.dimension_semantics<parallel>], iteration_bounds = array<i64: 1>, scalar_prefetch = 0 : i64, scratch_operands = 0 : i64, tpu.core_type = #tpu.core_type<tc>, window_params = [{transform_indices = @transform_0, window_bounds = array<i64: 64, 288>}, {pipeline_mode = #tpu.pipeline_mode<synchronous>, transform_indices = @transform_1, window_bounds = array<i64: 288, 32>}, {pipeline_mode = #tpu.pipeline_mode<synchronous>, transform_indices = @transform_2, window_bounds = array<i64: 1, 32>}, {transform_indices = @transform_3, window_bounds = array<i64: 64, 32>}]} {
    %c0 = arith.constant 0 : index
    %c0_0 = arith.constant 0 : index
    %0 = vector.load %arg1[%c0, %c0_0] : memref<64x288xbf16, #tpu.memory_space<vmem>>, vector<64x288xbf16>
    %c0_1 = arith.constant 0 : index
    %c0_2 = arith.constant 0 : index
    %1 = vector.load %arg2[%c0_1, %c0_2] : memref<288x32xbf16, #tpu.memory_space<vmem>>, vector<288x32xbf16>
    %cst = arith.constant dense<0.000000e+00> : vector<64x32xf32>
    %2 = tpu.matmul %0, %1, %cst {dimension_numbers = #tpu.dot_dimension_numbers<[1], [0], [0], [1], [0, 0, 1, 1], [], []>} : vector<64x288xbf16>, vector<288x32xbf16>, vector<64x32xf32> -> vector<64x32xf32>
    %c0_3 = arith.constant 0 : index
    %c0_4 = arith.constant 0 : index
    %3 = vector.load %arg3[%c0_3, %c0_4] : memref<1x32xf32, #tpu.memory_space<vmem>>, vector<1x32xf32>
    %4 = vector.broadcast %3 : vector<1x32xf32> to vector<64x32xf32>
    %5 = arith.addf %2, %4 : vector<64x32xf32>
    %cst_5 = arith.constant 0.000000e+00 : f32
    %6 = vector.broadcast %cst_5 : f32 to vector<64x32xf32>
    %7 = arith.maximumf %5, %6 : vector<64x32xf32>
    %c0_6 = arith.constant 0 : index
    %c0_7 = arith.constant 0 : index
    %8 = vector.load %arg4[%c0_6, %c0_7] : memref<64x32xf32, #tpu.memory_space<vmem>>, vector<64x32xf32>
    tpu.vector_store %arg4[%c0_6, %c0_7], %7 {strides = array<i32>} : memref<64x32xf32, #tpu.memory_space<vmem>>, vector<64x32xf32>,
    return
  }
  func.func @transform_0(%arg0: i32) -> (i32, i32) {
    %c0_i32 = arith.constant 0 : i32
    %c0_i32_0 = arith.constant 0 : i32
    return %arg0, %c0_i32 : i32, i32
  }
  func.func @transform_1(%arg0: i32) -> (i32, i32) {
    %c0_i32 = arith.constant 0 : i32
    %c0_i32_0 = arith.constant 0 : i32
    %c0_i32_1 = arith.constant 0 : i32
    return %c0_i32, %c0_i32_0 : i32, i32
  }
  func.func @transform_2(%arg0: i32) -> (i32, i32) {
    %c0_i32 = arith.constant 0 : i32
    %c0_i32_0 = arith.constant 0 : i32
    %c0_i32_1 = arith.constant 0 : i32
    return %c0_i32, %c0_i32_0 : i32, i32
  }
  func.func @transform_3(%arg0: i32) -> (i32, i32) {
    %c0_i32 = arith.constant 0 : i32
    %c0_i32_0 = arith.constant 0 : i32
    return %arg0, %c0_i32 : i32, i32
  }
}

module attributes {stable_mosaic.version = 11 : i64} {
  func.func @_linear_kernel(%arg0: i32, %arg1: memref<64x32xbf16, #tpu.memory_space<vmem>>, %arg2: memref<32x80xbf16, #tpu.memory_space<vmem>>, %arg3: memref<1x80xf32, #tpu.memory_space<vmem>>, %arg4: memref<64x80xf32, #tpu.memory_space<vmem>>) attributes {dimension_semantics = [#tpu.dimension_semantics<parallel>], iteration_bounds = array<i64: 1>, scalar_prefetch = 0 : i64, scratch_operands = 0 : i64, tpu.core_type = #tpu.core_type<tc>, window_params = [{transform_indices = @transform_0, window_bounds = array<i64: 64, 32>}, {pipeline_mode = #tpu.pipeline_mode<synchronous>, transform_indices = @transform_1, window_bounds = array<i64: 32, 80>}, {pipeline_mode = #tpu.pipeline_mode<synchronous>, transform_indices = @transform_2, window_bounds = array<i64: 1, 80>}, {transform_indices = @transform_3, window_bounds = array<i64: 64, 80>}]} {
    %c0 = arith.constant 0 : index
    %c0_0 = arith.constant 0 : index
    %0 = vector.load %arg1[%c0, %c0_0] : memref<64x32xbf16, #tpu.memory_space<vmem>>, vector<64x32xbf16>
    %c0_1 = arith.constant 0 : index
    %c0_2 = arith.constant 0 : index
    %1 = vector.load %arg2[%c0_1, %c0_2] : memref<32x80xbf16, #tpu.memory_space<vmem>>, vector<32x80xbf16>
    %cst = arith.constant dense<0.000000e+00> : vector<64x80xf32>
    %2 = tpu.matmul %0, %1, %cst {dimension_numbers = #tpu.dot_dimension_numbers<[1], [0], [0], [1], [0, 0, 1, 1], [], []>} : vector<64x32xbf16>, vector<32x80xbf16>, vector<64x80xf32> -> vector<64x80xf32>
    %c0_3 = arith.constant 0 : index
    %c0_4 = arith.constant 0 : index
    %3 = vector.load %arg3[%c0_3, %c0_4] : memref<1x80xf32, #tpu.memory_space<vmem>>, vector<1x80xf32>
    %4 = vector.broadcast %3 : vector<1x80xf32> to vector<64x80xf32>
    %5 = arith.addf %2, %4 : vector<64x80xf32>
    %c0_5 = arith.constant 0 : index
    %c0_6 = arith.constant 0 : index
    %6 = vector.load %arg4[%c0_5, %c0_6] : memref<64x80xf32, #tpu.memory_space<vmem>>, vector<64x80xf32>
    tpu.vector_store %arg4[%c0_5, %c0_6], %5 {strides = array<i32>} : memref<64x80xf32, #tpu.memory_space<vmem>>, vector<64x80xf32>,
    return
  }
  func.func @transform_0(%arg0: i32) -> (i32, i32) {
    %c0_i32 = arith.constant 0 : i32
    %c0_i32_0 = arith.constant 0 : i32
    return %arg0, %c0_i32 : i32, i32
  }
  func.func @transform_1(%arg0: i32) -> (i32, i32) {
    %c0_i32 = arith.constant 0 : i32
    %c0_i32_0 = arith.constant 0 : i32
    %c0_i32_1 = arith.constant 0 : i32
    return %c0_i32, %c0_i32_0 : i32, i32
  }
  func.func @transform_2(%arg0: i32) -> (i32, i32) {
    %c0_i32 = arith.constant 0 : i32
    %c0_i32_0 = arith.constant 0 : i32
    %c0_i32_1 = arith.constant 0 : i32
    return %c0_i32, %c0_i32_0 : i32, i32
  }
  func.func @transform_3(%arg0: i32) -> (i32, i32) {
    %c0_i32 = arith.constant 0 : i32
    %c0_i32_0 = arith.constant 0 : i32
    return %arg0, %c0_i32 : i32, i32
  }
}

module attributes {stable_mosaic.version = 11 : i64} {
  func.func @_linear_kernel(%arg0: i32, %arg1: memref<512x8xbf16, #tpu.memory_space<vmem>>, %arg2: memref<8x640xbf16, #tpu.memory_space<vmem>>, %arg3: memref<1x640xf32, #tpu.memory_space<vmem>>, %arg4: memref<512x640xf32, #tpu.memory_space<vmem>>) attributes {dimension_semantics = [#tpu.dimension_semantics<parallel>], iteration_bounds = array<i64: 2>, scalar_prefetch = 0 : i64, scratch_operands = 0 : i64, tpu.core_type = #tpu.core_type<tc>, window_params = [{transform_indices = @transform_0, window_bounds = array<i64: 512, 8>}, {pipeline_mode = #tpu.pipeline_mode<synchronous>, transform_indices = @transform_1, window_bounds = array<i64: 8, 640>}, {pipeline_mode = #tpu.pipeline_mode<synchronous>, transform_indices = @transform_2, window_bounds = array<i64: 1, 640>}, {transform_indices = @transform_3, window_bounds = array<i64: 512, 640>}]} {
    %c0 = arith.constant 0 : index
    %c0_0 = arith.constant 0 : index
    %0 = vector.load %arg1[%c0, %c0_0] : memref<512x8xbf16, #tpu.memory_space<vmem>>, vector<512x8xbf16>
    %c0_1 = arith.constant 0 : index
    %c0_2 = arith.constant 0 : index
    %1 = vector.load %arg2[%c0_1, %c0_2] : memref<8x640xbf16, #tpu.memory_space<vmem>>, vector<8x640xbf16>
    %cst = arith.constant dense<0.000000e+00> : vector<512x640xf32>
    %2 = tpu.matmul %0, %1, %cst {dimension_numbers = #tpu.dot_dimension_numbers<[1], [0], [0], [1], [0, 0, 1, 1], [], []>} : vector<512x8xbf16>, vector<8x640xbf16>, vector<512x640xf32> -> vector<512x640xf32>
    %c0_3 = arith.constant 0 : index
    %c0_4 = arith.constant 0 : index
    %3 = vector.load %arg3[%c0_3, %c0_4] : memref<1x640xf32, #tpu.memory_space<vmem>>, vector<1x640xf32>
    %4 = vector.broadcast %3 : vector<1x640xf32> to vector<512x640xf32>
    %5 = arith.addf %2, %4 : vector<512x640xf32>
    %cst_5 = arith.constant 0.000000e+00 : f32
    %6 = vector.broadcast %cst_5 : f32 to vector<512x640xf32>
    %7 = arith.maximumf %5, %6 : vector<512x640xf32>
    %c0_6 = arith.constant 0 : index
    %c0_7 = arith.constant 0 : index
    %8 = vector.load %arg4[%c0_6, %c0_7] : memref<512x640xf32, #tpu.memory_space<vmem>>, vector<512x640xf32>
    tpu.vector_store %arg4[%c0_6, %c0_7], %7 {strides = array<i32>} : memref<512x640xf32, #tpu.memory_space<vmem>>, vector<512x640xf32>,
    return
  }
  func.func @transform_0(%arg0: i32) -> (i32, i32) {
    %c0_i32 = arith.constant 0 : i32
    %c0_i32_0 = arith.constant 0 : i32
    return %arg0, %c0_i32 : i32, i32
  }
  func.func @transform_1(%arg0: i32) -> (i32, i32) {
    %c0_i32 = arith.constant 0 : i32
    %c0_i32_0 = arith.constant 0 : i32
    %c0_i32_1 = arith.constant 0 : i32
    return %c0_i32, %c0_i32_0 : i32, i32
  }
  func.func @transform_2(%arg0: i32) -> (i32, i32) {
    %c0_i32 = arith.constant 0 : i32
    %c0_i32_0 = arith.constant 0 : i32
    %c0_i32_1 = arith.constant 0 : i32
    return %c0_i32, %c0_i32_0 : i32, i32
  }
  func.func @transform_3(%arg0: i32) -> (i32, i32) {
    %c0_i32 = arith.constant 0 : i32
    %c0_i32_0 = arith.constant 0 : i32
    return %arg0, %c0_i32 : i32, i32
  }
}

module attributes {stable_mosaic.version = 11 : i64} {
  func.func @_linear_kernel(%arg0: i32, %arg1: memref<512x640xbf16, #tpu.memory_space<vmem>>, %arg2: memref<640x40xbf16, #tpu.memory_space<vmem>>, %arg3: memref<1x40xf32, #tpu.memory_space<vmem>>, %arg4: memref<512x40xf32, #tpu.memory_space<vmem>>) attributes {dimension_semantics = [#tpu.dimension_semantics<parallel>], iteration_bounds = array<i64: 2>, scalar_prefetch = 0 : i64, scratch_operands = 0 : i64, tpu.core_type = #tpu.core_type<tc>, window_params = [{transform_indices = @transform_0, window_bounds = array<i64: 512, 640>}, {pipeline_mode = #tpu.pipeline_mode<synchronous>, transform_indices = @transform_1, window_bounds = array<i64: 640, 40>}, {pipeline_mode = #tpu.pipeline_mode<synchronous>, transform_indices = @transform_2, window_bounds = array<i64: 1, 40>}, {transform_indices = @transform_3, window_bounds = array<i64: 512, 40>}]} {
    %c0 = arith.constant 0 : index
    %c0_0 = arith.constant 0 : index
    %0 = vector.load %arg1[%c0, %c0_0] : memref<512x640xbf16, #tpu.memory_space<vmem>>, vector<512x640xbf16>
    %c0_1 = arith.constant 0 : index
    %c0_2 = arith.constant 0 : index
    %1 = vector.load %arg2[%c0_1, %c0_2] : memref<640x40xbf16, #tpu.memory_space<vmem>>, vector<640x40xbf16>
    %cst = arith.constant dense<0.000000e+00> : vector<512x40xf32>
    %2 = tpu.matmul %0, %1, %cst {dimension_numbers = #tpu.dot_dimension_numbers<[1], [0], [0], [1], [0, 0, 1, 1], [], []>} : vector<512x640xbf16>, vector<640x40xbf16>, vector<512x40xf32> -> vector<512x40xf32>
    %c0_3 = arith.constant 0 : index
    %c0_4 = arith.constant 0 : index
    %3 = vector.load %arg3[%c0_3, %c0_4] : memref<1x40xf32, #tpu.memory_space<vmem>>, vector<1x40xf32>
    %4 = vector.broadcast %3 : vector<1x40xf32> to vector<512x40xf32>
    %5 = arith.addf %2, %4 : vector<512x40xf32>
    %c0_5 = arith.constant 0 : index
    %c0_6 = arith.constant 0 : index
    %6 = vector.load %arg4[%c0_5, %c0_6] : memref<512x40xf32, #tpu.memory_space<vmem>>, vector<512x40xf32>
    tpu.vector_store %arg4[%c0_5, %c0_6], %5 {strides = array<i32>} : memref<512x40xf32, #tpu.memory_space<vmem>>, vector<512x40xf32>,
    return
  }
  func.func @transform_0(%arg0: i32) -> (i32, i32) {
    %c0_i32 = arith.constant 0 : i32
    %c0_i32_0 = arith.constant 0 : i32
    return %arg0, %c0_i32 : i32, i32
  }
  func.func @transform_1(%arg0: i32) -> (i32, i32) {
    %c0_i32 = arith.constant 0 : i32
    %c0_i32_0 = arith.constant 0 : i32
    %c0_i32_1 = arith.constant 0 : i32
    return %c0_i32, %c0_i32_0 : i32, i32
  }
  func.func @transform_2(%arg0: i32) -> (i32, i32) {
    %c0_i32 = arith.constant 0 : i32
    %c0_i32_0 = arith.constant 0 : i32
    %c0_i32_1 = arith.constant 0 : i32
    return %c0_i32, %c0_i32_0 : i32, i32
  }
  func.func @transform_3(%arg0: i32) -> (i32, i32) {
    %c0_i32 = arith.constant 0 : i32
    %c0_i32_0 = arith.constant 0 : i32
    return %arg0, %c0_i32 : i32, i32
  }
}

module attributes {stable_mosaic.version = 11 : i64} {
  func.func @_linear_kernel(%arg0: i32, %arg1: memref<240x90xbf16, #tpu.memory_space<vmem>>, %arg2: memref<90x230xbf16, #tpu.memory_space<vmem>>, %arg3: memref<1x230xf32, #tpu.memory_space<vmem>>, %arg4: memref<240x230xf32, #tpu.memory_space<vmem>>) attributes {dimension_semantics = [#tpu.dimension_semantics<parallel>], iteration_bounds = array<i64: 1>, scalar_prefetch = 0 : i64, scratch_operands = 0 : i64, tpu.core_type = #tpu.core_type<tc>, window_params = [{transform_indices = @transform_0, window_bounds = array<i64: 240, 90>}, {pipeline_mode = #tpu.pipeline_mode<synchronous>, transform_indices = @transform_1, window_bounds = array<i64: 90, 230>}, {pipeline_mode = #tpu.pipeline_mode<synchronous>, transform_indices = @transform_2, window_bounds = array<i64: 1, 230>}, {transform_indices = @transform_3, window_bounds = array<i64: 240, 230>}]} {
    %c0 = arith.constant 0 : index
    %c0_0 = arith.constant 0 : index
    %0 = vector.load %arg1[%c0, %c0_0] : memref<240x90xbf16, #tpu.memory_space<vmem>>, vector<240x90xbf16>
    %c0_1 = arith.constant 0 : index
    %c0_2 = arith.constant 0 : index
    %1 = vector.load %arg2[%c0_1, %c0_2] : memref<90x230xbf16, #tpu.memory_space<vmem>>, vector<90x230xbf16>
    %cst = arith.constant dense<0.000000e+00> : vector<240x230xf32>
    %2 = tpu.matmul %0, %1, %cst {dimension_numbers = #tpu.dot_dimension_numbers<[1], [0], [0], [1], [0, 0, 1, 1], [], []>} : vector<240x90xbf16>, vector<90x230xbf16>, vector<240x230xf32> -> vector<240x230xf32>
    %c0_3 = arith.constant 0 : index
    %c0_4 = arith.constant 0 : index
    %3 = vector.load %arg3[%c0_3, %c0_4] : memref<1x230xf32, #tpu.memory_space<vmem>>, vector<1x230xf32>
    %4 = vector.broadcast %3 : vector<1x230xf32> to vector<240x230xf32>
    %5 = arith.addf %2, %4 : vector<240x230xf32>
    %cst_5 = arith.constant 0.000000e+00 : f32
    %6 = vector.broadcast %cst_5 : f32 to vector<240x230xf32>
    %7 = arith.maximumf %5, %6 : vector<240x230xf32>
    %c0_6 = arith.constant 0 : index
    %c0_7 = arith.constant 0 : index
    %8 = vector.load %arg4[%c0_6, %c0_7] : memref<240x230xf32, #tpu.memory_space<vmem>>, vector<240x230xf32>
    tpu.vector_store %arg4[%c0_6, %c0_7], %7 {strides = array<i32>} : memref<240x230xf32, #tpu.memory_space<vmem>>, vector<240x230xf32>,
    return
  }
  func.func @transform_0(%arg0: i32) -> (i32, i32) {
    %c0_i32 = arith.constant 0 : i32
    %c0_i32_0 = arith.constant 0 : i32
    return %arg0, %c0_i32 : i32, i32
  }
  func.func @transform_1(%arg0: i32) -> (i32, i32) {
    %c0_i32 = arith.constant 0 : i32
    %c0_i32_0 = arith.constant 0 : i32
    %c0_i32_1 = arith.constant 0 : i32
    return %c0_i32, %c0_i32_0 : i32, i32
  }
  func.func @transform_2(%arg0: i32) -> (i32, i32) {
    %c0_i32 = arith.constant 0 : i32
    %c0_i32_0 = arith.constant 0 : i32
    %c0_i32_1 = arith.constant 0 : i32
    return %c0_i32, %c0_i32_0 : i32, i32
  }
  func.func @transform_3(%arg0: i32) -> (i32, i32) {
    %c0_i32 = arith.constant 0 : i32
    %c0_i32_0 = arith.constant 0 : i32
    return %arg0, %c0_i32 : i32, i32
  }
}

module attributes {stable_mosaic.version = 11 : i64} {
  func.func @_linear_kernel(%arg0: i32, %arg1: memref<240x230xbf16, #tpu.memory_space<vmem>>, %arg2: memref<230x50xbf16, #tpu.memory_space<vmem>>, %arg3: memref<1x50xf32, #tpu.memory_space<vmem>>, %arg4: memref<240x50xf32, #tpu.memory_space<vmem>>) attributes {dimension_semantics = [#tpu.dimension_semantics<parallel>], iteration_bounds = array<i64: 1>, scalar_prefetch = 0 : i64, scratch_operands = 0 : i64, tpu.core_type = #tpu.core_type<tc>, window_params = [{transform_indices = @transform_0, window_bounds = array<i64: 240, 230>}, {pipeline_mode = #tpu.pipeline_mode<synchronous>, transform_indices = @transform_1, window_bounds = array<i64: 230, 50>}, {pipeline_mode = #tpu.pipeline_mode<synchronous>, transform_indices = @transform_2, window_bounds = array<i64: 1, 50>}, {transform_indices = @transform_3, window_bounds = array<i64: 240, 50>}]} {
    %c0 = arith.constant 0 : index
    %c0_0 = arith.constant 0 : index
    %0 = vector.load %arg1[%c0, %c0_0] : memref<240x230xbf16, #tpu.memory_space<vmem>>, vector<240x230xbf16>
    %c0_1 = arith.constant 0 : index
    %c0_2 = arith.constant 0 : index
    %1 = vector.load %arg2[%c0_1, %c0_2] : memref<230x50xbf16, #tpu.memory_space<vmem>>, vector<230x50xbf16>
    %cst = arith.constant dense<0.000000e+00> : vector<240x50xf32>
    %2 = tpu.matmul %0, %1, %cst {dimension_numbers = #tpu.dot_dimension_numbers<[1], [0], [0], [1], [0, 0, 1, 1], [], []>} : vector<240x230xbf16>, vector<230x50xbf16>, vector<240x50xf32> -> vector<240x50xf32>
    %c0_3 = arith.constant 0 : index
    %c0_4 = arith.constant 0 : index
    %3 = vector.load %arg3[%c0_3, %c0_4] : memref<1x50xf32, #tpu.memory_space<vmem>>, vector<1x50xf32>
    %4 = vector.broadcast %3 : vector<1x50xf32> to vector<240x50xf32>
    %5 = arith.addf %2, %4 : vector<240x50xf32>
    %c0_5 = arith.constant 0 : index
    %c0_6 = arith.constant 0 : index
    %6 = vector.load %arg4[%c0_5, %c0_6] : memref<240x50xf32, #tpu.memory_space<vmem>>, vector<240x50xf32>
    tpu.vector_store %arg4[%c0_5, %c0_6], %5 {strides = array<i32>} : memref<240x50xf32, #tpu.memory_space<vmem>>, vector<240x50xf32>,
    return
  }
  func.func @transform_0(%arg0: i32) -> (i32, i32) {
    %c0_i32 = arith.constant 0 : i32
    %c0_i32_0 = arith.constant 0 : i32
    return %arg0, %c0_i32 : i32, i32
  }
  func.func @transform_1(%arg0: i32) -> (i32, i32) {
    %c0_i32 = arith.constant 0 : i32
    %c0_i32_0 = arith.constant 0 : i32
    %c0_i32_1 = arith.constant 0 : i32
    return %c0_i32, %c0_i32_0 : i32, i32
  }
  func.func @transform_2(%arg0: i32) -> (i32, i32) {
    %c0_i32 = arith.constant 0 : i32
    %c0_i32_0 = arith.constant 0 : i32
    %c0_i32_1 = arith.constant 0 : i32
    return %c0_i32, %c0_i32_0 : i32, i32
  }
  func.func @transform_3(%arg0: i32) -> (i32, i32) {
    %c0_i32 = arith.constant 0 : i32
    %c0_i32_0 = arith.constant 0 : i32
    return %arg0, %c0_i32 : i32, i32
  }
}

module attributes {stable_mosaic.version = 11 : i64} {
  func.func @_linear_kernel(%arg0: i32, %arg1: memref<16x2000xbf16, #tpu.memory_space<vmem>>, %arg2: memref<2000x40xbf16, #tpu.memory_space<vmem>>, %arg3: memref<1x40xf32, #tpu.memory_space<vmem>>, %arg4: memref<16x40xf32, #tpu.memory_space<vmem>>) attributes {dimension_semantics = [#tpu.dimension_semantics<parallel>], iteration_bounds = array<i64: 1>, scalar_prefetch = 0 : i64, scratch_operands = 0 : i64, tpu.core_type = #tpu.core_type<tc>, window_params = [{transform_indices = @transform_0, window_bounds = array<i64: 16, 2000>}, {pipeline_mode = #tpu.pipeline_mode<synchronous>, transform_indices = @transform_1, window_bounds = array<i64: 2000, 40>}, {pipeline_mode = #tpu.pipeline_mode<synchronous>, transform_indices = @transform_2, window_bounds = array<i64: 1, 40>}, {transform_indices = @transform_3, window_bounds = array<i64: 16, 40>}]} {
    %c0 = arith.constant 0 : index
    %c0_0 = arith.constant 0 : index
    %0 = vector.load %arg1[%c0, %c0_0] : memref<16x2000xbf16, #tpu.memory_space<vmem>>, vector<16x2000xbf16>
    %c0_1 = arith.constant 0 : index
    %c0_2 = arith.constant 0 : index
    %1 = vector.load %arg2[%c0_1, %c0_2] : memref<2000x40xbf16, #tpu.memory_space<vmem>>, vector<2000x40xbf16>
    %cst = arith.constant dense<0.000000e+00> : vector<16x40xf32>
    %2 = tpu.matmul %0, %1, %cst {dimension_numbers = #tpu.dot_dimension_numbers<[1], [0], [0], [1], [0, 0, 1, 1], [], []>} : vector<16x2000xbf16>, vector<2000x40xbf16>, vector<16x40xf32> -> vector<16x40xf32>
    %c0_3 = arith.constant 0 : index
    %c0_4 = arith.constant 0 : index
    %3 = vector.load %arg3[%c0_3, %c0_4] : memref<1x40xf32, #tpu.memory_space<vmem>>, vector<1x40xf32>
    %4 = vector.broadcast %3 : vector<1x40xf32> to vector<16x40xf32>
    %5 = arith.addf %2, %4 : vector<16x40xf32>
    %c0_5 = arith.constant 0 : index
    %c0_6 = arith.constant 0 : index
    %6 = vector.load %arg4[%c0_5, %c0_6] : memref<16x40xf32, #tpu.memory_space<vmem>>, vector<16x40xf32>
    tpu.vector_store %arg4[%c0_5, %c0_6], %5 {strides = array<i32>} : memref<16x40xf32, #tpu.memory_space<vmem>>, vector<16x40xf32>,
    return
  }
  func.func @transform_0(%arg0: i32) -> (i32, i32) {
    %c0_i32 = arith.constant 0 : i32
    %c0_i32_0 = arith.constant 0 : i32
    return %arg0, %c0_i32 : i32, i32
  }
  func.func @transform_1(%arg0: i32) -> (i32, i32) {
    %c0_i32 = arith.constant 0 : i32
    %c0_i32_0 = arith.constant 0 : i32
    %c0_i32_1 = arith.constant 0 : i32
    return %c0_i32, %c0_i32_0 : i32, i32
  }
  func.func @transform_2(%arg0: i32) -> (i32, i32) {
    %c0_i32 = arith.constant 0 : i32
    %c0_i32_0 = arith.constant 0 : i32
    %c0_i32_1 = arith.constant 0 : i32
    return %c0_i32, %c0_i32_0 : i32, i32
  }
  func.func @transform_3(%arg0: i32) -> (i32, i32) {
    %c0_i32 = arith.constant 0 : i32
    %c0_i32_0 = arith.constant 0 : i32
    return %arg0, %c0_i32 : i32, i32
  }
}

</mosaic_0001>

<llo_original>
// kernel: _lambda_.11
$region0: #{_lambda_.11}
  #allocation0 [shape = 'u32[]', space=smem, size = 0x4, offset = 0x4, fixed_abs, tag = 'smem constant byte address 0x4 - core index']
  #allocation1 [shape = 'u32[144,128]{1,0:T(1,128)}', space=vmem, size = 0x12000, scoped, tag = 'internal scratch']
  %s0 = inlined_call_operand.vmem [shape: bf16[13824,9], index: 0, kind: input, shape index: {}]
  %s1 = inlined_call_operand.vmem [shape: bf16[9,16], index: 1, kind: input, shape index: {}]
  %s2 = inlined_call_operand.vmem [shape: f32[1,16], index: 2, kind: input, shape index: {}]
  %s3 = inlined_call_operand.vmem [shape: f32[13824,16], index: 3, kind: output, shape index: {}]
  %s4 = sld [smem:[#allocation0]]
  $region45: #{_lambda_.11} parent=0
    _
  %s6 = ssub.s32 1, %s4
  %s7 = scalar_select 0, %s6, %s4
  loop: start=0, step=1, limit=29
  $region2: #{_lambda_.11} parent=0 // loop_pre_header
    _
  $region3: #{_lambda_.11} parent=0 // loop_header
    %s9 = sphi 0, %s13
    %p10 = scmp.ge.s32.totalorder %s9, 29
    %s19 = sphi 0, %s21
    %s22 = sphi 0, %s19
    %s23 = sphi 0, %s22
    %s39 = sphi 0, %s23
    %s43 = sphi 0, %s43
    %s45 = sphi 0, %s43
    %s46 = sphi 0, %s45
    %s60 = sphi 0, %s46
    %s64 = sphi 0, %s64
    %s66 = sphi 0, %s64
    %s67 = sphi 0, %s66
    %s81 = sphi 0, %s67
    %s87 = sphi 0, %s89
    %s90 = sphi 0, %s87
    %s91 = sphi 0, %s90
    %s107 = sphi 0, %s91
  $region4: #{_lambda_.11} parent=0 // loop_header_branch
    %12 = sbr.rel (%p10) target = $region8
  $region5: #{_lambda_.11} parent=0 // loop_body
    %s14 = ssub.s32 %s9, 1
    %s15 = ssub.s32 %s9, 2
    %s16 = sadd.s32 %s9, 1
    %s17 = ssub.s32 %s9, %s16
    %p18 = scmp.eq.s32.totalorder %s17, 0
    %s20 = sadd.s32 %s19, 1
    %s21 = scalar_select %p18, %s19, %s20
    %p24 = pneg %p18
    %p25 = scmp.eq.s32.totalorder %s9, 26
    %p26 = por %p24, %p25
    %p27 = scmp.ne.s32.totalorder %s19, %s22
    %p28 = scmp.eq.s32.totalorder %s9, 0
    %p29 = por %p27, %p28
    %p30 = scmp.ne.s32.totalorder %s19, %s22
    %p31 = scmp.eq.s32.totalorder %s14, 26
    %p32 = por %p30, %p31
    %p33 = scmp.ne.s32.totalorder %s22, %s23
    %p34 = scmp.eq.s32.totalorder %s14, 0
    %p35 = por %p33, %p34
    %p36 = scmp.ne.s32.totalorder %s22, %s23
    %p37 = scmp.eq.s32.totalorder %s15, 26
    %p38 = por %p36, %p37
    %p40 = scmp.ne.s32.totalorder %s23, %s39
    %p41 = scmp.eq.s32.totalorder %s15, 0
    %p42 = por %p40, %p41
    %s44 = sadd.s32 %s43, 1
    %p47 = scmp.eq.s32.totalorder %s9, 26
    %p48 = scmp.ne.s32.totalorder %s43, %s45
    %p49 = scmp.eq.s32.totalorder %s9, 0
    %p50 = por %p48, %p49
    %p51 = scmp.ne.s32.totalorder %s43, %s45
    %p52 = scmp.eq.s32.totalorder %s14, 26
    %p53 = por %p51, %p52
    %p54 = scmp.ne.s32.totalorder %s45, %s46
    %p55 = scmp.eq.s32.totalorder %s14, 0
    %p56 = por %p54, %p55
    %p57 = scmp.ne.s32.totalorder %s45, %s46
    %p58 = scmp.eq.s32.totalorder %s15, 26
    %p59 = por %p57, %p58
    %p61 = scmp.ne.s32.totalorder %s46, %s60
    %p62 = scmp.eq.s32.totalorder %s15, 0
    %p63 = por %p61, %p62
    %s65 = sadd.s32 %s64, 1
    %p68 = scmp.eq.s32.totalorder %s9, 26
    %p69 = scmp.ne.s32.totalorder %s64, %s66
    %p70 = scmp.eq.s32.totalorder %s9, 0
    %p71 = por %p69, %p70
    %p72 = scmp.ne.s32.totalorder %s64, %s66
    %p73 = scmp.eq.s32.totalorder %s14, 26
    %p74 = por %p72, %p73
    %p75 = scmp.ne.s32.totalorder %s66, %s67
    %p76 = scmp.eq.s32.totalorder %s14, 0
    %p77 = por %p75, %p76
    %p78 = scmp.ne.s32.totalorder %s66, %s67
    %p79 = scmp.eq.s32.totalorder %s15, 26
    %p80 = por %p78, %p79
    %p82 = scmp.ne.s32.totalorder %s67, %s81
    %p83 = scmp.eq.s32.totalorder %s15, 0
    %p84 = por %p82, %p83
    %s85 = ssub.s32 %s9, %s16
    %p86 = scmp.eq.s32.totalorder %s85, 0
    %s88 = sadd.s32 %s87, 1
    %s89 = scalar_select %p86, %s87, %s88
    %p92 = pneg %p86
    %p93 = scmp.eq.s32.totalorder %s9, 26
    %p94 = por %p92, %p93
    %p95 = scmp.ne.s32.totalorder %s87, %s90
    %p96 = scmp.eq.s32.totalorder %s9, 0
    %p97 = por %p95, %p96
    %p98 = scmp.ne.s32.totalorder %s87, %s90
    %p99 = scmp.eq.s32.totalorder %s14, 26
    %p100 = por %p98, %p99
    %p101 = scmp.ne.s32.totalorder %s90, %s91
    %p102 = scmp.eq.s32.totalorder %s14, 0
    %p103 = por %p101, %p102
    %p104 = scmp.ne.s32.totalorder %s90, %s91
    %p105 = scmp.eq.s32.totalorder %s15, 26
    %p106 = por %p104, %p105
    %p108 = scmp.ne.s32.totalorder %s91, %s107
    %p109 = scmp.eq.s32.totalorder %s15, 0
    %p110 = por %p108, %p109
    %p111 = scmp.le.s32.totalorder 1, %s9
    %p112 = scmp.lt.s32.totalorder %s9, 28
    %p113 = pnand %p111, %p112
    %p114 = pneg %p113
    // Predicated region
    $region9: #{_lambda_.11} parent=5 // pred_check
      _
    $region10: #{_lambda_.11} parent=5 // pred_check_branch
      %116 = sbr.rel (%p113) target = $region12
    $region11: #{_lambda_.11} parent=5 // pred_region
      %s117 = ssub.s32 %s9, 1
      // Predicated region
      $region13: #{_lambda_.11} parent=11 // pred_check
        %p118 = pneg %p56
      $region14: #{_lambda_.11} parent=11 // pred_check_branch
        %120 = sbr.rel (%p118) target = $region16
      $region15: #{_lambda_.11} parent=11 // pred_region
        _
      $region16: #{_lambda_.11} parent=11 // pred_fallthru
        _
      // Predicated region
      $region17: #{_lambda_.11} parent=11 // pred_check
        %p121 = pneg %p77
      $region18: #{_lambda_.11} parent=11 // pred_check_branch
        %123 = sbr.rel (%p121) target = $region20
      $region19: #{_lambda_.11} parent=11 // pred_region
        _
      $region20: #{_lambda_.11} parent=11 // pred_fallthru
        _
    $region12: #{_lambda_.11} parent=5 // pred_fallthru
      _
    %p124 = scmp.lt.s32.totalorder %s9, 27
    // Predicated region
    $region21: #{_lambda_.11} parent=5 // pred_check
      %p125 = pneg %p124
    $region22: #{_lambda_.11} parent=5 // pred_check_branch
      %127 = sbr.rel (%p125) target = $region24
    $region23: #{_lambda_.11} parent=5 // pred_region
      // Predicated region
      $region25: #{_lambda_.11} parent=23 // pred_check
        %p128 = pneg %p29
      $region26: #{_lambda_.11} parent=23 // pred_check_branch
        %130 = sbr.rel (%p128) target = $region28
      $region27: #{_lambda_.11} parent=23 // pred_region
        %s131 = smul.u32 64, %s9
        %p132 = scmp.lt.s32.totalorder %s131, 1727
        %s133 = scalar_select %p132, %s131, 1727
        %s134 = smul.addr %s133, 4
        %s135 = scalar_lea.vmem %s0, %s134
        %s136 = smul.u32 64, %s9
      $region28: #{_lambda_.11} parent=23 // pred_fallthru
        _
    $region24: #{_lambda_.11} parent=5 // pred_fallthru
      _
    %p137 = scmp.le.s32.totalorder 1, %s9
    %p138 = scmp.lt.s32.totalorder %s9, 28
    %p139 = pnand %p137, %p138
    %p140 = pneg %p139
    // Predicated region
    $region29: #{_lambda_.11} parent=5 // pred_check
      _
    $region30: #{_lambda_.11} parent=5 // pred_check_branch
      %142 = sbr.rel (%p139) target = $region32
    $region31: #{_lambda_.11} parent=5 // pred_region
      %s143 = ssub.s32 %s9, 1
      %s144 = smul.u32 64, %s14
      %p145 = scmp.lt.s32.totalorder %s144, 1727
      %s146 = scalar_select %p145, %s144, 1727
      %s147 = smul.addr %s146, 4
      %s148 = scalar_lea.vmem %s0, %s147
      %p149 = pneg %p35
      %p150 = pneg %p32
      %p151 = pneg %p56
      %p152 = pneg %p53
      %p153 = pneg %p77
      %p154 = pneg %p74
      %p155 = pneg %p103
      %p156 = pneg %p100
      %s157 = smul.u32 64, %s14
      %p158 = scmp.lt.s32.totalorder %s157, 1727
      %s159 = scalar_select %p158, %s157, 1727
      %s160 = smul.addr %s159, 8
      %s161 = scalar_lea.vmem %s3, %s160
      %s162 = smul.u32 64, %s14
      %p163 = scmp.lt.s32.totalorder %s162, 1727
      %s164 = scalar_select %p163, %s162, 1727
      %s165 = smul.addr %s164, 4
      %s166 = scalar_lea.vmem %s0, %s165
      %s167 = smul.u32 64, %s14
      %s168 = smul.u32 64, %s14
      %p169 = scmp.lt.s32.totalorder %s168, 1727
      %s170 = scalar_select %p169, %s168, 1727
      %s171 = smul.addr %s170, 8
      %s172 = scalar_lea.vmem %s3, %s171
      %s173 = smul.u32 64, %s14
      %v175 = vld [vmem:[%s166] sm:$0xf]
      %v176 = vld [vmem:[%s166 + $0x4] sm:$0xf]
      %v177 = vld [vmem:[%s166 + $0x8] sm:$0xf]
      %v178 = vld [vmem:[%s166 + $0xc] sm:$0xf]
      %v179 = vld [vmem:[%s166 + $0x10] sm:$0xf]
      %v180 = vld [vmem:[%s166 + $0x14] sm:$0xf]
      %v181 = vld [vmem:[%s166 + $0x18] sm:$0xf]
      %v182 = vld [vmem:[%s166 + $0x1c] sm:$0xf]
      %v183 = vld [vmem:[%s166 + $0x20] sm:$0xf]
      %v184 = vld [vmem:[%s166 + $0x24] sm:$0xf]
      %v185 = vld [vmem:[%s166 + $0x28] sm:$0xf]
      %v186 = vld [vmem:[%s166 + $0x2c] sm:$0xf]
      %v187 = vld [vmem:[%s166 + $0x30] sm:$0xf]
      %v188 = vld [vmem:[%s166 + $0x34] sm:$0xf]
      %v189 = vld [vmem:[%s166 + $0x38] sm:$0xf]
      %v190 = vld [vmem:[%s166 + $0x3c] sm:$0xf]
      %v191 = vld [vmem:[%s166 + $0x40] sm:$0xf]
      %v192 = vld [vmem:[%s166 + $0x44] sm:$0xf]
      %v193 = vld [vmem:[%s166 + $0x48] sm:$0xf]
      %v194 = vld [vmem:[%s166 + $0x4c] sm:$0xf]
      %v195 = vld [vmem:[%s166 + $0x50] sm:$0xf]
      %v196 = vld [vmem:[%s166 + $0x54] sm:$0xf]
      %v197 = vld [vmem:[%s166 + $0x58] sm:$0xf]
      %v198 = vld [vmem:[%s166 + $0x5c] sm:$0xf]
      %v199 = vld [vmem:[%s166 + $0x60] sm:$0xf]
      %v200 = vld [vmem:[%s166 + $0x64] sm:$0xf]
      %v201 = vld [vmem:[%s166 + $0x68] sm:$0xf]
      %v202 = vld [vmem:[%s166 + $0x6c] sm:$0xf]
      %v203 = vld [vmem:[%s166 + $0x70] sm:$0xf]
      %v204 = vld [vmem:[%s166 + $0x74] sm:$0xf]
      %v205 = vld [vmem:[%s166 + $0x78] sm:$0xf]
      %v206 = vld [vmem:[%s166 + $0x7c] sm:$0xf]
      %v207 = vld [vmem:[%s166 + $0x80] sm:$0xf]
      %v208 = vld [vmem:[%s166 + $0x84] sm:$0xf]
      %v209 = vld [vmem:[%s166 + $0x88] sm:$0xf]
      %v210 = vld [vmem:[%s166 + $0x8c] sm:$0xf]
      %v211 = vld [vmem:[%s166 + $0x90] sm:$0xf]
      %v212 = vld [vmem:[%s166 + $0x94] sm:$0xf]
      %v213 = vld [vmem:[%s166 + $0x98] sm:$0xf]
      %v214 = vld [vmem:[%s166 + $0x9c] sm:$0xf]
      %v215 = vld [vmem:[%s166 + $0xa0] sm:$0xf]
      %v216 = vld [vmem:[%s166 + $0xa4] sm:$0xf]
      %v217 = vld [vmem:[%s166 + $0xa8] sm:$0xf]
      %v218 = vld [vmem:[%s166 + $0xac] sm:$0xf]
      %v219 = vld [vmem:[%s166 + $0xb0] sm:$0xf]
      %v220 = vld [vmem:[%s166 + $0xb4] sm:$0xf]
      %v221 = vld [vmem:[%s166 + $0xb8] sm:$0xf]
      %v222 = vld [vmem:[%s166 + $0xbc] sm:$0xf]
      %v223 = vld [vmem:[%s166 + $0xc0] sm:$0xf]
      %v224 = vld [vmem:[%s166 + $0xc4] sm:$0xf]
      %v225 = vld [vmem:[%s166 + $0xc8] sm:$0xf]
      %v226 = vld [vmem:[%s166 + $0xcc] sm:$0xf]
      %v227 = vld [vmem:[%s166 + $0xd0] sm:$0xf]
      %v228 = vld [vmem:[%s166 + $0xd4] sm:$0xf]
      %v229 = vld [vmem:[%s166 + $0xd8] sm:$0xf]
      %v230 = vld [vmem:[%s166 + $0xdc] sm:$0xf]
      %v231 = vld [vmem:[%s166 + $0xe0] sm:$0xf]
      %v232 = vld [vmem:[%s166 + $0xe4] sm:$0xf]
      %v233 = vld [vmem:[%s166 + $0xe8] sm:$0xf]
      %v234 = vld [vmem:[%s166 + $0xec] sm:$0xf]
      %v235 = vld [vmem:[%s166 + $0xf0] sm:$0xf]
      %v236 = vld [vmem:[%s166 + $0xf4] sm:$0xf]
      %v237 = vld [vmem:[%s166 + $0xf8] sm:$0xf]
      %v238 = vld [vmem:[%s166 + $0xfc] sm:$0xf]
      %v239 = vld [vmem:[%s1] sm:$0xf]
      %v240 = vld [vmem:[%s1 + $0x4] sm:$0x1]
      %v241 = vld [vmem:[%s2] sm:$0x1]
      %v243 = vlaneseq
      %v244 = vshrl.u32 %v243, 7
      %v245 = vsub.s32 0, %v244
      %v246 = vrot.slane %v241, %v245
      %v312 = vunpack.c.l.b16 %v175
      %v313 = vunpack.c.l.b16 %v176
      %v314 = vunpack.c.l.b16 %v177
      %v315 = vunpack.c.l.b16 %v178
      %v316 = vunpack.c.l.b16 %v179
      %v317 = vunpack.c.l.b16 %v180
      %v318 = vunpack.c.l.b16 %v181
      %v319 = vunpack.c.l.b16 %v182
      %v320 = vunpack.c.l.b16 %v183
      %v321 = vunpack.c.l.b16 %v184
      %v322 = vunpack.c.l.b16 %v185
      %v323 = vunpack.c.l.b16 %v186
      %v324 = vunpack.c.l.b16 %v187
      %v325 = vunpack.c.l.b16 %v188
      %v326 = vunpack.c.l.b16 %v189
      %v327 = vunpack.c.l.b16 %v190
      %v328 = vunpack.c.l.b16 %v191
      %v329 = vunpack.c.l.b16 %v192
      %v330 = vunpack.c.l.b16 %v193
      %v331 = vunpack.c.l.b16 %v194
      %v332 = vunpack.c.l.b16 %v195
      %v333 = vunpack.c.l.b16 %v196
      %v334 = vunpack.c.l.b16 %v197
      %v335 = vunpack.c.l.b16 %v198
      %v336 = vunpack.c.l.b16 %v199
      %v337 = vunpack.c.l.b16 %v200
      %v338 = vunpack.c.l.b16 %v201
      %v339 = vunpack.c.l.b16 %v202
      %v340 = vunpack.c.l.b16 %v203
      %v341 = vunpack.c.l.b16 %v204
      %v342 = vunpack.c.l.b16 %v205
      %v343 = vunpack.c.l.b16 %v206
      %v344 = vunpack.c.l.b16 %v207
      %v345 = vunpack.c.l.b16 %v208
      %v346 = vunpack.c.l.b16 %v209
      %v347 = vunpack.c.l.b16 %v210
      %v348 = vunpack.c.l.b16 %v211
      %v349 = vunpack.c.l.b16 %v212
      %v350 = vunpack.c.l.b16 %v213
      %v351 = vunpack.c.l.b16 %v214
      %v352 = vunpack.c.l.b16 %v215
      %v353 = vunpack.c.l.b16 %v216
      %v354 = vunpack.c.l.b16 %v217
      %v355 = vunpack.c.l.b16 %v218
      %v356 = vunpack.c.l.b16 %v219
      %v357 = vunpack.c.l.b16 %v220
      %v358 = vunpack.c.l.b16 %v221
      %v359 = vunpack.c.l.b16 %v222
      %v360 = vunpack.c.l.b16 %v223
      %v361 = vunpack.c.l.b16 %v224
      %v362 = vunpack.c.l.b16 %v225
      %v363 = vunpack.c.l.b16 %v226
      %v364 = vunpack.c.l.b16 %v227
      %v365 = vunpack.c.l.b16 %v228
      %v366 = vunpack.c.l.b16 %v229
      %v367 = vunpack.c.l.b16 %v230
      %v368 = vunpack.c.l.b16 %v231
      %v369 = vunpack.c.l.b16 %v232
      %v370 = vunpack.c.l.b16 %v233
      %v371 = vunpack.c.l.b16 %v234
      %v372 = vunpack.c.l.b16 %v235
      %v373 = vunpack.c.l.b16 %v236
      %v374 = vunpack.c.l.b16 %v237
      %v375 = vunpack.c.l.b16 %v238
      %v376 = vpack.c.b16 %v313, %v312
      %v377 = vpack.c.b16 %v315, %v314
      %v378 = vpack.c.b16 %v317, %v316
      %v379 = vpack.c.b16 %v319, %v318
      %v380 = vpack.c.b16 %v321, %v320
      %v381 = vpack.c.b16 %v323, %v322
      %v382 = vpack.c.b16 %v325, %v324
      %v383 = vpack.c.b16 %v327, %v326
      %v384 = vpack.c.b16 %v329, %v328
      %v385 = vpack.c.b16 %v331, %v330
      %v386 = vpack.c.b16 %v333, %v332
      %v387 = vpack.c.b16 %v335, %v334
      %v388 = vpack.c.b16 %v337, %v336
      %v389 = vpack.c.b16 %v339, %v338
      %v390 = vpack.c.b16 %v341, %v340
      %v391 = vpack.c.b16 %v343, %v342
      %v392 = vpack.c.b16 %v345, %v344
      %v393 = vpack.c.b16 %v347, %v346
      %v394 = vpack.c.b16 %v349, %v348
      %v395 = vpack.c.b16 %v351, %v350
      %v396 = vpack.c.b16 %v353, %v352
      %v397 = vpack.c.b16 %v355, %v354
      %v398 = vpack.c.b16 %v357, %v356
      %v399 = vpack.c.b16 %v359, %v358
      %v400 = vpack.c.b16 %v361, %v360
      %v401 = vpack.c.b16 %v363, %v362
      %v402 = vpack.c.b16 %v365, %v364
      %v403 = vpack.c.b16 %v367, %v366
      %v404 = vpack.c.b16 %v369, %v368
      %v405 = vpack.c.b16 %v371, %v370
      %v406 = vpack.c.b16 %v373, %v372
      %v407 = vpack.c.b16 %v375, %v374
      %v410 = vunpack.c.l.b16 %v239
      %v411 = vunpack.c.l.b16 %v240
      %v412 = vpack.c.b16 %v411, %v410
      %vm413 = vcmask 72704
      %v415 = vsel %vm413, %v376, 0
      %v418 = vsel %vm413, %v377, 0
      %v421 = vsel %vm413, %v378, 0
      %v424 = vsel %vm413, %v379, 0
      %v427 = vsel %vm413, %v380, 0
      %v430 = vsel %vm413, %v381, 0
      %v433 = vsel %vm413, %v382, 0
      %v436 = vsel %vm413, %v383, 0
      %v439 = vsel %vm413, %v384, 0
      %v442 = vsel %vm413, %v385, 0
      %v445 = vsel %vm413, %v386, 0
      %v448 = vsel %vm413, %v387, 0
      %v451 = vsel %vm413, %v388, 0
      %v454 = vsel %vm413, %v389, 0
      %v457 = vsel %vm413, %v390, 0
      %v460 = vsel %vm413, %v391, 0
      %v463 = vsel %vm413, %v392, 0
      %v466 = vsel %vm413, %v393, 0
      %v469 = vsel %vm413, %v394, 0
      %v472 = vsel %vm413, %v395, 0
      %v475 = vsel %vm413, %v396, 0
      %v478 = vsel %vm413, %v397, 0
      %v481 = vsel %vm413, %v398, 0
      %v484 = vsel %vm413, %v399, 0
      %v487 = vsel %vm413, %v400, 0
      %v490 = vsel %vm413, %v401, 0
      %v493 = vsel %vm413, %v402, 0
      %v496 = vsel %vm413, %v403, 0
      %v499 = vsel %vm413, %v404, 0
      %v502 = vsel %vm413, %v405, 0
      %v505 = vsel %vm413, %v406, 0
      %v508 = vsel %vm413, %v407, 0
      %vm510 = vcmask 1043456
      %vm511 = vcmask 1044480
      %v512 = vsel %vm510, 4294967295, 65535
      %v513 = vsel %vm511, %v512, 0
      %v515 = vand.u32 %v412, %v513
      %517 = vmatprep.subr.bf16.mxu0 0
      %518 = vmatpush1.bf16.msra.mxu0 %v515
      %519 = vmatprep.subr.bf16.mxu0 0
      %520 = vmatpush1.bf16.msra.mxu0 0
      %521 = vmatprep.subr.bf16.mxu0 0
      %522 = vmatpush1.bf16.msra.mxu0 0
      %523 = vmatprep.subr.bf16.mxu0 0
      %524 = vmatpush1.bf16.msra.mxu0 0
      %525 = vmatprep.subr.bf16.mxu0 0
      %526 = vmatpush1.bf16.msra.mxu0 0
      %527 = vmatprep.subr.bf16.mxu0 0
      %528 = vmatpush1.bf16.msra.mxu0 0
      %529 = vmatprep.subr.bf16.mxu0 0
      %530 = vmatpush1.bf16.msra.mxu0 0
      %531 = vmatprep.subr.bf16.mxu0 0
      %532 = vmatpush1.bf16.msra.mxu0 0
      %533 = vmatprep.subr.bf16.mxu0 0
      %534 = vmatpush1.bf16.msra.mxu0 0
      %535 = vmatprep.subr.bf16.mxu0 0
      %536 = vmatpush1.bf16.msra.mxu0 0
      %537 = vmatprep.subr.bf16.mxu0 0
      %538 = vmatpush1.bf16.msra.mxu0 0
      %539 = vmatprep.subr.bf16.mxu0 0
      %540 = vmatpush1.bf16.msra.mxu0 0
      %541 = vmatprep.subr.bf16.mxu0 0
      %542 = vmatpush1.bf16.msra.mxu0 0
      %543 = vmatprep.subr.bf16.mxu0 0
      %544 = vmatpush1.bf16.msra.mxu0 0
      %545 = vmatprep.subr.bf16.mxu0 0
      %546 = vmatpush1.bf16.msra.mxu0 0
      %547 = vmatprep.subr.bf16.mxu0 0
      %548 = vmatpush1.bf16.msra.mxu0 0
      %549 = vmatprep.mubr.bf16.mxu0 0
      %550 = vmatmul.mubr.bf16.gmra.mrb[0].mxu0 %v415
      %v551 = vpop.f32.mrb[0].mxu0
      %v552 = vadd.f32 %v246, %v551
      %v553 = vpop.f32.mrb[0].mxu0
      %v554 = vpop.f32.mrb[0].mxu0
      %v555 = vadd.f32 %v246, %v554
      %v556 = vpop.f32.mrb[0].mxu0
      %557 = vmatprep.mubr.bf16.mxu0 0
      %558 = vmatmul.mubr.bf16.gmra.mrb[0].mxu0 %v418
      %v559 = vpop.f32.mrb[0].mxu0
      %v560 = vadd.f32 %v246, %v559
      %v561 = vpop.f32.mrb[0].mxu0
      %v562 = vpop.f32.mrb[0].mxu0
      %v563 = vadd.f32 %v246, %v562
      %v564 = vpop.f32.mrb[0].mxu0
      %565 = vmatprep.mubr.bf16.mxu0 0
      %566 = vmatmul.mubr.bf16.gmra.mrb[0].mxu0 %v421
      %v567 = vpop.f32.mrb[0].mxu0
      %v568 = vadd.f32 %v246, %v567
      %v569 = vpop.f32.mrb[0].mxu0
      %v570 = vpop.f32.mrb[0].mxu0
      %v571 = vadd.f32 %v246, %v570
      %v572 = vpop.f32.mrb[0].mxu0
      %573 = vmatprep.mubr.bf16.mxu0 0
      %574 = vmatmul.mubr.bf16.gmra.mrb[0].mxu0 %v424
      %v575 = vpop.f32.mrb[0].mxu0
      %v576 = vadd.f32 %v246, %v575
      %v577 = vpop.f32.mrb[0].mxu0
      %v578 = vpop.f32.mrb[0].mxu0
      %v579 = vadd.f32 %v246, %v578
      %v580 = vpop.f32.mrb[0].mxu0
      %581 = vmatprep.mubr.bf16.mxu0 0
      %582 = vmatmul.mubr.bf16.gmra.mrb[0].mxu0 %v427
      %v583 = vpop.f32.mrb[0].mxu0
      %v584 = vadd.f32 %v246, %v583
      %v585 = vpop.f32.mrb[0].mxu0
      %v586 = vpop.f32.mrb[0].mxu0
      %v587 = vadd.f32 %v246, %v586
      %v588 = vpop.f32.mrb[0].mxu0
      %589 = vmatprep.mubr.bf16.mxu0 0
      %590 = vmatmul.mubr.bf16.gmra.mrb[0].mxu0 %v430
      %v591 = vpop.f32.mrb[0].mxu0
      %v592 = vadd.f32 %v246, %v591
      %v593 = vpop.f32.mrb[0].mxu0
      %v594 = vpop.f32.mrb[0].mxu0
      %v595 = vadd.f32 %v246, %v594
      %v596 = vpop.f32.mrb[0].mxu0
      %597 = vmatprep.mubr.bf16.mxu0 0
      %598 = vmatmul.mubr.bf16.gmra.mrb[0].mxu0 %v433
      %v599 = vpop.f32.mrb[0].mxu0
      %v600 = vadd.f32 %v246, %v599
      %v601 = vpop.f32.mrb[0].mxu0
      %v602 = vpop.f32.mrb[0].mxu0
      %v603 = vadd.f32 %v246, %v602
      %v604 = vpop.f32.mrb[0].mxu0
      %605 = vmatprep.mubr.bf16.mxu0 0
      %606 = vmatmul.mubr.bf16.gmra.mrb[0].mxu0 %v436
      %v607 = vpop.f32.mrb[0].mxu0
      %v608 = vadd.f32 %v246, %v607
      %v609 = vpop.f32.mrb[0].mxu0
      %v610 = vpop.f32.mrb[0].mxu0
      %v611 = vadd.f32 %v246, %v610
      %v612 = vpop.f32.mrb[0].mxu0
      %613 = vmatprep.mubr.bf16.mxu0 0
      %614 = vmatmul.mubr.bf16.gmra.mrb[0].mxu0 %v439
      %v615 = vpop.f32.mrb[0].mxu0
      %v616 = vadd.f32 %v246, %v615
      %v617 = vpop.f32.mrb[0].mxu0
      %v618 = vpop.f32.mrb[0].mxu0
      %v619 = vadd.f32 %v246, %v618
      %v620 = vpop.f32.mrb[0].mxu0
      %621 = vmatprep.mubr.bf16.mxu0 0
      %622 = vmatmul.mubr.bf16.gmra.mrb[0].mxu0 %v442
      %v623 = vpop.f32.mrb[0].mxu0
      %v624 = vadd.f32 %v246, %v623
      %v625 = vpop.f32.mrb[0].mxu0
      %v626 = vpop.f32.mrb[0].mxu0
      %v627 = vadd.f32 %v246, %v626
      %v628 = vpop.f32.mrb[0].mxu0
      %629 = vmatprep.mubr.bf16.mxu0 0
      %630 = vmatmul.mubr.bf16.gmra.mrb[0].mxu0 %v445
      %v631 = vpop.f32.mrb[0].mxu0
      %v632 = vadd.f32 %v246, %v631
      %v633 = vpop.f32.mrb[0].mxu0
      %v634 = vpop.f32.mrb[0].mxu0
      %v635 = vadd.f32 %v246, %v634
      %v636 = vpop.f32.mrb[0].mxu0
      %637 = vmatprep.mubr.bf16.mxu0 0
      %638 = vmatmul.mubr.bf16.gmra.mrb[0].mxu0 %v448
      %v639 = vpop.f32.mrb[0].mxu0
      %v640 = vadd.f32 %v246, %v639
      %v641 = vpop.f32.mrb[0].mxu0
      %v642 = vpop.f32.mrb[0].mxu0
      %v643 = vadd.f32 %v246, %v642
      %v644 = vpop.f32.mrb[0].mxu0
      %645 = vmatprep.mubr.bf16.mxu0 0
      %646 = vmatmul.mubr.bf16.gmra.mrb[0].mxu0 %v451
      %v647 = vpop.f32.mrb[0].mxu0
      %v648 = vadd.f32 %v246, %v647
      %v649 = vpop.f32.mrb[0].mxu0
      %v650 = vpop.f32.mrb[0].mxu0
      %v651 = vadd.f32 %v246, %v650
      %v652 = vpop.f32.mrb[0].mxu0
      %653 = vmatprep.mubr.bf16.mxu0 0
      %654 = vmatmul.mubr.bf16.gmra.mrb[0].mxu0 %v454
      %v655 = vpop.f32.mrb[0].mxu0
      %v656 = vadd.f32 %v246, %v655
      %v657 = vpop.f32.mrb[0].mxu0
      %v658 = vpop.f32.mrb[0].mxu0
      %v659 = vadd.f32 %v246, %v658
      %v660 = vpop.f32.mrb[0].mxu0
      %661 = vmatprep.mubr.bf16.mxu0 0
      %662 = vmatmul.mubr.bf16.gmra.mrb[0].mxu0 %v457
      %v663 = vpop.f32.mrb[0].mxu0
      %v664 = vadd.f32 %v246, %v663
      %v665 = vpop.f32.mrb[0].mxu0
      %v666 = vpop.f32.mrb[0].mxu0
      %v667 = vadd.f32 %v246, %v666
      %v668 = vpop.f32.mrb[0].mxu0
      %669 = vmatprep.mubr.bf16.mxu0 0
      %670 = vmatmul.mubr.bf16.gmra.mrb[0].mxu0 %v460
      %v671 = vpop.f32.mrb[0].mxu0
      %v672 = vadd.f32 %v246, %v671
      %v673 = vpop.f32.mrb[0].mxu0
      %v674 = vpop.f32.mrb[0].mxu0
      %v675 = vadd.f32 %v246, %v674
      %v676 = vpop.f32.mrb[0].mxu0
      %677 = vmatprep.mubr.bf16.mxu0 0
      %678 = vmatmul.mubr.bf16.gmra.mrb[0].mxu0 %v463
      %v679 = vpop.f32.mrb[0].mxu0
      %v680 = vadd.f32 %v246, %v679
      %v681 = vpop.f32.mrb[0].mxu0
      %v682 = vpop.f32.mrb[0].mxu0
      %v683 = vadd.f32 %v246, %v682
      %v684 = vpop.f32.mrb[0].mxu0
      %685 = vmatprep.mubr.bf16.mxu0 0
      %686 = vmatmul.mubr.bf16.gmra.mrb[0].mxu0 %v466
      %v687 = vpop.f32.mrb[0].mxu0
      %v688 = vadd.f32 %v246, %v687
      %v689 = vpop.f32.mrb[0].mxu0
      %v690 = vpop.f32.mrb[0].mxu0
      %v691 = vadd.f32 %v246, %v690
      %v692 = vpop.f32.mrb[0].mxu0
      %693 = vmatprep.mubr.bf16.mxu0 0
      %694 = vmatmul.mubr.bf16.gmra.mrb[0].mxu0 %v469
      %v695 = vpop.f32.mrb[0].mxu0
      %v696 = vadd.f32 %v246, %v695
      %v697 = vpop.f32.mrb[0].mxu0
      %v698 = vpop.f32.mrb[0].mxu0
      %v699 = vadd.f32 %v246, %v698
      %v700 = vpop.f32.mrb[0].mxu0
      %701 = vmatprep.mubr.bf16.mxu0 0
      %702 = vmatmul.mubr.bf16.gmra.mrb[0].mxu0 %v472
      %v703 = vpop.f32.mrb[0].mxu0
      %v704 = vadd.f32 %v246, %v703
      %v705 = vpop.f32.mrb[0].mxu0
      %v706 = vpop.f32.mrb[0].mxu0
      %v707 = vadd.f32 %v246, %v706
      %v708 = vpop.f32.mrb[0].mxu0
      %709 = vmatprep.mubr.bf16.mxu0 0
      %710 = vmatmul.mubr.bf16.gmra.mrb[0].mxu0 %v475
      %v711 = vpop.f32.mrb[0].mxu0
      %v712 = vadd.f32 %v246, %v711
      %v713 = vpop.f32.mrb[0].mxu0
      %v714 = vpop.f32.mrb[0].mxu0
      %v715 = vadd.f32 %v246, %v714
      %v716 = vpop.f32.mrb[0].mxu0
      %717 = vmatprep.mubr.bf16.mxu0 0
      %718 = vmatmul.mubr.bf16.gmra.mrb[0].mxu0 %v478
      %v719 = vpop.f32.mrb[0].mxu0
      %v720 = vadd.f32 %v246, %v719
      %v721 = vpop.f32.mrb[0].mxu0
      %v722 = vpop.f32.mrb[0].mxu0
      %v723 = vadd.f32 %v246, %v722
      %v724 = vpop.f32.mrb[0].mxu0
      %725 = vmatprep.mubr.bf16.mxu0 0
      %726 = vmatmul.mubr.bf16.gmra.mrb[0].mxu0 %v481
      %v727 = vpop.f32.mrb[0].mxu0
      %v728 = vadd.f32 %v246, %v727
      %v729 = vpop.f32.mrb[0].mxu0
      %v730 = vpop.f32.mrb[0].mxu0
      %v731 = vadd.f32 %v246, %v730
      %v732 = vpop.f32.mrb[0].mxu0
      %733 = vmatprep.mubr.bf16.mxu0 0
      %734 = vmatmul.mubr.bf16.gmra.mrb[0].mxu0 %v484
      %v735 = vpop.f32.mrb[0].mxu0
      %v736 = vadd.f32 %v246, %v735
      %v737 = vpop.f32.mrb[0].mxu0
      %v738 = vpop.f32.mrb[0].mxu0
      %v739 = vadd.f32 %v246, %v738
      %v740 = vpop.f32.mrb[0].mxu0
      %741 = vmatprep.mubr.bf16.mxu0 0
      %742 = vmatmul.mubr.bf16.gmra.mrb[0].mxu0 %v487
      %v743 = vpop.f32.mrb[0].mxu0
      %v744 = vadd.f32 %v246, %v743
      %v745 = vpop.f32.mrb[0].mxu0
      %v746 = vpop.f32.mrb[0].mxu0
      %v747 = vadd.f32 %v246, %v746
      %v748 = vpop.f32.mrb[0].mxu0
      %749 = vmatprep.mubr.bf16.mxu0 0
      %750 = vmatmul.mubr.bf16.gmra.mrb[0].mxu0 %v490
      %v751 = vpop.f32.mrb[0].mxu0
      %v752 = vadd.f32 %v246, %v751
      %v753 = vpop.f32.mrb[0].mxu0
      %v754 = vpop.f32.mrb[0].mxu0
      %v755 = vadd.f32 %v246, %v754
      %v756 = vpop.f32.mrb[0].mxu0
      %757 = vmatprep.mubr.bf16.mxu0 0
      %758 = vmatmul.mubr.bf16.gmra.mrb[0].mxu0 %v493
      %v759 = vpop.f32.mrb[0].mxu0
      %v760 = vadd.f32 %v246, %v759
      %v761 = vpop.f32.mrb[0].mxu0
      %v762 = vpop.f32.mrb[0].mxu0
      %v763 = vadd.f32 %v246, %v762
      %v764 = vpop.f32.mrb[0].mxu0
      %765 = vmatprep.mubr.bf16.mxu0 0
      %766 = vmatmul.mubr.bf16.gmra.mrb[0].mxu0 %v496
      %v767 = vpop.f32.mrb[0].mxu0
      %v768 = vadd.f32 %v246, %v767
      %v769 = vpop.f32.mrb[0].mxu0
      %v770 = vpop.f32.mrb[0].mxu0
      %v771 = vadd.f32 %v246, %v770
      %v772 = vpop.f32.mrb[0].mxu0
      %773 = vmatprep.mubr.bf16.mxu0 0
      %774 = vmatmul.mubr.bf16.gmra.mrb[0].mxu0 %v499
      %v775 = vpop.f32.mrb[0].mxu0
      %v776 = vadd.f32 %v246, %v775
      %v777 = vpop.f32.mrb[0].mxu0
      %v778 = vpop.f32.mrb[0].mxu0
      %v779 = vadd.f32 %v246, %v778
      %v780 = vpop.f32.mrb[0].mxu0
      %781 = vmatprep.mubr.bf16.mxu0 0
      %782 = vmatmul.mubr.bf16.gmra.mrb[0].mxu0 %v502
      %v783 = vpop.f32.mrb[0].mxu0
      %v784 = vadd.f32 %v246, %v783
      %v785 = vpop.f32.mrb[0].mxu0
      %v786 = vpop.f32.mrb[0].mxu0
      %v787 = vadd.f32 %v246, %v786
      %v788 = vpop.f32.mrb[0].mxu0
      %789 = vmatprep.mubr.bf16.mxu0 0
      %790 = vmatmul.mubr.bf16.gmra.mrb[0].mxu0 %v505
      %v791 = vpop.f32.mrb[0].mxu0
      %v792 = vadd.f32 %v246, %v791
      %v793 = vpop.f32.mrb[0].mxu0
      %v794 = vpop.f32.mrb[0].mxu0
      %v795 = vadd.f32 %v246, %v794
      %v796 = vpop.f32.mrb[0].mxu0
      %797 = vmatprep.mubr.bf16.mxu0 0
      %798 = vmatmul.mubr.bf16.gmra.mrb[0].mxu0 %v508
      %v799 = vpop.f32.mrb[0].mxu0
      %v800 = vadd.f32 %v246, %v799
      %v801 = vpop.f32.mrb[0].mxu0
      %v802 = vpop.f32.mrb[0].mxu0
      %v803 = vadd.f32 %v246, %v802
      %v804 = vpop.f32.mrb[0].mxu0
      %805 = vdwg.mxu0
      %v806 = vmax.f32 %v552, 0.0
      %v807 = vmax.f32 %v555, 0.0
      %v808 = vmax.f32 %v560, 0.0
      %v809 = vmax.f32 %v563, 0.0
      %v810 = vmax.f32 %v568, 0.0
      %v811 = vmax.f32 %v571, 0.0
      %v812 = vmax.f32 %v576, 0.0
      %v813 = vmax.f32 %v579, 0.0
      %v814 = vmax.f32 %v584, 0.0
      %v815 = vmax.f32 %v587, 0.0
      %v816 = vmax.f32 %v592, 0.0
      %v817 = vmax.f32 %v595, 0.0
      %v818 = vmax.f32 %v600, 0.0
      %v819 = vmax.f32 %v603, 0.0
      %v820 = vmax.f32 %v608, 0.0
      %v821 = vmax.f32 %v611, 0.0
      %v822 = vmax.f32 %v616, 0.0
      %v823 = vmax.f32 %v619, 0.0
      %v824 = vmax.f32 %v624, 0.0
      %v825 = vmax.f32 %v627, 0.0
      %v826 = vmax.f32 %v632, 0.0
      %v827 = vmax.f32 %v635, 0.0
      %v828 = vmax.f32 %v640, 0.0
      %v829 = vmax.f32 %v643, 0.0
      %v830 = vmax.f32 %v648, 0.0
      %v831 = vmax.f32 %v651, 0.0
      %v832 = vmax.f32 %v656, 0.0
      %v833 = vmax.f32 %v659, 0.0
      %v834 = vmax.f32 %v664, 0.0
      %v835 = vmax.f32 %v667, 0.0
      %v836 = vmax.f32 %v672, 0.0
      %v837 = vmax.f32 %v675, 0.0
      %v838 = vmax.f32 %v680, 0.0
      %v839 = vmax.f32 %v683, 0.0
      %v840 = vmax.f32 %v688, 0.0
      %v841 = vmax.f32 %v691, 0.0
      %v842 = vmax.f32 %v696, 0.0
      %v843 = vmax.f32 %v699, 0.0
      %v844 = vmax.f32 %v704, 0.0
      %v845 = vmax.f32 %v707, 0.0
      %v846 = vmax.f32 %v712, 0.0
      %v847 = vmax.f32 %v715, 0.0
      %v848 = vmax.f32 %v720, 0.0
      %v849 = vmax.f32 %v723, 0.0
      %v850 = vmax.f32 %v728, 0.0
      %v851 = vmax.f32 %v731, 0.0
      %v852 = vmax.f32 %v736, 0.0
      %v853 = vmax.f32 %v739, 0.0
      %v854 = vmax.f32 %v744, 0.0
      %v855 = vmax.f32 %v747, 0.0
      %v856 = vmax.f32 %v752, 0.0
      %v857 = vmax.f32 %v755, 0.0
      %v858 = vmax.f32 %v760, 0.0
      %v859 = vmax.f32 %v763, 0.0
      %v860 = vmax.f32 %v768, 0.0
      %v861 = vmax.f32 %v771, 0.0
      %v862 = vmax.f32 %v776, 0.0
      %v863 = vmax.f32 %v779, 0.0
      %v864 = vmax.f32 %v784, 0.0
      %v865 = vmax.f32 %v787, 0.0
      %v866 = vmax.f32 %v792, 0.0
      %v867 = vmax.f32 %v795, 0.0
      %v868 = vmax.f32 %v800, 0.0
      %v869 = vmax.f32 %v803, 0.0
      %vm870 = vcmask 130048
      %871 = vst.msk [vmem:[%s172] sm:$0xff] %vm870, %v806
      %872 = vst.msk [vmem:[%s172 + $0x8] sm:$0xff] %vm870, %v807
      %873 = vst.msk [vmem:[%s172 + $0x10] sm:$0xff] %vm870, %v808
      %874 = vst.msk [vmem:[%s172 + $0x18] sm:$0xff] %vm870, %v809
      %875 = vst.msk [vmem:[%s172 + $0x20] sm:$0xff] %vm870, %v810
      %876 = vst.msk [vmem:[%s172 + $0x28] sm:$0xff] %vm870, %v811
      %877 = vst.msk [vmem:[%s172 + $0x30] sm:$0xff] %vm870, %v812
      %878 = vst.msk [vmem:[%s172 + $0x38] sm:$0xff] %vm870, %v813
      %879 = vst.msk [vmem:[%s172 + $0x40] sm:$0xff] %vm870, %v814
      %880 = vst.msk [vmem:[%s172 + $0x48] sm:$0xff] %vm870, %v815
      %881 = vst.msk [vmem:[%s172 + $0x50] sm:$0xff] %vm870, %v816
      %882 = vst.msk [vmem:[%s172 + $0x58] sm:$0xff] %vm870, %v817
      %883 = vst.msk [vmem:[%s172 + $0x60] sm:$0xff] %vm870, %v818
      %884 = vst.msk [vmem:[%s172 + $0x68] sm:$0xff] %vm870, %v819
      %885 = vst.msk [vmem:[%s172 + $0x70] sm:$0xff] %vm870, %v820
      %886 = vst.msk [vmem:[%s172 + $0x78] sm:$0xff] %vm870, %v821
      %887 = vst.msk [vmem:[%s172 + $0x80] sm:$0xff] %vm870, %v822
      %888 = vst.msk [vmem:[%s172 + $0x88] sm:$0xff] %vm870, %v823
      %889 = vst.msk [vmem:[%s172 + $0x90] sm:$0xff] %vm870, %v824
      %890 = vst.msk [vmem:[%s172 + $0x98] sm:$0xff] %vm870, %v825
      %891 = vst.msk [vmem:[%s172 + $0xa0] sm:$0xff] %vm870, %v826
      %892 = vst.msk [vmem:[%s172 + $0xa8] sm:$0xff] %vm870, %v827
      %893 = vst.msk [vmem:[%s172 + $0xb0] sm:$0xff] %vm870, %v828
      %894 = vst.msk [vmem:[%s172 + $0xb8] sm:$0xff] %vm870, %v829
      %895 = vst.msk [vmem:[%s172 + $0xc0] sm:$0xff] %vm870, %v830
      %896 = vst.msk [vmem:[%s172 + $0xc8] sm:$0xff] %vm870, %v831
      %897 = vst.msk [vmem:[%s172 + $0xd0] sm:$0xff] %vm870, %v832
      %898 = vst.msk [vmem:[%s172 + $0xd8] sm:$0xff] %vm870, %v833
      %899 = vst.msk [vmem:[%s172 + $0xe0] sm:$0xff] %vm870, %v834
      %900 = vst.msk [vmem:[%s172 + $0xe8] sm:$0xff] %vm870, %v835
      %901 = vst.msk [vmem:[%s172 + $0xf0] sm:$0xff] %vm870, %v836
      %902 = vst.msk [vmem:[%s172 + $0xf8] sm:$0xff] %vm870, %v837
      %903 = vst.msk [vmem:[%s172 + $0x100] sm:$0xff] %vm870, %v838
      %904 = vst.msk [vmem:[%s172 + $0x108] sm:$0xff] %vm870, %v839
      %905 = vst.msk [vmem:[%s172 + $0x110] sm:$0xff] %vm870, %v840
      %906 = vst.msk [vmem:[%s172 + $0x118] sm:$0xff] %vm870, %v841
      %907 = vst.msk [vmem:[%s172 + $0x120] sm:$0xff] %vm870, %v842
      %908 = vst.msk [vmem:[%s172 + $0x128] sm:$0xff] %vm870, %v843
      %909 = vst.msk [vmem:[%s172 + $0x130] sm:$0xff] %vm870, %v844
      %910 = vst.msk [vmem:[%s172 + $0x138] sm:$0xff] %vm870, %v845
      %911 = vst.msk [vmem:[%s172 + $0x140] sm:$0xff] %vm870, %v846
      %912 = vst.msk [vmem:[%s172 + $0x148] sm:$0xff] %vm870, %v847
      %913 = vst.msk [vmem:[%s172 + $0x150] sm:$0xff] %vm870, %v848
      %914 = vst.msk [vmem:[%s172 + $0x158] sm:$0xff] %vm870, %v849
      %915 = vst.msk [vmem:[%s172 + $0x160] sm:$0xff] %vm870, %v850
      %916 = vst.msk [vmem:[%s172 + $0x168] sm:$0xff] %vm870, %v851
      %917 = vst.msk [vmem:[%s172 + $0x170] sm:$0xff] %vm870, %v852
      %918 = vst.msk [vmem:[%s172 + $0x178] sm:$0xff] %vm870, %v853
      %919 = vst.msk [vmem:[%s172 + $0x180] sm:$0xff] %vm870, %v854
      %920 = vst.msk [vmem:[%s172 + $0x188] sm:$0xff] %vm870, %v855
      %921 = vst.msk [vmem:[%s172 + $0x190] sm:$0xff] %vm870, %v856
      %922 = vst.msk [vmem:[%s172 + $0x198] sm:$0xff] %vm870, %v857
      %923 = vst.msk [vmem:[%s172 + $0x1a0] sm:$0xff] %vm870, %v858
      %924 = vst.msk [vmem:[%s172 + $0x1a8] sm:$0xff] %vm870, %v859
      %925 = vst.msk [vmem:[%s172 + $0x1b0] sm:$0xff] %vm870, %v860
      %926 = vst.msk [vmem:[%s172 + $0x1b8] sm:$0xff] %vm870, %v861
      %927 = vst.msk [vmem:[%s172 + $0x1c0] sm:$0xff] %vm870, %v862
      %928 = vst.msk [vmem:[%s172 + $0x1c8] sm:$0xff] %vm870, %v863
      %929 = vst.msk [vmem:[%s172 + $0x1d0] sm:$0xff] %vm870, %v864
      %930 = vst.msk [vmem:[%s172 + $0x1d8] sm:$0xff] %vm870, %v865
      %931 = vst.msk [vmem:[%s172 + $0x1e0] sm:$0xff] %vm870, %v866
      %932 = vst.msk [vmem:[%s172 + $0x1e8] sm:$0xff] %vm870, %v867
      %933 = vst.msk [vmem:[%s172 + $0x1f0] sm:$0xff] %vm870, %v868
      %934 = vst.msk [vmem:[%s172 + $0x1f8] sm:$0xff] %vm870, %v869
      %s935 = smul.u32 64, %s14
      %p936 = scmp.lt.s32.totalorder %s935, 1727
      %s937 = scalar_select %p936, %s935, 1727
      %s938 = smul.addr %s937, 8
      %s939 = scalar_lea.vmem %s3, %s938
      // Predicated region
      $region33: #{_lambda_.11} parent=31 // pred_check
        %p940 = pneg %p100
      $region34: #{_lambda_.11} parent=31 // pred_check_branch
        %942 = sbr.rel (%p940) target = $region36
      $region35: #{_lambda_.11} parent=31 // pred_region
        %s943 = smul.u32 64, %s14
      $region36: #{_lambda_.11} parent=31 // pred_fallthru
        _
    $region32: #{_lambda_.11} parent=5 // pred_fallthru
      _
    %p944 = scmp.le.s32.totalorder 2, %s9
    // Predicated region
    $region37: #{_lambda_.11} parent=5 // pred_check
      %p945 = pneg %p944
    $region38: #{_lambda_.11} parent=5 // pred_check_branch
      %947 = sbr.rel (%p945) target = $region40
    $region39: #{_lambda_.11} parent=5 // pred_region
      %s948 = ssub.s32 %s9, 2
      // Predicated region
      $region41: #{_lambda_.11} parent=39 // pred_check
        %p949 = pneg %p106
      $region42: #{_lambda_.11} parent=39 // pred_check_branch
        %951 = sbr.rel (%p949) target = $region44
      $region43: #{_lambda_.11} parent=39 // pred_region
        %s952 = smul.u32 64, %s15
        %p953 = scmp.lt.s32.totalorder %s952, 1727
        %s954 = scalar_select %p953, %s952, 1727
        %s955 = smul.addr %s954, 8
        %s956 = scalar_lea.vmem %s3, %s955
      $region44: #{_lambda_.11} parent=39 // pred_fallthru
        _
    $region40: #{_lambda_.11} parent=5 // pred_fallthru
      _
  $region6: #{_lambda_.11} parent=0 // loop_footer
    %s13 = sadd.s32 1, %s9
  $region7: #{_lambda_.11} parent=0 // loop_footer_branch
    %8 = sbr.rel target = $region3
  $region8: #{_lambda_.11} parent=0 // loop_exit
    _

// kernel: _lambda_.12
$region0: #{_lambda_.12}
  #allocation0 [shape = 'u32[]', space=smem, size = 0x4, offset = 0x4, fixed_abs, tag = 'smem constant byte address 0x4 - core index']
  #allocation1 [shape = 'u32[144,128]{1,0:T(1,128)}', space=vmem, size = 0x12000, scoped, tag = 'internal scratch']
  %s0 = inlined_call_operand.vmem [shape: bf16[3584,144], index: 0, kind: input, shape index: {}]
  %s1 = inlined_call_operand.vmem [shape: bf16[144,16], index: 1, kind: input, shape index: {}]
  %s2 = inlined_call_operand.vmem [shape: f32[1,16], index: 2, kind: input, shape index: {}]
  %s3 = inlined_call_operand.vmem [shape: f32[3584,16], index: 3, kind: output, shape index: {}]
  %s4 = sld [smem:[#allocation0]]
  $region45: #{_lambda_.12} parent=0
    _
  %s6 = ssub.s32 1, %s4
  %s7 = scalar_select 0, %s6, %s4
  loop: start=0, step=1, limit=9
  $region2: #{_lambda_.12} parent=0 // loop_pre_header
    _
  $region3: #{_lambda_.12} parent=0 // loop_header
    %s9 = sphi 0, %s13
    %p10 = scmp.ge.s32.totalorder %s9, 9
    %s19 = sphi 0, %s21
    %s22 = sphi 0, %s19
    %s23 = sphi 0, %s22
    %s39 = sphi 0, %s23
    %s43 = sphi 0, %s43
    %s45 = sphi 0, %s43
    %s46 = sphi 0, %s45
    %s60 = sphi 0, %s46
    %s64 = sphi 0, %s64
    %s66 = sphi 0, %s64
    %s67 = sphi 0, %s66
    %s81 = sphi 0, %s67
    %s87 = sphi 0, %s89
    %s90 = sphi 0, %s87
    %s91 = sphi 0, %s90
    %s107 = sphi 0, %s91
  $region4: #{_lambda_.12} parent=0 // loop_header_branch
    %12 = sbr.rel (%p10) target = $region8
  $region5: #{_lambda_.12} parent=0 // loop_body
    %s14 = ssub.s32 %s9, 1
    %s15 = ssub.s32 %s9, 2
    %s16 = sadd.s32 %s9, 1
    %s17 = ssub.s32 %s9, %s16
    %p18 = scmp.eq.s32.totalorder %s17, 0
    %s20 = sadd.s32 %s19, 1
    %s21 = scalar_select %p18, %s19, %s20
    %p24 = pneg %p18
    %p25 = scmp.eq.s32.totalorder %s9, 6
    %p26 = por %p24, %p25
    %p27 = scmp.ne.s32.totalorder %s19, %s22
    %p28 = scmp.eq.s32.totalorder %s9, 0
    %p29 = por %p27, %p28
    %p30 = scmp.ne.s32.totalorder %s19, %s22
    %p31 = scmp.eq.s32.totalorder %s14, 6
    %p32 = por %p30, %p31
    %p33 = scmp.ne.s32.totalorder %s22, %s23
    %p34 = scmp.eq.s32.totalorder %s14, 0
    %p35 = por %p33, %p34
    %p36 = scmp.ne.s32.totalorder %s22, %s23
    %p37 = scmp.eq.s32.totalorder %s15, 6
    %p38 = por %p36, %p37
    %p40 = scmp.ne.s32.totalorder %s23, %s39
    %p41 = scmp.eq.s32.totalorder %s15, 0
    %p42 = por %p40, %p41
    %s44 = sadd.s32 %s43, 1
    %p47 = scmp.eq.s32.totalorder %s9, 6
    %p48 = scmp.ne.s32.totalorder %s43, %s45
    %p49 = scmp.eq.s32.totalorder %s9, 0
    %p50 = por %p48, %p49
    %p51 = scmp.ne.s32.totalorder %s43, %s45
    %p52 = scmp.eq.s32.totalorder %s14, 6
    %p53 = por %p51, %p52
    %p54 = scmp.ne.s32.totalorder %s45, %s46
    %p55 = scmp.eq.s32.totalorder %s14, 0
    %p56 = por %p54, %p55
    %p57 = scmp.ne.s32.totalorder %s45, %s46
    %p58 = scmp.eq.s32.totalorder %s15, 6
    %p59 = por %p57, %p58
    %p61 = scmp.ne.s32.totalorder %s46, %s60
    %p62 = scmp.eq.s32.totalorder %s15, 0
    %p63 = por %p61, %p62
    %s65 = sadd.s32 %s64, 1
    %p68 = scmp.eq.s32.totalorder %s9, 6
    %p69 = scmp.ne.s32.totalorder %s64, %s66
    %p70 = scmp.eq.s32.totalorder %s9, 0
    %p71 = por %p69, %p70
    %p72 = scmp.ne.s32.totalorder %s64, %s66
    %p73 = scmp.eq.s32.totalorder %s14, 6
    %p74 = por %p72, %p73
    %p75 = scmp.ne.s32.totalorder %s66, %s67
    %p76 = scmp.eq.s32.totalorder %s14, 0
    %p77 = por %p75, %p76
    %p78 = scmp.ne.s32.totalorder %s66, %s67
    %p79 = scmp.eq.s32.totalorder %s15, 6
    %p80 = por %p78, %p79
    %p82 = scmp.ne.s32.totalorder %s67, %s81
    %p83 = scmp.eq.s32.totalorder %s15, 0
    %p84 = por %p82, %p83
    %s85 = ssub.s32 %s9, %s16
    %p86 = scmp.eq.s32.totalorder %s85, 0
    %s88 = sadd.s32 %s87, 1
    %s89 = scalar_select %p86, %s87, %s88
    %p92 = pneg %p86
    %p93 = scmp.eq.s32.totalorder %s9, 6
    %p94 = por %p92, %p93
    %p95 = scmp.ne.s32.totalorder %s87, %s90
    %p96 = scmp.eq.s32.totalorder %s9, 0
    %p97 = por %p95, %p96
    %p98 = scmp.ne.s32.totalorder %s87, %s90
    %p99 = scmp.eq.s32.totalorder %s14, 6
    %p100 = por %p98, %p99
    %p101 = scmp.ne.s32.totalorder %s90, %s91
    %p102 = scmp.eq.s32.totalorder %s14, 0
    %p103 = por %p101, %p102
    %p104 = scmp.ne.s32.totalorder %s90, %s91
    %p105 = scmp.eq.s32.totalorder %s15, 6
    %p106 = por %p104, %p105
    %p108 = scmp.ne.s32.totalorder %s91, %s107
    %p109 = scmp.eq.s32.totalorder %s15, 0
    %p110 = por %p108, %p109
    %p111 = scmp.le.s32.totalorder 1, %s9
    %p112 = scmp.lt.s32.totalorder %s9, 8
    %p113 = pnand %p111, %p112
    %p114 = pneg %p113
    // Predicated region
    $region9: #{_lambda_.12} parent=5 // pred_check
      _
    $region10: #{_lambda_.12} parent=5 // pred_check_branch
      %116 = sbr.rel (%p113) target = $region12
    $region11: #{_lambda_.12} parent=5 // pred_region
      %s117 = ssub.s32 %s9, 1
      // Predicated region
      $region13: #{_lambda_.12} parent=11 // pred_check
        %p118 = pneg %p56
      $region14: #{_lambda_.12} parent=11 // pred_check_branch
        %120 = sbr.rel (%p118) target = $region16
      $region15: #{_lambda_.12} parent=11 // pred_region
        _
      $region16: #{_lambda_.12} parent=11 // pred_fallthru
        _
      // Predicated region
      $region17: #{_lambda_.12} parent=11 // pred_check
        %p121 = pneg %p77
      $region18: #{_lambda_.12} parent=11 // pred_check_branch
        %123 = sbr.rel (%p121) target = $region20
      $region19: #{_lambda_.12} parent=11 // pred_region
        _
      $region20: #{_lambda_.12} parent=11 // pred_fallthru
        _
    $region12: #{_lambda_.12} parent=5 // pred_fallthru
      _
    %p124 = scmp.lt.s32.totalorder %s9, 7
    // Predicated region
    $region21: #{_lambda_.12} parent=5 // pred_check
      %p125 = pneg %p124
    $region22: #{_lambda_.12} parent=5 // pred_check_branch
      %127 = sbr.rel (%p125) target = $region24
    $region23: #{_lambda_.12} parent=5 // pred_region
      // Predicated region
      $region25: #{_lambda_.12} parent=23 // pred_check
        %p128 = pneg %p29
      $region26: #{_lambda_.12} parent=23 // pred_check_branch
        %130 = sbr.rel (%p128) target = $region28
      $region27: #{_lambda_.12} parent=23 // pred_region
        %s131 = smul.u32 64, %s9
        %p132 = scmp.lt.s32.totalorder %s131, 447
        %s133 = scalar_select %p132, %s131, 447
        %s134 = smul.addr %s133, 2
        %s135 = smul.addr %s134, 4
        %s136 = scalar_lea.vmem %s0, %s135
        %s137 = smul.u32 64, %s9
      $region28: #{_lambda_.12} parent=23 // pred_fallthru
        _
    $region24: #{_lambda_.12} parent=5 // pred_fallthru
      _
    %p138 = scmp.le.s32.totalorder 1, %s9
    %p139 = scmp.lt.s32.totalorder %s9, 8
    %p140 = pnand %p138, %p139
    %p141 = pneg %p140
    // Predicated region
    $region29: #{_lambda_.12} parent=5 // pred_check
      _
    $region30: #{_lambda_.12} parent=5 // pred_check_branch
      %143 = sbr.rel (%p140) target = $region32
    $region31: #{_lambda_.12} parent=5 // pred_region
      %s144 = ssub.s32 %s9, 1
      %s145 = smul.u32 64, %s14
      %p146 = scmp.lt.s32.totalorder %s145, 447
      %s147 = scalar_select %p146, %s145, 447
      %s148 = smul.addr %s147, 2
      %s149 = smul.addr %s148, 4
      %s150 = scalar_lea.vmem %s0, %s149
      %p151 = pneg %p35
      %p152 = pneg %p32
      %p153 = pneg %p56
      %p154 = pneg %p53
      %p155 = pneg %p77
      %p156 = pneg %p74
      %p157 = pneg %p103
      %p158 = pneg %p100
      %s159 = smul.u32 64, %s14
      %p160 = scmp.lt.s32.totalorder %s159, 447
      %s161 = scalar_select %p160, %s159, 447
      %s162 = smul.addr %s161, 8
      %s163 = scalar_lea.vmem %s3, %s162
      %s164 = smul.u32 64, %s14
      %p165 = scmp.lt.s32.totalorder %s164, 447
      %s166 = scalar_select %p165, %s164, 447
      %s167 = smul.addr %s166, 2
      %s168 = smul.addr %s167, 4
      %s169 = scalar_lea.vmem %s0, %s168
      %s170 = smul.u32 64, %s14
      %s171 = smul.u32 64, %s14
      %p172 = scmp.lt.s32.totalorder %s171, 447
      %s173 = scalar_select %p172, %s171, 447
      %s174 = smul.addr %s173, 8
      %s175 = scalar_lea.vmem %s3, %s174
      %s176 = smul.u32 64, %s14
      %v178 = vld [vmem:[%s169] sm:$0xff]
      %v179 = vld [vmem:[%s169 + $0x8] sm:$0xff]
      %v180 = vld [vmem:[%s169 + $0x10] sm:$0xff]
      %v181 = vld [vmem:[%s169 + $0x18] sm:$0xff]
      %v182 = vld [vmem:[%s169 + $0x20] sm:$0xff]
      %v183 = vld [vmem:[%s169 + $0x28] sm:$0xff]
      %v184 = vld [vmem:[%s169 + $0x30] sm:$0xff]
      %v185 = vld [vmem:[%s169 + $0x38] sm:$0xff]
      %v186 = vld [vmem:[%s169 + $0x40] sm:$0xff]
      %v187 = vld [vmem:[%s169 + $0x48] sm:$0xff]
      %v188 = vld [vmem:[%s169 + $0x50] sm:$0xff]
      %v189 = vld [vmem:[%s169 + $0x58] sm:$0xff]
      %v190 = vld [vmem:[%s169 + $0x60] sm:$0xff]
      %v191 = vld [vmem:[%s169 + $0x68] sm:$0xff]
      %v192 = vld [vmem:[%s169 + $0x70] sm:$0xff]
      %v193 = vld [vmem:[%s169 + $0x78] sm:$0xff]
      %v194 = vld [vmem:[%s169 + $0x80] sm:$0xff]
      %v195 = vld [vmem:[%s169 + $0x88] sm:$0xff]
      %v196 = vld [vmem:[%s169 + $0x90] sm:$0xff]
      %v197 = vld [vmem:[%s169 + $0x98] sm:$0xff]
      %v198 = vld [vmem:[%s169 + $0xa0] sm:$0xff]
      %v199 = vld [vmem:[%s169 + $0xa8] sm:$0xff]
      %v200 = vld [vmem:[%s169 + $0xb0] sm:$0xff]
      %v201 = vld [vmem:[%s169 + $0xb8] sm:$0xff]
      %v202 = vld [vmem:[%s169 + $0xc0] sm:$0xff]
      %v203 = vld [vmem:[%s169 + $0xc8] sm:$0xff]
      %v204 = vld [vmem:[%s169 + $0xd0] sm:$0xff]
      %v205 = vld [vmem:[%s169 + $0xd8] sm:$0xff]
      %v206 = vld [vmem:[%s169 + $0xe0] sm:$0xff]
      %v207 = vld [vmem:[%s169 + $0xe8] sm:$0xff]
      %v208 = vld [vmem:[%s169 + $0xf0] sm:$0xff]
      %v209 = vld [vmem:[%s169 + $0xf8] sm:$0xff]
      %v210 = vld [vmem:[%s169 + $0x100] sm:$0xff]
      %v211 = vld [vmem:[%s169 + $0x108] sm:$0xff]
      %v212 = vld [vmem:[%s169 + $0x110] sm:$0xff]
      %v213 = vld [vmem:[%s169 + $0x118] sm:$0xff]
      %v214 = vld [vmem:[%s169 + $0x120] sm:$0xff]
      %v215 = vld [vmem:[%s169 + $0x128] sm:$0xff]
      %v216 = vld [vmem:[%s169 + $0x130] sm:$0xff]
      %v217 = vld [vmem:[%s169 + $0x138] sm:$0xff]
      %v218 = vld [vmem:[%s169 + $0x140] sm:$0xff]
      %v219 = vld [vmem:[%s169 + $0x148] sm:$0xff]
      %v220 = vld [vmem:[%s169 + $0x150] sm:$0xff]
      %v221 = vld [vmem:[%s169 + $0x158] sm:$0xff]
      %v222 = vld [vmem:[%s169 + $0x160] sm:$0xff]
      %v223 = vld [vmem:[%s169 + $0x168] sm:$0xff]
      %v224 = vld [vmem:[%s169 + $0x170] sm:$0xff]
      %v225 = vld [vmem:[%s169 + $0x178] sm:$0xff]
      %v226 = vld [vmem:[%s169 + $0x180] sm:$0xff]
      %v227 = vld [vmem:[%s169 + $0x188] sm:$0xff]
      %v228 = vld [vmem:[%s169 + $0x190] sm:$0xff]
      %v229 = vld [vmem:[%s169 + $0x198] sm:$0xff]
      %v230 = vld [vmem:[%s169 + $0x1a0] sm:$0xff]
      %v231 = vld [vmem:[%s169 + $0x1a8] sm:$0xff]
      %v232 = vld [vmem:[%s169 + $0x1b0] sm:$0xff]
      %v233 = vld [vmem:[%s169 + $0x1b8] sm:$0xff]
      %v234 = vld [vmem:[%s169 + $0x1c0] sm:$0xff]
      %v235 = vld [vmem:[%s169 + $0x1c8] sm:$0xff]
      %v236 = vld [vmem:[%s169 + $0x1d0] sm:$0xff]
      %v237 = vld [vmem:[%s169 + $0x1d8] sm:$0xff]
      %v238 = vld [vmem:[%s169 + $0x1e0] sm:$0xff]
      %v239 = vld [vmem:[%s169 + $0x1e8] sm:$0xff]
      %v240 = vld [vmem:[%s169 + $0x1f0] sm:$0xff]
      %v241 = vld [vmem:[%s169 + $0x1f8] sm:$0xff]
      %v242 = vld [vmem:[%s1] sm:$0xf]
      %v243 = vld [vmem:[%s1 + $0x4] sm:$0xf]
      %v244 = vld [vmem:[%s1 + $0x8] sm:$0xf]
      %v245 = vld [vmem:[%s1 + $0xc] sm:$0xf]
      %v246 = vld [vmem:[%s1 + $0x10] sm:$0xf]
      %v247 = vld [vmem:[%s1 + $0x14] sm:$0xf]
      %v248 = vld [vmem:[%s1 + $0x18] sm:$0xf]
      %v249 = vld [vmem:[%s1 + $0x1c] sm:$0xf]
      %v250 = vld [vmem:[%s1 + $0x20] sm:$0xf]
      %v251 = vld [vmem:[%s1 + $0x24] sm:$0xf]
      %v252 = vld [vmem:[%s1 + $0x28] sm:$0xf]
      %v253 = vld [vmem:[%s1 + $0x2c] sm:$0xf]
      %v254 = vld [vmem:[%s1 + $0x30] sm:$0xf]
      %v255 = vld [vmem:[%s1 + $0x34] sm:$0xf]
      %v256 = vld [vmem:[%s1 + $0x38] sm:$0xf]
      %v257 = vld [vmem:[%s1 + $0x3c] sm:$0xf]
      %v258 = vld [vmem:[%s1 + $0x40] sm:$0xf]
      %v259 = vld [vmem:[%s1 + $0x44] sm:$0xf]
      %v260 = vld [vmem:[%s2] sm:$0x1]
      %v262 = vlaneseq
      %v263 = vshrl.u32 %v262, 7
      %v264 = vsub.s32 0, %v263
      %v265 = vrot.slane %v260, %v264
      %v331 = vunpack.c.l.b16 %v178
      %v332 = vunpack.c.h.b16 %v178
      %v333 = vunpack.c.l.b16 %v179
      %v334 = vunpack.c.h.b16 %v179
      %v335 = vunpack.c.l.b16 %v180
      %v336 = vunpack.c.h.b16 %v180
      %v337 = vunpack.c.l.b16 %v181
      %v338 = vunpack.c.h.b16 %v181
      %v339 = vunpack.c.l.b16 %v182
      %v340 = vunpack.c.h.b16 %v182
      %v341 = vunpack.c.l.b16 %v183
      %v342 = vunpack.c.h.b16 %v183
      %v343 = vunpack.c.l.b16 %v184
      %v344 = vunpack.c.h.b16 %v184
      %v345 = vunpack.c.l.b16 %v185
      %v346 = vunpack.c.h.b16 %v185
      %v347 = vunpack.c.l.b16 %v186
      %v348 = vunpack.c.h.b16 %v186
      %v349 = vunpack.c.l.b16 %v187
      %v350 = vunpack.c.h.b16 %v187
      %v351 = vunpack.c.l.b16 %v188
      %v352 = vunpack.c.h.b16 %v188
      %v353 = vunpack.c.l.b16 %v189
      %v354 = vunpack.c.h.b16 %v189
      %v355 = vunpack.c.l.b16 %v190
      %v356 = vunpack.c.h.b16 %v190
      %v357 = vunpack.c.l.b16 %v191
      %v358 = vunpack.c.h.b16 %v191
      %v359 = vunpack.c.l.b16 %v192
      %v360 = vunpack.c.h.b16 %v192
      %v361 = vunpack.c.l.b16 %v193
      %v362 = vunpack.c.h.b16 %v193
      %v363 = vunpack.c.l.b16 %v194
      %v364 = vunpack.c.h.b16 %v194
      %v365 = vunpack.c.l.b16 %v195
      %v366 = vunpack.c.h.b16 %v195
      %v367 = vunpack.c.l.b16 %v196
      %v368 = vunpack.c.h.b16 %v196
      %v369 = vunpack.c.l.b16 %v197
      %v370 = vunpack.c.h.b16 %v197
      %v371 = vunpack.c.l.b16 %v198
      %v372 = vunpack.c.h.b16 %v198
      %v373 = vunpack.c.l.b16 %v199
      %v374 = vunpack.c.h.b16 %v199
      %v375 = vunpack.c.l.b16 %v200
      %v376 = vunpack.c.h.b16 %v200
      %v377 = vunpack.c.l.b16 %v201
      %v378 = vunpack.c.h.b16 %v201
      %v379 = vunpack.c.l.b16 %v202
      %v380 = vunpack.c.h.b16 %v202
      %v381 = vunpack.c.l.b16 %v203
      %v382 = vunpack.c.h.b16 %v203
      %v383 = vunpack.c.l.b16 %v204
      %v384 = vunpack.c.h.b16 %v204
      %v385 = vunpack.c.l.b16 %v205
      %v386 = vunpack.c.h.b16 %v205
      %v387 = vunpack.c.l.b16 %v206
      %v388 = vunpack.c.h.b16 %v206
      %v389 = vunpack.c.l.b16 %v207
      %v390 = vunpack.c.h.b16 %v207
      %v391 = vunpack.c.l.b16 %v208
      %v392 = vunpack.c.h.b16 %v208
      %v393 = vunpack.c.l.b16 %v209
      %v394 = vunpack.c.h.b16 %v209
      %v395 = vunpack.c.l.b16 %v210
      %v396 = vunpack.c.h.b16 %v210
      %v397 = vunpack.c.l.b16 %v211
      %v398 = vunpack.c.h.b16 %v211
      %v399 = vunpack.c.l.b16 %v212
      %v400 = vunpack.c.h.b16 %v212
      %v401 = vunpack.c.l.b16 %v213
      %v402 = vunpack.c.h.b16 %v213
      %v403 = vunpack.c.l.b16 %v214
      %v404 = vunpack.c.h.b16 %v214
      %v405 = vunpack.c.l.b16 %v215
      %v406 = vunpack.c.h.b16 %v215
      %v407 = vunpack.c.l.b16 %v216
      %v408 = vunpack.c.h.b16 %v216
      %v409 = vunpack.c.l.b16 %v217
      %v410 = vunpack.c.h.b16 %v217
      %v411 = vunpack.c.l.b16 %v218
      %v412 = vunpack.c.h.b16 %v218
      %v413 = vunpack.c.l.b16 %v219
      %v414 = vunpack.c.h.b16 %v219
      %v415 = vunpack.c.l.b16 %v220
      %v416 = vunpack.c.h.b16 %v220
      %v417 = vunpack.c.l.b16 %v221
      %v418 = vunpack.c.h.b16 %v221
      %v419 = vunpack.c.l.b16 %v222
      %v420 = vunpack.c.h.b16 %v222
      %v421 = vunpack.c.l.b16 %v223
      %v422 = vunpack.c.h.b16 %v223
      %v423 = vunpack.c.l.b16 %v224
      %v424 = vunpack.c.h.b16 %v224
      %v425 = vunpack.c.l.b16 %v225
      %v426 = vunpack.c.h.b16 %v225
      %v427 = vunpack.c.l.b16 %v226
      %v428 = vunpack.c.h.b16 %v226
      %v429 = vunpack.c.l.b16 %v227
      %v430 = vunpack.c.h.b16 %v227
      %v431 = vunpack.c.l.b16 %v228
      %v432 = vunpack.c.h.b16 %v228
      %v433 = vunpack.c.l.b16 %v229
      %v434 = vunpack.c.h.b16 %v229
      %v435 = vunpack.c.l.b16 %v230
      %v436 = vunpack.c.h.b16 %v230
      %v437 = vunpack.c.l.b16 %v231
      %v438 = vunpack.c.h.b16 %v231
      %v439 = vunpack.c.l.b16 %v232
      %v440 = vunpack.c.h.b16 %v232
      %v441 = vunpack.c.l.b16 %v233
      %v442 = vunpack.c.h.b16 %v233
      %v443 = vunpack.c.l.b16 %v234
      %v444 = vunpack.c.h.b16 %v234
      %v445 = vunpack.c.l.b16 %v235
      %v446 = vunpack.c.h.b16 %v235
      %v447 = vunpack.c.l.b16 %v236
      %v448 = vunpack.c.h.b16 %v236
      %v449 = vunpack.c.l.b16 %v237
      %v450 = vunpack.c.h.b16 %v237
      %v451 = vunpack.c.l.b16 %v238
      %v452 = vunpack.c.h.b16 %v238
      %v453 = vunpack.c.l.b16 %v239
      %v454 = vunpack.c.h.b16 %v239
      %v455 = vunpack.c.l.b16 %v240
      %v456 = vunpack.c.h.b16 %v240
      %v457 = vunpack.c.l.b16 %v241
      %v458 = vunpack.c.h.b16 %v241
      %v459 = vpack.c.b16 %v333, %v331
      %v460 = vpack.c.b16 %v334, %v332
      %v461 = vpack.c.b16 %v337, %v335
      %v462 = vpack.c.b16 %v338, %v336
      %v463 = vpack.c.b16 %v341, %v339
      %v464 = vpack.c.b16 %v342, %v340
      %v465 = vpack.c.b16 %v345, %v343
      %v466 = vpack.c.b16 %v346, %v344
      %v467 = vpack.c.b16 %v349, %v347
      %v468 = vpack.c.b16 %v350, %v348
      %v469 = vpack.c.b16 %v353, %v351
      %v470 = vpack.c.b16 %v354, %v352
      %v471 = vpack.c.b16 %v357, %v355
      %v472 = vpack.c.b16 %v358, %v356
      %v473 = vpack.c.b16 %v361, %v359
      %v474 = vpack.c.b16 %v362, %v360
      %v475 = vpack.c.b16 %v365, %v363
      %v476 = vpack.c.b16 %v366, %v364
      %v477 = vpack.c.b16 %v369, %v367
      %v478 = vpack.c.b16 %v370, %v368
      %v479 = vpack.c.b16 %v373, %v371
      %v480 = vpack.c.b16 %v374, %v372
      %v481 = vpack.c.b16 %v377, %v375
      %v482 = vpack.c.b16 %v378, %v376
      %v483 = vpack.c.b16 %v381, %v379
      %v484 = vpack.c.b16 %v382, %v380
      %v485 = vpack.c.b16 %v385, %v383
      %v486 = vpack.c.b16 %v386, %v384
      %v487 = vpack.c.b16 %v389, %v387
      %v488 = vpack.c.b16 %v390, %v388
      %v489 = vpack.c.b16 %v393, %v391
      %v490 = vpack.c.b16 %v394, %v392
      %v491 = vpack.c.b16 %v397, %v395
      %v492 = vpack.c.b16 %v398, %v396
      %v493 = vpack.c.b16 %v401, %v399
      %v494 = vpack.c.b16 %v402, %v400
      %v495 = vpack.c.b16 %v405, %v403
      %v496 = vpack.c.b16 %v406, %v404
      %v497 = vpack.c.b16 %v409, %v407
      %v498 = vpack.c.b16 %v410, %v408
      %v499 = vpack.c.b16 %v413, %v411
      %v500 = vpack.c.b16 %v414, %v412
      %v501 = vpack.c.b16 %v417, %v415
      %v502 = vpack.c.b16 %v418, %v416
      %v503 = vpack.c.b16 %v421, %v419
      %v504 = vpack.c.b16 %v422, %v420
      %v505 = vpack.c.b16 %v425, %v423
      %v506 = vpack.c.b16 %v426, %v424
      %v507 = vpack.c.b16 %v429, %v427
      %v508 = vpack.c.b16 %v430, %v428
      %v509 = vpack.c.b16 %v433, %v431
      %v510 = vpack.c.b16 %v434, %v432
      %v511 = vpack.c.b16 %v437, %v435
      %v512 = vpack.c.b16 %v438, %v436
      %v513 = vpack.c.b16 %v441, %v439
      %v514 = vpack.c.b16 %v442, %v440
      %v515 = vpack.c.b16 %v445, %v443
      %v516 = vpack.c.b16 %v446, %v444
      %v517 = vpack.c.b16 %v449, %v447
      %v518 = vpack.c.b16 %v450, %v448
      %v519 = vpack.c.b16 %v453, %v451
      %v520 = vpack.c.b16 %v454, %v452
      %v521 = vpack.c.b16 %v457, %v455
      %v522 = vpack.c.b16 %v458, %v456
      %v573 = vunpack.c.l.b16 %v242
      %v574 = vunpack.c.l.b16 %v243
      %v575 = vunpack.c.l.b16 %v244
      %v576 = vunpack.c.l.b16 %v245
      %v577 = vunpack.c.l.b16 %v246
      %v578 = vunpack.c.l.b16 %v247
      %v579 = vunpack.c.l.b16 %v248
      %v580 = vunpack.c.l.b16 %v249
      %v581 = vunpack.c.l.b16 %v250
      %v582 = vunpack.c.l.b16 %v251
      %v583 = vunpack.c.l.b16 %v252
      %v584 = vunpack.c.l.b16 %v253
      %v585 = vunpack.c.l.b16 %v254
      %v586 = vunpack.c.l.b16 %v255
      %v587 = vunpack.c.l.b16 %v256
      %v588 = vunpack.c.l.b16 %v257
      %v589 = vunpack.c.l.b16 %v258
      %v590 = vunpack.c.l.b16 %v259
      %v591 = vpack.c.b16 %v574, %v573
      %v592 = vpack.c.b16 %v576, %v575
      %v593 = vpack.c.b16 %v578, %v577
      %v594 = vpack.c.b16 %v580, %v579
      %v595 = vpack.c.b16 %v582, %v581
      %v596 = vpack.c.b16 %v584, %v583
      %v597 = vpack.c.b16 %v586, %v585
      %v598 = vpack.c.b16 %v588, %v587
      %v599 = vpack.c.b16 %v590, %v589
      %vm609 = vcmask 130048
      %v611 = vsel %vm609, %v460, 0
      %v614 = vsel %vm609, %v462, 0
      %v617 = vsel %vm609, %v464, 0
      %v620 = vsel %vm609, %v466, 0
      %v623 = vsel %vm609, %v468, 0
      %v626 = vsel %vm609, %v470, 0
      %v629 = vsel %vm609, %v472, 0
      %v632 = vsel %vm609, %v474, 0
      %v635 = vsel %vm609, %v476, 0
      %v638 = vsel %vm609, %v478, 0
      %v641 = vsel %vm609, %v480, 0
      %v644 = vsel %vm609, %v482, 0
      %v647 = vsel %vm609, %v484, 0
      %v650 = vsel %vm609, %v486, 0
      %v653 = vsel %vm609, %v488, 0
      %v656 = vsel %vm609, %v490, 0
      %v659 = vsel %vm609, %v492, 0
      %v662 = vsel %vm609, %v494, 0
      %v665 = vsel %vm609, %v496, 0
      %v668 = vsel %vm609, %v498, 0
      %v671 = vsel %vm609, %v500, 0
      %v674 = vsel %vm609, %v502, 0
      %v677 = vsel %vm609, %v504, 0
      %v680 = vsel %vm609, %v506, 0
      %v683 = vsel %vm609, %v508, 0
      %v686 = vsel %vm609, %v510, 0
      %v689 = vsel %vm609, %v512, 0
      %v692 = vsel %vm609, %v514, 0
      %v695 = vsel %vm609, %v516, 0
      %v698 = vsel %vm609, %v518, 0
      %v701 = vsel %vm609, %v520, 0
      %v704 = vsel %vm609, %v522, 0
      %706 = vmatprep.subr.bf16.mxu0 0
      %707 = vmatpush1.bf16.msra.mxu0 %v591
      %708 = vmatprep.subr.bf16.mxu0 0
      %709 = vmatpush1.bf16.msra.mxu0 %v592
      %710 = vmatprep.subr.bf16.mxu0 0
      %711 = vmatpush1.bf16.msra.mxu0 %v593
      %712 = vmatprep.subr.bf16.mxu0 0
      %713 = vmatpush1.bf16.msra.mxu0 %v594
      %714 = vmatprep.subr.bf16.mxu0 0
      %715 = vmatpush1.bf16.msra.mxu0 %v595
      %716 = vmatprep.subr.bf16.mxu0 0
      %717 = vmatpush1.bf16.msra.mxu0 %v596
      %718 = vmatprep.subr.bf16.mxu0 0
      %719 = vmatpush1.bf16.msra.mxu0 %v597
      %720 = vmatprep.subr.bf16.mxu0 0
      %721 = vmatpush1.bf16.msra.mxu0 %v598
      %722 = vmatprep.subr.bf16.mxu0 0
      %723 = vmatpush1.bf16.msra.mxu0 %v599
      %724 = vmatprep.subr.bf16.mxu0 0
      %725 = vmatpush1.bf16.msra.mxu0 0
      %726 = vmatprep.subr.bf16.mxu0 0
      %727 = vmatpush1.bf16.msra.mxu0 0
      %728 = vmatprep.subr.bf16.mxu0 0
      %729 = vmatpush1.bf16.msra.mxu0 0
      %730 = vmatprep.subr.bf16.mxu0 0
      %731 = vmatpush1.bf16.msra.mxu0 0
      %732 = vmatprep.subr.bf16.mxu0 0
      %733 = vmatpush1.bf16.msra.mxu0 0
      %734 = vmatprep.subr.bf16.mxu0 0
      %735 = vmatpush1.bf16.msra.mxu0 0
      %736 = vmatprep.subr.bf16.mxu0 0
      %737 = vmatpush1.bf16.msra.mxu0 0
      %738 = vmatprep.mubr.bf16.mxu0 %v611
      %739 = vmatmul.mubr.bf16.gmra.mrb[0].mxu0 %v459
      %v740 = vpop.f32.mrb[0].mxu0
      %v741 = vadd.f32 %v265, %v740
      %v742 = vpop.f32.mrb[0].mxu0
      %v743 = vpop.f32.mrb[0].mxu0
      %v744 = vadd.f32 %v265, %v743
      %v745 = vpop.f32.mrb[0].mxu0
      %746 = vmatprep.mubr.bf16.mxu0 %v614
      %747 = vmatmul.mubr.bf16.gmra.mrb[0].mxu0 %v461
      %v748 = vpop.f32.mrb[0].mxu0
      %v749 = vadd.f32 %v265, %v748
      %v750 = vpop.f32.mrb[0].mxu0
      %v751 = vpop.f32.mrb[0].mxu0
      %v752 = vadd.f32 %v265, %v751
      %v753 = vpop.f32.mrb[0].mxu0
      %754 = vmatprep.mubr.bf16.mxu0 %v617
      %755 = vmatmul.mubr.bf16.gmra.mrb[0].mxu0 %v463
      %v756 = vpop.f32.mrb[0].mxu0
      %v757 = vadd.f32 %v265, %v756
      %v758 = vpop.f32.mrb[0].mxu0
      %v759 = vpop.f32.mrb[0].mxu0
      %v760 = vadd.f32 %v265, %v759
      %v761 = vpop.f32.mrb[0].mxu0
      %762 = vmatprep.mubr.bf16.mxu0 %v620
      %763 = vmatmul.mubr.bf16.gmra.mrb[0].mxu0 %v465
      %v764 = vpop.f32.mrb[0].mxu0
      %v765 = vadd.f32 %v265, %v764
      %v766 = vpop.f32.mrb[0].mxu0
      %v767 = vpop.f32.mrb[0].mxu0
      %v768 = vadd.f32 %v265, %v767
      %v769 = vpop.f32.mrb[0].mxu0
      %770 = vmatprep.mubr.bf16.mxu0 %v623
      %771 = vmatmul.mubr.bf16.gmra.mrb[0].mxu0 %v467
      %v772 = vpop.f32.mrb[0].mxu0
      %v773 = vadd.f32 %v265, %v772
      %v774 = vpop.f32.mrb[0].mxu0
      %v775 = vpop.f32.mrb[0].mxu0
      %v776 = vadd.f32 %v265, %v775
      %v777 = vpop.f32.mrb[0].mxu0
      %778 = vmatprep.mubr.bf16.mxu0 %v626
      %779 = vmatmul.mubr.bf16.gmra.mrb[0].mxu0 %v469
      %v780 = vpop.f32.mrb[0].mxu0
      %v781 = vadd.f32 %v265, %v780
      %v782 = vpop.f32.mrb[0].mxu0
      %v783 = vpop.f32.mrb[0].mxu0
      %v784 = vadd.f32 %v265, %v783
      %v785 = vpop.f32.mrb[0].mxu0
      %786 = vmatprep.mubr.bf16.mxu0 %v629
      %787 = vmatmul.mubr.bf16.gmra.mrb[0].mxu0 %v471
      %v788 = vpop.f32.mrb[0].mxu0
      %v789 = vadd.f32 %v265, %v788
      %v790 = vpop.f32.mrb[0].mxu0
      %v791 = vpop.f32.mrb[0].mxu0
      %v792 = vadd.f32 %v265, %v791
      %v793 = vpop.f32.mrb[0].mxu0
      %794 = vmatprep.mubr.bf16.mxu0 %v632
      %795 = vmatmul.mubr.bf16.gmra.mrb[0].mxu0 %v473
      %v796 = vpop.f32.mrb[0].mxu0
      %v797 = vadd.f32 %v265, %v796
      %v798 = vpop.f32.mrb[0].mxu0
      %v799 = vpop.f32.mrb[0].mxu0
      %v800 = vadd.f32 %v265, %v799
      %v801 = vpop.f32.mrb[0].mxu0
      %802 = vmatprep.mubr.bf16.mxu0 %v635
      %803 = vmatmul.mubr.bf16.gmra.mrb[0].mxu0 %v475
      %v804 = vpop.f32.mrb[0].mxu0
      %v805 = vadd.f32 %v265, %v804
      %v806 = vpop.f32.mrb[0].mxu0
      %v807 = vpop.f32.mrb[0].mxu0
      %v808 = vadd.f32 %v265, %v807
      %v809 = vpop.f32.mrb[0].mxu0
      %810 = vmatprep.mubr.bf16.mxu0 %v638
      %811 = vmatmul.mubr.bf16.gmra.mrb[0].mxu0 %v477
      %v812 = vpop.f32.mrb[0].mxu0
      %v813 = vadd.f32 %v265, %v812
      %v814 = vpop.f32.mrb[0].mxu0
      %v815 = vpop.f32.mrb[0].mxu0
      %v816 = vadd.f32 %v265, %v815
      %v817 = vpop.f32.mrb[0].mxu0
      %818 = vmatprep.mubr.bf16.mxu0 %v641
      %819 = vmatmul.mubr.bf16.gmra.mrb[0].mxu0 %v479
      %v820 = vpop.f32.mrb[0].mxu0
      %v821 = vadd.f32 %v265, %v820
      %v822 = vpop.f32.mrb[0].mxu0
      %v823 = vpop.f32.mrb[0].mxu0
      %v824 = vadd.f32 %v265, %v823
      %v825 = vpop.f32.mrb[0].mxu0
      %826 = vmatprep.mubr.bf16.mxu0 %v644
      %827 = vmatmul.mubr.bf16.gmra.mrb[0].mxu0 %v481
      %v828 = vpop.f32.mrb[0].mxu0
      %v829 = vadd.f32 %v265, %v828
      %v830 = vpop.f32.mrb[0].mxu0
      %v831 = vpop.f32.mrb[0].mxu0
      %v832 = vadd.f32 %v265, %v831
      %v833 = vpop.f32.mrb[0].mxu0
      %834 = vmatprep.mubr.bf16.mxu0 %v647
      %835 = vmatmul.mubr.bf16.gmra.mrb[0].mxu0 %v483
      %v836 = vpop.f32.mrb[0].mxu0
      %v837 = vadd.f32 %v265, %v836
      %v838 = vpop.f32.mrb[0].mxu0
      %v839 = vpop.f32.mrb[0].mxu0
      %v840 = vadd.f32 %v265, %v839
      %v841 = vpop.f32.mrb[0].mxu0
      %842 = vmatprep.mubr.bf16.mxu0 %v650
      %843 = vmatmul.mubr.bf16.gmra.mrb[0].mxu0 %v485
      %v844 = vpop.f32.mrb[0].mxu0
      %v845 = vadd.f32 %v265, %v844
      %v846 = vpop.f32.mrb[0].mxu0
      %v847 = vpop.f32.mrb[0].mxu0
      %v848 = vadd.f32 %v265, %v847
      %v849 = vpop.f32.mrb[0].mxu0
      %850 = vmatprep.mubr.bf16.mxu0 %v653
      %851 = vmatmul.mubr.bf16.gmra.mrb[0].mxu0 %v487
      %v852 = vpop.f32.mrb[0].mxu0
      %v853 = vadd.f32 %v265, %v852
      %v854 = vpop.f32.mrb[0].mxu0
      %v855 = vpop.f32.mrb[0].mxu0
      %v856 = vadd.f32 %v265, %v855
      %v857 = vpop.f32.mrb[0].mxu0
      %858 = vmatprep.mubr.bf16.mxu0 %v656
      %859 = vmatmul.mubr.bf16.gmra.mrb[0].mxu0 %v489
      %v860 = vpop.f32.mrb[0].mxu0
      %v861 = vadd.f32 %v265, %v860
      %v862 = vpop.f32.mrb[0].mxu0
      %v863 = vpop.f32.mrb[0].mxu0
      %v864 = vadd.f32 %v265, %v863
      %v865 = vpop.f32.mrb[0].mxu0
      %866 = vmatprep.mubr.bf16.mxu0 %v659
      %867 = vmatmul.mubr.bf16.gmra.mrb[0].mxu0 %v491
      %v868 = vpop.f32.mrb[0].mxu0
      %v869 = vadd.f32 %v265, %v868
      %v870 = vpop.f32.mrb[0].mxu0
      %v871 = vpop.f32.mrb[0].mxu0
      %v872 = vadd.f32 %v265, %v871
      %v873 = vpop.f32.mrb[0].mxu0
      %874 = vmatprep.mubr.bf16.mxu0 %v662
      %875 = vmatmul.mubr.bf16.gmra.mrb[0].mxu0 %v493
      %v876 = vpop.f32.mrb[0].mxu0
      %v877 = vadd.f32 %v265, %v876
      %v878 = vpop.f32.mrb[0].mxu0
      %v879 = vpop.f32.mrb[0].mxu0
      %v880 = vadd.f32 %v265, %v879
      %v881 = vpop.f32.mrb[0].mxu0
      %882 = vmatprep.mubr.bf16.mxu0 %v665
      %883 = vmatmul.mubr.bf16.gmra.mrb[0].mxu0 %v495
      %v884 = vpop.f32.mrb[0].mxu0
      %v885 = vadd.f32 %v265, %v884
      %v886 = vpop.f32.mrb[0].mxu0
      %v887 = vpop.f32.mrb[0].mxu0
      %v888 = vadd.f32 %v265, %v887
      %v889 = vpop.f32.mrb[0].mxu0
      %890 = vmatprep.mubr.bf16.mxu0 %v668
      %891 = vmatmul.mubr.bf16.gmra.mrb[0].mxu0 %v497
      %v892 = vpop.f32.mrb[0].mxu0
      %v893 = vadd.f32 %v265, %v892
      %v894 = vpop.f32.mrb[0].mxu0
      %v895 = vpop.f32.mrb[0].mxu0
      %v896 = vadd.f32 %v265, %v895
      %v897 = vpop.f32.mrb[0].mxu0
      %898 = vmatprep.mubr.bf16.mxu0 %v671
      %899 = vmatmul.mubr.bf16.gmra.mrb[0].mxu0 %v499
      %v900 = vpop.f32.mrb[0].mxu0
      %v901 = vadd.f32 %v265, %v900
      %v902 = vpop.f32.mrb[0].mxu0
      %v903 = vpop.f32.mrb[0].mxu0
      %v904 = vadd.f32 %v265, %v903
      %v905 = vpop.f32.mrb[0].mxu0
      %906 = vmatprep.mubr.bf16.mxu0 %v674
      %907 = vmatmul.mubr.bf16.gmra.mrb[0].mxu0 %v501
      %v908 = vpop.f32.mrb[0].mxu0
      %v909 = vadd.f32 %v265, %v908
      %v910 = vpop.f32.mrb[0].mxu0
      %v911 = vpop.f32.mrb[0].mxu0
      %v912 = vadd.f32 %v265, %v911
      %v913 = vpop.f32.mrb[0].mxu0
      %914 = vmatprep.mubr.bf16.mxu0 %v677
      %915 = vmatmul.mubr.bf16.gmra.mrb[0].mxu0 %v503
      %v916 = vpop.f32.mrb[0].mxu0
      %v917 = vadd.f32 %v265, %v916
      %v918 = vpop.f32.mrb[0].mxu0
      %v919 = vpop.f32.mrb[0].mxu0
      %v920 = vadd.f32 %v265, %v919
      %v921 = vpop.f32.mrb[0].mxu0
      %922 = vmatprep.mubr.bf16.mxu0 %v680
      %923 = vmatmul.mubr.bf16.gmra.mrb[0].mxu0 %v505
      %v924 = vpop.f32.mrb[0].mxu0
      %v925 = vadd.f32 %v265, %v924
      %v926 = vpop.f32.mrb[0].mxu0
      %v927 = vpop.f32.mrb[0].mxu0
      %v928 = vadd.f32 %v265, %v927
      %v929 = vpop.f32.mrb[0].mxu0
      %930 = vmatprep.mubr.bf16.mxu0 %v683
      %931 = vmatmul.mubr.bf16.gmra.mrb[0].mxu0 %v507
      %v932 = vpop.f32.mrb[0].mxu0
      %v933 = vadd.f32 %v265, %v932
      %v934 = vpop.f32.mrb[0].mxu0
      %v935 = vpop.f32.mrb[0].mxu0
      %v936 = vadd.f32 %v265, %v935
      %v937 = vpop.f32.mrb[0].mxu0
      %938 = vmatprep.mubr.bf16.mxu0 %v686
      %939 = vmatmul.mubr.bf16.gmra.mrb[0].mxu0 %v509
      %v940 = vpop.f32.mrb[0].mxu0
      %v941 = vadd.f32 %v265, %v940
      %v942 = vpop.f32.mrb[0].mxu0
      %v943 = vpop.f32.mrb[0].mxu0
      %v944 = vadd.f32 %v265, %v943
      %v945 = vpop.f32.mrb[0].mxu0
      %946 = vmatprep.mubr.bf16.mxu0 %v689
      %947 = vmatmul.mubr.bf16.gmra.mrb[0].mxu0 %v511
      %v948 = vpop.f32.mrb[0].mxu0
      %v949 = vadd.f32 %v265, %v948
      %v950 = vpop.f32.mrb[0].mxu0
      %v951 = vpop.f32.mrb[0].mxu0
      %v952 = vadd.f32 %v265, %v951
      %v953 = vpop.f32.mrb[0].mxu0
      %954 = vmatprep.mubr.bf16.mxu0 %v692
      %955 = vmatmul.mubr.bf16.gmra.mrb[0].mxu0 %v513
      %v956 = vpop.f32.mrb[0].mxu0
      %v957 = vadd.f32 %v265, %v956
      %v958 = vpop.f32.mrb[0].mxu0
      %v959 = vpop.f32.mrb[0].mxu0
      %v960 = vadd.f32 %v265, %v959
      %v961 = vpop.f32.mrb[0].mxu0
      %962 = vmatprep.mubr.bf16.mxu0 %v695
      %963 = vmatmul.mubr.bf16.gmra.mrb[0].mxu0 %v515
      %v964 = vpop.f32.mrb[0].mxu0
      %v965 = vadd.f32 %v265, %v964
      %v966 = vpop.f32.mrb[0].mxu0
      %v967 = vpop.f32.mrb[0].mxu0
      %v968 = vadd.f32 %v265, %v967
      %v969 = vpop.f32.mrb[0].mxu0
      %970 = vmatprep.mubr.bf16.mxu0 %v698
      %971 = vmatmul.mubr.bf16.gmra.mrb[0].mxu0 %v517
      %v972 = vpop.f32.mrb[0].mxu0
      %v973 = vadd.f32 %v265, %v972
      %v974 = vpop.f32.mrb[0].mxu0
      %v975 = vpop.f32.mrb[0].mxu0
      %v976 = vadd.f32 %v265, %v975
      %v977 = vpop.f32.mrb[0].mxu0
      %978 = vmatprep.mubr.bf16.mxu0 %v701
      %979 = vmatmul.mubr.bf16.gmra.mrb[0].mxu0 %v519
      %v980 = vpop.f32.mrb[0].mxu0
      %v981 = vadd.f32 %v265, %v980
      %v982 = vpop.f32.mrb[0].mxu0
      %v983 = vpop.f32.mrb[0].mxu0
      %v984 = vadd.f32 %v265, %v983
      %v985 = vpop.f32.mrb[0].mxu0
      %986 = vmatprep.mubr.bf16.mxu0 %v704
      %987 = vmatmul.mubr.bf16.gmra.mrb[0].mxu0 %v521
      %v988 = vpop.f32.mrb[0].mxu0
      %v989 = vadd.f32 %v265, %v988
      %v990 = vpop.f32.mrb[0].mxu0
      %v991 = vpop.f32.mrb[0].mxu0
      %v992 = vadd.f32 %v265, %v991
      %v993 = vpop.f32.mrb[0].mxu0
      %994 = vdwg.mxu0
      %v995 = vmax.f32 %v741, 0.0
      %v996 = vmax.f32 %v744, 0.0
      %v997 = vmax.f32 %v749, 0.0
      %v998 = vmax.f32 %v752, 0.0
      %v999 = vmax.f32 %v757, 0.0
      %v1000 = vmax.f32 %v760, 0.0
      %v1001 = vmax.f32 %v765, 0.0
      %v1002 = vmax.f32 %v768, 0.0
      %v1003 = vmax.f32 %v773, 0.0
      %v1004 = vmax.f32 %v776, 0.0
      %v1005 = vmax.f32 %v781, 0.0
      %v1006 = vmax.f32 %v784, 0.0
      %v1007 = vmax.f32 %v789, 0.0
      %v1008 = vmax.f32 %v792, 0.0
      %v1009 = vmax.f32 %v797, 0.0
      %v1010 = vmax.f32 %v800, 0.0
      %v1011 = vmax.f32 %v805, 0.0
      %v1012 = vmax.f32 %v808, 0.0
      %v1013 = vmax.f32 %v813, 0.0
      %v1014 = vmax.f32 %v816, 0.0
      %v1015 = vmax.f32 %v821, 0.0
      %v1016 = vmax.f32 %v824, 0.0
      %v1017 = vmax.f32 %v829, 0.0
      %v1018 = vmax.f32 %v832, 0.0
      %v1019 = vmax.f32 %v837, 0.0
      %v1020 = vmax.f32 %v840, 0.0
      %v1021 = vmax.f32 %v845, 0.0
      %v1022 = vmax.f32 %v848, 0.0
      %v1023 = vmax.f32 %v853, 0.0
      %v1024 = vmax.f32 %v856, 0.0
      %v1025 = vmax.f32 %v861, 0.0
      %v1026 = vmax.f32 %v864, 0.0
      %v1027 = vmax.f32 %v869, 0.0
      %v1028 = vmax.f32 %v872, 0.0
      %v1029 = vmax.f32 %v877, 0.0
      %v1030 = vmax.f32 %v880, 0.0
      %v1031 = vmax.f32 %v885, 0.0
      %v1032 = vmax.f32 %v888, 0.0
      %v1033 = vmax.f32 %v893, 0.0
      %v1034 = vmax.f32 %v896, 0.0
      %v1035 = vmax.f32 %v901, 0.0
      %v1036 = vmax.f32 %v904, 0.0
      %v1037 = vmax.f32 %v909, 0.0
      %v1038 = vmax.f32 %v912, 0.0
      %v1039 = vmax.f32 %v917, 0.0
      %v1040 = vmax.f32 %v920, 0.0
      %v1041 = vmax.f32 %v925, 0.0
      %v1042 = vmax.f32 %v928, 0.0
      %v1043 = vmax.f32 %v933, 0.0
      %v1044 = vmax.f32 %v936, 0.0
      %v1045 = vmax.f32 %v941, 0.0
      %v1046 = vmax.f32 %v944, 0.0
      %v1047 = vmax.f32 %v949, 0.0
      %v1048 = vmax.f32 %v952, 0.0
      %v1049 = vmax.f32 %v957, 0.0
      %v1050 = vmax.f32 %v960, 0.0
      %v1051 = vmax.f32 %v965, 0.0
      %v1052 = vmax.f32 %v968, 0.0
      %v1053 = vmax.f32 %v973, 0.0
      %v1054 = vmax.f32 %v976, 0.0
      %v1055 = vmax.f32 %v981, 0.0
      %v1056 = vmax.f32 %v984, 0.0
      %v1057 = vmax.f32 %v989, 0.0
      %v1058 = vmax.f32 %v992, 0.0
      %1059 = vst.msk [vmem:[%s175] sm:$0xff] %vm609, %v995
      %1060 = vst.msk [vmem:[%s175 + $0x8] sm:$0xff] %vm609, %v996
      %1061 = vst.msk [vmem:[%s175 + $0x10] sm:$0xff] %vm609, %v997
      %1062 = vst.msk [vmem:[%s175 + $0x18] sm:$0xff] %vm609, %v998
      %1063 = vst.msk [vmem:[%s175 + $0x20] sm:$0xff] %vm609, %v999
      %1064 = vst.msk [vmem:[%s175 + $0x28] sm:$0xff] %vm609, %v1000
      %1065 = vst.msk [vmem:[%s175 + $0x30] sm:$0xff] %vm609, %v1001
      %1066 = vst.msk [vmem:[%s175 + $0x38] sm:$0xff] %vm609, %v1002
      %1067 = vst.msk [vmem:[%s175 + $0x40] sm:$0xff] %vm609, %v1003
      %1068 = vst.msk [vmem:[%s175 + $0x48] sm:$0xff] %vm609, %v1004
      %1069 = vst.msk [vmem:[%s175 + $0x50] sm:$0xff] %vm609, %v1005
      %1070 = vst.msk [vmem:[%s175 + $0x58] sm:$0xff] %vm609, %v1006
      %1071 = vst.msk [vmem:[%s175 + $0x60] sm:$0xff] %vm609, %v1007
      %1072 = vst.msk [vmem:[%s175 + $0x68] sm:$0xff] %vm609, %v1008
      %1073 = vst.msk [vmem:[%s175 + $0x70] sm:$0xff] %vm609, %v1009
      %1074 = vst.msk [vmem:[%s175 + $0x78] sm:$0xff] %vm609, %v1010
      %1075 = vst.msk [vmem:[%s175 + $0x80] sm:$0xff] %vm609, %v1011
      %1076 = vst.msk [vmem:[%s175 + $0x88] sm:$0xff] %vm609, %v1012
      %1077 = vst.msk [vmem:[%s175 + $0x90] sm:$0xff] %vm609, %v1013
      %1078 = vst.msk [vmem:[%s175 + $0x98] sm:$0xff] %vm609, %v1014
      %1079 = vst.msk [vmem:[%s175 + $0xa0] sm:$0xff] %vm609, %v1015
      %1080 = vst.msk [vmem:[%s175 + $0xa8] sm:$0xff] %vm609, %v1016
      %1081 = vst.msk [vmem:[%s175 + $0xb0] sm:$0xff] %vm609, %v1017
      %1082 = vst.msk [vmem:[%s175 + $0xb8] sm:$0xff] %vm609, %v1018
      %1083 = vst.msk [vmem:[%s175 + $0xc0] sm:$0xff] %vm609, %v1019
      %1084 = vst.msk [vmem:[%s175 + $0xc8] sm:$0xff] %vm609, %v1020
      %1085 = vst.msk [vmem:[%s175 + $0xd0] sm:$0xff] %vm609, %v1021
      %1086 = vst.msk [vmem:[%s175 + $0xd8] sm:$0xff] %vm609, %v1022
      %1087 = vst.msk [vmem:[%s175 + $0xe0] sm:$0xff] %vm609, %v1023
      %1088 = vst.msk [vmem:[%s175 + $0xe8] sm:$0xff] %vm609, %v1024
      %1089 = vst.msk [vmem:[%s175 + $0xf0] sm:$0xff] %vm609, %v1025
      %1090 = vst.msk [vmem:[%s175 + $0xf8] sm:$0xff] %vm609, %v1026
      %1091 = vst.msk [vmem:[%s175 + $0x100] sm:$0xff] %vm609, %v1027
      %1092 = vst.msk [vmem:[%s175 + $0x108] sm:$0xff] %vm609, %v1028
      %1093 = vst.msk [vmem:[%s175 + $0x110] sm:$0xff] %vm609, %v1029
      %1094 = vst.msk [vmem:[%s175 + $0x118] sm:$0xff] %vm609, %v1030
      %1095 = vst.msk [vmem:[%s175 + $0x120] sm:$0xff] %vm609, %v1031
      %1096 = vst.msk [vmem:[%s175 + $0x128] sm:$0xff] %vm609, %v1032
      %1097 = vst.msk [vmem:[%s175 + $0x130] sm:$0xff] %vm609, %v1033
      %1098 = vst.msk [vmem:[%s175 + $0x138] sm:$0xff] %vm609, %v1034
      %1099 = vst.msk [vmem:[%s175 + $0x140] sm:$0xff] %vm609, %v1035
      %1100 = vst.msk [vmem:[%s175 + $0x148] sm:$0xff] %vm609, %v1036
      %1101 = vst.msk [vmem:[%s175 + $0x150] sm:$0xff] %vm609, %v1037
      %1102 = vst.msk [vmem:[%s175 + $0x158] sm:$0xff] %vm609, %v1038
      %1103 = vst.msk [vmem:[%s175 + $0x160] sm:$0xff] %vm609, %v1039
      %1104 = vst.msk [vmem:[%s175 + $0x168] sm:$0xff] %vm609, %v1040
      %1105 = vst.msk [vmem:[%s175 + $0x170] sm:$0xff] %vm609, %v1041
      %1106 = vst.msk [vmem:[%s175 + $0x178] sm:$0xff] %vm609, %v1042
      %1107 = vst.msk [vmem:[%s175 + $0x180] sm:$0xff] %vm609, %v1043
      %1108 = vst.msk [vmem:[%s175 + $0x188] sm:$0xff] %vm609, %v1044
      %1109 = vst.msk [vmem:[%s175 + $0x190] sm:$0xff] %vm609, %v1045
      %1110 = vst.msk [vmem:[%s175 + $0x198] sm:$0xff] %vm609, %v1046
      %1111 = vst.msk [vmem:[%s175 + $0x1a0] sm:$0xff] %vm609, %v1047
      %1112 = vst.msk [vmem:[%s175 + $0x1a8] sm:$0xff] %vm609, %v1048
      %1113 = vst.msk [vmem:[%s175 + $0x1b0] sm:$0xff] %vm609, %v1049
      %1114 = vst.msk [vmem:[%s175 + $0x1b8] sm:$0xff] %vm609, %v1050
      %1115 = vst.msk [vmem:[%s175 + $0x1c0] sm:$0xff] %vm609, %v1051
      %1116 = vst.msk [vmem:[%s175 + $0x1c8] sm:$0xff] %vm609, %v1052
      %1117 = vst.msk [vmem:[%s175 + $0x1d0] sm:$0xff] %vm609, %v1053
      %1118 = vst.msk [vmem:[%s175 + $0x1d8] sm:$0xff] %vm609, %v1054
      %1119 = vst.msk [vmem:[%s175 + $0x1e0] sm:$0xff] %vm609, %v1055
      %1120 = vst.msk [vmem:[%s175 + $0x1e8] sm:$0xff] %vm609, %v1056
      %1121 = vst.msk [vmem:[%s175 + $0x1f0] sm:$0xff] %vm609, %v1057
      %1122 = vst.msk [vmem:[%s175 + $0x1f8] sm:$0xff] %vm609, %v1058
      %s1123 = smul.u32 64, %s14
      %p1124 = scmp.lt.s32.totalorder %s1123, 447
      %s1125 = scalar_select %p1124, %s1123, 447
      %s1126 = smul.addr %s1125, 8
      %s1127 = scalar_lea.vmem %s3, %s1126
      // Predicated region
      $region33: #{_lambda_.12} parent=31 // pred_check
        %p1128 = pneg %p100
      $region34: #{_lambda_.12} parent=31 // pred_check_branch
        %1130 = sbr.rel (%p1128) target = $region36
      $region35: #{_lambda_.12} parent=31 // pred_region
        %s1131 = smul.u32 64, %s14
      $region36: #{_lambda_.12} parent=31 // pred_fallthru
        _
    $region32: #{_lambda_.12} parent=5 // pred_fallthru
      _
    %p1132 = scmp.le.s32.totalorder 2, %s9
    // Predicated region
    $region37: #{_lambda_.12} parent=5 // pred_check
      %p1133 = pneg %p1132
    $region38: #{_lambda_.12} parent=5 // pred_check_branch
      %1135 = sbr.rel (%p1133) target = $region40
    $region39: #{_lambda_.12} parent=5 // pred_region
      %s1136 = ssub.s32 %s9, 2
      // Predicated region
      $region41: #{_lambda_.12} parent=39 // pred_check
        %p1137 = pneg %p106
      $region42: #{_lambda_.12} parent=39 // pred_check_branch
        %1139 = sbr.rel (%p1137) target = $region44
      $region43: #{_lambda_.12} parent=39 // pred_region
        %s1140 = smul.u32 64, %s15
        %p1141 = scmp.lt.s32.totalorder %s1140, 447
        %s1142 = scalar_select %p1141, %s1140, 447
        %s1143 = smul.addr %s1142, 8
        %s1144 = scalar_lea.vmem %s3, %s1143
      $region44: #{_lambda_.12} parent=39 // pred_fallthru
        _
    $region40: #{_lambda_.12} parent=5 // pred_fallthru
      _
  $region6: #{_lambda_.12} parent=0 // loop_footer
    %s13 = sadd.s32 1, %s9
  $region7: #{_lambda_.12} parent=0 // loop_footer_branch
    %8 = sbr.rel target = $region3
  $region8: #{_lambda_.12} parent=0 // loop_exit
    _

// kernel: _lambda_.13
$region0: #{_lambda_.13}
  #allocation0 [shape = 'u32[]', space=smem, size = 0x4, offset = 0x4, fixed_abs, tag = 'smem constant byte address 0x4 - core index']
  #allocation1 [shape = 'u32[144,128]{1,0:T(1,128)}', space=vmem, size = 0x12000, scoped, tag = 'internal scratch']
  %s0 = inlined_call_operand.vmem [shape: bf16[1024,144], index: 0, kind: input, shape index: {}]
  %s1 = inlined_call_operand.vmem [shape: bf16[144,32], index: 1, kind: input, shape index: {}]
  %s2 = inlined_call_operand.vmem [shape: f32[1,32], index: 2, kind: input, shape index: {}]
  %s3 = inlined_call_operand.vmem [shape: f32[1024,32], index: 3, kind: output, shape index: {}]
  %s4 = sld [smem:[#allocation0]]
  $region45: #{_lambda_.13} parent=0
    _
  %s6 = ssub.s32 1, %s4
  %s7 = scalar_select 0, %s6, %s4
  loop: start=0, step=1, limit=4
  $region2: #{_lambda_.13} parent=0 // loop_pre_header
    _
  $region3: #{_lambda_.13} parent=0 // loop_header
    %s9 = sphi 0, %s13
    %p10 = scmp.ge.s32.totalorder %s9, 4
    %s19 = sphi 0, %s21
    %s22 = sphi 0, %s19
    %s23 = sphi 0, %s22
    %s39 = sphi 0, %s23
    %s43 = sphi 0, %s43
    %s45 = sphi 0, %s43
    %s46 = sphi 0, %s45
    %s60 = sphi 0, %s46
    %s64 = sphi 0, %s64
    %s66 = sphi 0, %s64
    %s67 = sphi 0, %s66
    %s81 = sphi 0, %s67
    %s87 = sphi 0, %s89
    %s90 = sphi 0, %s87
    %s91 = sphi 0, %s90
    %s107 = sphi 0, %s91
  $region4: #{_lambda_.13} parent=0 // loop_header_branch
    %12 = sbr.rel (%p10) target = $region8
  $region5: #{_lambda_.13} parent=0 // loop_body
    %s14 = ssub.s32 %s9, 1
    %s15 = ssub.s32 %s9, 2
    %s16 = sadd.s32 %s9, 1
    %s17 = ssub.s32 %s9, %s16
    %p18 = scmp.eq.s32.totalorder %s17, 0
    %s20 = sadd.s32 %s19, 1
    %s21 = scalar_select %p18, %s19, %s20
    %p24 = pneg %p18
    %p25 = scmp.eq.s32.totalorder %s9, 1
    %p26 = por %p24, %p25
    %p27 = scmp.ne.s32.totalorder %s19, %s22
    %p28 = scmp.eq.s32.totalorder %s9, 0
    %p29 = por %p27, %p28
    %p30 = scmp.ne.s32.totalorder %s19, %s22
    %p31 = scmp.eq.s32.totalorder %s14, 1
    %p32 = por %p30, %p31
    %p33 = scmp.ne.s32.totalorder %s22, %s23
    %p34 = scmp.eq.s32.totalorder %s14, 0
    %p35 = por %p33, %p34
    %p36 = scmp.ne.s32.totalorder %s22, %s23
    %p37 = scmp.eq.s32.totalorder %s15, 1
    %p38 = por %p36, %p37
    %p40 = scmp.ne.s32.totalorder %s23, %s39
    %p41 = scmp.eq.s32.totalorder %s15, 0
    %p42 = por %p40, %p41
    %s44 = sadd.s32 %s43, 1
    %p47 = scmp.eq.s32.totalorder %s9, 1
    %p48 = scmp.ne.s32.totalorder %s43, %s45
    %p49 = scmp.eq.s32.totalorder %s9, 0
    %p50 = por %p48, %p49
    %p51 = scmp.ne.s32.totalorder %s43, %s45
    %p52 = scmp.eq.s32.totalorder %s14, 1
    %p53 = por %p51, %p52
    %p54 = scmp.ne.s32.totalorder %s45, %s46
    %p55 = scmp.eq.s32.totalorder %s14, 0
    %p56 = por %p54, %p55
    %p57 = scmp.ne.s32.totalorder %s45, %s46
    %p58 = scmp.eq.s32.totalorder %s15, 1
    %p59 = por %p57, %p58
    %p61 = scmp.ne.s32.totalorder %s46, %s60
    %p62 = scmp.eq.s32.totalorder %s15, 0
    %p63 = por %p61, %p62
    %s65 = sadd.s32 %s64, 1
    %p68 = scmp.eq.s32.totalorder %s9, 1
    %p69 = scmp.ne.s32.totalorder %s64, %s66
    %p70 = scmp.eq.s32.totalorder %s9, 0
    %p71 = por %p69, %p70
    %p72 = scmp.ne.s32.totalorder %s64, %s66
    %p73 = scmp.eq.s32.totalorder %s14, 1
    %p74 = por %p72, %p73
    %p75 = scmp.ne.s32.totalorder %s66, %s67
    %p76 = scmp.eq.s32.totalorder %s14, 0
    %p77 = por %p75, %p76
    %p78 = scmp.ne.s32.totalorder %s66, %s67
    %p79 = scmp.eq.s32.totalorder %s15, 1
    %p80 = por %p78, %p79
    %p82 = scmp.ne.s32.totalorder %s67, %s81
    %p83 = scmp.eq.s32.totalorder %s15, 0
    %p84 = por %p82, %p83
    %s85 = ssub.s32 %s9, %s16
    %p86 = scmp.eq.s32.totalorder %s85, 0
    %s88 = sadd.s32 %s87, 1
    %s89 = scalar_select %p86, %s87, %s88
    %p92 = pneg %p86
    %p93 = scmp.eq.s32.totalorder %s9, 1
    %p94 = por %p92, %p93
    %p95 = scmp.ne.s32.totalorder %s87, %s90
    %p96 = scmp.eq.s32.totalorder %s9, 0
    %p97 = por %p95, %p96
    %p98 = scmp.ne.s32.totalorder %s87, %s90
    %p99 = scmp.eq.s32.totalorder %s14, 1
    %p100 = por %p98, %p99
    %p101 = scmp.ne.s32.totalorder %s90, %s91
    %p102 = scmp.eq.s32.totalorder %s14, 0
    %p103 = por %p101, %p102
    %p104 = scmp.ne.s32.totalorder %s90, %s91
    %p105 = scmp.eq.s32.totalorder %s15, 1
    %p106 = por %p104, %p105
    %p108 = scmp.ne.s32.totalorder %s91, %s107
    %p109 = scmp.eq.s32.totalorder %s15, 0
    %p110 = por %p108, %p109
    %p111 = scmp.le.s32.totalorder 1, %s9
    %p112 = scmp.lt.s32.totalorder %s9, 3
    %p113 = pnand %p111, %p112
    %p114 = pneg %p113
    // Predicated region
    $region9: #{_lambda_.13} parent=5 // pred_check
      _
    $region10: #{_lambda_.13} parent=5 // pred_check_branch
      %116 = sbr.rel (%p113) target = $region12
    $region11: #{_lambda_.13} parent=5 // pred_region
      %s117 = ssub.s32 %s9, 1
      // Predicated region
      $region13: #{_lambda_.13} parent=11 // pred_check
        %p118 = pneg %p56
      $region14: #{_lambda_.13} parent=11 // pred_check_branch
        %120 = sbr.rel (%p118) target = $region16
      $region15: #{_lambda_.13} parent=11 // pred_region
        _
      $region16: #{_lambda_.13} parent=11 // pred_fallthru
        _
      // Predicated region
      $region17: #{_lambda_.13} parent=11 // pred_check
        %p121 = pneg %p77
      $region18: #{_lambda_.13} parent=11 // pred_check_branch
        %123 = sbr.rel (%p121) target = $region20
      $region19: #{_lambda_.13} parent=11 // pred_region
        _
      $region20: #{_lambda_.13} parent=11 // pred_fallthru
        _
    $region12: #{_lambda_.13} parent=5 // pred_fallthru
      _
    %p124 = scmp.lt.s32.totalorder %s9, 2
    // Predicated region
    $region21: #{_lambda_.13} parent=5 // pred_check
      %p125 = pneg %p124
    $region22: #{_lambda_.13} parent=5 // pred_check_branch
      %127 = sbr.rel (%p125) target = $region24
    $region23: #{_lambda_.13} parent=5 // pred_region
      // Predicated region
      $region25: #{_lambda_.13} parent=23 // pred_check
        %p128 = pneg %p29
      $region26: #{_lambda_.13} parent=23 // pred_check_branch
        %130 = sbr.rel (%p128) target = $region28
      $region27: #{_lambda_.13} parent=23 // pred_region
        %s131 = smul.u32 64, %s9
        %p132 = scmp.lt.s32.totalorder %s131, 127
        %s133 = scalar_select %p132, %s131, 127
        %s134 = smul.addr %s133, 2
        %s135 = smul.addr %s134, 4
        %s136 = scalar_lea.vmem %s0, %s135
        %s137 = smul.u32 64, %s9
      $region28: #{_lambda_.13} parent=23 // pred_fallthru
        _
    $region24: #{_lambda_.13} parent=5 // pred_fallthru
      _
    %p138 = scmp.le.s32.totalorder 1, %s9
    %p139 = scmp.lt.s32.totalorder %s9, 3
    %p140 = pnand %p138, %p139
    %p141 = pneg %p140
    // Predicated region
    $region29: #{_lambda_.13} parent=5 // pred_check
      _
    $region30: #{_lambda_.13} parent=5 // pred_check_branch
      %143 = sbr.rel (%p140) target = $region32
    $region31: #{_lambda_.13} parent=5 // pred_region
      %s144 = ssub.s32 %s9, 1
      %s145 = smul.u32 64, %s14
      %p146 = scmp.lt.s32.totalorder %s145, 127
      %s147 = scalar_select %p146, %s145, 127
      %s148 = smul.addr %s147, 2
      %s149 = smul.addr %s148, 4
      %s150 = scalar_lea.vmem %s0, %s149
      %p151 = pneg %p35
      %p152 = pneg %p32
      %p153 = pneg %p56
      %p154 = pneg %p53
      %p155 = pneg %p77
      %p156 = pneg %p74
      %p157 = pneg %p103
      %p158 = pneg %p100
      %s159 = smul.u32 64, %s14
      %p160 = scmp.lt.s32.totalorder %s159, 127
      %s161 = scalar_select %p160, %s159, 127
      %s162 = smul.addr %s161, 8
      %s163 = scalar_lea.vmem %s3, %s162
      %s164 = smul.u32 64, %s14
      %p165 = scmp.lt.s32.totalorder %s164, 127
      %s166 = scalar_select %p165, %s164, 127
      %s167 = smul.addr %s166, 2
      %s168 = smul.addr %s167, 4
      %s169 = scalar_lea.vmem %s0, %s168
      %s170 = smul.u32 64, %s14
      %s171 = smul.u32 64, %s14
      %p172 = scmp.lt.s32.totalorder %s171, 127
      %s173 = scalar_select %p172, %s171, 127
      %s174 = smul.addr %s173, 8
      %s175 = scalar_lea.vmem %s3, %s174
      %s176 = smul.u32 64, %s14
      %v178 = vld [vmem:[%s169] sm:$0xff]
      %v179 = vld [vmem:[%s169 + $0x8] sm:$0xff]
      %v180 = vld [vmem:[%s169 + $0x10] sm:$0xff]
      %v181 = vld [vmem:[%s169 + $0x18] sm:$0xff]
      %v182 = vld [vmem:[%s169 + $0x20] sm:$0xff]
      %v183 = vld [vmem:[%s169 + $0x28] sm:$0xff]
      %v184 = vld [vmem:[%s169 + $0x30] sm:$0xff]
      %v185 = vld [vmem:[%s169 + $0x38] sm:$0xff]
      %v186 = vld [vmem:[%s169 + $0x40] sm:$0xff]
      %v187 = vld [vmem:[%s169 + $0x48] sm:$0xff]
      %v188 = vld [vmem:[%s169 + $0x50] sm:$0xff]
      %v189 = vld [vmem:[%s169 + $0x58] sm:$0xff]
      %v190 = vld [vmem:[%s169 + $0x60] sm:$0xff]
      %v191 = vld [vmem:[%s169 + $0x68] sm:$0xff]
      %v192 = vld [vmem:[%s169 + $0x70] sm:$0xff]
      %v193 = vld [vmem:[%s169 + $0x78] sm:$0xff]
      %v194 = vld [vmem:[%s169 + $0x80] sm:$0xff]
      %v195 = vld [vmem:[%s169 + $0x88] sm:$0xff]
      %v196 = vld [vmem:[%s169 + $0x90] sm:$0xff]
      %v197 = vld [vmem:[%s169 + $0x98] sm:$0xff]
      %v198 = vld [vmem:[%s169 + $0xa0] sm:$0xff]
      %v199 = vld [vmem:[%s169 + $0xa8] sm:$0xff]
      %v200 = vld [vmem:[%s169 + $0xb0] sm:$0xff]
      %v201 = vld [vmem:[%s169 + $0xb8] sm:$0xff]
      %v202 = vld [vmem:[%s169 + $0xc0] sm:$0xff]
      %v203 = vld [vmem:[%s169 + $0xc8] sm:$0xff]
      %v204 = vld [vmem:[%s169 + $0xd0] sm:$0xff]
      %v205 = vld [vmem:[%s169 + $0xd8] sm:$0xff]
      %v206 = vld [vmem:[%s169 + $0xe0] sm:$0xff]
      %v207 = vld [vmem:[%s169 + $0xe8] sm:$0xff]
      %v208 = vld [vmem:[%s169 + $0xf0] sm:$0xff]
      %v209 = vld [vmem:[%s169 + $0xf8] sm:$0xff]
      %v210 = vld [vmem:[%s169 + $0x100] sm:$0xff]
      %v211 = vld [vmem:[%s169 + $0x108] sm:$0xff]
      %v212 = vld [vmem:[%s169 + $0x110] sm:$0xff]
      %v213 = vld [vmem:[%s169 + $0x118] sm:$0xff]
      %v214 = vld [vmem:[%s169 + $0x120] sm:$0xff]
      %v215 = vld [vmem:[%s169 + $0x128] sm:$0xff]
      %v216 = vld [vmem:[%s169 + $0x130] sm:$0xff]
      %v217 = vld [vmem:[%s169 + $0x138] sm:$0xff]
      %v218 = vld [vmem:[%s169 + $0x140] sm:$0xff]
      %v219 = vld [vmem:[%s169 + $0x148] sm:$0xff]
      %v220 = vld [vmem:[%s169 + $0x150] sm:$0xff]
      %v221 = vld [vmem:[%s169 + $0x158] sm:$0xff]
      %v222 = vld [vmem:[%s169 + $0x160] sm:$0xff]
      %v223 = vld [vmem:[%s169 + $0x168] sm:$0xff]
      %v224 = vld [vmem:[%s169 + $0x170] sm:$0xff]
      %v225 = vld [vmem:[%s169 + $0x178] sm:$0xff]
      %v226 = vld [vmem:[%s169 + $0x180] sm:$0xff]
      %v227 = vld [vmem:[%s169 + $0x188] sm:$0xff]
      %v228 = vld [vmem:[%s169 + $0x190] sm:$0xff]
      %v229 = vld [vmem:[%s169 + $0x198] sm:$0xff]
      %v230 = vld [vmem:[%s169 + $0x1a0] sm:$0xff]
      %v231 = vld [vmem:[%s169 + $0x1a8] sm:$0xff]
      %v232 = vld [vmem:[%s169 + $0x1b0] sm:$0xff]
      %v233 = vld [vmem:[%s169 + $0x1b8] sm:$0xff]
      %v234 = vld [vmem:[%s169 + $0x1c0] sm:$0xff]
      %v235 = vld [vmem:[%s169 + $0x1c8] sm:$0xff]
      %v236 = vld [vmem:[%s169 + $0x1d0] sm:$0xff]
      %v237 = vld [vmem:[%s169 + $0x1d8] sm:$0xff]
      %v238 = vld [vmem:[%s169 + $0x1e0] sm:$0xff]
      %v239 = vld [vmem:[%s169 + $0x1e8] sm:$0xff]
      %v240 = vld [vmem:[%s169 + $0x1f0] sm:$0xff]
      %v241 = vld [vmem:[%s169 + $0x1f8] sm:$0xff]
      %v242 = vld [vmem:[%s1] sm:$0xf]
      %v243 = vld [vmem:[%s1 + $0x4] sm:$0xf]
      %v244 = vld [vmem:[%s1 + $0x8] sm:$0xf]
      %v245 = vld [vmem:[%s1 + $0xc] sm:$0xf]
      %v246 = vld [vmem:[%s1 + $0x10] sm:$0xf]
      %v247 = vld [vmem:[%s1 + $0x14] sm:$0xf]
      %v248 = vld [vmem:[%s1 + $0x18] sm:$0xf]
      %v249 = vld [vmem:[%s1 + $0x1c] sm:$0xf]
      %v250 = vld [vmem:[%s1 + $0x20] sm:$0xf]
      %v251 = vld [vmem:[%s1 + $0x24] sm:$0xf]
      %v252 = vld [vmem:[%s1 + $0x28] sm:$0xf]
      %v253 = vld [vmem:[%s1 + $0x2c] sm:$0xf]
      %v254 = vld [vmem:[%s1 + $0x30] sm:$0xf]
      %v255 = vld [vmem:[%s1 + $0x34] sm:$0xf]
      %v256 = vld [vmem:[%s1 + $0x38] sm:$0xf]
      %v257 = vld [vmem:[%s1 + $0x3c] sm:$0xf]
      %v258 = vld [vmem:[%s1 + $0x40] sm:$0xf]
      %v259 = vld [vmem:[%s1 + $0x44] sm:$0xf]
      %v260 = vld [vmem:[%s2] sm:$0x1]
      %v262 = vlaneseq
      %v263 = vshrl.u32 %v262, 7
      %v264 = vsub.s32 0, %v263
      %v265 = vrot.slane %v260, %v264
      %v331 = vunpack.c.l.b16 %v178
      %v332 = vunpack.c.h.b16 %v178
      %v333 = vunpack.c.l.b16 %v179
      %v334 = vunpack.c.h.b16 %v179
      %v335 = vunpack.c.l.b16 %v180
      %v336 = vunpack.c.h.b16 %v180
      %v337 = vunpack.c.l.b16 %v181
      %v338 = vunpack.c.h.b16 %v181
      %v339 = vunpack.c.l.b16 %v182
      %v340 = vunpack.c.h.b16 %v182
      %v341 = vunpack.c.l.b16 %v183
      %v342 = vunpack.c.h.b16 %v183
      %v343 = vunpack.c.l.b16 %v184
      %v344 = vunpack.c.h.b16 %v184
      %v345 = vunpack.c.l.b16 %v185
      %v346 = vunpack.c.h.b16 %v185
      %v347 = vunpack.c.l.b16 %v186
      %v348 = vunpack.c.h.b16 %v186
      %v349 = vunpack.c.l.b16 %v187
      %v350 = vunpack.c.h.b16 %v187
      %v351 = vunpack.c.l.b16 %v188
      %v352 = vunpack.c.h.b16 %v188
      %v353 = vunpack.c.l.b16 %v189
      %v354 = vunpack.c.h.b16 %v189
      %v355 = vunpack.c.l.b16 %v190
      %v356 = vunpack.c.h.b16 %v190
      %v357 = vunpack.c.l.b16 %v191
      %v358 = vunpack.c.h.b16 %v191
      %v359 = vunpack.c.l.b16 %v192
      %v360 = vunpack.c.h.b16 %v192
      %v361 = vunpack.c.l.b16 %v193
      %v362 = vunpack.c.h.b16 %v193
      %v363 = vunpack.c.l.b16 %v194
      %v364 = vunpack.c.h.b16 %v194
      %v365 = vunpack.c.l.b16 %v195
      %v366 = vunpack.c.h.b16 %v195
      %v367 = vunpack.c.l.b16 %v196
      %v368 = vunpack.c.h.b16 %v196
      %v369 = vunpack.c.l.b16 %v197
      %v370 = vunpack.c.h.b16 %v197
      %v371 = vunpack.c.l.b16 %v198
      %v372 = vunpack.c.h.b16 %v198
      %v373 = vunpack.c.l.b16 %v199
      %v374 = vunpack.c.h.b16 %v199
      %v375 = vunpack.c.l.b16 %v200
      %v376 = vunpack.c.h.b16 %v200
      %v377 = vunpack.c.l.b16 %v201
      %v378 = vunpack.c.h.b16 %v201
      %v379 = vunpack.c.l.b16 %v202
      %v380 = vunpack.c.h.b16 %v202
      %v381 = vunpack.c.l.b16 %v203
      %v382 = vunpack.c.h.b16 %v203
      %v383 = vunpack.c.l.b16 %v204
      %v384 = vunpack.c.h.b16 %v204
      %v385 = vunpack.c.l.b16 %v205
      %v386 = vunpack.c.h.b16 %v205
      %v387 = vunpack.c.l.b16 %v206
      %v388 = vunpack.c.h.b16 %v206
      %v389 = vunpack.c.l.b16 %v207
      %v390 = vunpack.c.h.b16 %v207
      %v391 = vunpack.c.l.b16 %v208
      %v392 = vunpack.c.h.b16 %v208
      %v393 = vunpack.c.l.b16 %v209
      %v394 = vunpack.c.h.b16 %v209
      %v395 = vunpack.c.l.b16 %v210
      %v396 = vunpack.c.h.b16 %v210
      %v397 = vunpack.c.l.b16 %v211
      %v398 = vunpack.c.h.b16 %v211
      %v399 = vunpack.c.l.b16 %v212
      %v400 = vunpack.c.h.b16 %v212
      %v401 = vunpack.c.l.b16 %v213
      %v402 = vunpack.c.h.b16 %v213
      %v403 = vunpack.c.l.b16 %v214
      %v404 = vunpack.c.h.b16 %v214
      %v405 = vunpack.c.l.b16 %v215
      %v406 = vunpack.c.h.b16 %v215
      %v407 = vunpack.c.l.b16 %v216
      %v408 = vunpack.c.h.b16 %v216
      %v409 = vunpack.c.l.b16 %v217
      %v410 = vunpack.c.h.b16 %v217
      %v411 = vunpack.c.l.b16 %v218
      %v412 = vunpack.c.h.b16 %v218
      %v413 = vunpack.c.l.b16 %v219
      %v414 = vunpack.c.h.b16 %v219
      %v415 = vunpack.c.l.b16 %v220
      %v416 = vunpack.c.h.b16 %v220
      %v417 = vunpack.c.l.b16 %v221
      %v418 = vunpack.c.h.b16 %v221
      %v419 = vunpack.c.l.b16 %v222
      %v420 = vunpack.c.h.b16 %v222
      %v421 = vunpack.c.l.b16 %v223
      %v422 = vunpack.c.h.b16 %v223
      %v423 = vunpack.c.l.b16 %v224
      %v424 = vunpack.c.h.b16 %v224
      %v425 = vunpack.c.l.b16 %v225
      %v426 = vunpack.c.h.b16 %v225
      %v427 = vunpack.c.l.b16 %v226
      %v428 = vunpack.c.h.b16 %v226
      %v429 = vunpack.c.l.b16 %v227
      %v430 = vunpack.c.h.b16 %v227
      %v431 = vunpack.c.l.b16 %v228
      %v432 = vunpack.c.h.b16 %v228
      %v433 = vunpack.c.l.b16 %v229
      %v434 = vunpack.c.h.b16 %v229
      %v435 = vunpack.c.l.b16 %v230
      %v436 = vunpack.c.h.b16 %v230
      %v437 = vunpack.c.l.b16 %v231
      %v438 = vunpack.c.h.b16 %v231
      %v439 = vunpack.c.l.b16 %v232
      %v440 = vunpack.c.h.b16 %v232
      %v441 = vunpack.c.l.b16 %v233
      %v442 = vunpack.c.h.b16 %v233
      %v443 = vunpack.c.l.b16 %v234
      %v444 = vunpack.c.h.b16 %v234
      %v445 = vunpack.c.l.b16 %v235
      %v446 = vunpack.c.h.b16 %v235
      %v447 = vunpack.c.l.b16 %v236
      %v448 = vunpack.c.h.b16 %v236
      %v449 = vunpack.c.l.b16 %v237
      %v450 = vunpack.c.h.b16 %v237
      %v451 = vunpack.c.l.b16 %v238
      %v452 = vunpack.c.h.b16 %v238
      %v453 = vunpack.c.l.b16 %v239
      %v454 = vunpack.c.h.b16 %v239
      %v455 = vunpack.c.l.b16 %v240
      %v456 = vunpack.c.h.b16 %v240
      %v457 = vunpack.c.l.b16 %v241
      %v458 = vunpack.c.h.b16 %v241
      %v459 = vpack.c.b16 %v333, %v331
      %v460 = vpack.c.b16 %v334, %v332
      %v461 = vpack.c.b16 %v337, %v335
      %v462 = vpack.c.b16 %v338, %v336
      %v463 = vpack.c.b16 %v341, %v339
      %v464 = vpack.c.b16 %v342, %v340
      %v465 = vpack.c.b16 %v345, %v343
      %v466 = vpack.c.b16 %v346, %v344
      %v467 = vpack.c.b16 %v349, %v347
      %v468 = vpack.c.b16 %v350, %v348
      %v469 = vpack.c.b16 %v353, %v351
      %v470 = vpack.c.b16 %v354, %v352
      %v471 = vpack.c.b16 %v357, %v355
      %v472 = vpack.c.b16 %v358, %v356
      %v473 = vpack.c.b16 %v361, %v359
      %v474 = vpack.c.b16 %v362, %v360
      %v475 = vpack.c.b16 %v365, %v363
      %v476 = vpack.c.b16 %v366, %v364
      %v477 = vpack.c.b16 %v369, %v367
      %v478 = vpack.c.b16 %v370, %v368
      %v479 = vpack.c.b16 %v373, %v371
      %v480 = vpack.c.b16 %v374, %v372
      %v481 = vpack.c.b16 %v377, %v375
      %v482 = vpack.c.b16 %v378, %v376
      %v483 = vpack.c.b16 %v381, %v379
      %v484 = vpack.c.b16 %v382, %v380
      %v485 = vpack.c.b16 %v385, %v383
      %v486 = vpack.c.b16 %v386, %v384
      %v487 = vpack.c.b16 %v389, %v387
      %v488 = vpack.c.b16 %v390, %v388
      %v489 = vpack.c.b16 %v393, %v391
      %v490 = vpack.c.b16 %v394, %v392
      %v491 = vpack.c.b16 %v397, %v395
      %v492 = vpack.c.b16 %v398, %v396
      %v493 = vpack.c.b16 %v401, %v399
      %v494 = vpack.c.b16 %v402, %v400
      %v495 = vpack.c.b16 %v405, %v403
      %v496 = vpack.c.b16 %v406, %v404
      %v497 = vpack.c.b16 %v409, %v407
      %v498 = vpack.c.b16 %v410, %v408
      %v499 = vpack.c.b16 %v413, %v411
      %v500 = vpack.c.b16 %v414, %v412
      %v501 = vpack.c.b16 %v417, %v415
      %v502 = vpack.c.b16 %v418, %v416
      %v503 = vpack.c.b16 %v421, %v419
      %v504 = vpack.c.b16 %v422, %v420
      %v505 = vpack.c.b16 %v425, %v423
      %v506 = vpack.c.b16 %v426, %v424
      %v507 = vpack.c.b16 %v429, %v427
      %v508 = vpack.c.b16 %v430, %v428
      %v509 = vpack.c.b16 %v433, %v431
      %v510 = vpack.c.b16 %v434, %v432
      %v511 = vpack.c.b16 %v437, %v435
      %v512 = vpack.c.b16 %v438, %v436
      %v513 = vpack.c.b16 %v441, %v439
      %v514 = vpack.c.b16 %v442, %v440
      %v515 = vpack.c.b16 %v445, %v443
      %v516 = vpack.c.b16 %v446, %v444
      %v517 = vpack.c.b16 %v449, %v447
      %v518 = vpack.c.b16 %v450, %v448
      %v519 = vpack.c.b16 %v453, %v451
      %v520 = vpack.c.b16 %v454, %v452
      %v521 = vpack.c.b16 %v457, %v455
      %v522 = vpack.c.b16 %v458, %v456
      %v573 = vunpack.c.l.b16 %v242
      %v574 = vunpack.c.l.b16 %v243
      %v575 = vunpack.c.l.b16 %v244
      %v576 = vunpack.c.l.b16 %v245
      %v577 = vunpack.c.l.b16 %v246
      %v578 = vunpack.c.l.b16 %v247
      %v579 = vunpack.c.l.b16 %v248
      %v580 = vunpack.c.l.b16 %v249
      %v581 = vunpack.c.l.b16 %v250
      %v582 = vunpack.c.l.b16 %v251
      %v583 = vunpack.c.l.b16 %v252
      %v584 = vunpack.c.l.b16 %v253
      %v585 = vunpack.c.l.b16 %v254
      %v586 = vunpack.c.l.b16 %v255
      %v587 = vunpack.c.l.b16 %v256
      %v588 = vunpack.c.l.b16 %v257
      %v589 = vunpack.c.l.b16 %v258
      %v590 = vunpack.c.l.b16 %v259
      %v591 = vpack.c.b16 %v574, %v573
      %v592 = vpack.c.b16 %v576, %v575
      %v593 = vpack.c.b16 %v578, %v577
      %v594 = vpack.c.b16 %v580, %v579
      %v595 = vpack.c.b16 %v582, %v581
      %v596 = vpack.c.b16 %v584, %v583
      %v597 = vpack.c.b16 %v586, %v585
      %v598 = vpack.c.b16 %v588, %v587
      %v599 = vpack.c.b16 %v590, %v589
      %vm609 = vcmask 130048
      %v611 = vsel %vm609, %v460, 0
      %v614 = vsel %vm609, %v462, 0
      %v617 = vsel %vm609, %v464, 0
      %v620 = vsel %vm609, %v466, 0
      %v623 = vsel %vm609, %v468, 0
      %v626 = vsel %vm609, %v470, 0
      %v629 = vsel %vm609, %v472, 0
      %v632 = vsel %vm609, %v474, 0
      %v635 = vsel %vm609, %v476, 0
      %v638 = vsel %vm609, %v478, 0
      %v641 = vsel %vm609, %v480, 0
      %v644 = vsel %vm609, %v482, 0
      %v647 = vsel %vm609, %v484, 0
      %v650 = vsel %vm609, %v486, 0
      %v653 = vsel %vm609, %v488, 0
      %v656 = vsel %vm609, %v490, 0
      %v659 = vsel %vm609, %v492, 0
      %v662 = vsel %vm609, %v494, 0
      %v665 = vsel %vm609, %v496, 0
      %v668 = vsel %vm609, %v498, 0
      %v671 = vsel %vm609, %v500, 0
      %v674 = vsel %vm609, %v502, 0
      %v677 = vsel %vm609, %v504, 0
      %v680 = vsel %vm609, %v506, 0
      %v683 = vsel %vm609, %v508, 0
      %v686 = vsel %vm609, %v510, 0
      %v689 = vsel %vm609, %v512, 0
      %v692 = vsel %vm609, %v514, 0
      %v695 = vsel %vm609, %v516, 0
      %v698 = vsel %vm609, %v518, 0
      %v701 = vsel %vm609, %v520, 0
      %v704 = vsel %vm609, %v522, 0
      %706 = vmatprep.subr.bf16.mxu0 0
      %707 = vmatpush1.bf16.msra.mxu0 %v591
      %708 = vmatprep.subr.bf16.mxu0 0
      %709 = vmatpush1.bf16.msra.mxu0 %v592
      %710 = vmatprep.subr.bf16.mxu0 0
      %711 = vmatpush1.bf16.msra.mxu0 %v593
      %712 = vmatprep.subr.bf16.mxu0 0
      %713 = vmatpush1.bf16.msra.mxu0 %v594
      %714 = vmatprep.subr.bf16.mxu0 0
      %715 = vmatpush1.bf16.msra.mxu0 %v595
      %716 = vmatprep.subr.bf16.mxu0 0
      %717 = vmatpush1.bf16.msra.mxu0 %v596
      %718 = vmatprep.subr.bf16.mxu0 0
      %719 = vmatpush1.bf16.msra.mxu0 %v597
      %720 = vmatprep.subr.bf16.mxu0 0
      %721 = vmatpush1.bf16.msra.mxu0 %v598
      %722 = vmatprep.subr.bf16.mxu0 0
      %723 = vmatpush1.bf16.msra.mxu0 %v599
      %724 = vmatprep.subr.bf16.mxu0 0
      %725 = vmatpush1.bf16.msra.mxu0 0
      %726 = vmatprep.subr.bf16.mxu0 0
      %727 = vmatpush1.bf16.msra.mxu0 0
      %728 = vmatprep.subr.bf16.mxu0 0
      %729 = vmatpush1.bf16.msra.mxu0 0
      %730 = vmatprep.subr.bf16.mxu0 0
      %731 = vmatpush1.bf16.msra.mxu0 0
      %732 = vmatprep.subr.bf16.mxu0 0
      %733 = vmatpush1.bf16.msra.mxu0 0
      %734 = vmatprep.subr.bf16.mxu0 0
      %735 = vmatpush1.bf16.msra.mxu0 0
      %736 = vmatprep.subr.bf16.mxu0 0
      %737 = vmatpush1.bf16.msra.mxu0 0
      %738 = vmatprep.mubr.bf16.mxu0 %v611
      %739 = vmatmul.mubr.bf16.gmra.mrb[0].mxu0 %v459
      %v740 = vpop.f32.mrb[0].mxu0
      %v741 = vadd.f32 %v265, %v740
      %v742 = vpop.f32.mrb[0].mxu0
      %v743 = vpop.f32.mrb[0].mxu0
      %v744 = vadd.f32 %v265, %v743
      %v745 = vpop.f32.mrb[0].mxu0
      %746 = vmatprep.mubr.bf16.mxu0 %v614
      %747 = vmatmul.mubr.bf16.gmra.mrb[0].mxu0 %v461
      %v748 = vpop.f32.mrb[0].mxu0
      %v749 = vadd.f32 %v265, %v748
      %v750 = vpop.f32.mrb[0].mxu0
      %v751 = vpop.f32.mrb[0].mxu0
      %v752 = vadd.f32 %v265, %v751
      %v753 = vpop.f32.mrb[0].mxu0
      %754 = vmatprep.mubr.bf16.mxu0 %v617
      %755 = vmatmul.mubr.bf16.gmra.mrb[0].mxu0 %v463
      %v756 = vpop.f32.mrb[0].mxu0
      %v757 = vadd.f32 %v265, %v756
      %v758 = vpop.f32.mrb[0].mxu0
      %v759 = vpop.f32.mrb[0].mxu0
      %v760 = vadd.f32 %v265, %v759
      %v761 = vpop.f32.mrb[0].mxu0
      %762 = vmatprep.mubr.bf16.mxu0 %v620
      %763 = vmatmul.mubr.bf16.gmra.mrb[0].mxu0 %v465
      %v764 = vpop.f32.mrb[0].mxu0
      %v765 = vadd.f32 %v265, %v764
      %v766 = vpop.f32.mrb[0].mxu0
      %v767 = vpop.f32.mrb[0].mxu0
      %v768 = vadd.f32 %v265, %v767
      %v769 = vpop.f32.mrb[0].mxu0
      %770 = vmatprep.mubr.bf16.mxu0 %v623
      %771 = vmatmul.mubr.bf16.gmra.mrb[0].mxu0 %v467
      %v772 = vpop.f32.mrb[0].mxu0
      %v773 = vadd.f32 %v265, %v772
      %v774 = vpop.f32.mrb[0].mxu0
      %v775 = vpop.f32.mrb[0].mxu0
      %v776 = vadd.f32 %v265, %v775
      %v777 = vpop.f32.mrb[0].mxu0
      %778 = vmatprep.mubr.bf16.mxu0 %v626
      %779 = vmatmul.mubr.bf16.gmra.mrb[0].mxu0 %v469
      %v780 = vpop.f32.mrb[0].mxu0
      %v781 = vadd.f32 %v265, %v780
      %v782 = vpop.f32.mrb[0].mxu0
      %v783 = vpop.f32.mrb[0].mxu0
      %v784 = vadd.f32 %v265, %v783
      %v785 = vpop.f32.mrb[0].mxu0
      %786 = vmatprep.mubr.bf16.mxu0 %v629
      %787 = vmatmul.mubr.bf16.gmra.mrb[0].mxu0 %v471
      %v788 = vpop.f32.mrb[0].mxu0
      %v789 = vadd.f32 %v265, %v788
      %v790 = vpop.f32.mrb[0].mxu0
      %v791 = vpop.f32.mrb[0].mxu0
      %v792 = vadd.f32 %v265, %v791
      %v793 = vpop.f32.mrb[0].mxu0
      %794 = vmatprep.mubr.bf16.mxu0 %v632
      %795 = vmatmul.mubr.bf16.gmra.mrb[0].mxu0 %v473
      %v796 = vpop.f32.mrb[0].mxu0
      %v797 = vadd.f32 %v265, %v796
      %v798 = vpop.f32.mrb[0].mxu0
      %v799 = vpop.f32.mrb[0].mxu0
      %v800 = vadd.f32 %v265, %v799
      %v801 = vpop.f32.mrb[0].mxu0
      %802 = vmatprep.mubr.bf16.mxu0 %v635
      %803 = vmatmul.mubr.bf16.gmra.mrb[0].mxu0 %v475
      %v804 = vpop.f32.mrb[0].mxu0
      %v805 = vadd.f32 %v265, %v804
      %v806 = vpop.f32.mrb[0].mxu0
      %v807 = vpop.f32.mrb[0].mxu0
      %v808 = vadd.f32 %v265, %v807
      %v809 = vpop.f32.mrb[0].mxu0
      %810 = vmatprep.mubr.bf16.mxu0 %v638
      %811 = vmatmul.mubr.bf16.gmra.mrb[0].mxu0 %v477
      %v812 = vpop.f32.mrb[0].mxu0
      %v813 = vadd.f32 %v265, %v812
      %v814 = vpop.f32.mrb[0].mxu0
      %v815 = vpop.f32.mrb[0].mxu0
      %v816 = vadd.f32 %v265, %v815
      %v817 = vpop.f32.mrb[0].mxu0
      %818 = vmatprep.mubr.bf16.mxu0 %v641
      %819 = vmatmul.mubr.bf16.gmra.mrb[0].mxu0 %v479
      %v820 = vpop.f32.mrb[0].mxu0
      %v821 = vadd.f32 %v265, %v820
      %v822 = vpop.f32.mrb[0].mxu0
      %v823 = vpop.f32.mrb[0].mxu0
      %v824 = vadd.f32 %v265, %v823
      %v825 = vpop.f32.mrb[0].mxu0
      %826 = vmatprep.mubr.bf16.mxu0 %v644
      %827 = vmatmul.mubr.bf16.gmra.mrb[0].mxu0 %v481
      %v828 = vpop.f32.mrb[0].mxu0
      %v829 = vadd.f32 %v265, %v828
      %v830 = vpop.f32.mrb[0].mxu0
      %v831 = vpop.f32.mrb[0].mxu0
      %v832 = vadd.f32 %v265, %v831
      %v833 = vpop.f32.mrb[0].mxu0
      %834 = vmatprep.mubr.bf16.mxu0 %v647
      %835 = vmatmul.mubr.bf16.gmra.mrb[0].mxu0 %v483
      %v836 = vpop.f32.mrb[0].mxu0
      %v837 = vadd.f32 %v265, %v836
      %v838 = vpop.f32.mrb[0].mxu0
      %v839 = vpop.f32.mrb[0].mxu0
      %v840 = vadd.f32 %v265, %v839
      %v841 = vpop.f32.mrb[0].mxu0
      %842 = vmatprep.mubr.bf16.mxu0 %v650
      %843 = vmatmul.mubr.bf16.gmra.mrb[0].mxu0 %v485
      %v844 = vpop.f32.mrb[0].mxu0
      %v845 = vadd.f32 %v265, %v844
      %v846 = vpop.f32.mrb[0].mxu0
      %v847 = vpop.f32.mrb[0].mxu0
      %v848 = vadd.f32 %v265, %v847
      %v849 = vpop.f32.mrb[0].mxu0
      %850 = vmatprep.mubr.bf16.mxu0 %v653
      %851 = vmatmul.mubr.bf16.gmra.mrb[0].mxu0 %v487
      %v852 = vpop.f32.mrb[0].mxu0
      %v853 = vadd.f32 %v265, %v852
      %v854 = vpop.f32.mrb[0].mxu0
      %v855 = vpop.f32.mrb[0].mxu0
      %v856 = vadd.f32 %v265, %v855
      %v857 = vpop.f32.mrb[0].mxu0
      %858 = vmatprep.mubr.bf16.mxu0 %v656
      %859 = vmatmul.mubr.bf16.gmra.mrb[0].mxu0 %v489
      %v860 = vpop.f32.mrb[0].mxu0
      %v861 = vadd.f32 %v265, %v860
      %v862 = vpop.f32.mrb[0].mxu0
      %v863 = vpop.f32.mrb[0].mxu0
      %v864 = vadd.f32 %v265, %v863
      %v865 = vpop.f32.mrb[0].mxu0
      %866 = vmatprep.mubr.bf16.mxu0 %v659
      %867 = vmatmul.mubr.bf16.gmra.mrb[0].mxu0 %v491
      %v868 = vpop.f32.mrb[0].mxu0
      %v869 = vadd.f32 %v265, %v868
      %v870 = vpop.f32.mrb[0].mxu0
      %v871 = vpop.f32.mrb[0].mxu0
      %v872 = vadd.f32 %v265, %v871
      %v873 = vpop.f32.mrb[0].mxu0
      %874 = vmatprep.mubr.bf16.mxu0 %v662
      %875 = vmatmul.mubr.bf16.gmra.mrb[0].mxu0 %v493
      %v876 = vpop.f32.mrb[0].mxu0
      %v877 = vadd.f32 %v265, %v876
      %v878 = vpop.f32.mrb[0].mxu0
      %v879 = vpop.f32.mrb[0].mxu0
      %v880 = vadd.f32 %v265, %v879
      %v881 = vpop.f32.mrb[0].mxu0
      %882 = vmatprep.mubr.bf16.mxu0 %v665
      %883 = vmatmul.mubr.bf16.gmra.mrb[0].mxu0 %v495
      %v884 = vpop.f32.mrb[0].mxu0
      %v885 = vadd.f32 %v265, %v884
      %v886 = vpop.f32.mrb[0].mxu0
      %v887 = vpop.f32.mrb[0].mxu0
      %v888 = vadd.f32 %v265, %v887
      %v889 = vpop.f32.mrb[0].mxu0
      %890 = vmatprep.mubr.bf16.mxu0 %v668
      %891 = vmatmul.mubr.bf16.gmra.mrb[0].mxu0 %v497
      %v892 = vpop.f32.mrb[0].mxu0
      %v893 = vadd.f32 %v265, %v892
      %v894 = vpop.f32.mrb[0].mxu0
      %v895 = vpop.f32.mrb[0].mxu0
      %v896 = vadd.f32 %v265, %v895
      %v897 = vpop.f32.mrb[0].mxu0
      %898 = vmatprep.mubr.bf16.mxu0 %v671
      %899 = vmatmul.mubr.bf16.gmra.mrb[0].mxu0 %v499
      %v900 = vpop.f32.mrb[0].mxu0
      %v901 = vadd.f32 %v265, %v900
      %v902 = vpop.f32.mrb[0].mxu0
      %v903 = vpop.f32.mrb[0].mxu0
      %v904 = vadd.f32 %v265, %v903
      %v905 = vpop.f32.mrb[0].mxu0
      %906 = vmatprep.mubr.bf16.mxu0 %v674
      %907 = vmatmul.mubr.bf16.gmra.mrb[0].mxu0 %v501
      %v908 = vpop.f32.mrb[0].mxu0
      %v909 = vadd.f32 %v265, %v908
      %v910 = vpop.f32.mrb[0].mxu0
      %v911 = vpop.f32.mrb[0].mxu0
      %v912 = vadd.f32 %v265, %v911
      %v913 = vpop.f32.mrb[0].mxu0
      %914 = vmatprep.mubr.bf16.mxu0 %v677
      %915 = vmatmul.mubr.bf16.gmra.mrb[0].mxu0 %v503
      %v916 = vpop.f32.mrb[0].mxu0
      %v917 = vadd.f32 %v265, %v916
      %v918 = vpop.f32.mrb[0].mxu0
      %v919 = vpop.f32.mrb[0].mxu0
      %v920 = vadd.f32 %v265, %v919
      %v921 = vpop.f32.mrb[0].mxu0
      %922 = vmatprep.mubr.bf16.mxu0 %v680
      %923 = vmatmul.mubr.bf16.gmra.mrb[0].mxu0 %v505
      %v924 = vpop.f32.mrb[0].mxu0
      %v925 = vadd.f32 %v265, %v924
      %v926 = vpop.f32.mrb[0].mxu0
      %v927 = vpop.f32.mrb[0].mxu0
      %v928 = vadd.f32 %v265, %v927
      %v929 = vpop.f32.mrb[0].mxu0
      %930 = vmatprep.mubr.bf16.mxu0 %v683
      %931 = vmatmul.mubr.bf16.gmra.mrb[0].mxu0 %v507
      %v932 = vpop.f32.mrb[0].mxu0
      %v933 = vadd.f32 %v265, %v932
      %v934 = vpop.f32.mrb[0].mxu0
      %v935 = vpop.f32.mrb[0].mxu0
      %v936 = vadd.f32 %v265, %v935
      %v937 = vpop.f32.mrb[0].mxu0
      %938 = vmatprep.mubr.bf16.mxu0 %v686
      %939 = vmatmul.mubr.bf16.gmra.mrb[0].mxu0 %v509
      %v940 = vpop.f32.mrb[0].mxu0
      %v941 = vadd.f32 %v265, %v940
      %v942 = vpop.f32.mrb[0].mxu0
      %v943 = vpop.f32.mrb[0].mxu0
      %v944 = vadd.f32 %v265, %v943
      %v945 = vpop.f32.mrb[0].mxu0
      %946 = vmatprep.mubr.bf16.mxu0 %v689
      %947 = vmatmul.mubr.bf16.gmra.mrb[0].mxu0 %v511
      %v948 = vpop.f32.mrb[0].mxu0
      %v949 = vadd.f32 %v265, %v948
      %v950 = vpop.f32.mrb[0].mxu0
      %v951 = vpop.f32.mrb[0].mxu0
      %v952 = vadd.f32 %v265, %v951
      %v953 = vpop.f32.mrb[0].mxu0
      %954 = vmatprep.mubr.bf16.mxu0 %v692
      %955 = vmatmul.mubr.bf16.gmra.mrb[0].mxu0 %v513
      %v956 = vpop.f32.mrb[0].mxu0
      %v957 = vadd.f32 %v265, %v956
      %v958 = vpop.f32.mrb[0].mxu0
      %v959 = vpop.f32.mrb[0].mxu0
      %v960 = vadd.f32 %v265, %v959
      %v961 = vpop.f32.mrb[0].mxu0
      %962 = vmatprep.mubr.bf16.mxu0 %v695
      %963 = vmatmul.mubr.bf16.gmra.mrb[0].mxu0 %v515
      %v964 = vpop.f32.mrb[0].mxu0
      %v965 = vadd.f32 %v265, %v964
      %v966 = vpop.f32.mrb[0].mxu0
      %v967 = vpop.f32.mrb[0].mxu0
      %v968 = vadd.f32 %v265, %v967
      %v969 = vpop.f32.mrb[0].mxu0
      %970 = vmatprep.mubr.bf16.mxu0 %v698
      %971 = vmatmul.mubr.bf16.gmra.mrb[0].mxu0 %v517
      %v972 = vpop.f32.mrb[0].mxu0
      %v973 = vadd.f32 %v265, %v972
      %v974 = vpop.f32.mrb[0].mxu0
      %v975 = vpop.f32.mrb[0].mxu0
      %v976 = vadd.f32 %v265, %v975
      %v977 = vpop.f32.mrb[0].mxu0
      %978 = vmatprep.mubr.bf16.mxu0 %v701
      %979 = vmatmul.mubr.bf16.gmra.mrb[0].mxu0 %v519
      %v980 = vpop.f32.mrb[0].mxu0
      %v981 = vadd.f32 %v265, %v980
      %v982 = vpop.f32.mrb[0].mxu0
      %v983 = vpop.f32.mrb[0].mxu0
      %v984 = vadd.f32 %v265, %v983
      %v985 = vpop.f32.mrb[0].mxu0
      %986 = vmatprep.mubr.bf16.mxu0 %v704
      %987 = vmatmul.mubr.bf16.gmra.mrb[0].mxu0 %v521
      %v988 = vpop.f32.mrb[0].mxu0
      %v989 = vadd.f32 %v265, %v988
      %v990 = vpop.f32.mrb[0].mxu0
      %v991 = vpop.f32.mrb[0].mxu0
      %v992 = vadd.f32 %v265, %v991
      %v993 = vpop.f32.mrb[0].mxu0
      %994 = vdwg.mxu0
      %v995 = vmax.f32 %v741, 0.0
      %v996 = vmax.f32 %v744, 0.0
      %v997 = vmax.f32 %v749, 0.0
      %v998 = vmax.f32 %v752, 0.0
      %v999 = vmax.f32 %v757, 0.0
      %v1000 = vmax.f32 %v760, 0.0
      %v1001 = vmax.f32 %v765, 0.0
      %v1002 = vmax.f32 %v768, 0.0
      %v1003 = vmax.f32 %v773, 0.0
      %v1004 = vmax.f32 %v776, 0.0
      %v1005 = vmax.f32 %v781, 0.0
      %v1006 = vmax.f32 %v784, 0.0
      %v1007 = vmax.f32 %v789, 0.0
      %v1008 = vmax.f32 %v792, 0.0
      %v1009 = vmax.f32 %v797, 0.0
      %v1010 = vmax.f32 %v800, 0.0
      %v1011 = vmax.f32 %v805, 0.0
      %v1012 = vmax.f32 %v808, 0.0
      %v1013 = vmax.f32 %v813, 0.0
      %v1014 = vmax.f32 %v816, 0.0
      %v1015 = vmax.f32 %v821, 0.0
      %v1016 = vmax.f32 %v824, 0.0
      %v1017 = vmax.f32 %v829, 0.0
      %v1018 = vmax.f32 %v832, 0.0
      %v1019 = vmax.f32 %v837, 0.0
      %v1020 = vmax.f32 %v840, 0.0
      %v1021 = vmax.f32 %v845, 0.0
      %v1022 = vmax.f32 %v848, 0.0
      %v1023 = vmax.f32 %v853, 0.0
      %v1024 = vmax.f32 %v856, 0.0
      %v1025 = vmax.f32 %v861, 0.0
      %v1026 = vmax.f32 %v864, 0.0
      %v1027 = vmax.f32 %v869, 0.0
      %v1028 = vmax.f32 %v872, 0.0
      %v1029 = vmax.f32 %v877, 0.0
      %v1030 = vmax.f32 %v880, 0.0
      %v1031 = vmax.f32 %v885, 0.0
      %v1032 = vmax.f32 %v888, 0.0
      %v1033 = vmax.f32 %v893, 0.0
      %v1034 = vmax.f32 %v896, 0.0
      %v1035 = vmax.f32 %v901, 0.0
      %v1036 = vmax.f32 %v904, 0.0
      %v1037 = vmax.f32 %v909, 0.0
      %v1038 = vmax.f32 %v912, 0.0
      %v1039 = vmax.f32 %v917, 0.0
      %v1040 = vmax.f32 %v920, 0.0
      %v1041 = vmax.f32 %v925, 0.0
      %v1042 = vmax.f32 %v928, 0.0
      %v1043 = vmax.f32 %v933, 0.0
      %v1044 = vmax.f32 %v936, 0.0
      %v1045 = vmax.f32 %v941, 0.0
      %v1046 = vmax.f32 %v944, 0.0
      %v1047 = vmax.f32 %v949, 0.0
      %v1048 = vmax.f32 %v952, 0.0
      %v1049 = vmax.f32 %v957, 0.0
      %v1050 = vmax.f32 %v960, 0.0
      %v1051 = vmax.f32 %v965, 0.0
      %v1052 = vmax.f32 %v968, 0.0
      %v1053 = vmax.f32 %v973, 0.0
      %v1054 = vmax.f32 %v976, 0.0
      %v1055 = vmax.f32 %v981, 0.0
      %v1056 = vmax.f32 %v984, 0.0
      %v1057 = vmax.f32 %v989, 0.0
      %v1058 = vmax.f32 %v992, 0.0
      %vm1059 = vcmask 261120
      %1060 = vst.msk [vmem:[%s175] sm:$0xff] %vm1059, %v995
      %1061 = vst.msk [vmem:[%s175 + $0x8] sm:$0xff] %vm1059, %v996
      %1062 = vst.msk [vmem:[%s175 + $0x10] sm:$0xff] %vm1059, %v997
      %1063 = vst.msk [vmem:[%s175 + $0x18] sm:$0xff] %vm1059, %v998
      %1064 = vst.msk [vmem:[%s175 + $0x20] sm:$0xff] %vm1059, %v999
      %1065 = vst.msk [vmem:[%s175 + $0x28] sm:$0xff] %vm1059, %v1000
      %1066 = vst.msk [vmem:[%s175 + $0x30] sm:$0xff] %vm1059, %v1001
      %1067 = vst.msk [vmem:[%s175 + $0x38] sm:$0xff] %vm1059, %v1002
      %1068 = vst.msk [vmem:[%s175 + $0x40] sm:$0xff] %vm1059, %v1003
      %1069 = vst.msk [vmem:[%s175 + $0x48] sm:$0xff] %vm1059, %v1004
      %1070 = vst.msk [vmem:[%s175 + $0x50] sm:$0xff] %vm1059, %v1005
      %1071 = vst.msk [vmem:[%s175 + $0x58] sm:$0xff] %vm1059, %v1006
      %1072 = vst.msk [vmem:[%s175 + $0x60] sm:$0xff] %vm1059, %v1007
      %1073 = vst.msk [vmem:[%s175 + $0x68] sm:$0xff] %vm1059, %v1008
      %1074 = vst.msk [vmem:[%s175 + $0x70] sm:$0xff] %vm1059, %v1009
      %1075 = vst.msk [vmem:[%s175 + $0x78] sm:$0xff] %vm1059, %v1010
      %1076 = vst.msk [vmem:[%s175 + $0x80] sm:$0xff] %vm1059, %v1011
      %1077 = vst.msk [vmem:[%s175 + $0x88] sm:$0xff] %vm1059, %v1012
      %1078 = vst.msk [vmem:[%s175 + $0x90] sm:$0xff] %vm1059, %v1013
      %1079 = vst.msk [vmem:[%s175 + $0x98] sm:$0xff] %vm1059, %v1014
      %1080 = vst.msk [vmem:[%s175 + $0xa0] sm:$0xff] %vm1059, %v1015
      %1081 = vst.msk [vmem:[%s175 + $0xa8] sm:$0xff] %vm1059, %v1016
      %1082 = vst.msk [vmem:[%s175 + $0xb0] sm:$0xff] %vm1059, %v1017
      %1083 = vst.msk [vmem:[%s175 + $0xb8] sm:$0xff] %vm1059, %v1018
      %1084 = vst.msk [vmem:[%s175 + $0xc0] sm:$0xff] %vm1059, %v1019
      %1085 = vst.msk [vmem:[%s175 + $0xc8] sm:$0xff] %vm1059, %v1020
      %1086 = vst.msk [vmem:[%s175 + $0xd0] sm:$0xff] %vm1059, %v1021
      %1087 = vst.msk [vmem:[%s175 + $0xd8] sm:$0xff] %vm1059, %v1022
      %1088 = vst.msk [vmem:[%s175 + $0xe0] sm:$0xff] %vm1059, %v1023
      %1089 = vst.msk [vmem:[%s175 + $0xe8] sm:$0xff] %vm1059, %v1024
      %1090 = vst.msk [vmem:[%s175 + $0xf0] sm:$0xff] %vm1059, %v1025
      %1091 = vst.msk [vmem:[%s175 + $0xf8] sm:$0xff] %vm1059, %v1026
      %1092 = vst.msk [vmem:[%s175 + $0x100] sm:$0xff] %vm1059, %v1027
      %1093 = vst.msk [vmem:[%s175 + $0x108] sm:$0xff] %vm1059, %v1028
      %1094 = vst.msk [vmem:[%s175 + $0x110] sm:$0xff] %vm1059, %v1029
      %1095 = vst.msk [vmem:[%s175 + $0x118] sm:$0xff] %vm1059, %v1030
      %1096 = vst.msk [vmem:[%s175 + $0x120] sm:$0xff] %vm1059, %v1031
      %1097 = vst.msk [vmem:[%s175 + $0x128] sm:$0xff] %vm1059, %v1032
      %1098 = vst.msk [vmem:[%s175 + $0x130] sm:$0xff] %vm1059, %v1033
      %1099 = vst.msk [vmem:[%s175 + $0x138] sm:$0xff] %vm1059, %v1034
      %1100 = vst.msk [vmem:[%s175 + $0x140] sm:$0xff] %vm1059, %v1035
      %1101 = vst.msk [vmem:[%s175 + $0x148] sm:$0xff] %vm1059, %v1036
      %1102 = vst.msk [vmem:[%s175 + $0x150] sm:$0xff] %vm1059, %v1037
      %1103 = vst.msk [vmem:[%s175 + $0x158] sm:$0xff] %vm1059, %v1038
      %1104 = vst.msk [vmem:[%s175 + $0x160] sm:$0xff] %vm1059, %v1039
      %1105 = vst.msk [vmem:[%s175 + $0x168] sm:$0xff] %vm1059, %v1040
      %1106 = vst.msk [vmem:[%s175 + $0x170] sm:$0xff] %vm1059, %v1041
      %1107 = vst.msk [vmem:[%s175 + $0x178] sm:$0xff] %vm1059, %v1042
      %1108 = vst.msk [vmem:[%s175 + $0x180] sm:$0xff] %vm1059, %v1043
      %1109 = vst.msk [vmem:[%s175 + $0x188] sm:$0xff] %vm1059, %v1044
      %1110 = vst.msk [vmem:[%s175 + $0x190] sm:$0xff] %vm1059, %v1045
      %1111 = vst.msk [vmem:[%s175 + $0x198] sm:$0xff] %vm1059, %v1046
      %1112 = vst.msk [vmem:[%s175 + $0x1a0] sm:$0xff] %vm1059, %v1047
      %1113 = vst.msk [vmem:[%s175 + $0x1a8] sm:$0xff] %vm1059, %v1048
      %1114 = vst.msk [vmem:[%s175 + $0x1b0] sm:$0xff] %vm1059, %v1049
      %1115 = vst.msk [vmem:[%s175 + $0x1b8] sm:$0xff] %vm1059, %v1050
      %1116 = vst.msk [vmem:[%s175 + $0x1c0] sm:$0xff] %vm1059, %v1051
      %1117 = vst.msk [vmem:[%s175 + $0x1c8] sm:$0xff] %vm1059, %v1052
      %1118 = vst.msk [vmem:[%s175 + $0x1d0] sm:$0xff] %vm1059, %v1053
      %1119 = vst.msk [vmem:[%s175 + $0x1d8] sm:$0xff] %vm1059, %v1054
      %1120 = vst.msk [vmem:[%s175 + $0x1e0] sm:$0xff] %vm1059, %v1055
      %1121 = vst.msk [vmem:[%s175 + $0x1e8] sm:$0xff] %vm1059, %v1056
      %1122 = vst.msk [vmem:[%s175 + $0x1f0] sm:$0xff] %vm1059, %v1057
      %1123 = vst.msk [vmem:[%s175 + $0x1f8] sm:$0xff] %vm1059, %v1058
      %s1124 = smul.u32 64, %s14
      %p1125 = scmp.lt.s32.totalorder %s1124, 127
      %s1126 = scalar_select %p1125, %s1124, 127
      %s1127 = smul.addr %s1126, 8
      %s1128 = scalar_lea.vmem %s3, %s1127
      // Predicated region
      $region33: #{_lambda_.13} parent=31 // pred_check
        %p1129 = pneg %p100
      $region34: #{_lambda_.13} parent=31 // pred_check_branch
        %1131 = sbr.rel (%p1129) target = $region36
      $region35: #{_lambda_.13} parent=31 // pred_region
        %s1132 = smul.u32 64, %s14
      $region36: #{_lambda_.13} parent=31 // pred_fallthru
        _
    $region32: #{_lambda_.13} parent=5 // pred_fallthru
      _
    %p1133 = scmp.le.s32.totalorder 2, %s9
    // Predicated region
    $region37: #{_lambda_.13} parent=5 // pred_check
      %p1134 = pneg %p1133
    $region38: #{_lambda_.13} parent=5 // pred_check_branch
      %1136 = sbr.rel (%p1134) target = $region40
    $region39: #{_lambda_.13} parent=5 // pred_region
      %s1137 = ssub.s32 %s9, 2
      // Predicated region
      $region41: #{_lambda_.13} parent=39 // pred_check
        %p1138 = pneg %p106
      $region42: #{_lambda_.13} parent=39 // pred_check_branch
        %1140 = sbr.rel (%p1138) target = $region44
      $region43: #{_lambda_.13} parent=39 // pred_region
        %s1141 = smul.u32 64, %s15
        %p1142 = scmp.lt.s32.totalorder %s1141, 127
        %s1143 = scalar_select %p1142, %s1141, 127
        %s1144 = smul.addr %s1143, 8
        %s1145 = scalar_lea.vmem %s3, %s1144
      $region44: #{_lambda_.13} parent=39 // pred_fallthru
        _
    $region40: #{_lambda_.13} parent=5 // pred_fallthru
      _
  $region6: #{_lambda_.13} parent=0 // loop_footer
    %s13 = sadd.s32 1, %s9
  $region7: #{_lambda_.13} parent=0 // loop_footer_branch
    %8 = sbr.rel target = $region3
  $region8: #{_lambda_.13} parent=0 // loop_exit
    _

// kernel: _lambda_.14
$region0: #{_lambda_.14}
  #allocation0 [shape = 'u32[]', space=smem, size = 0x4, offset = 0x4, fixed_abs, tag = 'smem constant byte address 0x4 - core index']
  #allocation1 [shape = 'u32[144,128]{1,0:T(1,128)}', space=vmem, size = 0x12000, scoped, tag = 'internal scratch']
  %s0 = inlined_call_operand.vmem [shape: bf16[224,288], index: 0, kind: input, shape index: {}]
  %s1 = inlined_call_operand.vmem [shape: bf16[288,32], index: 1, kind: input, shape index: {}]
  %s2 = inlined_call_operand.vmem [shape: f32[1,32], index: 2, kind: input, shape index: {}]
  %s3 = inlined_call_operand.vmem [shape: f32[224,32], index: 3, kind: output, shape index: {}]
  %s4 = sld [smem:[#allocation0]]
  $region22: #{_lambda_.14} parent=0
    _
  %s6 = ssub.s32 1, %s4
  %s7 = scalar_select 0, %s6, %s4
  // Predicated region
  $region2: #{_lambda_.14} parent=0 // pred_check
    _
  $region3: #{_lambda_.14} parent=0 // pred_check_branch
    %9 = sbr.rel (0) target = $region5
  $region4: #{_lambda_.14} parent=0 // pred_region
    _
  $region5: #{_lambda_.14} parent=0 // pred_fallthru
    _
  // Predicated region
  $region6: #{_lambda_.14} parent=0 // pred_check
    _
  $region7: #{_lambda_.14} parent=0 // pred_check_branch
    %11 = sbr.rel (0) target = $region9
  $region8: #{_lambda_.14} parent=0 // pred_region
    _
  $region9: #{_lambda_.14} parent=0 // pred_fallthru
    _
  // Predicated region
  $region10: #{_lambda_.14} parent=0 // pred_check
    _
  $region11: #{_lambda_.14} parent=0 // pred_check_branch
    %13 = sbr.rel (0) target = $region13
  $region12: #{_lambda_.14} parent=0 // pred_region
    _
  $region13: #{_lambda_.14} parent=0 // pred_fallthru
    _
  %v15 = vld [vmem:[%s0] sm:$0xff]
  %v16 = vld [vmem:[%s0 + $0x8] sm:$0xf]
  %v17 = vld [vmem:[%s0 + $0xc] sm:$0xff]
  %v18 = vld [vmem:[%s0 + $0x14] sm:$0xf]
  %v19 = vld [vmem:[%s0 + $0x18] sm:$0xff]
  %v20 = vld [vmem:[%s0 + $0x20] sm:$0xf]
  %v21 = vld [vmem:[%s0 + $0x24] sm:$0xff]
  %v22 = vld [vmem:[%s0 + $0x2c] sm:$0xf]
  %v23 = vld [vmem:[%s0 + $0x30] sm:$0xff]
  %v24 = vld [vmem:[%s0 + $0x38] sm:$0xf]
  %v25 = vld [vmem:[%s0 + $0x3c] sm:$0xff]
  %v26 = vld [vmem:[%s0 + $0x44] sm:$0xf]
  %v27 = vld [vmem:[%s0 + $0x48] sm:$0xff]
  %v28 = vld [vmem:[%s0 + $0x50] sm:$0xf]
  %v29 = vld [vmem:[%s0 + $0x54] sm:$0xff]
  %v30 = vld [vmem:[%s0 + $0x5c] sm:$0xf]
  %v31 = vld [vmem:[%s0 + $0x60] sm:$0xff]
  %v32 = vld [vmem:[%s0 + $0x68] sm:$0xf]
  %v33 = vld [vmem:[%s0 + $0x6c] sm:$0xff]
  %v34 = vld [vmem:[%s0 + $0x74] sm:$0xf]
  %v35 = vld [vmem:[%s0 + $0x78] sm:$0xff]
  %v36 = vld [vmem:[%s0 + $0x80] sm:$0xf]
  %v37 = vld [vmem:[%s0 + $0x84] sm:$0xff]
  %v38 = vld [vmem:[%s0 + $0x8c] sm:$0xf]
  %v39 = vld [vmem:[%s0 + $0x90] sm:$0xff]
  %v40 = vld [vmem:[%s0 + $0x98] sm:$0xf]
  %v41 = vld [vmem:[%s0 + $0x9c] sm:$0xff]
  %v42 = vld [vmem:[%s0 + $0xa4] sm:$0xf]
  %v43 = vld [vmem:[%s0 + $0xa8] sm:$0xff]
  %v44 = vld [vmem:[%s0 + $0xb0] sm:$0xf]
  %v45 = vld [vmem:[%s0 + $0xb4] sm:$0xff]
  %v46 = vld [vmem:[%s0 + $0xbc] sm:$0xf]
  %v47 = vld [vmem:[%s0 + $0xc0] sm:$0xff]
  %v48 = vld [vmem:[%s0 + $0xc8] sm:$0xf]
  %v49 = vld [vmem:[%s0 + $0xcc] sm:$0xff]
  %v50 = vld [vmem:[%s0 + $0xd4] sm:$0xf]
  %v51 = vld [vmem:[%s0 + $0xd8] sm:$0xff]
  %v52 = vld [vmem:[%s0 + $0xe0] sm:$0xf]
  %v53 = vld [vmem:[%s0 + $0xe4] sm:$0xff]
  %v54 = vld [vmem:[%s0 + $0xec] sm:$0xf]
  %v55 = vld [vmem:[%s0 + $0xf0] sm:$0xff]
  %v56 = vld [vmem:[%s0 + $0xf8] sm:$0xf]
  %v57 = vld [vmem:[%s0 + $0xfc] sm:$0xff]
  %v58 = vld [vmem:[%s0 + $0x104] sm:$0xf]
  %v59 = vld [vmem:[%s0 + $0x108] sm:$0xff]
  %v60 = vld [vmem:[%s0 + $0x110] sm:$0xf]
  %v61 = vld [vmem:[%s0 + $0x114] sm:$0xff]
  %v62 = vld [vmem:[%s0 + $0x11c] sm:$0xf]
  %v63 = vld [vmem:[%s0 + $0x120] sm:$0xff]
  %v64 = vld [vmem:[%s0 + $0x128] sm:$0xf]
  %v65 = vld [vmem:[%s0 + $0x12c] sm:$0xff]
  %v66 = vld [vmem:[%s0 + $0x134] sm:$0xf]
  %v67 = vld [vmem:[%s0 + $0x138] sm:$0xff]
  %v68 = vld [vmem:[%s0 + $0x140] sm:$0xf]
  %v69 = vld [vmem:[%s0 + $0x144] sm:$0xff]
  %v70 = vld [vmem:[%s0 + $0x14c] sm:$0xf]
  %v71 = vld [vmem:[%s1] sm:$0xf]
  %v72 = vld [vmem:[%s1 + $0x4] sm:$0xf]
  %v73 = vld [vmem:[%s1 + $0x8] sm:$0xf]
  %v74 = vld [vmem:[%s1 + $0xc] sm:$0xf]
  %v75 = vld [vmem:[%s1 + $0x10] sm:$0xf]
  %v76 = vld [vmem:[%s1 + $0x14] sm:$0xf]
  %v77 = vld [vmem:[%s1 + $0x18] sm:$0xf]
  %v78 = vld [vmem:[%s1 + $0x1c] sm:$0xf]
  %v79 = vld [vmem:[%s1 + $0x20] sm:$0xf]
  %v80 = vld [vmem:[%s1 + $0x24] sm:$0xf]
  %v81 = vld [vmem:[%s1 + $0x28] sm:$0xf]
  %v82 = vld [vmem:[%s1 + $0x2c] sm:$0xf]
  %v83 = vld [vmem:[%s1 + $0x30] sm:$0xf]
  %v84 = vld [vmem:[%s1 + $0x34] sm:$0xf]
  %v85 = vld [vmem:[%s1 + $0x38] sm:$0xf]
  %v86 = vld [vmem:[%s1 + $0x3c] sm:$0xf]
  %v87 = vld [vmem:[%s1 + $0x40] sm:$0xf]
  %v88 = vld [vmem:[%s1 + $0x44] sm:$0xf]
  %v89 = vld [vmem:[%s1 + $0x48] sm:$0xf]
  %v90 = vld [vmem:[%s1 + $0x4c] sm:$0xf]
  %v91 = vld [vmem:[%s1 + $0x50] sm:$0xf]
  %v92 = vld [vmem:[%s1 + $0x54] sm:$0xf]
  %v93 = vld [vmem:[%s1 + $0x58] sm:$0xf]
  %v94 = vld [vmem:[%s1 + $0x5c] sm:$0xf]
  %v95 = vld [vmem:[%s1 + $0x60] sm:$0xf]
  %v96 = vld [vmem:[%s1 + $0x64] sm:$0xf]
  %v97 = vld [vmem:[%s1 + $0x68] sm:$0xf]
  %v98 = vld [vmem:[%s1 + $0x6c] sm:$0xf]
  %v99 = vld [vmem:[%s1 + $0x70] sm:$0xf]
  %v100 = vld [vmem:[%s1 + $0x74] sm:$0xf]
  %v101 = vld [vmem:[%s1 + $0x78] sm:$0xf]
  %v102 = vld [vmem:[%s1 + $0x7c] sm:$0xf]
  %v103 = vld [vmem:[%s1 + $0x80] sm:$0xf]
  %v104 = vld [vmem:[%s1 + $0x84] sm:$0xf]
  %v105 = vld [vmem:[%s1 + $0x88] sm:$0xf]
  %v106 = vld [vmem:[%s1 + $0x8c] sm:$0xf]
  %v107 = vld [vmem:[%s2] sm:$0x1]
  %v109 = vlaneseq
  %v110 = vshrl.u32 %v109, 7
  %v111 = vsub.s32 0, %v110
  %v112 = vrot.slane %v107, %v111
  %v170 = vunpack.c.l.b16 %v15
  %v171 = vunpack.c.h.b16 %v15
  %v172 = vunpack.c.l.b16 %v16
  %v173 = vunpack.c.l.b16 %v17
  %v174 = vunpack.c.h.b16 %v17
  %v175 = vunpack.c.l.b16 %v18
  %v176 = vunpack.c.l.b16 %v19
  %v177 = vunpack.c.h.b16 %v19
  %v178 = vunpack.c.l.b16 %v20
  %v179 = vunpack.c.l.b16 %v21
  %v180 = vunpack.c.h.b16 %v21
  %v181 = vunpack.c.l.b16 %v22
  %v182 = vunpack.c.l.b16 %v23
  %v183 = vunpack.c.h.b16 %v23
  %v184 = vunpack.c.l.b16 %v24
  %v185 = vunpack.c.l.b16 %v25
  %v186 = vunpack.c.h.b16 %v25
  %v187 = vunpack.c.l.b16 %v26
  %v188 = vunpack.c.l.b16 %v27
  %v189 = vunpack.c.h.b16 %v27
  %v190 = vunpack.c.l.b16 %v28
  %v191 = vunpack.c.l.b16 %v29
  %v192 = vunpack.c.h.b16 %v29
  %v193 = vunpack.c.l.b16 %v30
  %v194 = vunpack.c.l.b16 %v31
  %v195 = vunpack.c.h.b16 %v31
  %v196 = vunpack.c.l.b16 %v32
  %v197 = vunpack.c.l.b16 %v33
  %v198 = vunpack.c.h.b16 %v33
  %v199 = vunpack.c.l.b16 %v34
  %v200 = vunpack.c.l.b16 %v35
  %v201 = vunpack.c.h.b16 %v35
  %v202 = vunpack.c.l.b16 %v36
  %v203 = vunpack.c.l.b16 %v37
  %v204 = vunpack.c.h.b16 %v37
  %v205 = vunpack.c.l.b16 %v38
  %v206 = vunpack.c.l.b16 %v39
  %v207 = vunpack.c.h.b16 %v39
  %v208 = vunpack.c.l.b16 %v40
  %v209 = vunpack.c.l.b16 %v41
  %v210 = vunpack.c.h.b16 %v41
  %v211 = vunpack.c.l.b16 %v42
  %v212 = vunpack.c.l.b16 %v43
  %v213 = vunpack.c.h.b16 %v43
  %v214 = vunpack.c.l.b16 %v44
  %v215 = vunpack.c.l.b16 %v45
  %v216 = vunpack.c.h.b16 %v45
  %v217 = vunpack.c.l.b16 %v46
  %v218 = vunpack.c.l.b16 %v47
  %v219 = vunpack.c.h.b16 %v47
  %v220 = vunpack.c.l.b16 %v48
  %v221 = vunpack.c.l.b16 %v49
  %v222 = vunpack.c.h.b16 %v49
  %v223 = vunpack.c.l.b16 %v50
  %v224 = vunpack.c.l.b16 %v51
  %v225 = vunpack.c.h.b16 %v51
  %v226 = vunpack.c.l.b16 %v52
  %v227 = vunpack.c.l.b16 %v53
  %v228 = vunpack.c.h.b16 %v53
  %v229 = vunpack.c.l.b16 %v54
  %v230 = vunpack.c.l.b16 %v55
  %v231 = vunpack.c.h.b16 %v55
  %v232 = vunpack.c.l.b16 %v56
  %v233 = vunpack.c.l.b16 %v57
  %v234 = vunpack.c.h.b16 %v57
  %v235 = vunpack.c.l.b16 %v58
  %v236 = vunpack.c.l.b16 %v59
  %v237 = vunpack.c.h.b16 %v59
  %v238 = vunpack.c.l.b16 %v60
  %v239 = vunpack.c.l.b16 %v61
  %v240 = vunpack.c.h.b16 %v61
  %v241 = vunpack.c.l.b16 %v62
  %v242 = vunpack.c.l.b16 %v63
  %v243 = vunpack.c.h.b16 %v63
  %v244 = vunpack.c.l.b16 %v64
  %v245 = vunpack.c.l.b16 %v65
  %v246 = vunpack.c.h.b16 %v65
  %v247 = vunpack.c.l.b16 %v66
  %v248 = vunpack.c.l.b16 %v67
  %v249 = vunpack.c.h.b16 %v67
  %v250 = vunpack.c.l.b16 %v68
  %v251 = vunpack.c.l.b16 %v69
  %v252 = vunpack.c.h.b16 %v69
  %v253 = vunpack.c.l.b16 %v70
  %v254 = vpack.c.b16 %v173, %v170
  %v255 = vpack.c.b16 %v174, %v171
  %v256 = vpack.c.b16 %v175, %v172
  %v257 = vpack.c.b16 %v179, %v176
  %v258 = vpack.c.b16 %v180, %v177
  %v259 = vpack.c.b16 %v181, %v178
  %v260 = vpack.c.b16 %v185, %v182
  %v261 = vpack.c.b16 %v186, %v183
  %v262 = vpack.c.b16 %v187, %v184
  %v263 = vpack.c.b16 %v191, %v188
  %v264 = vpack.c.b16 %v192, %v189
  %v265 = vpack.c.b16 %v193, %v190
  %v266 = vpack.c.b16 %v197, %v194
  %v267 = vpack.c.b16 %v198, %v195
  %v268 = vpack.c.b16 %v199, %v196
  %v269 = vpack.c.b16 %v203, %v200
  %v270 = vpack.c.b16 %v204, %v201
  %v271 = vpack.c.b16 %v205, %v202
  %v272 = vpack.c.b16 %v209, %v206
  %v273 = vpack.c.b16 %v210, %v207
  %v274 = vpack.c.b16 %v211, %v208
  %v275 = vpack.c.b16 %v215, %v212
  %v276 = vpack.c.b16 %v216, %v213
  %v277 = vpack.c.b16 %v217, %v214
  %v278 = vpack.c.b16 %v221, %v218
  %v279 = vpack.c.b16 %v222, %v219
  %v280 = vpack.c.b16 %v223, %v220
  %v281 = vpack.c.b16 %v227, %v224
  %v282 = vpack.c.b16 %v228, %v225
  %v283 = vpack.c.b16 %v229, %v226
  %v284 = vpack.c.b16 %v233, %v230
  %v285 = vpack.c.b16 %v234, %v231
  %v286 = vpack.c.b16 %v235, %v232
  %v287 = vpack.c.b16 %v239, %v236
  %v288 = vpack.c.b16 %v240, %v237
  %v289 = vpack.c.b16 %v241, %v238
  %v290 = vpack.c.b16 %v245, %v242
  %v291 = vpack.c.b16 %v246, %v243
  %v292 = vpack.c.b16 %v247, %v244
  %v293 = vpack.c.b16 %v251, %v248
  %v294 = vpack.c.b16 %v252, %v249
  %v295 = vpack.c.b16 %v253, %v250
  %v360 = vunpack.c.l.b16 %v71
  %v361 = vunpack.c.l.b16 %v72
  %v362 = vunpack.c.l.b16 %v73
  %v363 = vunpack.c.l.b16 %v74
  %v364 = vunpack.c.l.b16 %v75
  %v365 = vunpack.c.l.b16 %v76
  %v366 = vunpack.c.l.b16 %v77
  %v367 = vunpack.c.l.b16 %v78
  %v368 = vunpack.c.l.b16 %v79
  %v369 = vunpack.c.l.b16 %v80
  %v370 = vunpack.c.l.b16 %v81
  %v371 = vunpack.c.l.b16 %v82
  %v372 = vunpack.c.l.b16 %v83
  %v373 = vunpack.c.l.b16 %v84
  %v374 = vunpack.c.l.b16 %v85
  %v375 = vunpack.c.l.b16 %v86
  %v376 = vunpack.c.l.b16 %v87
  %v377 = vunpack.c.l.b16 %v88
  %v378 = vunpack.c.l.b16 %v89
  %v379 = vunpack.c.l.b16 %v90
  %v380 = vunpack.c.l.b16 %v91
  %v381 = vunpack.c.l.b16 %v92
  %v382 = vunpack.c.l.b16 %v93
  %v383 = vunpack.c.l.b16 %v94
  %v384 = vunpack.c.l.b16 %v95
  %v385 = vunpack.c.l.b16 %v96
  %v386 = vunpack.c.l.b16 %v97
  %v387 = vunpack.c.l.b16 %v98
  %v388 = vunpack.c.l.b16 %v99
  %v389 = vunpack.c.l.b16 %v100
  %v390 = vunpack.c.l.b16 %v101
  %v391 = vunpack.c.l.b16 %v102
  %v392 = vunpack.c.l.b16 %v103
  %v393 = vunpack.c.l.b16 %v104
  %v394 = vunpack.c.l.b16 %v105
  %v395 = vunpack.c.l.b16 %v106
  %v396 = vpack.c.b16 %v361, %v360
  %v397 = vpack.c.b16 %v363, %v362
  %v398 = vpack.c.b16 %v365, %v364
  %v399 = vpack.c.b16 %v367, %v366
  %v400 = vpack.c.b16 %v369, %v368
  %v401 = vpack.c.b16 %v371, %v370
  %v402 = vpack.c.b16 %v373, %v372
  %v403 = vpack.c.b16 %v375, %v374
  %v404 = vpack.c.b16 %v377, %v376
  %v405 = vpack.c.b16 %v379, %v378
  %v406 = vpack.c.b16 %v381, %v380
  %v407 = vpack.c.b16 %v383, %v382
  %v408 = vpack.c.b16 %v385, %v384
  %v409 = vpack.c.b16 %v387, %v386
  %v410 = vpack.c.b16 %v389, %v388
  %v411 = vpack.c.b16 %v391, %v390
  %v412 = vpack.c.b16 %v393, %v392
  %v413 = vpack.c.b16 %v395, %v394
  %vm432 = vcmask 261120
  %v434 = vsel %vm432, %v256, 0
  %v437 = vsel %vm432, %v259, 0
  %v440 = vsel %vm432, %v262, 0
  %v443 = vsel %vm432, %v265, 0
  %v446 = vsel %vm432, %v268, 0
  %v449 = vsel %vm432, %v271, 0
  %v452 = vsel %vm432, %v274, 0
  %v455 = vsel %vm432, %v277, 0
  %v458 = vsel %vm432, %v280, 0
  %v461 = vsel %vm432, %v283, 0
  %v464 = vsel %vm432, %v286, 0
  %v467 = vsel %vm432, %v289, 0
  %v470 = vsel %vm432, %v292, 0
  %v473 = vsel %vm432, %v295, 0
  %475 = vmatprep.subr.bf16.mxu0 0
  %476 = vmatpush1.bf16.msra.mxu0 %v396
  %477 = vmatprep.subr.bf16.mxu0 0
  %478 = vmatpush1.bf16.msra.mxu0 %v397
  %479 = vmatprep.subr.bf16.mxu0 0
  %480 = vmatpush1.bf16.msra.mxu0 %v398
  %481 = vmatprep.subr.bf16.mxu0 0
  %482 = vmatpush1.bf16.msra.mxu0 %v399
  %483 = vmatprep.subr.bf16.mxu0 0
  %484 = vmatpush1.bf16.msra.mxu0 %v400
  %485 = vmatprep.subr.bf16.mxu0 0
  %486 = vmatpush1.bf16.msra.mxu0 %v401
  %487 = vmatprep.subr.bf16.mxu0 0
  %488 = vmatpush1.bf16.msra.mxu0 %v402
  %489 = vmatprep.subr.bf16.mxu0 0
  %490 = vmatpush1.bf16.msra.mxu0 %v403
  %491 = vmatprep.subr.bf16.mxu0 0
  %492 = vmatpush1.bf16.msra.mxu0 %v404
  %493 = vmatprep.subr.bf16.mxu0 0
  %494 = vmatpush1.bf16.msra.mxu0 %v405
  %495 = vmatprep.subr.bf16.mxu0 0
  %496 = vmatpush1.bf16.msra.mxu0 %v406
  %497 = vmatprep.subr.bf16.mxu0 0
  %498 = vmatpush1.bf16.msra.mxu0 %v407
  %499 = vmatprep.subr.bf16.mxu0 0
  %500 = vmatpush1.bf16.msra.mxu0 %v408
  %501 = vmatprep.subr.bf16.mxu0 0
  %502 = vmatpush1.bf16.msra.mxu0 %v409
  %503 = vmatprep.subr.bf16.mxu0 0
  %504 = vmatpush1.bf16.msra.mxu0 %v410
  %505 = vmatprep.subr.bf16.mxu0 0
  %506 = vmatpush1.bf16.msra.mxu0 %v411
  %507 = vmatprep.mubr.bf16.mxu0 %v255
  %508 = vmatmul.mubr.bf16.gmra.mrb[0].mxu0 %v254
  %v509 = vpop.f32.mrb[0].mxu0
  %v510 = vadd.f32 %v112, %v509
  %v511 = vpop.f32.mrb[0].mxu0
  %v512 = vpop.f32.mrb[0].mxu0
  %v513 = vadd.f32 %v112, %v512
  %v514 = vpop.f32.mrb[0].mxu0
  %515 = vmatprep.mubr.bf16.mxu0 %v258
  %516 = vmatmul.mubr.bf16.gmra.mrb[0].mxu0 %v257
  %v517 = vpop.f32.mrb[0].mxu0
  %v518 = vadd.f32 %v112, %v517
  %v519 = vpop.f32.mrb[0].mxu0
  %v520 = vpop.f32.mrb[0].mxu0
  %v521 = vadd.f32 %v112, %v520
  %v522 = vpop.f32.mrb[0].mxu0
  %523 = vmatprep.mubr.bf16.mxu0 %v261
  %524 = vmatmul.mubr.bf16.gmra.mrb[0].mxu0 %v260
  %v525 = vpop.f32.mrb[0].mxu0
  %v526 = vadd.f32 %v112, %v525
  %v527 = vpop.f32.mrb[0].mxu0
  %v528 = vpop.f32.mrb[0].mxu0
  %v529 = vadd.f32 %v112, %v528
  %v530 = vpop.f32.mrb[0].mxu0
  %531 = vmatprep.mubr.bf16.mxu0 %v264
  %532 = vmatmul.mubr.bf16.gmra.mrb[0].mxu0 %v263
  %v533 = vpop.f32.mrb[0].mxu0
  %v534 = vadd.f32 %v112, %v533
  %v535 = vpop.f32.mrb[0].mxu0
  %v536 = vpop.f32.mrb[0].mxu0
  %v537 = vadd.f32 %v112, %v536
  %v538 = vpop.f32.mrb[0].mxu0
  %539 = vmatprep.mubr.bf16.mxu0 %v267
  %540 = vmatmul.mubr.bf16.gmra.mrb[0].mxu0 %v266
  %v541 = vpop.f32.mrb[0].mxu0
  %v542 = vadd.f32 %v112, %v541
  %v543 = vpop.f32.mrb[0].mxu0
  %v544 = vpop.f32.mrb[0].mxu0
  %v545 = vadd.f32 %v112, %v544
  %v546 = vpop.f32.mrb[0].mxu0
  %547 = vmatprep.mubr.bf16.mxu0 %v270
  %548 = vmatmul.mubr.bf16.gmra.mrb[0].mxu0 %v269
  %v549 = vpop.f32.mrb[0].mxu0
  %v550 = vadd.f32 %v112, %v549
  %v551 = vpop.f32.mrb[0].mxu0
  %v552 = vpop.f32.mrb[0].mxu0
  %v553 = vadd.f32 %v112, %v552
  %v554 = vpop.f32.mrb[0].mxu0
  %555 = vmatprep.mubr.bf16.mxu0 %v273
  %556 = vmatmul.mubr.bf16.gmra.mrb[0].mxu0 %v272
  %v557 = vpop.f32.mrb[0].mxu0
  %v558 = vadd.f32 %v112, %v557
  %v559 = vpop.f32.mrb[0].mxu0
  %v560 = vpop.f32.mrb[0].mxu0
  %v561 = vadd.f32 %v112, %v560
  %v562 = vpop.f32.mrb[0].mxu0
  %563 = vmatprep.mubr.bf16.mxu0 %v276
  %564 = vmatmul.mubr.bf16.gmra.mrb[0].mxu0 %v275
  %v565 = vpop.f32.mrb[0].mxu0
  %v566 = vadd.f32 %v112, %v565
  %v567 = vpop.f32.mrb[0].mxu0
  %v568 = vpop.f32.mrb[0].mxu0
  %v569 = vadd.f32 %v112, %v568
  %v570 = vpop.f32.mrb[0].mxu0
  %571 = vmatprep.mubr.bf16.mxu0 %v279
  %572 = vmatmul.mubr.bf16.gmra.mrb[0].mxu0 %v278
  %v573 = vpop.f32.mrb[0].mxu0
  %v574 = vadd.f32 %v112, %v573
  %v575 = vpop.f32.mrb[0].mxu0
  %v576 = vpop.f32.mrb[0].mxu0
  %v577 = vadd.f32 %v112, %v576
  %v578 = vpop.f32.mrb[0].mxu0
  %579 = vmatprep.mubr.bf16.mxu0 %v282
  %580 = vmatmul.mubr.bf16.gmra.mrb[0].mxu0 %v281
  %v581 = vpop.f32.mrb[0].mxu0
  %v582 = vadd.f32 %v112, %v581
  %v583 = vpop.f32.mrb[0].mxu0
  %v584 = vpop.f32.mrb[0].mxu0
  %v585 = vadd.f32 %v112, %v584
  %v586 = vpop.f32.mrb[0].mxu0
  %587 = vmatprep.mubr.bf16.mxu0 %v285
  %588 = vmatmul.mubr.bf16.gmra.mrb[0].mxu0 %v284
  %v589 = vpop.f32.mrb[0].mxu0
  %v590 = vadd.f32 %v112, %v589
  %v591 = vpop.f32.mrb[0].mxu0
  %v592 = vpop.f32.mrb[0].mxu0
  %v593 = vadd.f32 %v112, %v592
  %v594 = vpop.f32.mrb[0].mxu0
  %595 = vmatprep.mubr.bf16.mxu0 %v288
  %596 = vmatmul.mubr.bf16.gmra.mrb[0].mxu0 %v287
  %v597 = vpop.f32.mrb[0].mxu0
  %v598 = vadd.f32 %v112, %v597
  %v599 = vpop.f32.mrb[0].mxu0
  %v600 = vpop.f32.mrb[0].mxu0
  %v601 = vadd.f32 %v112, %v600
  %v602 = vpop.f32.mrb[0].mxu0
  %603 = vmatprep.mubr.bf16.mxu0 %v291
  %604 = vmatmul.mubr.bf16.gmra.mrb[0].mxu0 %v290
  %v605 = vpop.f32.mrb[0].mxu0
  %v606 = vadd.f32 %v112, %v605
  %v607 = vpop.f32.mrb[0].mxu0
  %v608 = vpop.f32.mrb[0].mxu0
  %v609 = vadd.f32 %v112, %v608
  %v610 = vpop.f32.mrb[0].mxu0
  %611 = vmatprep.mubr.bf16.mxu0 %v294
  %612 = vmatmul.mubr.bf16.gmra.mrb[0].mxu0 %v293
  %v613 = vpop.f32.mrb[0].mxu0
  %v614 = vadd.f32 %v112, %v613
  %v615 = vpop.f32.mrb[0].mxu0
  %v616 = vpop.f32.mrb[0].mxu0
  %v617 = vadd.f32 %v112, %v616
  %v618 = vpop.f32.mrb[0].mxu0
  %619 = vdwg.mxu0
  %620 = vmatprep.subr.bf16.mxu0 0
  %621 = vmatpush1.bf16.msra.mxu0 %v412
  %622 = vmatprep.subr.bf16.mxu0 0
  %623 = vmatpush1.bf16.msra.mxu0 %v413
  %624 = vmatprep.subr.bf16.mxu0 0
  %625 = vmatpush1.bf16.msra.mxu0 0
  %626 = vmatprep.subr.bf16.mxu0 0
  %627 = vmatpush1.bf16.msra.mxu0 0
  %628 = vmatprep.subr.bf16.mxu0 0
  %629 = vmatpush1.bf16.msra.mxu0 0
  %630 = vmatprep.subr.bf16.mxu0 0
  %631 = vmatpush1.bf16.msra.mxu0 0
  %632 = vmatprep.subr.bf16.mxu0 0
  %633 = vmatpush1.bf16.msra.mxu0 0
  %634 = vmatprep.subr.bf16.mxu0 0
  %635 = vmatpush1.bf16.msra.mxu0 0
  %636 = vmatprep.subr.bf16.mxu0 0
  %637 = vmatpush1.bf16.msra.mxu0 0
  %638 = vmatprep.subr.bf16.mxu0 0
  %639 = vmatpush1.bf16.msra.mxu0 0
  %640 = vmatprep.subr.bf16.mxu0 0
  %641 = vmatpush1.bf16.msra.mxu0 0
  %642 = vmatprep.subr.bf16.mxu0 0
  %643 = vmatpush1.bf16.msra.mxu0 0
  %644 = vmatprep.subr.bf16.mxu0 0
  %645 = vmatpush1.bf16.msra.mxu0 0
  %646 = vmatprep.subr.bf16.mxu0 0
  %647 = vmatpush1.bf16.msra.mxu0 0
  %648 = vmatprep.subr.bf16.mxu0 0
  %649 = vmatpush1.bf16.msra.mxu0 0
  %650 = vmatprep.subr.bf16.mxu0 0
  %651 = vmatpush1.bf16.msra.mxu0 0
  %652 = vmatprep.mubr.bf16.mxu0 0
  %653 = vmatmul.mubr.bf16.gmra.mrb[0].mxu0 %v434
  %v654 = vpop.f32.mrb[0].mxu0
  %v655 = vadd.f32 %v510, %v654
  %v656 = vpop.f32.mrb[0].mxu0
  %v657 = vpop.f32.mrb[0].mxu0
  %v658 = vadd.f32 %v513, %v657
  %v659 = vpop.f32.mrb[0].mxu0
  %660 = vmatprep.mubr.bf16.mxu0 0
  %661 = vmatmul.mubr.bf16.gmra.mrb[0].mxu0 %v437
  %v662 = vpop.f32.mrb[0].mxu0
  %v663 = vadd.f32 %v518, %v662
  %v664 = vpop.f32.mrb[0].mxu0
  %v665 = vpop.f32.mrb[0].mxu0
  %v666 = vadd.f32 %v521, %v665
  %v667 = vpop.f32.mrb[0].mxu0
  %668 = vmatprep.mubr.bf16.mxu0 0
  %669 = vmatmul.mubr.bf16.gmra.mrb[0].mxu0 %v440
  %v670 = vpop.f32.mrb[0].mxu0
  %v671 = vadd.f32 %v526, %v670
  %v672 = vpop.f32.mrb[0].mxu0
  %v673 = vpop.f32.mrb[0].mxu0
  %v674 = vadd.f32 %v529, %v673
  %v675 = vpop.f32.mrb[0].mxu0
  %676 = vmatprep.mubr.bf16.mxu0 0
  %677 = vmatmul.mubr.bf16.gmra.mrb[0].mxu0 %v443
  %v678 = vpop.f32.mrb[0].mxu0
  %v679 = vadd.f32 %v534, %v678
  %v680 = vpop.f32.mrb[0].mxu0
  %v681 = vpop.f32.mrb[0].mxu0
  %v682 = vadd.f32 %v537, %v681
  %v683 = vpop.f32.mrb[0].mxu0
  %684 = vmatprep.mubr.bf16.mxu0 0
  %685 = vmatmul.mubr.bf16.gmra.mrb[0].mxu0 %v446
  %v686 = vpop.f32.mrb[0].mxu0
  %v687 = vadd.f32 %v542, %v686
  %v688 = vpop.f32.mrb[0].mxu0
  %v689 = vpop.f32.mrb[0].mxu0
  %v690 = vadd.f32 %v545, %v689
  %v691 = vpop.f32.mrb[0].mxu0
  %692 = vmatprep.mubr.bf16.mxu0 0
  %693 = vmatmul.mubr.bf16.gmra.mrb[0].mxu0 %v449
  %v694 = vpop.f32.mrb[0].mxu0
  %v695 = vadd.f32 %v550, %v694
  %v696 = vpop.f32.mrb[0].mxu0
  %v697 = vpop.f32.mrb[0].mxu0
  %v698 = vadd.f32 %v553, %v697
  %v699 = vpop.f32.mrb[0].mxu0
  %700 = vmatprep.mubr.bf16.mxu0 0
  %701 = vmatmul.mubr.bf16.gmra.mrb[0].mxu0 %v452
  %v702 = vpop.f32.mrb[0].mxu0
  %v703 = vadd.f32 %v558, %v702
  %v704 = vpop.f32.mrb[0].mxu0
  %v705 = vpop.f32.mrb[0].mxu0
  %v706 = vadd.f32 %v561, %v705
  %v707 = vpop.f32.mrb[0].mxu0
  %708 = vmatprep.mubr.bf16.mxu0 0
  %709 = vmatmul.mubr.bf16.gmra.mrb[0].mxu0 %v455
  %v710 = vpop.f32.mrb[0].mxu0
  %v711 = vadd.f32 %v566, %v710
  %v712 = vpop.f32.mrb[0].mxu0
  %v713 = vpop.f32.mrb[0].mxu0
  %v714 = vadd.f32 %v569, %v713
  %v715 = vpop.f32.mrb[0].mxu0
  %716 = vmatprep.mubr.bf16.mxu0 0
  %717 = vmatmul.mubr.bf16.gmra.mrb[0].mxu0 %v458
  %v718 = vpop.f32.mrb[0].mxu0
  %v719 = vadd.f32 %v574, %v718
  %v720 = vpop.f32.mrb[0].mxu0
  %v721 = vpop.f32.mrb[0].mxu0
  %v722 = vadd.f32 %v577, %v721
  %v723 = vpop.f32.mrb[0].mxu0
  %724 = vmatprep.mubr.bf16.mxu0 0
  %725 = vmatmul.mubr.bf16.gmra.mrb[0].mxu0 %v461
  %v726 = vpop.f32.mrb[0].mxu0
  %v727 = vadd.f32 %v582, %v726
  %v728 = vpop.f32.mrb[0].mxu0
  %v729 = vpop.f32.mrb[0].mxu0
  %v730 = vadd.f32 %v585, %v729
  %v731 = vpop.f32.mrb[0].mxu0
  %732 = vmatprep.mubr.bf16.mxu0 0
  %733 = vmatmul.mubr.bf16.gmra.mrb[0].mxu0 %v464
  %v734 = vpop.f32.mrb[0].mxu0
  %v735 = vadd.f32 %v590, %v734
  %v736 = vpop.f32.mrb[0].mxu0
  %v737 = vpop.f32.mrb[0].mxu0
  %v738 = vadd.f32 %v593, %v737
  %v739 = vpop.f32.mrb[0].mxu0
  %740 = vmatprep.mubr.bf16.mxu0 0
  %741 = vmatmul.mubr.bf16.gmra.mrb[0].mxu0 %v467
  %v742 = vpop.f32.mrb[0].mxu0
  %v743 = vadd.f32 %v598, %v742
  %v744 = vpop.f32.mrb[0].mxu0
  %v745 = vpop.f32.mrb[0].mxu0
  %v746 = vadd.f32 %v601, %v745
  %v747 = vpop.f32.mrb[0].mxu0
  %748 = vmatprep.mubr.bf16.mxu0 0
  %749 = vmatmul.mubr.bf16.gmra.mrb[0].mxu0 %v470
  %v750 = vpop.f32.mrb[0].mxu0
  %v751 = vadd.f32 %v606, %v750
  %v752 = vpop.f32.mrb[0].mxu0
  %v753 = vpop.f32.mrb[0].mxu0
  %v754 = vadd.f32 %v609, %v753
  %v755 = vpop.f32.mrb[0].mxu0
  %756 = vmatprep.mubr.bf16.mxu0 0
  %757 = vmatmul.mubr.bf16.gmra.mrb[0].mxu0 %v473
  %v758 = vpop.f32.mrb[0].mxu0
  %v759 = vadd.f32 %v614, %v758
  %v760 = vpop.f32.mrb[0].mxu0
  %v761 = vpop.f32.mrb[0].mxu0
  %v762 = vadd.f32 %v617, %v761
  %v763 = vpop.f32.mrb[0].mxu0
  %764 = vdwg.mxu0
  %v765 = vmax.f32 %v655, 0.0
  %v766 = vmax.f32 %v658, 0.0
  %v767 = vmax.f32 %v663, 0.0
  %v768 = vmax.f32 %v666, 0.0
  %v769 = vmax.f32 %v671, 0.0
  %v770 = vmax.f32 %v674, 0.0
  %v771 = vmax.f32 %v679, 0.0
  %v772 = vmax.f32 %v682, 0.0
  %v773 = vmax.f32 %v687, 0.0
  %v774 = vmax.f32 %v690, 0.0
  %v775 = vmax.f32 %v695, 0.0
  %v776 = vmax.f32 %v698, 0.0
  %v777 = vmax.f32 %v703, 0.0
  %v778 = vmax.f32 %v706, 0.0
  %v779 = vmax.f32 %v711, 0.0
  %v780 = vmax.f32 %v714, 0.0
  %v781 = vmax.f32 %v719, 0.0
  %v782 = vmax.f32 %v722, 0.0
  %v783 = vmax.f32 %v727, 0.0
  %v784 = vmax.f32 %v730, 0.0
  %v785 = vmax.f32 %v735, 0.0
  %v786 = vmax.f32 %v738, 0.0
  %v787 = vmax.f32 %v743, 0.0
  %v788 = vmax.f32 %v746, 0.0
  %v789 = vmax.f32 %v751, 0.0
  %v790 = vmax.f32 %v754, 0.0
  %v791 = vmax.f32 %v759, 0.0
  %v792 = vmax.f32 %v762, 0.0
  %793 = vst.msk [vmem:[%s3] sm:$0xff] %vm432, %v765
  %794 = vst.msk [vmem:[%s3 + $0x8] sm:$0xff] %vm432, %v766
  %795 = vst.msk [vmem:[%s3 + $0x10] sm:$0xff] %vm432, %v767
  %796 = vst.msk [vmem:[%s3 + $0x18] sm:$0xff] %vm432, %v768
  %797 = vst.msk [vmem:[%s3 + $0x20] sm:$0xff] %vm432, %v769
  %798 = vst.msk [vmem:[%s3 + $0x28] sm:$0xff] %vm432, %v770
  %799 = vst.msk [vmem:[%s3 + $0x30] sm:$0xff] %vm432, %v771
  %800 = vst.msk [vmem:[%s3 + $0x38] sm:$0xff] %vm432, %v772
  %801 = vst.msk [vmem:[%s3 + $0x40] sm:$0xff] %vm432, %v773
  %802 = vst.msk [vmem:[%s3 + $0x48] sm:$0xff] %vm432, %v774
  %803 = vst.msk [vmem:[%s3 + $0x50] sm:$0xff] %vm432, %v775
  %804 = vst.msk [vmem:[%s3 + $0x58] sm:$0xff] %vm432, %v776
  %805 = vst.msk [vmem:[%s3 + $0x60] sm:$0xff] %vm432, %v777
  %806 = vst.msk [vmem:[%s3 + $0x68] sm:$0xff] %vm432, %v778
  %807 = vst.msk [vmem:[%s3 + $0x70] sm:$0xff] %vm432, %v779
  %808 = vst.msk [vmem:[%s3 + $0x78] sm:$0xff] %vm432, %v780
  %809 = vst.msk [vmem:[%s3 + $0x80] sm:$0xff] %vm432, %v781
  %810 = vst.msk [vmem:[%s3 + $0x88] sm:$0xff] %vm432, %v782
  %811 = vst.msk [vmem:[%s3 + $0x90] sm:$0xff] %vm432, %v783
  %812 = vst.msk [vmem:[%s3 + $0x98] sm:$0xff] %vm432, %v784
  %813 = vst.msk [vmem:[%s3 + $0xa0] sm:$0xff] %vm432, %v785
  %814 = vst.msk [vmem:[%s3 + $0xa8] sm:$0xff] %vm432, %v786
  %815 = vst.msk [vmem:[%s3 + $0xb0] sm:$0xff] %vm432, %v787
  %816 = vst.msk [vmem:[%s3 + $0xb8] sm:$0xff] %vm432, %v788
  %817 = vst.msk [vmem:[%s3 + $0xc0] sm:$0xff] %vm432, %v789
  %818 = vst.msk [vmem:[%s3 + $0xc8] sm:$0xff] %vm432, %v790
  %819 = vst.msk [vmem:[%s3 + $0xd0] sm:$0xff] %vm432, %v791
  %820 = vst.msk [vmem:[%s3 + $0xd8] sm:$0xff] %vm432, %v792
  // Predicated region
  $region14: #{_lambda_.14} parent=0 // pred_check
    _
  $region15: #{_lambda_.14} parent=0 // pred_check_branch
    %822 = sbr.rel (0) target = $region17
  $region16: #{_lambda_.14} parent=0 // pred_region
    _
  $region17: #{_lambda_.14} parent=0 // pred_fallthru
    _
  // Predicated region
  $region18: #{_lambda_.14} parent=0 // pred_check
    _
  $region19: #{_lambda_.14} parent=0 // pred_check_branch
    %824 = sbr.rel (0) target = $region21
  $region20: #{_lambda_.14} parent=0 // pred_region
    _
  $region21: #{_lambda_.14} parent=0 // pred_fallthru
    _

// kernel: _lambda_.15
$region0: #{_lambda_.15}
  #allocation0 [shape = 'u32[]', space=smem, size = 0x4, offset = 0x4, fixed_abs, tag = 'smem constant byte address 0x4 - core index']
  #allocation1 [shape = 'u32[144,128]{1,0:T(1,128)}', space=vmem, size = 0x12000, scoped, tag = 'internal scratch']
  %s0 = inlined_call_operand.vmem [shape: bf16[64,288], index: 0, kind: input, shape index: {}]
  %s1 = inlined_call_operand.vmem [shape: bf16[288,32], index: 1, kind: input, shape index: {}]
  %s2 = inlined_call_operand.vmem [shape: f32[1,32], index: 2, kind: input, shape index: {}]
  %s3 = inlined_call_operand.vmem [shape: f32[64,32], index: 3, kind: output, shape index: {}]
  %s4 = sld [smem:[#allocation0]]
  $region22: #{_lambda_.15} parent=0
    _
  %s6 = ssub.s32 1, %s4
  %s7 = scalar_select 0, %s6, %s4
  // Predicated region
  $region2: #{_lambda_.15} parent=0 // pred_check
    _
  $region3: #{_lambda_.15} parent=0 // pred_check_branch
    %9 = sbr.rel (0) target = $region5
  $region4: #{_lambda_.15} parent=0 // pred_region
    _
  $region5: #{_lambda_.15} parent=0 // pred_fallthru
    _
  // Predicated region
  $region6: #{_lambda_.15} parent=0 // pred_check
    _
  $region7: #{_lambda_.15} parent=0 // pred_check_branch
    %11 = sbr.rel (0) target = $region9
  $region8: #{_lambda_.15} parent=0 // pred_region
    _
  $region9: #{_lambda_.15} parent=0 // pred_fallthru
    _
  // Predicated region
  $region10: #{_lambda_.15} parent=0 // pred_check
    _
  $region11: #{_lambda_.15} parent=0 // pred_check_branch
    %13 = sbr.rel (0) target = $region13
  $region12: #{_lambda_.15} parent=0 // pred_region
    _
  $region13: #{_lambda_.15} parent=0 // pred_fallthru
    _
  %v15 = vld [vmem:[%s0] sm:$0xff]
  %v16 = vld [vmem:[%s0 + $0x8] sm:$0xf]
  %v17 = vld [vmem:[%s0 + $0xc] sm:$0xff]
  %v18 = vld [vmem:[%s0 + $0x14] sm:$0xf]
  %v19 = vld [vmem:[%s0 + $0x18] sm:$0xff]
  %v20 = vld [vmem:[%s0 + $0x20] sm:$0xf]
  %v21 = vld [vmem:[%s0 + $0x24] sm:$0xff]
  %v22 = vld [vmem:[%s0 + $0x2c] sm:$0xf]
  %v23 = vld [vmem:[%s0 + $0x30] sm:$0xff]
  %v24 = vld [vmem:[%s0 + $0x38] sm:$0xf]
  %v25 = vld [vmem:[%s0 + $0x3c] sm:$0xff]
  %v26 = vld [vmem:[%s0 + $0x44] sm:$0xf]
  %v27 = vld [vmem:[%s0 + $0x48] sm:$0xff]
  %v28 = vld [vmem:[%s0 + $0x50] sm:$0xf]
  %v29 = vld [vmem:[%s0 + $0x54] sm:$0xff]
  %v30 = vld [vmem:[%s0 + $0x5c] sm:$0xf]
  %v31 = vld [vmem:[%s1] sm:$0xf]
  %v32 = vld [vmem:[%s1 + $0x4] sm:$0xf]
  %v33 = vld [vmem:[%s1 + $0x8] sm:$0xf]
  %v34 = vld [vmem:[%s1 + $0xc] sm:$0xf]
  %v35 = vld [vmem:[%s1 + $0x10] sm:$0xf]
  %v36 = vld [vmem:[%s1 + $0x14] sm:$0xf]
  %v37 = vld [vmem:[%s1 + $0x18] sm:$0xf]
  %v38 = vld [vmem:[%s1 + $0x1c] sm:$0xf]
  %v39 = vld [vmem:[%s1 + $0x20] sm:$0xf]
  %v40 = vld [vmem:[%s1 + $0x24] sm:$0xf]
  %v41 = vld [vmem:[%s1 + $0x28] sm:$0xf]
  %v42 = vld [vmem:[%s1 + $0x2c] sm:$0xf]
  %v43 = vld [vmem:[%s1 + $0x30] sm:$0xf]
  %v44 = vld [vmem:[%s1 + $0x34] sm:$0xf]
  %v45 = vld [vmem:[%s1 + $0x38] sm:$0xf]
  %v46 = vld [vmem:[%s1 + $0x3c] sm:$0xf]
  %v47 = vld [vmem:[%s1 + $0x40] sm:$0xf]
  %v48 = vld [vmem:[%s1 + $0x44] sm:$0xf]
  %v49 = vld [vmem:[%s1 + $0x48] sm:$0xf]
  %v50 = vld [vmem:[%s1 + $0x4c] sm:$0xf]
  %v51 = vld [vmem:[%s1 + $0x50] sm:$0xf]
  %v52 = vld [vmem:[%s1 + $0x54] sm:$0xf]
  %v53 = vld [vmem:[%s1 + $0x58] sm:$0xf]
  %v54 = vld [vmem:[%s1 + $0x5c] sm:$0xf]
  %v55 = vld [vmem:[%s1 + $0x60] sm:$0xf]
  %v56 = vld [vmem:[%s1 + $0x64] sm:$0xf]
  %v57 = vld [vmem:[%s1 + $0x68] sm:$0xf]
  %v58 = vld [vmem:[%s1 + $0x6c] sm:$0xf]
  %v59 = vld [vmem:[%s1 + $0x70] sm:$0xf]
  %v60 = vld [vmem:[%s1 + $0x74] sm:$0xf]
  %v61 = vld [vmem:[%s1 + $0x78] sm:$0xf]
  %v62 = vld [vmem:[%s1 + $0x7c] sm:$0xf]
  %v63 = vld [vmem:[%s1 + $0x80] sm:$0xf]
  %v64 = vld [vmem:[%s1 + $0x84] sm:$0xf]
  %v65 = vld [vmem:[%s1 + $0x88] sm:$0xf]
  %v66 = vld [vmem:[%s1 + $0x8c] sm:$0xf]
  %v67 = vld [vmem:[%s2] sm:$0x1]
  %v69 = vlaneseq
  %v70 = vshrl.u32 %v69, 7
  %v71 = vsub.s32 0, %v70
  %v72 = vrot.slane %v67, %v71
  %v90 = vunpack.c.l.b16 %v15
  %v91 = vunpack.c.h.b16 %v15
  %v92 = vunpack.c.l.b16 %v16
  %v93 = vunpack.c.l.b16 %v17
  %v94 = vunpack.c.h.b16 %v17
  %v95 = vunpack.c.l.b16 %v18
  %v96 = vunpack.c.l.b16 %v19
  %v97 = vunpack.c.h.b16 %v19
  %v98 = vunpack.c.l.b16 %v20
  %v99 = vunpack.c.l.b16 %v21
  %v100 = vunpack.c.h.b16 %v21
  %v101 = vunpack.c.l.b16 %v22
  %v102 = vunpack.c.l.b16 %v23
  %v103 = vunpack.c.h.b16 %v23
  %v104 = vunpack.c.l.b16 %v24
  %v105 = vunpack.c.l.b16 %v25
  %v106 = vunpack.c.h.b16 %v25
  %v107 = vunpack.c.l.b16 %v26
  %v108 = vunpack.c.l.b16 %v27
  %v109 = vunpack.c.h.b16 %v27
  %v110 = vunpack.c.l.b16 %v28
  %v111 = vunpack.c.l.b16 %v29
  %v112 = vunpack.c.h.b16 %v29
  %v113 = vunpack.c.l.b16 %v30
  %v114 = vpack.c.b16 %v93, %v90
  %v115 = vpack.c.b16 %v94, %v91
  %v116 = vpack.c.b16 %v95, %v92
  %v117 = vpack.c.b16 %v99, %v96
  %v118 = vpack.c.b16 %v100, %v97
  %v119 = vpack.c.b16 %v101, %v98
  %v120 = vpack.c.b16 %v105, %v102
  %v121 = vpack.c.b16 %v106, %v103
  %v122 = vpack.c.b16 %v107, %v104
  %v123 = vpack.c.b16 %v111, %v108
  %v124 = vpack.c.b16 %v112, %v109
  %v125 = vpack.c.b16 %v113, %v110
  %v170 = vunpack.c.l.b16 %v31
  %v171 = vunpack.c.l.b16 %v32
  %v172 = vunpack.c.l.b16 %v33
  %v173 = vunpack.c.l.b16 %v34
  %v174 = vunpack.c.l.b16 %v35
  %v175 = vunpack.c.l.b16 %v36
  %v176 = vunpack.c.l.b16 %v37
  %v177 = vunpack.c.l.b16 %v38
  %v178 = vunpack.c.l.b16 %v39
  %v179 = vunpack.c.l.b16 %v40
  %v180 = vunpack.c.l.b16 %v41
  %v181 = vunpack.c.l.b16 %v42
  %v182 = vunpack.c.l.b16 %v43
  %v183 = vunpack.c.l.b16 %v44
  %v184 = vunpack.c.l.b16 %v45
  %v185 = vunpack.c.l.b16 %v46
  %v186 = vunpack.c.l.b16 %v47
  %v187 = vunpack.c.l.b16 %v48
  %v188 = vunpack.c.l.b16 %v49
  %v189 = vunpack.c.l.b16 %v50
  %v190 = vunpack.c.l.b16 %v51
  %v191 = vunpack.c.l.b16 %v52
  %v192 = vunpack.c.l.b16 %v53
  %v193 = vunpack.c.l.b16 %v54
  %v194 = vunpack.c.l.b16 %v55
  %v195 = vunpack.c.l.b16 %v56
  %v196 = vunpack.c.l.b16 %v57
  %v197 = vunpack.c.l.b16 %v58
  %v198 = vunpack.c.l.b16 %v59
  %v199 = vunpack.c.l.b16 %v60
  %v200 = vunpack.c.l.b16 %v61
  %v201 = vunpack.c.l.b16 %v62
  %v202 = vunpack.c.l.b16 %v63
  %v203 = vunpack.c.l.b16 %v64
  %v204 = vunpack.c.l.b16 %v65
  %v205 = vunpack.c.l.b16 %v66
  %v206 = vpack.c.b16 %v171, %v170
  %v207 = vpack.c.b16 %v173, %v172
  %v208 = vpack.c.b16 %v175, %v174
  %v209 = vpack.c.b16 %v177, %v176
  %v210 = vpack.c.b16 %v179, %v178
  %v211 = vpack.c.b16 %v181, %v180
  %v212 = vpack.c.b16 %v183, %v182
  %v213 = vpack.c.b16 %v185, %v184
  %v214 = vpack.c.b16 %v187, %v186
  %v215 = vpack.c.b16 %v189, %v188
  %v216 = vpack.c.b16 %v191, %v190
  %v217 = vpack.c.b16 %v193, %v192
  %v218 = vpack.c.b16 %v195, %v194
  %v219 = vpack.c.b16 %v197, %v196
  %v220 = vpack.c.b16 %v199, %v198
  %v221 = vpack.c.b16 %v201, %v200
  %v222 = vpack.c.b16 %v203, %v202
  %v223 = vpack.c.b16 %v205, %v204
  %vm242 = vcmask 261120
  %v244 = vsel %vm242, %v116, 0
  %v247 = vsel %vm242, %v119, 0
  %v250 = vsel %vm242, %v122, 0
  %v253 = vsel %vm242, %v125, 0
  %255 = vmatprep.subr.bf16.mxu0 0
  %256 = vmatpush1.bf16.msra.mxu0 %v206
  %257 = vmatprep.subr.bf16.mxu0 0
  %258 = vmatpush1.bf16.msra.mxu0 %v207
  %259 = vmatprep.subr.bf16.mxu0 0
  %260 = vmatpush1.bf16.msra.mxu0 %v208
  %261 = vmatprep.subr.bf16.mxu0 0
  %262 = vmatpush1.bf16.msra.mxu0 %v209
  %263 = vmatprep.subr.bf16.mxu0 0
  %264 = vmatpush1.bf16.msra.mxu0 %v210
  %265 = vmatprep.subr.bf16.mxu0 0
  %266 = vmatpush1.bf16.msra.mxu0 %v211
  %267 = vmatprep.subr.bf16.mxu0 0
  %268 = vmatpush1.bf16.msra.mxu0 %v212
  %269 = vmatprep.subr.bf16.mxu0 0
  %270 = vmatpush1.bf16.msra.mxu0 %v213
  %271 = vmatprep.subr.bf16.mxu0 0
  %272 = vmatpush1.bf16.msra.mxu0 %v214
  %273 = vmatprep.subr.bf16.mxu0 0
  %274 = vmatpush1.bf16.msra.mxu0 %v215
  %275 = vmatprep.subr.bf16.mxu0 0
  %276 = vmatpush1.bf16.msra.mxu0 %v216
  %277 = vmatprep.subr.bf16.mxu0 0
  %278 = vmatpush1.bf16.msra.mxu0 %v217
  %279 = vmatprep.subr.bf16.mxu0 0
  %280 = vmatpush1.bf16.msra.mxu0 %v218
  %281 = vmatprep.subr.bf16.mxu0 0
  %282 = vmatpush1.bf16.msra.mxu0 %v219
  %283 = vmatprep.subr.bf16.mxu0 0
  %284 = vmatpush1.bf16.msra.mxu0 %v220
  %285 = vmatprep.subr.bf16.mxu0 0
  %286 = vmatpush1.bf16.msra.mxu0 %v221
  %287 = vmatprep.mubr.bf16.mxu0 %v115
  %288 = vmatmul.mubr.bf16.gmra.mrb[0].mxu0 %v114
  %v289 = vpop.f32.mrb[0].mxu0
  %v290 = vadd.f32 %v72, %v289
  %v291 = vpop.f32.mrb[0].mxu0
  %v292 = vpop.f32.mrb[0].mxu0
  %v293 = vadd.f32 %v72, %v292
  %v294 = vpop.f32.mrb[0].mxu0
  %295 = vmatprep.mubr.bf16.mxu0 %v118
  %296 = vmatmul.mubr.bf16.gmra.mrb[0].mxu0 %v117
  %v297 = vpop.f32.mrb[0].mxu0
  %v298 = vadd.f32 %v72, %v297
  %v299 = vpop.f32.mrb[0].mxu0
  %v300 = vpop.f32.mrb[0].mxu0
  %v301 = vadd.f32 %v72, %v300
  %v302 = vpop.f32.mrb[0].mxu0
  %303 = vmatprep.mubr.bf16.mxu0 %v121
  %304 = vmatmul.mubr.bf16.gmra.mrb[0].mxu0 %v120
  %v305 = vpop.f32.mrb[0].mxu0
  %v306 = vadd.f32 %v72, %v305
  %v307 = vpop.f32.mrb[0].mxu0
  %v308 = vpop.f32.mrb[0].mxu0
  %v309 = vadd.f32 %v72, %v308
  %v310 = vpop.f32.mrb[0].mxu0
  %311 = vmatprep.mubr.bf16.mxu0 %v124
  %312 = vmatmul.mubr.bf16.gmra.mrb[0].mxu0 %v123
  %v313 = vpop.f32.mrb[0].mxu0
  %v314 = vadd.f32 %v72, %v313
  %v315 = vpop.f32.mrb[0].mxu0
  %v316 = vpop.f32.mrb[0].mxu0
  %v317 = vadd.f32 %v72, %v316
  %v318 = vpop.f32.mrb[0].mxu0
  %319 = vdwg.mxu0
  %320 = vmatprep.subr.bf16.mxu0 0
  %321 = vmatpush1.bf16.msra.mxu0 %v222
  %322 = vmatprep.subr.bf16.mxu0 0
  %323 = vmatpush1.bf16.msra.mxu0 %v223
  %324 = vmatprep.subr.bf16.mxu0 0
  %325 = vmatpush1.bf16.msra.mxu0 0
  %326 = vmatprep.subr.bf16.mxu0 0
  %327 = vmatpush1.bf16.msra.mxu0 0
  %328 = vmatprep.subr.bf16.mxu0 0
  %329 = vmatpush1.bf16.msra.mxu0 0
  %330 = vmatprep.subr.bf16.mxu0 0
  %331 = vmatpush1.bf16.msra.mxu0 0
  %332 = vmatprep.subr.bf16.mxu0 0
  %333 = vmatpush1.bf16.msra.mxu0 0
  %334 = vmatprep.subr.bf16.mxu0 0
  %335 = vmatpush1.bf16.msra.mxu0 0
  %336 = vmatprep.subr.bf16.mxu0 0
  %337 = vmatpush1.bf16.msra.mxu0 0
  %338 = vmatprep.subr.bf16.mxu0 0
  %339 = vmatpush1.bf16.msra.mxu0 0
  %340 = vmatprep.subr.bf16.mxu0 0
  %341 = vmatpush1.bf16.msra.mxu0 0
  %342 = vmatprep.subr.bf16.mxu0 0
  %343 = vmatpush1.bf16.msra.mxu0 0
  %344 = vmatprep.subr.bf16.mxu0 0
  %345 = vmatpush1.bf16.msra.mxu0 0
  %346 = vmatprep.subr.bf16.mxu0 0
  %347 = vmatpush1.bf16.msra.mxu0 0
  %348 = vmatprep.subr.bf16.mxu0 0
  %349 = vmatpush1.bf16.msra.mxu0 0
  %350 = vmatprep.subr.bf16.mxu0 0
  %351 = vmatpush1.bf16.msra.mxu0 0
  %352 = vmatprep.mubr.bf16.mxu0 0
  %353 = vmatmul.mubr.bf16.gmra.mrb[0].mxu0 %v244
  %v354 = vpop.f32.mrb[0].mxu0
  %v355 = vadd.f32 %v290, %v354
  %v356 = vpop.f32.mrb[0].mxu0
  %v357 = vpop.f32.mrb[0].mxu0
  %v358 = vadd.f32 %v293, %v357
  %v359 = vpop.f32.mrb[0].mxu0
  %360 = vmatprep.mubr.bf16.mxu0 0
  %361 = vmatmul.mubr.bf16.gmra.mrb[0].mxu0 %v247
  %v362 = vpop.f32.mrb[0].mxu0
  %v363 = vadd.f32 %v298, %v362
  %v364 = vpop.f32.mrb[0].mxu0
  %v365 = vpop.f32.mrb[0].mxu0
  %v366 = vadd.f32 %v301, %v365
  %v367 = vpop.f32.mrb[0].mxu0
  %368 = vmatprep.mubr.bf16.mxu0 0
  %369 = vmatmul.mubr.bf16.gmra.mrb[0].mxu0 %v250
  %v370 = vpop.f32.mrb[0].mxu0
  %v371 = vadd.f32 %v306, %v370
  %v372 = vpop.f32.mrb[0].mxu0
  %v373 = vpop.f32.mrb[0].mxu0
  %v374 = vadd.f32 %v309, %v373
  %v375 = vpop.f32.mrb[0].mxu0
  %376 = vmatprep.mubr.bf16.mxu0 0
  %377 = vmatmul.mubr.bf16.gmra.mrb[0].mxu0 %v253
  %v378 = vpop.f32.mrb[0].mxu0
  %v379 = vadd.f32 %v314, %v378
  %v380 = vpop.f32.mrb[0].mxu0
  %v381 = vpop.f32.mrb[0].mxu0
  %v382 = vadd.f32 %v317, %v381
  %v383 = vpop.f32.mrb[0].mxu0
  %384 = vdwg.mxu0
  %v385 = vmax.f32 %v355, 0.0
  %v386 = vmax.f32 %v358, 0.0
  %v387 = vmax.f32 %v363, 0.0
  %v388 = vmax.f32 %v366, 0.0
  %v389 = vmax.f32 %v371, 0.0
  %v390 = vmax.f32 %v374, 0.0
  %v391 = vmax.f32 %v379, 0.0
  %v392 = vmax.f32 %v382, 0.0
  %393 = vst.msk [vmem:[%s3] sm:$0xff] %vm242, %v385
  %394 = vst.msk [vmem:[%s3 + $0x8] sm:$0xff] %vm242, %v386
  %395 = vst.msk [vmem:[%s3 + $0x10] sm:$0xff] %vm242, %v387
  %396 = vst.msk [vmem:[%s3 + $0x18] sm:$0xff] %vm242, %v388
  %397 = vst.msk [vmem:[%s3 + $0x20] sm:$0xff] %vm242, %v389
  %398 = vst.msk [vmem:[%s3 + $0x28] sm:$0xff] %vm242, %v390
  %399 = vst.msk [vmem:[%s3 + $0x30] sm:$0xff] %vm242, %v391
  %400 = vst.msk [vmem:[%s3 + $0x38] sm:$0xff] %vm242, %v392
  // Predicated region
  $region14: #{_lambda_.15} parent=0 // pred_check
    _
  $region15: #{_lambda_.15} parent=0 // pred_check_branch
    %402 = sbr.rel (0) target = $region17
  $region16: #{_lambda_.15} parent=0 // pred_region
    _
  $region17: #{_lambda_.15} parent=0 // pred_fallthru
    _
  // Predicated region
  $region18: #{_lambda_.15} parent=0 // pred_check
    _
  $region19: #{_lambda_.15} parent=0 // pred_check_branch
    %404 = sbr.rel (0) target = $region21
  $region20: #{_lambda_.15} parent=0 // pred_region
    _
  $region21: #{_lambda_.15} parent=0 // pred_fallthru
    _

// kernel: _lambda_.16
$region0: #{_lambda_.16}
  #allocation0 [shape = 'u32[]', space=smem, size = 0x4, offset = 0x4, fixed_abs, tag = 'smem constant byte address 0x4 - core index']
  #allocation1 [shape = 'u32[144,128]{1,0:T(1,128)}', space=vmem, size = 0x12000, scoped, tag = 'internal scratch']
  %s0 = inlined_call_operand.vmem [shape: bf16[64,32], index: 0, kind: input, shape index: {}]
  %s1 = inlined_call_operand.vmem [shape: bf16[32,80], index: 1, kind: input, shape index: {}]
  %s2 = inlined_call_operand.vmem [shape: f32[1,80], index: 2, kind: input, shape index: {}]
  %s3 = inlined_call_operand.vmem [shape: f32[64,80], index: 3, kind: output, shape index: {}]
  %s4 = sld [smem:[#allocation0]]
  $region22: #{_lambda_.16} parent=0
    _
  %s6 = ssub.s32 1, %s4
  %s7 = scalar_select 0, %s6, %s4
  // Predicated region
  $region2: #{_lambda_.16} parent=0 // pred_check
    _
  $region3: #{_lambda_.16} parent=0 // pred_check_branch
    %9 = sbr.rel (0) target = $region5
  $region4: #{_lambda_.16} parent=0 // pred_region
    _
  $region5: #{_lambda_.16} parent=0 // pred_fallthru
    _
  // Predicated region
  $region6: #{_lambda_.16} parent=0 // pred_check
    _
  $region7: #{_lambda_.16} parent=0 // pred_check_branch
    %11 = sbr.rel (0) target = $region9
  $region8: #{_lambda_.16} parent=0 // pred_region
    _
  $region9: #{_lambda_.16} parent=0 // pred_fallthru
    _
  // Predicated region
  $region10: #{_lambda_.16} parent=0 // pred_check
    _
  $region11: #{_lambda_.16} parent=0 // pred_check_branch
    %13 = sbr.rel (0) target = $region13
  $region12: #{_lambda_.16} parent=0 // pred_region
    _
  $region13: #{_lambda_.16} parent=0 // pred_fallthru
    _
  %v15 = vld [vmem:[%s0] sm:$0xf]
  %v16 = vld [vmem:[%s0 + $0x4] sm:$0xf]
  %v17 = vld [vmem:[%s0 + $0x8] sm:$0xf]
  %v18 = vld [vmem:[%s0 + $0xc] sm:$0xf]
  %v19 = vld [vmem:[%s0 + $0x10] sm:$0xf]
  %v20 = vld [vmem:[%s0 + $0x14] sm:$0xf]
  %v21 = vld [vmem:[%s0 + $0x18] sm:$0xf]
  %v22 = vld [vmem:[%s0 + $0x1c] sm:$0xf]
  %v23 = vld [vmem:[%s1] sm:$0xf]
  %v24 = vld [vmem:[%s1 + $0x4] sm:$0xf]
  %v25 = vld [vmem:[%s1 + $0x8] sm:$0xf]
  %v26 = vld [vmem:[%s1 + $0xc] sm:$0xf]
  %v27 = vld [vmem:[%s2] sm:$0x1]
  %v29 = vlaneseq
  %v30 = vshrl.u32 %v29, 7
  %v31 = vsub.s32 0, %v30
  %v32 = vrot.slane %v27, %v31
  %v42 = vunpack.c.l.b16 %v15
  %v43 = vunpack.c.l.b16 %v16
  %v44 = vunpack.c.l.b16 %v17
  %v45 = vunpack.c.l.b16 %v18
  %v46 = vunpack.c.l.b16 %v19
  %v47 = vunpack.c.l.b16 %v20
  %v48 = vunpack.c.l.b16 %v21
  %v49 = vunpack.c.l.b16 %v22
  %v50 = vpack.c.b16 %v43, %v42
  %v51 = vpack.c.b16 %v45, %v44
  %v52 = vpack.c.b16 %v47, %v46
  %v53 = vpack.c.b16 %v49, %v48
  %v58 = vunpack.c.l.b16 %v23
  %v59 = vunpack.c.l.b16 %v24
  %v60 = vunpack.c.l.b16 %v25
  %v61 = vunpack.c.l.b16 %v26
  %v62 = vpack.c.b16 %v59, %v58
  %v63 = vpack.c.b16 %v61, %v60
  %vm66 = vcmask 261120
  %v68 = vsel %vm66, %v50, 0
  %v71 = vsel %vm66, %v51, 0
  %v74 = vsel %vm66, %v52, 0
  %v77 = vsel %vm66, %v53, 0
  %79 = vmatprep.subr.bf16.mxu0 0
  %80 = vmatpush1.bf16.msra.mxu0 %v62
  %81 = vmatprep.subr.bf16.mxu0 0
  %82 = vmatpush1.bf16.msra.mxu0 %v63
  %83 = vmatprep.subr.bf16.mxu0 0
  %84 = vmatpush1.bf16.msra.mxu0 0
  %85 = vmatprep.subr.bf16.mxu0 0
  %86 = vmatpush1.bf16.msra.mxu0 0
  %87 = vmatprep.subr.bf16.mxu0 0
  %88 = vmatpush1.bf16.msra.mxu0 0
  %89 = vmatprep.subr.bf16.mxu0 0
  %90 = vmatpush1.bf16.msra.mxu0 0
  %91 = vmatprep.subr.bf16.mxu0 0
  %92 = vmatpush1.bf16.msra.mxu0 0
  %93 = vmatprep.subr.bf16.mxu0 0
  %94 = vmatpush1.bf16.msra.mxu0 0
  %95 = vmatprep.subr.bf16.mxu0 0
  %96 = vmatpush1.bf16.msra.mxu0 0
  %97 = vmatprep.subr.bf16.mxu0 0
  %98 = vmatpush1.bf16.msra.mxu0 0
  %99 = vmatprep.subr.bf16.mxu0 0
  %100 = vmatpush1.bf16.msra.mxu0 0
  %101 = vmatprep.subr.bf16.mxu0 0
  %102 = vmatpush1.bf16.msra.mxu0 0
  %103 = vmatprep.subr.bf16.mxu0 0
  %104 = vmatpush1.bf16.msra.mxu0 0
  %105 = vmatprep.subr.bf16.mxu0 0
  %106 = vmatpush1.bf16.msra.mxu0 0
  %107 = vmatprep.subr.bf16.mxu0 0
  %108 = vmatpush1.bf16.msra.mxu0 0
  %109 = vmatprep.subr.bf16.mxu0 0
  %110 = vmatpush1.bf16.msra.mxu0 0
  %111 = vmatprep.mubr.bf16.mxu0 0
  %112 = vmatmul.mubr.bf16.gmra.mrb[0].mxu0 %v68
  %v113 = vpop.f32.mrb[0].mxu0
  %v114 = vadd.f32 %v32, %v113
  %v115 = vpop.f32.mrb[0].mxu0
  %v116 = vpop.f32.mrb[0].mxu0
  %v117 = vadd.f32 %v32, %v116
  %v118 = vpop.f32.mrb[0].mxu0
  %119 = vmatprep.mubr.bf16.mxu0 0
  %120 = vmatmul.mubr.bf16.gmra.mrb[0].mxu0 %v71
  %v121 = vpop.f32.mrb[0].mxu0
  %v122 = vadd.f32 %v32, %v121
  %v123 = vpop.f32.mrb[0].mxu0
  %v124 = vpop.f32.mrb[0].mxu0
  %v125 = vadd.f32 %v32, %v124
  %v126 = vpop.f32.mrb[0].mxu0
  %127 = vmatprep.mubr.bf16.mxu0 0
  %128 = vmatmul.mubr.bf16.gmra.mrb[0].mxu0 %v74
  %v129 = vpop.f32.mrb[0].mxu0
  %v130 = vadd.f32 %v32, %v129
  %v131 = vpop.f32.mrb[0].mxu0
  %v132 = vpop.f32.mrb[0].mxu0
  %v133 = vadd.f32 %v32, %v132
  %v134 = vpop.f32.mrb[0].mxu0
  %135 = vmatprep.mubr.bf16.mxu0 0
  %136 = vmatmul.mubr.bf16.gmra.mrb[0].mxu0 %v77
  %v137 = vpop.f32.mrb[0].mxu0
  %v138 = vadd.f32 %v32, %v137
  %v139 = vpop.f32.mrb[0].mxu0
  %v140 = vpop.f32.mrb[0].mxu0
  %v141 = vadd.f32 %v32, %v140
  %v142 = vpop.f32.mrb[0].mxu0
  %143 = vdwg.mxu0
  %vm144 = vcmask 654336
  %145 = vst.msk [vmem:[%s3] sm:$0xff] %vm144, %v114
  %146 = vst.msk [vmem:[%s3 + $0x8] sm:$0xff] %vm144, %v117
  %147 = vst.msk [vmem:[%s3 + $0x10] sm:$0xff] %vm144, %v122
  %148 = vst.msk [vmem:[%s3 + $0x18] sm:$0xff] %vm144, %v125
  %149 = vst.msk [vmem:[%s3 + $0x20] sm:$0xff] %vm144, %v130
  %150 = vst.msk [vmem:[%s3 + $0x28] sm:$0xff] %vm144, %v133
  %151 = vst.msk [vmem:[%s3 + $0x30] sm:$0xff] %vm144, %v138
  %152 = vst.msk [vmem:[%s3 + $0x38] sm:$0xff] %vm144, %v141
  // Predicated region
  $region14: #{_lambda_.16} parent=0 // pred_check
    _
  $region15: #{_lambda_.16} parent=0 // pred_check_branch
    %154 = sbr.rel (0) target = $region17
  $region16: #{_lambda_.16} parent=0 // pred_region
    _
  $region17: #{_lambda_.16} parent=0 // pred_fallthru
    _
  // Predicated region
  $region18: #{_lambda_.16} parent=0 // pred_check
    _
  $region19: #{_lambda_.16} parent=0 // pred_check_branch
    %156 = sbr.rel (0) target = $region21
  $region20: #{_lambda_.16} parent=0 // pred_region
    _
  $region21: #{_lambda_.16} parent=0 // pred_fallthru
    _

// kernel: _lambda_.17
$region0: #{_lambda_.17}
  #allocation0 [shape = 'u32[]', space=smem, size = 0x4, offset = 0x4, fixed_abs, tag = 'smem constant byte address 0x4 - core index']
  #allocation1 [shape = 'u32[144,128]{1,0:T(1,128)}', space=vmem, size = 0x12000, scoped, tag = 'internal scratch']
  %s0 = inlined_call_operand.vmem [shape: bf16[1024,8], index: 0, kind: input, shape index: {}]
  %s1 = inlined_call_operand.vmem [shape: bf16[8,640], index: 1, kind: input, shape index: {}]
  %s2 = inlined_call_operand.vmem [shape: f32[1,640], index: 2, kind: input, shape index: {}]
  %s3 = inlined_call_operand.vmem [shape: f32[1024,640], index: 3, kind: output, shape index: {}]
  %s4 = sld [smem:[#allocation0]]
  $region45: #{_lambda_.17} parent=0
    _
  %s6 = ssub.s32 1, %s4
  %s7 = scalar_select 0, %s6, %s4
  loop: start=0, step=1, limit=4
  $region2: #{_lambda_.17} parent=0 // loop_pre_header
    _
  $region3: #{_lambda_.17} parent=0 // loop_header
    %s9 = sphi 0, %s13
    %p10 = scmp.ge.s32.totalorder %s9, 4
    %s19 = sphi 0, %s21
    %s22 = sphi 0, %s19
    %s23 = sphi 0, %s22
    %s39 = sphi 0, %s23
    %s43 = sphi 0, %s43
    %s45 = sphi 0, %s43
    %s46 = sphi 0, %s45
    %s60 = sphi 0, %s46
    %s64 = sphi 0, %s64
    %s66 = sphi 0, %s64
    %s67 = sphi 0, %s66
    %s81 = sphi 0, %s67
    %s87 = sphi 0, %s89
    %s90 = sphi 0, %s87
    %s91 = sphi 0, %s90
    %s107 = sphi 0, %s91
  $region4: #{_lambda_.17} parent=0 // loop_header_branch
    %12 = sbr.rel (%p10) target = $region8
  $region5: #{_lambda_.17} parent=0 // loop_body
    %s14 = ssub.s32 %s9, 1
    %s15 = ssub.s32 %s9, 2
    %s16 = sadd.s32 %s9, 1
    %s17 = ssub.s32 %s9, %s16
    %p18 = scmp.eq.s32.totalorder %s17, 0
    %s20 = sadd.s32 %s19, 1
    %s21 = scalar_select %p18, %s19, %s20
    %p24 = pneg %p18
    %p25 = scmp.eq.s32.totalorder %s9, 1
    %p26 = por %p24, %p25
    %p27 = scmp.ne.s32.totalorder %s19, %s22
    %p28 = scmp.eq.s32.totalorder %s9, 0
    %p29 = por %p27, %p28
    %p30 = scmp.ne.s32.totalorder %s19, %s22
    %p31 = scmp.eq.s32.totalorder %s14, 1
    %p32 = por %p30, %p31
    %p33 = scmp.ne.s32.totalorder %s22, %s23
    %p34 = scmp.eq.s32.totalorder %s14, 0
    %p35 = por %p33, %p34
    %p36 = scmp.ne.s32.totalorder %s22, %s23
    %p37 = scmp.eq.s32.totalorder %s15, 1
    %p38 = por %p36, %p37
    %p40 = scmp.ne.s32.totalorder %s23, %s39
    %p41 = scmp.eq.s32.totalorder %s15, 0
    %p42 = por %p40, %p41
    %s44 = sadd.s32 %s43, 1
    %p47 = scmp.eq.s32.totalorder %s9, 1
    %p48 = scmp.ne.s32.totalorder %s43, %s45
    %p49 = scmp.eq.s32.totalorder %s9, 0
    %p50 = por %p48, %p49
    %p51 = scmp.ne.s32.totalorder %s43, %s45
    %p52 = scmp.eq.s32.totalorder %s14, 1
    %p53 = por %p51, %p52
    %p54 = scmp.ne.s32.totalorder %s45, %s46
    %p55 = scmp.eq.s32.totalorder %s14, 0
    %p56 = por %p54, %p55
    %p57 = scmp.ne.s32.totalorder %s45, %s46
    %p58 = scmp.eq.s32.totalorder %s15, 1
    %p59 = por %p57, %p58
    %p61 = scmp.ne.s32.totalorder %s46, %s60
    %p62 = scmp.eq.s32.totalorder %s15, 0
    %p63 = por %p61, %p62
    %s65 = sadd.s32 %s64, 1
    %p68 = scmp.eq.s32.totalorder %s9, 1
    %p69 = scmp.ne.s32.totalorder %s64, %s66
    %p70 = scmp.eq.s32.totalorder %s9, 0
    %p71 = por %p69, %p70
    %p72 = scmp.ne.s32.totalorder %s64, %s66
    %p73 = scmp.eq.s32.totalorder %s14, 1
    %p74 = por %p72, %p73
    %p75 = scmp.ne.s32.totalorder %s66, %s67
    %p76 = scmp.eq.s32.totalorder %s14, 0
    %p77 = por %p75, %p76
    %p78 = scmp.ne.s32.totalorder %s66, %s67
    %p79 = scmp.eq.s32.totalorder %s15, 1
    %p80 = por %p78, %p79
    %p82 = scmp.ne.s32.totalorder %s67, %s81
    %p83 = scmp.eq.s32.totalorder %s15, 0
    %p84 = por %p82, %p83
    %s85 = ssub.s32 %s9, %s16
    %p86 = scmp.eq.s32.totalorder %s85, 0
    %s88 = sadd.s32 %s87, 1
    %s89 = scalar_select %p86, %s87, %s88
    %p92 = pneg %p86
    %p93 = scmp.eq.s32.totalorder %s9, 1
    %p94 = por %p92, %p93
    %p95 = scmp.ne.s32.totalorder %s87, %s90
    %p96 = scmp.eq.s32.totalorder %s9, 0
    %p97 = por %p95, %p96
    %p98 = scmp.ne.s32.totalorder %s87, %s90
    %p99 = scmp.eq.s32.totalorder %s14, 1
    %p100 = por %p98, %p99
    %p101 = scmp.ne.s32.totalorder %s90, %s91
    %p102 = scmp.eq.s32.totalorder %s14, 0
    %p103 = por %p101, %p102
    %p104 = scmp.ne.s32.totalorder %s90, %s91
    %p105 = scmp.eq.s32.totalorder %s15, 1
    %p106 = por %p104, %p105
    %p108 = scmp.ne.s32.totalorder %s91, %s107
    %p109 = scmp.eq.s32.totalorder %s15, 0
    %p110 = por %p108, %p109
    %p111 = scmp.le.s32.totalorder 1, %s9
    %p112 = scmp.lt.s32.totalorder %s9, 3
    %p113 = pnand %p111, %p112
    %p114 = pneg %p113
    // Predicated region
    $region9: #{_lambda_.17} parent=5 // pred_check
      _
    $region10: #{_lambda_.17} parent=5 // pred_check_branch
      %116 = sbr.rel (%p113) target = $region12
    $region11: #{_lambda_.17} parent=5 // pred_region
      %s117 = ssub.s32 %s9, 1
      // Predicated region
      $region13: #{_lambda_.17} parent=11 // pred_check
        %p118 = pneg %p56
      $region14: #{_lambda_.17} parent=11 // pred_check_branch
        %120 = sbr.rel (%p118) target = $region16
      $region15: #{_lambda_.17} parent=11 // pred_region
        _
      $region16: #{_lambda_.17} parent=11 // pred_fallthru
        _
      // Predicated region
      $region17: #{_lambda_.17} parent=11 // pred_check
        %p121 = pneg %p77
      $region18: #{_lambda_.17} parent=11 // pred_check_branch
        %123 = sbr.rel (%p121) target = $region20
      $region19: #{_lambda_.17} parent=11 // pred_region
        _
      $region20: #{_lambda_.17} parent=11 // pred_fallthru
        _
    $region12: #{_lambda_.17} parent=5 // pred_fallthru
      _
    %p124 = scmp.lt.s32.totalorder %s9, 2
    // Predicated region
    $region21: #{_lambda_.17} parent=5 // pred_check
      %p125 = pneg %p124
    $region22: #{_lambda_.17} parent=5 // pred_check_branch
      %127 = sbr.rel (%p125) target = $region24
    $region23: #{_lambda_.17} parent=5 // pred_region
      // Predicated region
      $region25: #{_lambda_.17} parent=23 // pred_check
        %p128 = pneg %p29
      $region26: #{_lambda_.17} parent=23 // pred_check_branch
        %130 = sbr.rel (%p128) target = $region28
      $region27: #{_lambda_.17} parent=23 // pred_region
        %s131 = smul.u32 64, %s9
        %p132 = scmp.lt.s32.totalorder %s131, 127
        %s133 = scalar_select %p132, %s131, 127
        %s134 = smul.addr %s133, 4
        %s135 = scalar_lea.vmem %s0, %s134
        %s136 = smul.u32 64, %s9
      $region28: #{_lambda_.17} parent=23 // pred_fallthru
        _
    $region24: #{_lambda_.17} parent=5 // pred_fallthru
      _
    %p137 = scmp.le.s32.totalorder 1, %s9
    %p138 = scmp.lt.s32.totalorder %s9, 3
    %p139 = pnand %p137, %p138
    %p140 = pneg %p139
    // Predicated region
    $region29: #{_lambda_.17} parent=5 // pred_check
      _
    $region30: #{_lambda_.17} parent=5 // pred_check_branch
      %142 = sbr.rel (%p139) target = $region32
    $region31: #{_lambda_.17} parent=5 // pred_region
      %s143 = ssub.s32 %s9, 1
      %s144 = smul.u32 64, %s14
      %p145 = scmp.lt.s32.totalorder %s144, 127
      %s146 = scalar_select %p145, %s144, 127
      %s147 = smul.addr %s146, 4
      %s148 = scalar_lea.vmem %s0, %s147
      %p149 = pneg %p35
      %p150 = pneg %p32
      %p151 = pneg %p56
      %p152 = pneg %p53
      %p153 = pneg %p77
      %p154 = pneg %p74
      %p155 = pneg %p103
      %p156 = pneg %p100
      %s157 = smul.u32 64, %s14
      %p158 = scmp.lt.s32.totalorder %s157, 127
      %s159 = scalar_select %p158, %s157, 127
      %s160 = smul.addr %s159, 5
      %s161 = smul.addr %s160, 8
      %s162 = scalar_lea.vmem %s3, %s161
      %s163 = smul.u32 64, %s14
      %p164 = scmp.lt.s32.totalorder %s163, 127
      %s165 = scalar_select %p164, %s163, 127
      %s166 = smul.addr %s165, 4
      %s167 = scalar_lea.vmem %s0, %s166
      %s168 = smul.u32 64, %s14
      %s169 = smul.u32 64, %s14
      %p170 = scmp.lt.s32.totalorder %s169, 127
      %s171 = scalar_select %p170, %s169, 127
      %s172 = smul.addr %s171, 5
      %s173 = smul.addr %s172, 8
      %s174 = scalar_lea.vmem %s3, %s173
      %s175 = smul.u32 64, %s14
      %v177 = vld [vmem:[%s167] sm:$0xf]
      %v178 = vld [vmem:[%s167 + $0x4] sm:$0xf]
      %v179 = vld [vmem:[%s167 + $0x8] sm:$0xf]
      %v180 = vld [vmem:[%s167 + $0xc] sm:$0xf]
      %v181 = vld [vmem:[%s167 + $0x10] sm:$0xf]
      %v182 = vld [vmem:[%s167 + $0x14] sm:$0xf]
      %v183 = vld [vmem:[%s167 + $0x18] sm:$0xf]
      %v184 = vld [vmem:[%s167 + $0x1c] sm:$0xf]
      %v185 = vld [vmem:[%s167 + $0x20] sm:$0xf]
      %v186 = vld [vmem:[%s167 + $0x24] sm:$0xf]
      %v187 = vld [vmem:[%s167 + $0x28] sm:$0xf]
      %v188 = vld [vmem:[%s167 + $0x2c] sm:$0xf]
      %v189 = vld [vmem:[%s167 + $0x30] sm:$0xf]
      %v190 = vld [vmem:[%s167 + $0x34] sm:$0xf]
      %v191 = vld [vmem:[%s167 + $0x38] sm:$0xf]
      %v192 = vld [vmem:[%s167 + $0x3c] sm:$0xf]
      %v193 = vld [vmem:[%s167 + $0x40] sm:$0xf]
      %v194 = vld [vmem:[%s167 + $0x44] sm:$0xf]
      %v195 = vld [vmem:[%s167 + $0x48] sm:$0xf]
      %v196 = vld [vmem:[%s167 + $0x4c] sm:$0xf]
      %v197 = vld [vmem:[%s167 + $0x50] sm:$0xf]
      %v198 = vld [vmem:[%s167 + $0x54] sm:$0xf]
      %v199 = vld [vmem:[%s167 + $0x58] sm:$0xf]
      %v200 = vld [vmem:[%s167 + $0x5c] sm:$0xf]
      %v201 = vld [vmem:[%s167 + $0x60] sm:$0xf]
      %v202 = vld [vmem:[%s167 + $0x64] sm:$0xf]
      %v203 = vld [vmem:[%s167 + $0x68] sm:$0xf]
      %v204 = vld [vmem:[%s167 + $0x6c] sm:$0xf]
      %v205 = vld [vmem:[%s167 + $0x70] sm:$0xf]
      %v206 = vld [vmem:[%s167 + $0x74] sm:$0xf]
      %v207 = vld [vmem:[%s167 + $0x78] sm:$0xf]
      %v208 = vld [vmem:[%s167 + $0x7c] sm:$0xf]
      %v209 = vld [vmem:[%s167 + $0x80] sm:$0xf]
      %v210 = vld [vmem:[%s167 + $0x84] sm:$0xf]
      %v211 = vld [vmem:[%s167 + $0x88] sm:$0xf]
      %v212 = vld [vmem:[%s167 + $0x8c] sm:$0xf]
      %v213 = vld [vmem:[%s167 + $0x90] sm:$0xf]
      %v214 = vld [vmem:[%s167 + $0x94] sm:$0xf]
      %v215 = vld [vmem:[%s167 + $0x98] sm:$0xf]
      %v216 = vld [vmem:[%s167 + $0x9c] sm:$0xf]
      %v217 = vld [vmem:[%s167 + $0xa0] sm:$0xf]
      %v218 = vld [vmem:[%s167 + $0xa4] sm:$0xf]
      %v219 = vld [vmem:[%s167 + $0xa8] sm:$0xf]
      %v220 = vld [vmem:[%s167 + $0xac] sm:$0xf]
      %v221 = vld [vmem:[%s167 + $0xb0] sm:$0xf]
      %v222 = vld [vmem:[%s167 + $0xb4] sm:$0xf]
      %v223 = vld [vmem:[%s167 + $0xb8] sm:$0xf]
      %v224 = vld [vmem:[%s167 + $0xbc] sm:$0xf]
      %v225 = vld [vmem:[%s167 + $0xc0] sm:$0xf]
      %v226 = vld [vmem:[%s167 + $0xc4] sm:$0xf]
      %v227 = vld [vmem:[%s167 + $0xc8] sm:$0xf]
      %v228 = vld [vmem:[%s167 + $0xcc] sm:$0xf]
      %v229 = vld [vmem:[%s167 + $0xd0] sm:$0xf]
      %v230 = vld [vmem:[%s167 + $0xd4] sm:$0xf]
      %v231 = vld [vmem:[%s167 + $0xd8] sm:$0xf]
      %v232 = vld [vmem:[%s167 + $0xdc] sm:$0xf]
      %v233 = vld [vmem:[%s167 + $0xe0] sm:$0xf]
      %v234 = vld [vmem:[%s167 + $0xe4] sm:$0xf]
      %v235 = vld [vmem:[%s167 + $0xe8] sm:$0xf]
      %v236 = vld [vmem:[%s167 + $0xec] sm:$0xf]
      %v237 = vld [vmem:[%s167 + $0xf0] sm:$0xf]
      %v238 = vld [vmem:[%s167 + $0xf4] sm:$0xf]
      %v239 = vld [vmem:[%s167 + $0xf8] sm:$0xf]
      %v240 = vld [vmem:[%s167 + $0xfc] sm:$0xf]
      %v241 = vld [vmem:[%s1] sm:$0xff]
      %v242 = vld [vmem:[%s1 + $0x8] sm:$0xff]
      %v243 = vld [vmem:[%s1 + $0x10] sm:$0xf]
      %v244 = vld [vmem:[%s2] sm:$0x1f]
      %v246 = vlaneseq
      %v247 = vshrl.u32 %v246, 7
      %v248 = vsub.s32 0, %v247
      %v249 = vrot.slane %v244, %v248
      %v250 = vlaneseq
      %v251 = vshrl.u32 %v250, 7
      %v252 = vsub.s32 1, %v251
      %v253 = vrot.slane %v244, %v252
      %v254 = vlaneseq
      %v255 = vshrl.u32 %v254, 7
      %v256 = vsub.s32 2, %v255
      %v257 = vrot.slane %v244, %v256
      %v258 = vlaneseq
      %v259 = vshrl.u32 %v258, 7
      %v260 = vsub.s32 3, %v259
      %v261 = vrot.slane %v244, %v260
      %v262 = vlaneseq
      %v263 = vshrl.u32 %v262, 7
      %v264 = vsub.s32 4, %v263
      %v265 = vrot.slane %v244, %v264
      %v335 = vunpack.c.l.b16 %v177
      %v336 = vunpack.c.l.b16 %v178
      %v337 = vunpack.c.l.b16 %v179
      %v338 = vunpack.c.l.b16 %v180
      %v339 = vunpack.c.l.b16 %v181
      %v340 = vunpack.c.l.b16 %v182
      %v341 = vunpack.c.l.b16 %v183
      %v342 = vunpack.c.l.b16 %v184
      %v343 = vunpack.c.l.b16 %v185
      %v344 = vunpack.c.l.b16 %v186
      %v345 = vunpack.c.l.b16 %v187
      %v346 = vunpack.c.l.b16 %v188
      %v347 = vunpack.c.l.b16 %v189
      %v348 = vunpack.c.l.b16 %v190
      %v349 = vunpack.c.l.b16 %v191
      %v350 = vunpack.c.l.b16 %v192
      %v351 = vunpack.c.l.b16 %v193
      %v352 = vunpack.c.l.b16 %v194
      %v353 = vunpack.c.l.b16 %v195
      %v354 = vunpack.c.l.b16 %v196
      %v355 = vunpack.c.l.b16 %v197
      %v356 = vunpack.c.l.b16 %v198
      %v357 = vunpack.c.l.b16 %v199
      %v358 = vunpack.c.l.b16 %v200
      %v359 = vunpack.c.l.b16 %v201
      %v360 = vunpack.c.l.b16 %v202
      %v361 = vunpack.c.l.b16 %v203
      %v362 = vunpack.c.l.b16 %v204
      %v363 = vunpack.c.l.b16 %v205
      %v364 = vunpack.c.l.b16 %v206
      %v365 = vunpack.c.l.b16 %v207
      %v366 = vunpack.c.l.b16 %v208
      %v367 = vunpack.c.l.b16 %v209
      %v368 = vunpack.c.l.b16 %v210
      %v369 = vunpack.c.l.b16 %v211
      %v370 = vunpack.c.l.b16 %v212
      %v371 = vunpack.c.l.b16 %v213
      %v372 = vunpack.c.l.b16 %v214
      %v373 = vunpack.c.l.b16 %v215
      %v374 = vunpack.c.l.b16 %v216
      %v375 = vunpack.c.l.b16 %v217
      %v376 = vunpack.c.l.b16 %v218
      %v377 = vunpack.c.l.b16 %v219
      %v378 = vunpack.c.l.b16 %v220
      %v379 = vunpack.c.l.b16 %v221
      %v380 = vunpack.c.l.b16 %v222
      %v381 = vunpack.c.l.b16 %v223
      %v382 = vunpack.c.l.b16 %v224
      %v383 = vunpack.c.l.b16 %v225
      %v384 = vunpack.c.l.b16 %v226
      %v385 = vunpack.c.l.b16 %v227
      %v386 = vunpack.c.l.b16 %v228
      %v387 = vunpack.c.l.b16 %v229
      %v388 = vunpack.c.l.b16 %v230
      %v389 = vunpack.c.l.b16 %v231
      %v390 = vunpack.c.l.b16 %v232
      %v391 = vunpack.c.l.b16 %v233
      %v392 = vunpack.c.l.b16 %v234
      %v393 = vunpack.c.l.b16 %v235
      %v394 = vunpack.c.l.b16 %v236
      %v395 = vunpack.c.l.b16 %v237
      %v396 = vunpack.c.l.b16 %v238
      %v397 = vunpack.c.l.b16 %v239
      %v398 = vunpack.c.l.b16 %v240
      %v399 = vpack.c.b16 %v336, %v335
      %v400 = vpack.c.b16 %v338, %v337
      %v401 = vpack.c.b16 %v340, %v339
      %v402 = vpack.c.b16 %v342, %v341
      %v403 = vpack.c.b16 %v344, %v343
      %v404 = vpack.c.b16 %v346, %v345
      %v405 = vpack.c.b16 %v348, %v347
      %v406 = vpack.c.b16 %v350, %v349
      %v407 = vpack.c.b16 %v352, %v351
      %v408 = vpack.c.b16 %v354, %v353
      %v409 = vpack.c.b16 %v356, %v355
      %v410 = vpack.c.b16 %v358, %v357
      %v411 = vpack.c.b16 %v360, %v359
      %v412 = vpack.c.b16 %v362, %v361
      %v413 = vpack.c.b16 %v364, %v363
      %v414 = vpack.c.b16 %v366, %v365
      %v415 = vpack.c.b16 %v368, %v367
      %v416 = vpack.c.b16 %v370, %v369
      %v417 = vpack.c.b16 %v372, %v371
      %v418 = vpack.c.b16 %v374, %v373
      %v419 = vpack.c.b16 %v376, %v375
      %v420 = vpack.c.b16 %v378, %v377
      %v421 = vpack.c.b16 %v380, %v379
      %v422 = vpack.c.b16 %v382, %v381
      %v423 = vpack.c.b16 %v384, %v383
      %v424 = vpack.c.b16 %v386, %v385
      %v425 = vpack.c.b16 %v388, %v387
      %v426 = vpack.c.b16 %v390, %v389
      %v427 = vpack.c.b16 %v392, %v391
      %v428 = vpack.c.b16 %v394, %v393
      %v429 = vpack.c.b16 %v396, %v395
      %v430 = vpack.c.b16 %v398, %v397
      %v434 = vunpack.c.l.b16 %v241
      %v435 = vunpack.c.h.b16 %v241
      %v436 = vunpack.c.l.b16 %v242
      %v437 = vunpack.c.h.b16 %v242
      %v438 = vunpack.c.l.b16 %v243
      %v439 = vpack.c.b16 %v434, %v434
      %v440 = vpack.c.b16 %v435, %v435
      %v441 = vpack.c.b16 %v436, %v436
      %v442 = vpack.c.b16 %v437, %v437
      %v443 = vpack.c.b16 %v438, %v438
      %vm444 = vcmask 64512
      %v446 = vsel %vm444, %v399, 0
      %v449 = vsel %vm444, %v400, 0
      %v452 = vsel %vm444, %v401, 0
      %v455 = vsel %vm444, %v402, 0
      %v458 = vsel %vm444, %v403, 0
      %v461 = vsel %vm444, %v404, 0
      %v464 = vsel %vm444, %v405, 0
      %v467 = vsel %vm444, %v406, 0
      %v470 = vsel %vm444, %v407, 0
      %v473 = vsel %vm444, %v408, 0
      %v476 = vsel %vm444, %v409, 0
      %v479 = vsel %vm444, %v410, 0
      %v482 = vsel %vm444, %v411, 0
      %v485 = vsel %vm444, %v412, 0
      %v488 = vsel %vm444, %v413, 0
      %v491 = vsel %vm444, %v414, 0
      %v494 = vsel %vm444, %v415, 0
      %v497 = vsel %vm444, %v416, 0
      %v500 = vsel %vm444, %v417, 0
      %v503 = vsel %vm444, %v418, 0
      %v506 = vsel %vm444, %v419, 0
      %v509 = vsel %vm444, %v420, 0
      %v512 = vsel %vm444, %v421, 0
      %v515 = vsel %vm444, %v422, 0
      %v518 = vsel %vm444, %v423, 0
      %v521 = vsel %vm444, %v424, 0
      %v524 = vsel %vm444, %v425, 0
      %v527 = vsel %vm444, %v426, 0
      %v530 = vsel %vm444, %v427, 0
      %v533 = vsel %vm444, %v428, 0
      %v536 = vsel %vm444, %v429, 0
      %v539 = vsel %vm444, %v430, 0
      %vm541 = vcmask 1043456
      %v543 = vsel %vm541, %v439, 0
      %v546 = vsel %vm541, %v440, 0
      %v549 = vsel %vm541, %v441, 0
      %v552 = vsel %vm541, %v442, 0
      %v555 = vsel %vm541, %v443, 0
      %557 = vmatprep.subr.bf16.mxu0 %v546
      %558 = vmatpush1.bf16.msra.mxu0 %v543
      %559 = vmatprep.subr.bf16.mxu0 0
      %560 = vmatpush1.bf16.msra.mxu0 0
      %561 = vmatprep.subr.bf16.mxu0 0
      %562 = vmatpush1.bf16.msra.mxu0 0
      %563 = vmatprep.subr.bf16.mxu0 0
      %564 = vmatpush1.bf16.msra.mxu0 0
      %565 = vmatprep.subr.bf16.mxu0 0
      %566 = vmatpush1.bf16.msra.mxu0 0
      %567 = vmatprep.subr.bf16.mxu0 0
      %568 = vmatpush1.bf16.msra.mxu0 0
      %569 = vmatprep.subr.bf16.mxu0 0
      %570 = vmatpush1.bf16.msra.mxu0 0
      %571 = vmatprep.subr.bf16.mxu0 0
      %572 = vmatpush1.bf16.msra.mxu0 0
      %573 = vmatprep.subr.bf16.mxu0 0
      %574 = vmatpush1.bf16.msra.mxu0 0
      %575 = vmatprep.subr.bf16.mxu0 0
      %576 = vmatpush1.bf16.msra.mxu0 0
      %577 = vmatprep.subr.bf16.mxu0 0
      %578 = vmatpush1.bf16.msra.mxu0 0
      %579 = vmatprep.subr.bf16.mxu0 0
      %580 = vmatpush1.bf16.msra.mxu0 0
      %581 = vmatprep.subr.bf16.mxu0 0
      %582 = vmatpush1.bf16.msra.mxu0 0
      %583 = vmatprep.subr.bf16.mxu0 0
      %584 = vmatpush1.bf16.msra.mxu0 0
      %585 = vmatprep.subr.bf16.mxu0 0
      %586 = vmatpush1.bf16.msra.mxu0 0
      %587 = vmatprep.subr.bf16.mxu0 0
      %588 = vmatpush1.bf16.msra.mxu0 0
      %589 = vmatprep.mubr.bf16.mxu0 0
      %590 = vmatmul.mubr.bf16.gmra.mrb[0].mxu0 %v446
      %v591 = vpop.f32.mrb[0].mxu0
      %v592 = vadd.f32 %v249, %v591
      %v593 = vpop.f32.mrb[0].mxu0
      %v594 = vadd.f32 %v253, %v593
      %v595 = vpop.f32.mrb[0].mxu0
      %v596 = vadd.f32 %v249, %v595
      %v597 = vpop.f32.mrb[0].mxu0
      %v598 = vadd.f32 %v253, %v597
      %599 = vmatprep.mubr.bf16.mxu0 0
      %600 = vmatmul.mubr.bf16.gmra.mrb[0].mxu0 %v449
      %v601 = vpop.f32.mrb[0].mxu0
      %v602 = vadd.f32 %v249, %v601
      %v603 = vpop.f32.mrb[0].mxu0
      %v604 = vadd.f32 %v253, %v603
      %v605 = vpop.f32.mrb[0].mxu0
      %v606 = vadd.f32 %v249, %v605
      %v607 = vpop.f32.mrb[0].mxu0
      %v608 = vadd.f32 %v253, %v607
      %609 = vmatprep.mubr.bf16.mxu0 0
      %610 = vmatmul.mubr.bf16.gmra.mrb[0].mxu0 %v452
      %v611 = vpop.f32.mrb[0].mxu0
      %v612 = vadd.f32 %v249, %v611
      %v613 = vpop.f32.mrb[0].mxu0
      %v614 = vadd.f32 %v253, %v613
      %v615 = vpop.f32.mrb[0].mxu0
      %v616 = vadd.f32 %v249, %v615
      %v617 = vpop.f32.mrb[0].mxu0
      %v618 = vadd.f32 %v253, %v617
      %619 = vmatprep.mubr.bf16.mxu0 0
      %620 = vmatmul.mubr.bf16.gmra.mrb[0].mxu0 %v455
      %v621 = vpop.f32.mrb[0].mxu0
      %v622 = vadd.f32 %v249, %v621
      %v623 = vpop.f32.mrb[0].mxu0
      %v624 = vadd.f32 %v253, %v623
      %v625 = vpop.f32.mrb[0].mxu0
      %v626 = vadd.f32 %v249, %v625
      %v627 = vpop.f32.mrb[0].mxu0
      %v628 = vadd.f32 %v253, %v627
      %629 = vmatprep.mubr.bf16.mxu0 0
      %630 = vmatmul.mubr.bf16.gmra.mrb[0].mxu0 %v458
      %v631 = vpop.f32.mrb[0].mxu0
      %v632 = vadd.f32 %v249, %v631
      %v633 = vpop.f32.mrb[0].mxu0
      %v634 = vadd.f32 %v253, %v633
      %v635 = vpop.f32.mrb[0].mxu0
      %v636 = vadd.f32 %v249, %v635
      %v637 = vpop.f32.mrb[0].mxu0
      %v638 = vadd.f32 %v253, %v637
      %639 = vmatprep.mubr.bf16.mxu0 0
      %640 = vmatmul.mubr.bf16.gmra.mrb[0].mxu0 %v461
      %v641 = vpop.f32.mrb[0].mxu0
      %v642 = vadd.f32 %v249, %v641
      %v643 = vpop.f32.mrb[0].mxu0
      %v644 = vadd.f32 %v253, %v643
      %v645 = vpop.f32.mrb[0].mxu0
      %v646 = vadd.f32 %v249, %v645
      %v647 = vpop.f32.mrb[0].mxu0
      %v648 = vadd.f32 %v253, %v647
      %649 = vmatprep.mubr.bf16.mxu0 0
      %650 = vmatmul.mubr.bf16.gmra.mrb[0].mxu0 %v464
      %v651 = vpop.f32.mrb[0].mxu0
      %v652 = vadd.f32 %v249, %v651
      %v653 = vpop.f32.mrb[0].mxu0
      %v654 = vadd.f32 %v253, %v653
      %v655 = vpop.f32.mrb[0].mxu0
      %v656 = vadd.f32 %v249, %v655
      %v657 = vpop.f32.mrb[0].mxu0
      %v658 = vadd.f32 %v253, %v657
      %659 = vmatprep.mubr.bf16.mxu0 0
      %660 = vmatmul.mubr.bf16.gmra.mrb[0].mxu0 %v467
      %v661 = vpop.f32.mrb[0].mxu0
      %v662 = vadd.f32 %v249, %v661
      %v663 = vpop.f32.mrb[0].mxu0
      %v664 = vadd.f32 %v253, %v663
      %v665 = vpop.f32.mrb[0].mxu0
      %v666 = vadd.f32 %v249, %v665
      %v667 = vpop.f32.mrb[0].mxu0
      %v668 = vadd.f32 %v253, %v667
      %669 = vmatprep.mubr.bf16.mxu0 0
      %670 = vmatmul.mubr.bf16.gmra.mrb[0].mxu0 %v470
      %v671 = vpop.f32.mrb[0].mxu0
      %v672 = vadd.f32 %v249, %v671
      %v673 = vpop.f32.mrb[0].mxu0
      %v674 = vadd.f32 %v253, %v673
      %v675 = vpop.f32.mrb[0].mxu0
      %v676 = vadd.f32 %v249, %v675
      %v677 = vpop.f32.mrb[0].mxu0
      %v678 = vadd.f32 %v253, %v677
      %679 = vmatprep.mubr.bf16.mxu0 0
      %680 = vmatmul.mubr.bf16.gmra.mrb[0].mxu0 %v473
      %v681 = vpop.f32.mrb[0].mxu0
      %v682 = vadd.f32 %v249, %v681
      %v683 = vpop.f32.mrb[0].mxu0
      %v684 = vadd.f32 %v253, %v683
      %v685 = vpop.f32.mrb[0].mxu0
      %v686 = vadd.f32 %v249, %v685
      %v687 = vpop.f32.mrb[0].mxu0
      %v688 = vadd.f32 %v253, %v687
      %689 = vmatprep.mubr.bf16.mxu0 0
      %690 = vmatmul.mubr.bf16.gmra.mrb[0].mxu0 %v476
      %v691 = vpop.f32.mrb[0].mxu0
      %v692 = vadd.f32 %v249, %v691
      %v693 = vpop.f32.mrb[0].mxu0
      %v694 = vadd.f32 %v253, %v693
      %v695 = vpop.f32.mrb[0].mxu0
      %v696 = vadd.f32 %v249, %v695
      %v697 = vpop.f32.mrb[0].mxu0
      %v698 = vadd.f32 %v253, %v697
      %699 = vmatprep.mubr.bf16.mxu0 0
      %700 = vmatmul.mubr.bf16.gmra.mrb[0].mxu0 %v479
      %v701 = vpop.f32.mrb[0].mxu0
      %v702 = vadd.f32 %v249, %v701
      %v703 = vpop.f32.mrb[0].mxu0
      %v704 = vadd.f32 %v253, %v703
      %v705 = vpop.f32.mrb[0].mxu0
      %v706 = vadd.f32 %v249, %v705
      %v707 = vpop.f32.mrb[0].mxu0
      %v708 = vadd.f32 %v253, %v707
      %709 = vmatprep.mubr.bf16.mxu0 0
      %710 = vmatmul.mubr.bf16.gmra.mrb[0].mxu0 %v482
      %v711 = vpop.f32.mrb[0].mxu0
      %v712 = vadd.f32 %v249, %v711
      %v713 = vpop.f32.mrb[0].mxu0
      %v714 = vadd.f32 %v253, %v713
      %v715 = vpop.f32.mrb[0].mxu0
      %v716 = vadd.f32 %v249, %v715
      %v717 = vpop.f32.mrb[0].mxu0
      %v718 = vadd.f32 %v253, %v717
      %719 = vmatprep.mubr.bf16.mxu0 0
      %720 = vmatmul.mubr.bf16.gmra.mrb[0].mxu0 %v485
      %v721 = vpop.f32.mrb[0].mxu0
      %v722 = vadd.f32 %v249, %v721
      %v723 = vpop.f32.mrb[0].mxu0
      %v724 = vadd.f32 %v253, %v723
      %v725 = vpop.f32.mrb[0].mxu0
      %v726 = vadd.f32 %v249, %v725
      %v727 = vpop.f32.mrb[0].mxu0
      %v728 = vadd.f32 %v253, %v727
      %729 = vmatprep.mubr.bf16.mxu0 0
      %730 = vmatmul.mubr.bf16.gmra.mrb[0].mxu0 %v488
      %v731 = vpop.f32.mrb[0].mxu0
      %v732 = vadd.f32 %v249, %v731
      %v733 = vpop.f32.mrb[0].mxu0
      %v734 = vadd.f32 %v253, %v733
      %v735 = vpop.f32.mrb[0].mxu0
      %v736 = vadd.f32 %v249, %v735
      %v737 = vpop.f32.mrb[0].mxu0
      %v738 = vadd.f32 %v253, %v737
      %739 = vmatprep.mubr.bf16.mxu0 0
      %740 = vmatmul.mubr.bf16.gmra.mrb[0].mxu0 %v491
      %v741 = vpop.f32.mrb[0].mxu0
      %v742 = vadd.f32 %v249, %v741
      %v743 = vpop.f32.mrb[0].mxu0
      %v744 = vadd.f32 %v253, %v743
      %v745 = vpop.f32.mrb[0].mxu0
      %v746 = vadd.f32 %v249, %v745
      %v747 = vpop.f32.mrb[0].mxu0
      %v748 = vadd.f32 %v253, %v747
      %749 = vmatprep.mubr.bf16.mxu0 0
      %750 = vmatmul.mubr.bf16.gmra.mrb[0].mxu0 %v494
      %v751 = vpop.f32.mrb[0].mxu0
      %v752 = vadd.f32 %v249, %v751
      %v753 = vpop.f32.mrb[0].mxu0
      %v754 = vadd.f32 %v253, %v753
      %v755 = vpop.f32.mrb[0].mxu0
      %v756 = vadd.f32 %v249, %v755
      %v757 = vpop.f32.mrb[0].mxu0
      %v758 = vadd.f32 %v253, %v757
      %759 = vmatprep.mubr.bf16.mxu0 0
      %760 = vmatmul.mubr.bf16.gmra.mrb[0].mxu0 %v497
      %v761 = vpop.f32.mrb[0].mxu0
      %v762 = vadd.f32 %v249, %v761
      %v763 = vpop.f32.mrb[0].mxu0
      %v764 = vadd.f32 %v253, %v763
      %v765 = vpop.f32.mrb[0].mxu0
      %v766 = vadd.f32 %v249, %v765
      %v767 = vpop.f32.mrb[0].mxu0
      %v768 = vadd.f32 %v253, %v767
      %769 = vmatprep.mubr.bf16.mxu0 0
      %770 = vmatmul.mubr.bf16.gmra.mrb[0].mxu0 %v500
      %v771 = vpop.f32.mrb[0].mxu0
      %v772 = vadd.f32 %v249, %v771
      %v773 = vpop.f32.mrb[0].mxu0
      %v774 = vadd.f32 %v253, %v773
      %v775 = vpop.f32.mrb[0].mxu0
      %v776 = vadd.f32 %v249, %v775
      %v777 = vpop.f32.mrb[0].mxu0
      %v778 = vadd.f32 %v253, %v777
      %779 = vmatprep.mubr.bf16.mxu0 0
      %780 = vmatmul.mubr.bf16.gmra.mrb[0].mxu0 %v503
      %v781 = vpop.f32.mrb[0].mxu0
      %v782 = vadd.f32 %v249, %v781
      %v783 = vpop.f32.mrb[0].mxu0
      %v784 = vadd.f32 %v253, %v783
      %v785 = vpop.f32.mrb[0].mxu0
      %v786 = vadd.f32 %v249, %v785
      %v787 = vpop.f32.mrb[0].mxu0
      %v788 = vadd.f32 %v253, %v787
      %789 = vmatprep.mubr.bf16.mxu0 0
      %790 = vmatmul.mubr.bf16.gmra.mrb[0].mxu0 %v506
      %v791 = vpop.f32.mrb[0].mxu0
      %v792 = vadd.f32 %v249, %v791
      %v793 = vpop.f32.mrb[0].mxu0
      %v794 = vadd.f32 %v253, %v793
      %v795 = vpop.f32.mrb[0].mxu0
      %v796 = vadd.f32 %v249, %v795
      %v797 = vpop.f32.mrb[0].mxu0
      %v798 = vadd.f32 %v253, %v797
      %799 = vmatprep.mubr.bf16.mxu0 0
      %800 = vmatmul.mubr.bf16.gmra.mrb[0].mxu0 %v509
      %v801 = vpop.f32.mrb[0].mxu0
      %v802 = vadd.f32 %v249, %v801
      %v803 = vpop.f32.mrb[0].mxu0
      %v804 = vadd.f32 %v253, %v803
      %v805 = vpop.f32.mrb[0].mxu0
      %v806 = vadd.f32 %v249, %v805
      %v807 = vpop.f32.mrb[0].mxu0
      %v808 = vadd.f32 %v253, %v807
      %809 = vmatprep.mubr.bf16.mxu0 0
      %810 = vmatmul.mubr.bf16.gmra.mrb[0].mxu0 %v512
      %v811 = vpop.f32.mrb[0].mxu0
      %v812 = vadd.f32 %v249, %v811
      %v813 = vpop.f32.mrb[0].mxu0
      %v814 = vadd.f32 %v253, %v813
      %v815 = vpop.f32.mrb[0].mxu0
      %v816 = vadd.f32 %v249, %v815
      %v817 = vpop.f32.mrb[0].mxu0
      %v818 = vadd.f32 %v253, %v817
      %819 = vmatprep.mubr.bf16.mxu0 0
      %820 = vmatmul.mubr.bf16.gmra.mrb[0].mxu0 %v515
      %v821 = vpop.f32.mrb[0].mxu0
      %v822 = vadd.f32 %v249, %v821
      %v823 = vpop.f32.mrb[0].mxu0
      %v824 = vadd.f32 %v253, %v823
      %v825 = vpop.f32.mrb[0].mxu0
      %v826 = vadd.f32 %v249, %v825
      %v827 = vpop.f32.mrb[0].mxu0
      %v828 = vadd.f32 %v253, %v827
      %829 = vmatprep.mubr.bf16.mxu0 0
      %830 = vmatmul.mubr.bf16.gmra.mrb[0].mxu0 %v518
      %v831 = vpop.f32.mrb[0].mxu0
      %v832 = vadd.f32 %v249, %v831
      %v833 = vpop.f32.mrb[0].mxu0
      %v834 = vadd.f32 %v253, %v833
      %v835 = vpop.f32.mrb[0].mxu0
      %v836 = vadd.f32 %v249, %v835
      %v837 = vpop.f32.mrb[0].mxu0
      %v838 = vadd.f32 %v253, %v837
      %839 = vmatprep.mubr.bf16.mxu0 0
      %840 = vmatmul.mubr.bf16.gmra.mrb[0].mxu0 %v521
      %v841 = vpop.f32.mrb[0].mxu0
      %v842 = vadd.f32 %v249, %v841
      %v843 = vpop.f32.mrb[0].mxu0
      %v844 = vadd.f32 %v253, %v843
      %v845 = vpop.f32.mrb[0].mxu0
      %v846 = vadd.f32 %v249, %v845
      %v847 = vpop.f32.mrb[0].mxu0
      %v848 = vadd.f32 %v253, %v847
      %849 = vmatprep.mubr.bf16.mxu0 0
      %850 = vmatmul.mubr.bf16.gmra.mrb[0].mxu0 %v524
      %v851 = vpop.f32.mrb[0].mxu0
      %v852 = vadd.f32 %v249, %v851
      %v853 = vpop.f32.mrb[0].mxu0
      %v854 = vadd.f32 %v253, %v853
      %v855 = vpop.f32.mrb[0].mxu0
      %v856 = vadd.f32 %v249, %v855
      %v857 = vpop.f32.mrb[0].mxu0
      %v858 = vadd.f32 %v253, %v857
      %859 = vmatprep.mubr.bf16.mxu0 0
      %860 = vmatmul.mubr.bf16.gmra.mrb[0].mxu0 %v527
      %v861 = vpop.f32.mrb[0].mxu0
      %v862 = vadd.f32 %v249, %v861
      %v863 = vpop.f32.mrb[0].mxu0
      %v864 = vadd.f32 %v253, %v863
      %v865 = vpop.f32.mrb[0].mxu0
      %v866 = vadd.f32 %v249, %v865
      %v867 = vpop.f32.mrb[0].mxu0
      %v868 = vadd.f32 %v253, %v867
      %869 = vmatprep.mubr.bf16.mxu0 0
      %870 = vmatmul.mubr.bf16.gmra.mrb[0].mxu0 %v530
      %v871 = vpop.f32.mrb[0].mxu0
      %v872 = vadd.f32 %v249, %v871
      %v873 = vpop.f32.mrb[0].mxu0
      %v874 = vadd.f32 %v253, %v873
      %v875 = vpop.f32.mrb[0].mxu0
      %v876 = vadd.f32 %v249, %v875
      %v877 = vpop.f32.mrb[0].mxu0
      %v878 = vadd.f32 %v253, %v877
      %879 = vmatprep.mubr.bf16.mxu0 0
      %880 = vmatmul.mubr.bf16.gmra.mrb[0].mxu0 %v533
      %v881 = vpop.f32.mrb[0].mxu0
      %v882 = vadd.f32 %v249, %v881
      %v883 = vpop.f32.mrb[0].mxu0
      %v884 = vadd.f32 %v253, %v883
      %v885 = vpop.f32.mrb[0].mxu0
      %v886 = vadd.f32 %v249, %v885
      %v887 = vpop.f32.mrb[0].mxu0
      %v888 = vadd.f32 %v253, %v887
      %889 = vmatprep.mubr.bf16.mxu0 0
      %890 = vmatmul.mubr.bf16.gmra.mrb[0].mxu0 %v536
      %v891 = vpop.f32.mrb[0].mxu0
      %v892 = vadd.f32 %v249, %v891
      %v893 = vpop.f32.mrb[0].mxu0
      %v894 = vadd.f32 %v253, %v893
      %v895 = vpop.f32.mrb[0].mxu0
      %v896 = vadd.f32 %v249, %v895
      %v897 = vpop.f32.mrb[0].mxu0
      %v898 = vadd.f32 %v253, %v897
      %899 = vmatprep.mubr.bf16.mxu0 0
      %900 = vmatmul.mubr.bf16.gmra.mrb[0].mxu0 %v539
      %v901 = vpop.f32.mrb[0].mxu0
      %v902 = vadd.f32 %v249, %v901
      %v903 = vpop.f32.mrb[0].mxu0
      %v904 = vadd.f32 %v253, %v903
      %v905 = vpop.f32.mrb[0].mxu0
      %v906 = vadd.f32 %v249, %v905
      %v907 = vpop.f32.mrb[0].mxu0
      %v908 = vadd.f32 %v253, %v907
      %909 = vdwg.mxu0
      %910 = vmatprep.subr.bf16.mxu0 %v552
      %911 = vmatpush1.bf16.msra.mxu0 %v549
      %912 = vmatprep.subr.bf16.mxu0 0
      %913 = vmatpush1.bf16.msra.mxu0 0
      %914 = vmatprep.subr.bf16.mxu0 0
      %915 = vmatpush1.bf16.msra.mxu0 0
      %916 = vmatprep.subr.bf16.mxu0 0
      %917 = vmatpush1.bf16.msra.mxu0 0
      %918 = vmatprep.subr.bf16.mxu0 0
      %919 = vmatpush1.bf16.msra.mxu0 0
      %920 = vmatprep.subr.bf16.mxu0 0
      %921 = vmatpush1.bf16.msra.mxu0 0
      %922 = vmatprep.subr.bf16.mxu0 0
      %923 = vmatpush1.bf16.msra.mxu0 0
      %924 = vmatprep.subr.bf16.mxu0 0
      %925 = vmatpush1.bf16.msra.mxu0 0
      %926 = vmatprep.subr.bf16.mxu0 0
      %927 = vmatpush1.bf16.msra.mxu0 0
      %928 = vmatprep.subr.bf16.mxu0 0
      %929 = vmatpush1.bf16.msra.mxu0 0
      %930 = vmatprep.subr.bf16.mxu0 0
      %931 = vmatpush1.bf16.msra.mxu0 0
      %932 = vmatprep.subr.bf16.mxu0 0
      %933 = vmatpush1.bf16.msra.mxu0 0
      %934 = vmatprep.subr.bf16.mxu0 0
      %935 = vmatpush1.bf16.msra.mxu0 0
      %936 = vmatprep.subr.bf16.mxu0 0
      %937 = vmatpush1.bf16.msra.mxu0 0
      %938 = vmatprep.subr.bf16.mxu0 0
      %939 = vmatpush1.bf16.msra.mxu0 0
      %940 = vmatprep.subr.bf16.mxu0 0
      %941 = vmatpush1.bf16.msra.mxu0 0
      %942 = vmatprep.mubr.bf16.mxu0 0
      %943 = vmatmul.mubr.bf16.gmra.mrb[0].mxu0 %v446
      %v944 = vpop.f32.mrb[0].mxu0
      %v945 = vadd.f32 %v257, %v944
      %v946 = vpop.f32.mrb[0].mxu0
      %v947 = vadd.f32 %v261, %v946
      %v948 = vpop.f32.mrb[0].mxu0
      %v949 = vadd.f32 %v257, %v948
      %v950 = vpop.f32.mrb[0].mxu0
      %v951 = vadd.f32 %v261, %v950
      %952 = vmatprep.mubr.bf16.mxu0 0
      %953 = vmatmul.mubr.bf16.gmra.mrb[0].mxu0 %v449
      %v954 = vpop.f32.mrb[0].mxu0
      %v955 = vadd.f32 %v257, %v954
      %v956 = vpop.f32.mrb[0].mxu0
      %v957 = vadd.f32 %v261, %v956
      %v958 = vpop.f32.mrb[0].mxu0
      %v959 = vadd.f32 %v257, %v958
      %v960 = vpop.f32.mrb[0].mxu0
      %v961 = vadd.f32 %v261, %v960
      %962 = vmatprep.mubr.bf16.mxu0 0
      %963 = vmatmul.mubr.bf16.gmra.mrb[0].mxu0 %v452
      %v964 = vpop.f32.mrb[0].mxu0
      %v965 = vadd.f32 %v257, %v964
      %v966 = vpop.f32.mrb[0].mxu0
      %v967 = vadd.f32 %v261, %v966
      %v968 = vpop.f32.mrb[0].mxu0
      %v969 = vadd.f32 %v257, %v968
      %v970 = vpop.f32.mrb[0].mxu0
      %v971 = vadd.f32 %v261, %v970
      %972 = vmatprep.mubr.bf16.mxu0 0
      %973 = vmatmul.mubr.bf16.gmra.mrb[0].mxu0 %v455
      %v974 = vpop.f32.mrb[0].mxu0
      %v975 = vadd.f32 %v257, %v974
      %v976 = vpop.f32.mrb[0].mxu0
      %v977 = vadd.f32 %v261, %v976
      %v978 = vpop.f32.mrb[0].mxu0
      %v979 = vadd.f32 %v257, %v978
      %v980 = vpop.f32.mrb[0].mxu0
      %v981 = vadd.f32 %v261, %v980
      %982 = vmatprep.mubr.bf16.mxu0 0
      %983 = vmatmul.mubr.bf16.gmra.mrb[0].mxu0 %v458
      %v984 = vpop.f32.mrb[0].mxu0
      %v985 = vadd.f32 %v257, %v984
      %v986 = vpop.f32.mrb[0].mxu0
      %v987 = vadd.f32 %v261, %v986
      %v988 = vpop.f32.mrb[0].mxu0
      %v989 = vadd.f32 %v257, %v988
      %v990 = vpop.f32.mrb[0].mxu0
      %v991 = vadd.f32 %v261, %v990
      %992 = vmatprep.mubr.bf16.mxu0 0
      %993 = vmatmul.mubr.bf16.gmra.mrb[0].mxu0 %v461
      %v994 = vpop.f32.mrb[0].mxu0
      %v995 = vadd.f32 %v257, %v994
      %v996 = vpop.f32.mrb[0].mxu0
      %v997 = vadd.f32 %v261, %v996
      %v998 = vpop.f32.mrb[0].mxu0
      %v999 = vadd.f32 %v257, %v998
      %v1000 = vpop.f32.mrb[0].mxu0
      %v1001 = vadd.f32 %v261, %v1000
      %1002 = vmatprep.mubr.bf16.mxu0 0
      %1003 = vmatmul.mubr.bf16.gmra.mrb[0].mxu0 %v464
      %v1004 = vpop.f32.mrb[0].mxu0
      %v1005 = vadd.f32 %v257, %v1004
      %v1006 = vpop.f32.mrb[0].mxu0
      %v1007 = vadd.f32 %v261, %v1006
      %v1008 = vpop.f32.mrb[0].mxu0
      %v1009 = vadd.f32 %v257, %v1008
      %v1010 = vpop.f32.mrb[0].mxu0
      %v1011 = vadd.f32 %v261, %v1010
      %1012 = vmatprep.mubr.bf16.mxu0 0
      %1013 = vmatmul.mubr.bf16.gmra.mrb[0].mxu0 %v467
      %v1014 = vpop.f32.mrb[0].mxu0
      %v1015 = vadd.f32 %v257, %v1014
      %v1016 = vpop.f32.mrb[0].mxu0
      %v1017 = vadd.f32 %v261, %v1016
      %v1018 = vpop.f32.mrb[0].mxu0
      %v1019 = vadd.f32 %v257, %v1018
      %v1020 = vpop.f32.mrb[0].mxu0
      %v1021 = vadd.f32 %v261, %v1020
      %1022 = vmatprep.mubr.bf16.mxu0 0
      %1023 = vmatmul.mubr.bf16.gmra.mrb[0].mxu0 %v470
      %v1024 = vpop.f32.mrb[0].mxu0
      %v1025 = vadd.f32 %v257, %v1024
      %v1026 = vpop.f32.mrb[0].mxu0
      %v1027 = vadd.f32 %v261, %v1026
      %v1028 = vpop.f32.mrb[0].mxu0
      %v1029 = vadd.f32 %v257, %v1028
      %v1030 = vpop.f32.mrb[0].mxu0
      %v1031 = vadd.f32 %v261, %v1030
      %1032 = vmatprep.mubr.bf16.mxu0 0
      %1033 = vmatmul.mubr.bf16.gmra.mrb[0].mxu0 %v473
      %v1034 = vpop.f32.mrb[0].mxu0
      %v1035 = vadd.f32 %v257, %v1034
      %v1036 = vpop.f32.mrb[0].mxu0
      %v1037 = vadd.f32 %v261, %v1036
      %v1038 = vpop.f32.mrb[0].mxu0
      %v1039 = vadd.f32 %v257, %v1038
      %v1040 = vpop.f32.mrb[0].mxu0
      %v1041 = vadd.f32 %v261, %v1040
      %1042 = vmatprep.mubr.bf16.mxu0 0
      %1043 = vmatmul.mubr.bf16.gmra.mrb[0].mxu0 %v476
      %v1044 = vpop.f32.mrb[0].mxu0
      %v1045 = vadd.f32 %v257, %v1044
      %v1046 = vpop.f32.mrb[0].mxu0
      %v1047 = vadd.f32 %v261, %v1046
      %v1048 = vpop.f32.mrb[0].mxu0
      %v1049 = vadd.f32 %v257, %v1048
      %v1050 = vpop.f32.mrb[0].mxu0
      %v1051 = vadd.f32 %v261, %v1050
      %1052 = vmatprep.mubr.bf16.mxu0 0
      %1053 = vmatmul.mubr.bf16.gmra.mrb[0].mxu0 %v479
      %v1054 = vpop.f32.mrb[0].mxu0
      %v1055 = vadd.f32 %v257, %v1054
      %v1056 = vpop.f32.mrb[0].mxu0
      %v1057 = vadd.f32 %v261, %v1056
      %v1058 = vpop.f32.mrb[0].mxu0
      %v1059 = vadd.f32 %v257, %v1058
      %v1060 = vpop.f32.mrb[0].mxu0
      %v1061 = vadd.f32 %v261, %v1060
      %1062 = vmatprep.mubr.bf16.mxu0 0
      %1063 = vmatmul.mubr.bf16.gmra.mrb[0].mxu0 %v482
      %v1064 = vpop.f32.mrb[0].mxu0
      %v1065 = vadd.f32 %v257, %v1064
      %v1066 = vpop.f32.mrb[0].mxu0
      %v1067 = vadd.f32 %v261, %v1066
      %v1068 = vpop.f32.mrb[0].mxu0
      %v1069 = vadd.f32 %v257, %v1068
      %v1070 = vpop.f32.mrb[0].mxu0
      %v1071 = vadd.f32 %v261, %v1070
      %1072 = vmatprep.mubr.bf16.mxu0 0
      %1073 = vmatmul.mubr.bf16.gmra.mrb[0].mxu0 %v485
      %v1074 = vpop.f32.mrb[0].mxu0
      %v1075 = vadd.f32 %v257, %v1074
      %v1076 = vpop.f32.mrb[0].mxu0
      %v1077 = vadd.f32 %v261, %v1076
      %v1078 = vpop.f32.mrb[0].mxu0
      %v1079 = vadd.f32 %v257, %v1078
      %v1080 = vpop.f32.mrb[0].mxu0
      %v1081 = vadd.f32 %v261, %v1080
      %1082 = vmatprep.mubr.bf16.mxu0 0
      %1083 = vmatmul.mubr.bf16.gmra.mrb[0].mxu0 %v488
      %v1084 = vpop.f32.mrb[0].mxu0
      %v1085 = vadd.f32 %v257, %v1084
      %v1086 = vpop.f32.mrb[0].mxu0
      %v1087 = vadd.f32 %v261, %v1086
      %v1088 = vpop.f32.mrb[0].mxu0
      %v1089 = vadd.f32 %v257, %v1088
      %v1090 = vpop.f32.mrb[0].mxu0
      %v1091 = vadd.f32 %v261, %v1090
      %1092 = vmatprep.mubr.bf16.mxu0 0
      %1093 = vmatmul.mubr.bf16.gmra.mrb[0].mxu0 %v491
      %v1094 = vpop.f32.mrb[0].mxu0
      %v1095 = vadd.f32 %v257, %v1094
      %v1096 = vpop.f32.mrb[0].mxu0
      %v1097 = vadd.f32 %v261, %v1096
      %v1098 = vpop.f32.mrb[0].mxu0
      %v1099 = vadd.f32 %v257, %v1098
      %v1100 = vpop.f32.mrb[0].mxu0
      %v1101 = vadd.f32 %v261, %v1100
      %1102 = vmatprep.mubr.bf16.mxu0 0
      %1103 = vmatmul.mubr.bf16.gmra.mrb[0].mxu0 %v494
      %v1104 = vpop.f32.mrb[0].mxu0
      %v1105 = vadd.f32 %v257, %v1104
      %v1106 = vpop.f32.mrb[0].mxu0
      %v1107 = vadd.f32 %v261, %v1106
      %v1108 = vpop.f32.mrb[0].mxu0
      %v1109 = vadd.f32 %v257, %v1108
      %v1110 = vpop.f32.mrb[0].mxu0
      %v1111 = vadd.f32 %v261, %v1110
      %1112 = vmatprep.mubr.bf16.mxu0 0
      %1113 = vmatmul.mubr.bf16.gmra.mrb[0].mxu0 %v497
      %v1114 = vpop.f32.mrb[0].mxu0
      %v1115 = vadd.f32 %v257, %v1114
      %v1116 = vpop.f32.mrb[0].mxu0
      %v1117 = vadd.f32 %v261, %v1116
      %v1118 = vpop.f32.mrb[0].mxu0
      %v1119 = vadd.f32 %v257, %v1118
      %v1120 = vpop.f32.mrb[0].mxu0
      %v1121 = vadd.f32 %v261, %v1120
      %1122 = vmatprep.mubr.bf16.mxu0 0
      %1123 = vmatmul.mubr.bf16.gmra.mrb[0].mxu0 %v500
      %v1124 = vpop.f32.mrb[0].mxu0
      %v1125 = vadd.f32 %v257, %v1124
      %v1126 = vpop.f32.mrb[0].mxu0
      %v1127 = vadd.f32 %v261, %v1126
      %v1128 = vpop.f32.mrb[0].mxu0
      %v1129 = vadd.f32 %v257, %v1128
      %v1130 = vpop.f32.mrb[0].mxu0
      %v1131 = vadd.f32 %v261, %v1130
      %1132 = vmatprep.mubr.bf16.mxu0 0
      %1133 = vmatmul.mubr.bf16.gmra.mrb[0].mxu0 %v503
      %v1134 = vpop.f32.mrb[0].mxu0
      %v1135 = vadd.f32 %v257, %v1134
      %v1136 = vpop.f32.mrb[0].mxu0
      %v1137 = vadd.f32 %v261, %v1136
      %v1138 = vpop.f32.mrb[0].mxu0
      %v1139 = vadd.f32 %v257, %v1138
      %v1140 = vpop.f32.mrb[0].mxu0
      %v1141 = vadd.f32 %v261, %v1140
      %1142 = vmatprep.mubr.bf16.mxu0 0
      %1143 = vmatmul.mubr.bf16.gmra.mrb[0].mxu0 %v506
      %v1144 = vpop.f32.mrb[0].mxu0
      %v1145 = vadd.f32 %v257, %v1144
      %v1146 = vpop.f32.mrb[0].mxu0
      %v1147 = vadd.f32 %v261, %v1146
      %v1148 = vpop.f32.mrb[0].mxu0
      %v1149 = vadd.f32 %v257, %v1148
      %v1150 = vpop.f32.mrb[0].mxu0
      %v1151 = vadd.f32 %v261, %v1150
      %1152 = vmatprep.mubr.bf16.mxu0 0
      %1153 = vmatmul.mubr.bf16.gmra.mrb[0].mxu0 %v509
      %v1154 = vpop.f32.mrb[0].mxu0
      %v1155 = vadd.f32 %v257, %v1154
      %v1156 = vpop.f32.mrb[0].mxu0
      %v1157 = vadd.f32 %v261, %v1156
      %v1158 = vpop.f32.mrb[0].mxu0
      %v1159 = vadd.f32 %v257, %v1158
      %v1160 = vpop.f32.mrb[0].mxu0
      %v1161 = vadd.f32 %v261, %v1160
      %1162 = vmatprep.mubr.bf16.mxu0 0
      %1163 = vmatmul.mubr.bf16.gmra.mrb[0].mxu0 %v512
      %v1164 = vpop.f32.mrb[0].mxu0
      %v1165 = vadd.f32 %v257, %v1164
      %v1166 = vpop.f32.mrb[0].mxu0
      %v1167 = vadd.f32 %v261, %v1166
      %v1168 = vpop.f32.mrb[0].mxu0
      %v1169 = vadd.f32 %v257, %v1168
      %v1170 = vpop.f32.mrb[0].mxu0
      %v1171 = vadd.f32 %v261, %v1170
      %1172 = vmatprep.mubr.bf16.mxu0 0
      %1173 = vmatmul.mubr.bf16.gmra.mrb[0].mxu0 %v515
      %v1174 = vpop.f32.mrb[0].mxu0
      %v1175 = vadd.f32 %v257, %v1174
      %v1176 = vpop.f32.mrb[0].mxu0
      %v1177 = vadd.f32 %v261, %v1176
      %v1178 = vpop.f32.mrb[0].mxu0
      %v1179 = vadd.f32 %v257, %v1178
      %v1180 = vpop.f32.mrb[0].mxu0
      %v1181 = vadd.f32 %v261, %v1180
      %1182 = vmatprep.mubr.bf16.mxu0 0
      %1183 = vmatmul.mubr.bf16.gmra.mrb[0].mxu0 %v518
      %v1184 = vpop.f32.mrb[0].mxu0
      %v1185 = vadd.f32 %v257, %v1184
      %v1186 = vpop.f32.mrb[0].mxu0
      %v1187 = vadd.f32 %v261, %v1186
      %v1188 = vpop.f32.mrb[0].mxu0
      %v1189 = vadd.f32 %v257, %v1188
      %v1190 = vpop.f32.mrb[0].mxu0
      %v1191 = vadd.f32 %v261, %v1190
      %1192 = vmatprep.mubr.bf16.mxu0 0
      %1193 = vmatmul.mubr.bf16.gmra.mrb[0].mxu0 %v521
      %v1194 = vpop.f32.mrb[0].mxu0
      %v1195 = vadd.f32 %v257, %v1194
      %v1196 = vpop.f32.mrb[0].mxu0
      %v1197 = vadd.f32 %v261, %v1196
      %v1198 = vpop.f32.mrb[0].mxu0
      %v1199 = vadd.f32 %v257, %v1198
      %v1200 = vpop.f32.mrb[0].mxu0
      %v1201 = vadd.f32 %v261, %v1200
      %1202 = vmatprep.mubr.bf16.mxu0 0
      %1203 = vmatmul.mubr.bf16.gmra.mrb[0].mxu0 %v524
      %v1204 = vpop.f32.mrb[0].mxu0
      %v1205 = vadd.f32 %v257, %v1204
      %v1206 = vpop.f32.mrb[0].mxu0
      %v1207 = vadd.f32 %v261, %v1206
      %v1208 = vpop.f32.mrb[0].mxu0
      %v1209 = vadd.f32 %v257, %v1208
      %v1210 = vpop.f32.mrb[0].mxu0
      %v1211 = vadd.f32 %v261, %v1210
      %1212 = vmatprep.mubr.bf16.mxu0 0
      %1213 = vmatmul.mubr.bf16.gmra.mrb[0].mxu0 %v527
      %v1214 = vpop.f32.mrb[0].mxu0
      %v1215 = vadd.f32 %v257, %v1214
      %v1216 = vpop.f32.mrb[0].mxu0
      %v1217 = vadd.f32 %v261, %v1216
      %v1218 = vpop.f32.mrb[0].mxu0
      %v1219 = vadd.f32 %v257, %v1218
      %v1220 = vpop.f32.mrb[0].mxu0
      %v1221 = vadd.f32 %v261, %v1220
      %1222 = vmatprep.mubr.bf16.mxu0 0
      %1223 = vmatmul.mubr.bf16.gmra.mrb[0].mxu0 %v530
      %v1224 = vpop.f32.mrb[0].mxu0
      %v1225 = vadd.f32 %v257, %v1224
      %v1226 = vpop.f32.mrb[0].mxu0
      %v1227 = vadd.f32 %v261, %v1226
      %v1228 = vpop.f32.mrb[0].mxu0
      %v1229 = vadd.f32 %v257, %v1228
      %v1230 = vpop.f32.mrb[0].mxu0
      %v1231 = vadd.f32 %v261, %v1230
      %1232 = vmatprep.mubr.bf16.mxu0 0
      %1233 = vmatmul.mubr.bf16.gmra.mrb[0].mxu0 %v533
      %v1234 = vpop.f32.mrb[0].mxu0
      %v1235 = vadd.f32 %v257, %v1234
      %v1236 = vpop.f32.mrb[0].mxu0
      %v1237 = vadd.f32 %v261, %v1236
      %v1238 = vpop.f32.mrb[0].mxu0
      %v1239 = vadd.f32 %v257, %v1238
      %v1240 = vpop.f32.mrb[0].mxu0
      %v1241 = vadd.f32 %v261, %v1240
      %1242 = vmatprep.mubr.bf16.mxu0 0
      %1243 = vmatmul.mubr.bf16.gmra.mrb[0].mxu0 %v536
      %v1244 = vpop.f32.mrb[0].mxu0
      %v1245 = vadd.f32 %v257, %v1244
      %v1246 = vpop.f32.mrb[0].mxu0
      %v1247 = vadd.f32 %v261, %v1246
      %v1248 = vpop.f32.mrb[0].mxu0
      %v1249 = vadd.f32 %v257, %v1248
      %v1250 = vpop.f32.mrb[0].mxu0
      %v1251 = vadd.f32 %v261, %v1250
      %1252 = vmatprep.mubr.bf16.mxu0 0
      %1253 = vmatmul.mubr.bf16.gmra.mrb[0].mxu0 %v539
      %v1254 = vpop.f32.mrb[0].mxu0
      %v1255 = vadd.f32 %v257, %v1254
      %v1256 = vpop.f32.mrb[0].mxu0
      %v1257 = vadd.f32 %v261, %v1256
      %v1258 = vpop.f32.mrb[0].mxu0
      %v1259 = vadd.f32 %v257, %v1258
      %v1260 = vpop.f32.mrb[0].mxu0
      %v1261 = vadd.f32 %v261, %v1260
      %1262 = vdwg.mxu0
      %1263 = vmatprep.subr.bf16.mxu0 0
      %1264 = vmatpush1.bf16.msra.mxu0 %v555
      %1265 = vmatprep.subr.bf16.mxu0 0
      %1266 = vmatpush1.bf16.msra.mxu0 0
      %1267 = vmatprep.subr.bf16.mxu0 0
      %1268 = vmatpush1.bf16.msra.mxu0 0
      %1269 = vmatprep.subr.bf16.mxu0 0
      %1270 = vmatpush1.bf16.msra.mxu0 0
      %1271 = vmatprep.subr.bf16.mxu0 0
      %1272 = vmatpush1.bf16.msra.mxu0 0
      %1273 = vmatprep.subr.bf16.mxu0 0
      %1274 = vmatpush1.bf16.msra.mxu0 0
      %1275 = vmatprep.subr.bf16.mxu0 0
      %1276 = vmatpush1.bf16.msra.mxu0 0
      %1277 = vmatprep.subr.bf16.mxu0 0
      %1278 = vmatpush1.bf16.msra.mxu0 0
      %1279 = vmatprep.subr.bf16.mxu0 0
      %1280 = vmatpush1.bf16.msra.mxu0 0
      %1281 = vmatprep.subr.bf16.mxu0 0
      %1282 = vmatpush1.bf16.msra.mxu0 0
      %1283 = vmatprep.subr.bf16.mxu0 0
      %1284 = vmatpush1.bf16.msra.mxu0 0
      %1285 = vmatprep.subr.bf16.mxu0 0
      %1286 = vmatpush1.bf16.msra.mxu0 0
      %1287 = vmatprep.subr.bf16.mxu0 0
      %1288 = vmatpush1.bf16.msra.mxu0 0
      %1289 = vmatprep.subr.bf16.mxu0 0
      %1290 = vmatpush1.bf16.msra.mxu0 0
      %1291 = vmatprep.subr.bf16.mxu0 0
      %1292 = vmatpush1.bf16.msra.mxu0 0
      %1293 = vmatprep.subr.bf16.mxu0 0
      %1294 = vmatpush1.bf16.msra.mxu0 0
      %1295 = vmatprep.mubr.bf16.mxu0 0
      %1296 = vmatmul.mubr.bf16.gmra.mrb[0].mxu0 %v446
      %v1297 = vpop.f32.mrb[0].mxu0
      %v1298 = vadd.f32 %v265, %v1297
      %v1299 = vpop.f32.mrb[0].mxu0
      %v1300 = vpop.f32.mrb[0].mxu0
      %v1301 = vadd.f32 %v265, %v1300
      %v1302 = vpop.f32.mrb[0].mxu0
      %1303 = vmatprep.mubr.bf16.mxu0 0
      %1304 = vmatmul.mubr.bf16.gmra.mrb[0].mxu0 %v449
      %v1305 = vpop.f32.mrb[0].mxu0
      %v1306 = vadd.f32 %v265, %v1305
      %v1307 = vpop.f32.mrb[0].mxu0
      %v1308 = vpop.f32.mrb[0].mxu0
      %v1309 = vadd.f32 %v265, %v1308
      %v1310 = vpop.f32.mrb[0].mxu0
      %1311 = vmatprep.mubr.bf16.mxu0 0
      %1312 = vmatmul.mubr.bf16.gmra.mrb[0].mxu0 %v452
      %v1313 = vpop.f32.mrb[0].mxu0
      %v1314 = vadd.f32 %v265, %v1313
      %v1315 = vpop.f32.mrb[0].mxu0
      %v1316 = vpop.f32.mrb[0].mxu0
      %v1317 = vadd.f32 %v265, %v1316
      %v1318 = vpop.f32.mrb[0].mxu0
      %1319 = vmatprep.mubr.bf16.mxu0 0
      %1320 = vmatmul.mubr.bf16.gmra.mrb[0].mxu0 %v455
      %v1321 = vpop.f32.mrb[0].mxu0
      %v1322 = vadd.f32 %v265, %v1321
      %v1323 = vpop.f32.mrb[0].mxu0
      %v1324 = vpop.f32.mrb[0].mxu0
      %v1325 = vadd.f32 %v265, %v1324
      %v1326 = vpop.f32.mrb[0].mxu0
      %1327 = vmatprep.mubr.bf16.mxu0 0
      %1328 = vmatmul.mubr.bf16.gmra.mrb[0].mxu0 %v458
      %v1329 = vpop.f32.mrb[0].mxu0
      %v1330 = vadd.f32 %v265, %v1329
      %v1331 = vpop.f32.mrb[0].mxu0
      %v1332 = vpop.f32.mrb[0].mxu0
      %v1333 = vadd.f32 %v265, %v1332
      %v1334 = vpop.f32.mrb[0].mxu0
      %1335 = vmatprep.mubr.bf16.mxu0 0
      %1336 = vmatmul.mubr.bf16.gmra.mrb[0].mxu0 %v461
      %v1337 = vpop.f32.mrb[0].mxu0
      %v1338 = vadd.f32 %v265, %v1337
      %v1339 = vpop.f32.mrb[0].mxu0
      %v1340 = vpop.f32.mrb[0].mxu0
      %v1341 = vadd.f32 %v265, %v1340
      %v1342 = vpop.f32.mrb[0].mxu0
      %1343 = vmatprep.mubr.bf16.mxu0 0
      %1344 = vmatmul.mubr.bf16.gmra.mrb[0].mxu0 %v464
      %v1345 = vpop.f32.mrb[0].mxu0
      %v1346 = vadd.f32 %v265, %v1345
      %v1347 = vpop.f32.mrb[0].mxu0
      %v1348 = vpop.f32.mrb[0].mxu0
      %v1349 = vadd.f32 %v265, %v1348
      %v1350 = vpop.f32.mrb[0].mxu0
      %1351 = vmatprep.mubr.bf16.mxu0 0
      %1352 = vmatmul.mubr.bf16.gmra.mrb[0].mxu0 %v467
      %v1353 = vpop.f32.mrb[0].mxu0
      %v1354 = vadd.f32 %v265, %v1353
      %v1355 = vpop.f32.mrb[0].mxu0
      %v1356 = vpop.f32.mrb[0].mxu0
      %v1357 = vadd.f32 %v265, %v1356
      %v1358 = vpop.f32.mrb[0].mxu0
      %1359 = vmatprep.mubr.bf16.mxu0 0
      %1360 = vmatmul.mubr.bf16.gmra.mrb[0].mxu0 %v470
      %v1361 = vpop.f32.mrb[0].mxu0
      %v1362 = vadd.f32 %v265, %v1361
      %v1363 = vpop.f32.mrb[0].mxu0
      %v1364 = vpop.f32.mrb[0].mxu0
      %v1365 = vadd.f32 %v265, %v1364
      %v1366 = vpop.f32.mrb[0].mxu0
      %1367 = vmatprep.mubr.bf16.mxu0 0
      %1368 = vmatmul.mubr.bf16.gmra.mrb[0].mxu0 %v473
      %v1369 = vpop.f32.mrb[0].mxu0
      %v1370 = vadd.f32 %v265, %v1369
      %v1371 = vpop.f32.mrb[0].mxu0
      %v1372 = vpop.f32.mrb[0].mxu0
      %v1373 = vadd.f32 %v265, %v1372
      %v1374 = vpop.f32.mrb[0].mxu0
      %1375 = vmatprep.mubr.bf16.mxu0 0
      %1376 = vmatmul.mubr.bf16.gmra.mrb[0].mxu0 %v476
      %v1377 = vpop.f32.mrb[0].mxu0
      %v1378 = vadd.f32 %v265, %v1377
      %v1379 = vpop.f32.mrb[0].mxu0
      %v1380 = vpop.f32.mrb[0].mxu0
      %v1381 = vadd.f32 %v265, %v1380
      %v1382 = vpop.f32.mrb[0].mxu0
      %1383 = vmatprep.mubr.bf16.mxu0 0
      %1384 = vmatmul.mubr.bf16.gmra.mrb[0].mxu0 %v479
      %v1385 = vpop.f32.mrb[0].mxu0
      %v1386 = vadd.f32 %v265, %v1385
      %v1387 = vpop.f32.mrb[0].mxu0
      %v1388 = vpop.f32.mrb[0].mxu0
      %v1389 = vadd.f32 %v265, %v1388
      %v1390 = vpop.f32.mrb[0].mxu0
      %1391 = vmatprep.mubr.bf16.mxu0 0
      %1392 = vmatmul.mubr.bf16.gmra.mrb[0].mxu0 %v482
      %v1393 = vpop.f32.mrb[0].mxu0
      %v1394 = vadd.f32 %v265, %v1393
      %v1395 = vpop.f32.mrb[0].mxu0
      %v1396 = vpop.f32.mrb[0].mxu0
      %v1397 = vadd.f32 %v265, %v1396
      %v1398 = vpop.f32.mrb[0].mxu0
      %1399 = vmatprep.mubr.bf16.mxu0 0
      %1400 = vmatmul.mubr.bf16.gmra.mrb[0].mxu0 %v485
      %v1401 = vpop.f32.mrb[0].mxu0
      %v1402 = vadd.f32 %v265, %v1401
      %v1403 = vpop.f32.mrb[0].mxu0
      %v1404 = vpop.f32.mrb[0].mxu0
      %v1405 = vadd.f32 %v265, %v1404
      %v1406 = vpop.f32.mrb[0].mxu0
      %1407 = vmatprep.mubr.bf16.mxu0 0
      %1408 = vmatmul.mubr.bf16.gmra.mrb[0].mxu0 %v488
      %v1409 = vpop.f32.mrb[0].mxu0
      %v1410 = vadd.f32 %v265, %v1409
      %v1411 = vpop.f32.mrb[0].mxu0
      %v1412 = vpop.f32.mrb[0].mxu0
      %v1413 = vadd.f32 %v265, %v1412
      %v1414 = vpop.f32.mrb[0].mxu0
      %1415 = vmatprep.mubr.bf16.mxu0 0
      %1416 = vmatmul.mubr.bf16.gmra.mrb[0].mxu0 %v491
      %v1417 = vpop.f32.mrb[0].mxu0
      %v1418 = vadd.f32 %v265, %v1417
      %v1419 = vpop.f32.mrb[0].mxu0
      %v1420 = vpop.f32.mrb[0].mxu0
      %v1421 = vadd.f32 %v265, %v1420
      %v1422 = vpop.f32.mrb[0].mxu0
      %1423 = vmatprep.mubr.bf16.mxu0 0
      %1424 = vmatmul.mubr.bf16.gmra.mrb[0].mxu0 %v494
      %v1425 = vpop.f32.mrb[0].mxu0
      %v1426 = vadd.f32 %v265, %v1425
      %v1427 = vpop.f32.mrb[0].mxu0
      %v1428 = vpop.f32.mrb[0].mxu0
      %v1429 = vadd.f32 %v265, %v1428
      %v1430 = vpop.f32.mrb[0].mxu0
      %1431 = vmatprep.mubr.bf16.mxu0 0
      %1432 = vmatmul.mubr.bf16.gmra.mrb[0].mxu0 %v497
      %v1433 = vpop.f32.mrb[0].mxu0
      %v1434 = vadd.f32 %v265, %v1433
      %v1435 = vpop.f32.mrb[0].mxu0
      %v1436 = vpop.f32.mrb[0].mxu0
      %v1437 = vadd.f32 %v265, %v1436
      %v1438 = vpop.f32.mrb[0].mxu0
      %1439 = vmatprep.mubr.bf16.mxu0 0
      %1440 = vmatmul.mubr.bf16.gmra.mrb[0].mxu0 %v500
      %v1441 = vpop.f32.mrb[0].mxu0
      %v1442 = vadd.f32 %v265, %v1441
      %v1443 = vpop.f32.mrb[0].mxu0
      %v1444 = vpop.f32.mrb[0].mxu0
      %v1445 = vadd.f32 %v265, %v1444
      %v1446 = vpop.f32.mrb[0].mxu0
      %1447 = vmatprep.mubr.bf16.mxu0 0
      %1448 = vmatmul.mubr.bf16.gmra.mrb[0].mxu0 %v503
      %v1449 = vpop.f32.mrb[0].mxu0
      %v1450 = vadd.f32 %v265, %v1449
      %v1451 = vpop.f32.mrb[0].mxu0
      %v1452 = vpop.f32.mrb[0].mxu0
      %v1453 = vadd.f32 %v265, %v1452
      %v1454 = vpop.f32.mrb[0].mxu0
      %1455 = vmatprep.mubr.bf16.mxu0 0
      %1456 = vmatmul.mubr.bf16.gmra.mrb[0].mxu0 %v506
      %v1457 = vpop.f32.mrb[0].mxu0
      %v1458 = vadd.f32 %v265, %v1457
      %v1459 = vpop.f32.mrb[0].mxu0
      %v1460 = vpop.f32.mrb[0].mxu0
      %v1461 = vadd.f32 %v265, %v1460
      %v1462 = vpop.f32.mrb[0].mxu0
      %1463 = vmatprep.mubr.bf16.mxu0 0
      %1464 = vmatmul.mubr.bf16.gmra.mrb[0].mxu0 %v509
      %v1465 = vpop.f32.mrb[0].mxu0
      %v1466 = vadd.f32 %v265, %v1465
      %v1467 = vpop.f32.mrb[0].mxu0
      %v1468 = vpop.f32.mrb[0].mxu0
      %v1469 = vadd.f32 %v265, %v1468
      %v1470 = vpop.f32.mrb[0].mxu0
      %1471 = vmatprep.mubr.bf16.mxu0 0
      %1472 = vmatmul.mubr.bf16.gmra.mrb[0].mxu0 %v512
      %v1473 = vpop.f32.mrb[0].mxu0
      %v1474 = vadd.f32 %v265, %v1473
      %v1475 = vpop.f32.mrb[0].mxu0
      %v1476 = vpop.f32.mrb[0].mxu0
      %v1477 = vadd.f32 %v265, %v1476
      %v1478 = vpop.f32.mrb[0].mxu0
      %1479 = vmatprep.mubr.bf16.mxu0 0
      %1480 = vmatmul.mubr.bf16.gmra.mrb[0].mxu0 %v515
      %v1481 = vpop.f32.mrb[0].mxu0
      %v1482 = vadd.f32 %v265, %v1481
      %v1483 = vpop.f32.mrb[0].mxu0
      %v1484 = vpop.f32.mrb[0].mxu0
      %v1485 = vadd.f32 %v265, %v1484
      %v1486 = vpop.f32.mrb[0].mxu0
      %1487 = vmatprep.mubr.bf16.mxu0 0
      %1488 = vmatmul.mubr.bf16.gmra.mrb[0].mxu0 %v518
      %v1489 = vpop.f32.mrb[0].mxu0
      %v1490 = vadd.f32 %v265, %v1489
      %v1491 = vpop.f32.mrb[0].mxu0
      %v1492 = vpop.f32.mrb[0].mxu0
      %v1493 = vadd.f32 %v265, %v1492
      %v1494 = vpop.f32.mrb[0].mxu0
      %1495 = vmatprep.mubr.bf16.mxu0 0
      %1496 = vmatmul.mubr.bf16.gmra.mrb[0].mxu0 %v521
      %v1497 = vpop.f32.mrb[0].mxu0
      %v1498 = vadd.f32 %v265, %v1497
      %v1499 = vpop.f32.mrb[0].mxu0
      %v1500 = vpop.f32.mrb[0].mxu0
      %v1501 = vadd.f32 %v265, %v1500
      %v1502 = vpop.f32.mrb[0].mxu0
      %1503 = vmatprep.mubr.bf16.mxu0 0
      %1504 = vmatmul.mubr.bf16.gmra.mrb[0].mxu0 %v524
      %v1505 = vpop.f32.mrb[0].mxu0
      %v1506 = vadd.f32 %v265, %v1505
      %v1507 = vpop.f32.mrb[0].mxu0
      %v1508 = vpop.f32.mrb[0].mxu0
      %v1509 = vadd.f32 %v265, %v1508
      %v1510 = vpop.f32.mrb[0].mxu0
      %1511 = vmatprep.mubr.bf16.mxu0 0
      %1512 = vmatmul.mubr.bf16.gmra.mrb[0].mxu0 %v527
      %v1513 = vpop.f32.mrb[0].mxu0
      %v1514 = vadd.f32 %v265, %v1513
      %v1515 = vpop.f32.mrb[0].mxu0
      %v1516 = vpop.f32.mrb[0].mxu0
      %v1517 = vadd.f32 %v265, %v1516
      %v1518 = vpop.f32.mrb[0].mxu0
      %1519 = vmatprep.mubr.bf16.mxu0 0
      %1520 = vmatmul.mubr.bf16.gmra.mrb[0].mxu0 %v530
      %v1521 = vpop.f32.mrb[0].mxu0
      %v1522 = vadd.f32 %v265, %v1521
      %v1523 = vpop.f32.mrb[0].mxu0
      %v1524 = vpop.f32.mrb[0].mxu0
      %v1525 = vadd.f32 %v265, %v1524
      %v1526 = vpop.f32.mrb[0].mxu0
      %1527 = vmatprep.mubr.bf16.mxu0 0
      %1528 = vmatmul.mubr.bf16.gmra.mrb[0].mxu0 %v533
      %v1529 = vpop.f32.mrb[0].mxu0
      %v1530 = vadd.f32 %v265, %v1529
      %v1531 = vpop.f32.mrb[0].mxu0
      %v1532 = vpop.f32.mrb[0].mxu0
      %v1533 = vadd.f32 %v265, %v1532
      %v1534 = vpop.f32.mrb[0].mxu0
      %1535 = vmatprep.mubr.bf16.mxu0 0
      %1536 = vmatmul.mubr.bf16.gmra.mrb[0].mxu0 %v536
      %v1537 = vpop.f32.mrb[0].mxu0
      %v1538 = vadd.f32 %v265, %v1537
      %v1539 = vpop.f32.mrb[0].mxu0
      %v1540 = vpop.f32.mrb[0].mxu0
      %v1541 = vadd.f32 %v265, %v1540
      %v1542 = vpop.f32.mrb[0].mxu0
      %1543 = vmatprep.mubr.bf16.mxu0 0
      %1544 = vmatmul.mubr.bf16.gmra.mrb[0].mxu0 %v539
      %v1545 = vpop.f32.mrb[0].mxu0
      %v1546 = vadd.f32 %v265, %v1545
      %v1547 = vpop.f32.mrb[0].mxu0
      %v1548 = vpop.f32.mrb[0].mxu0
      %v1549 = vadd.f32 %v265, %v1548
      %v1550 = vpop.f32.mrb[0].mxu0
      %1551 = vdwg.mxu0
      %v1552 = vmax.f32 %v592, 0.0
      %v1553 = vmax.f32 %v594, 0.0
      %v1554 = vmax.f32 %v945, 0.0
      %v1555 = vmax.f32 %v947, 0.0
      %v1556 = vmax.f32 %v1298, 0.0
      %v1557 = vmax.f32 %v596, 0.0
      %v1558 = vmax.f32 %v598, 0.0
      %v1559 = vmax.f32 %v949, 0.0
      %v1560 = vmax.f32 %v951, 0.0
      %v1561 = vmax.f32 %v1301, 0.0
      %v1562 = vmax.f32 %v602, 0.0
      %v1563 = vmax.f32 %v604, 0.0
      %v1564 = vmax.f32 %v955, 0.0
      %v1565 = vmax.f32 %v957, 0.0
      %v1566 = vmax.f32 %v1306, 0.0
      %v1567 = vmax.f32 %v606, 0.0
      %v1568 = vmax.f32 %v608, 0.0
      %v1569 = vmax.f32 %v959, 0.0
      %v1570 = vmax.f32 %v961, 0.0
      %v1571 = vmax.f32 %v1309, 0.0
      %v1572 = vmax.f32 %v612, 0.0
      %v1573 = vmax.f32 %v614, 0.0
      %v1574 = vmax.f32 %v965, 0.0
      %v1575 = vmax.f32 %v967, 0.0
      %v1576 = vmax.f32 %v1314, 0.0
      %v1577 = vmax.f32 %v616, 0.0
      %v1578 = vmax.f32 %v618, 0.0
      %v1579 = vmax.f32 %v969, 0.0
      %v1580 = vmax.f32 %v971, 0.0
      %v1581 = vmax.f32 %v1317, 0.0
      %v1582 = vmax.f32 %v622, 0.0
      %v1583 = vmax.f32 %v624, 0.0
      %v1584 = vmax.f32 %v975, 0.0
      %v1585 = vmax.f32 %v977, 0.0
      %v1586 = vmax.f32 %v1322, 0.0
      %v1587 = vmax.f32 %v626, 0.0
      %v1588 = vmax.f32 %v628, 0.0
      %v1589 = vmax.f32 %v979, 0.0
      %v1590 = vmax.f32 %v981, 0.0
      %v1591 = vmax.f32 %v1325, 0.0
      %v1592 = vmax.f32 %v632, 0.0
      %v1593 = vmax.f32 %v634, 0.0
      %v1594 = vmax.f32 %v985, 0.0
      %v1595 = vmax.f32 %v987, 0.0
      %v1596 = vmax.f32 %v1330, 0.0
      %v1597 = vmax.f32 %v636, 0.0
      %v1598 = vmax.f32 %v638, 0.0
      %v1599 = vmax.f32 %v989, 0.0
      %v1600 = vmax.f32 %v991, 0.0
      %v1601 = vmax.f32 %v1333, 0.0
      %v1602 = vmax.f32 %v642, 0.0
      %v1603 = vmax.f32 %v644, 0.0
      %v1604 = vmax.f32 %v995, 0.0
      %v1605 = vmax.f32 %v997, 0.0
      %v1606 = vmax.f32 %v1338, 0.0
      %v1607 = vmax.f32 %v646, 0.0
      %v1608 = vmax.f32 %v648, 0.0
      %v1609 = vmax.f32 %v999, 0.0
      %v1610 = vmax.f32 %v1001, 0.0
      %v1611 = vmax.f32 %v1341, 0.0
      %v1612 = vmax.f32 %v652, 0.0
      %v1613 = vmax.f32 %v654, 0.0
      %v1614 = vmax.f32 %v1005, 0.0
      %v1615 = vmax.f32 %v1007, 0.0
      %v1616 = vmax.f32 %v1346, 0.0
      %v1617 = vmax.f32 %v656, 0.0
      %v1618 = vmax.f32 %v658, 0.0
      %v1619 = vmax.f32 %v1009, 0.0
      %v1620 = vmax.f32 %v1011, 0.0
      %v1621 = vmax.f32 %v1349, 0.0
      %v1622 = vmax.f32 %v662, 0.0
      %v1623 = vmax.f32 %v664, 0.0
      %v1624 = vmax.f32 %v1015, 0.0
      %v1625 = vmax.f32 %v1017, 0.0
      %v1626 = vmax.f32 %v1354, 0.0
      %v1627 = vmax.f32 %v666, 0.0
      %v1628 = vmax.f32 %v668, 0.0
      %v1629 = vmax.f32 %v1019, 0.0
      %v1630 = vmax.f32 %v1021, 0.0
      %v1631 = vmax.f32 %v1357, 0.0
      %v1632 = vmax.f32 %v672, 0.0
      %v1633 = vmax.f32 %v674, 0.0
      %v1634 = vmax.f32 %v1025, 0.0
      %v1635 = vmax.f32 %v1027, 0.0
      %v1636 = vmax.f32 %v1362, 0.0
      %v1637 = vmax.f32 %v676, 0.0
      %v1638 = vmax.f32 %v678, 0.0
      %v1639 = vmax.f32 %v1029, 0.0
      %v1640 = vmax.f32 %v1031, 0.0
      %v1641 = vmax.f32 %v1365, 0.0
      %v1642 = vmax.f32 %v682, 0.0
      %v1643 = vmax.f32 %v684, 0.0
      %v1644 = vmax.f32 %v1035, 0.0
      %v1645 = vmax.f32 %v1037, 0.0
      %v1646 = vmax.f32 %v1370, 0.0
      %v1647 = vmax.f32 %v686, 0.0
      %v1648 = vmax.f32 %v688, 0.0
      %v1649 = vmax.f32 %v1039, 0.0
      %v1650 = vmax.f32 %v1041, 0.0
      %v1651 = vmax.f32 %v1373, 0.0
      %v1652 = vmax.f32 %v692, 0.0
      %v1653 = vmax.f32 %v694, 0.0
      %v1654 = vmax.f32 %v1045, 0.0
      %v1655 = vmax.f32 %v1047, 0.0
      %v1656 = vmax.f32 %v1378, 0.0
      %v1657 = vmax.f32 %v696, 0.0
      %v1658 = vmax.f32 %v698, 0.0
      %v1659 = vmax.f32 %v1049, 0.0
      %v1660 = vmax.f32 %v1051, 0.0
      %v1661 = vmax.f32 %v1381, 0.0
      %v1662 = vmax.f32 %v702, 0.0
      %v1663 = vmax.f32 %v704, 0.0
      %v1664 = vmax.f32 %v1055, 0.0
      %v1665 = vmax.f32 %v1057, 0.0
      %v1666 = vmax.f32 %v1386, 0.0
      %v1667 = vmax.f32 %v706, 0.0
      %v1668 = vmax.f32 %v708, 0.0
      %v1669 = vmax.f32 %v1059, 0.0
      %v1670 = vmax.f32 %v1061, 0.0
      %v1671 = vmax.f32 %v1389, 0.0
      %v1672 = vmax.f32 %v712, 0.0
      %v1673 = vmax.f32 %v714, 0.0
      %v1674 = vmax.f32 %v1065, 0.0
      %v1675 = vmax.f32 %v1067, 0.0
      %v1676 = vmax.f32 %v1394, 0.0
      %v1677 = vmax.f32 %v716, 0.0
      %v1678 = vmax.f32 %v718, 0.0
      %v1679 = vmax.f32 %v1069, 0.0
      %v1680 = vmax.f32 %v1071, 0.0
      %v1681 = vmax.f32 %v1397, 0.0
      %v1682 = vmax.f32 %v722, 0.0
      %v1683 = vmax.f32 %v724, 0.0
      %v1684 = vmax.f32 %v1075, 0.0
      %v1685 = vmax.f32 %v1077, 0.0
      %v1686 = vmax.f32 %v1402, 0.0
      %v1687 = vmax.f32 %v726, 0.0
      %v1688 = vmax.f32 %v728, 0.0
      %v1689 = vmax.f32 %v1079, 0.0
      %v1690 = vmax.f32 %v1081, 0.0
      %v1691 = vmax.f32 %v1405, 0.0
      %v1692 = vmax.f32 %v732, 0.0
      %v1693 = vmax.f32 %v734, 0.0
      %v1694 = vmax.f32 %v1085, 0.0
      %v1695 = vmax.f32 %v1087, 0.0
      %v1696 = vmax.f32 %v1410, 0.0
      %v1697 = vmax.f32 %v736, 0.0
      %v1698 = vmax.f32 %v738, 0.0
      %v1699 = vmax.f32 %v1089, 0.0
      %v1700 = vmax.f32 %v1091, 0.0
      %v1701 = vmax.f32 %v1413, 0.0
      %v1702 = vmax.f32 %v742, 0.0
      %v1703 = vmax.f32 %v744, 0.0
      %v1704 = vmax.f32 %v1095, 0.0
      %v1705 = vmax.f32 %v1097, 0.0
      %v1706 = vmax.f32 %v1418, 0.0
      %v1707 = vmax.f32 %v746, 0.0
      %v1708 = vmax.f32 %v748, 0.0
      %v1709 = vmax.f32 %v1099, 0.0
      %v1710 = vmax.f32 %v1101, 0.0
      %v1711 = vmax.f32 %v1421, 0.0
      %v1712 = vmax.f32 %v752, 0.0
      %v1713 = vmax.f32 %v754, 0.0
      %v1714 = vmax.f32 %v1105, 0.0
      %v1715 = vmax.f32 %v1107, 0.0
      %v1716 = vmax.f32 %v1426, 0.0
      %v1717 = vmax.f32 %v756, 0.0
      %v1718 = vmax.f32 %v758, 0.0
      %v1719 = vmax.f32 %v1109, 0.0
      %v1720 = vmax.f32 %v1111, 0.0
      %v1721 = vmax.f32 %v1429, 0.0
      %v1722 = vmax.f32 %v762, 0.0
      %v1723 = vmax.f32 %v764, 0.0
      %v1724 = vmax.f32 %v1115, 0.0
      %v1725 = vmax.f32 %v1117, 0.0
      %v1726 = vmax.f32 %v1434, 0.0
      %v1727 = vmax.f32 %v766, 0.0
      %v1728 = vmax.f32 %v768, 0.0
      %v1729 = vmax.f32 %v1119, 0.0
      %v1730 = vmax.f32 %v1121, 0.0
      %v1731 = vmax.f32 %v1437, 0.0
      %v1732 = vmax.f32 %v772, 0.0
      %v1733 = vmax.f32 %v774, 0.0
      %v1734 = vmax.f32 %v1125, 0.0
      %v1735 = vmax.f32 %v1127, 0.0
      %v1736 = vmax.f32 %v1442, 0.0
      %v1737 = vmax.f32 %v776, 0.0
      %v1738 = vmax.f32 %v778, 0.0
      %v1739 = vmax.f32 %v1129, 0.0
      %v1740 = vmax.f32 %v1131, 0.0
      %v1741 = vmax.f32 %v1445, 0.0
      %v1742 = vmax.f32 %v782, 0.0
      %v1743 = vmax.f32 %v784, 0.0
      %v1744 = vmax.f32 %v1135, 0.0
      %v1745 = vmax.f32 %v1137, 0.0
      %v1746 = vmax.f32 %v1450, 0.0
      %v1747 = vmax.f32 %v786, 0.0
      %v1748 = vmax.f32 %v788, 0.0
      %v1749 = vmax.f32 %v1139, 0.0
      %v1750 = vmax.f32 %v1141, 0.0
      %v1751 = vmax.f32 %v1453, 0.0
      %v1752 = vmax.f32 %v792, 0.0
      %v1753 = vmax.f32 %v794, 0.0
      %v1754 = vmax.f32 %v1145, 0.0
      %v1755 = vmax.f32 %v1147, 0.0
      %v1756 = vmax.f32 %v1458, 0.0
      %v1757 = vmax.f32 %v796, 0.0
      %v1758 = vmax.f32 %v798, 0.0
      %v1759 = vmax.f32 %v1149, 0.0
      %v1760 = vmax.f32 %v1151, 0.0
      %v1761 = vmax.f32 %v1461, 0.0
      %v1762 = vmax.f32 %v802, 0.0
      %v1763 = vmax.f32 %v804, 0.0
      %v1764 = vmax.f32 %v1155, 0.0
      %v1765 = vmax.f32 %v1157, 0.0
      %v1766 = vmax.f32 %v1466, 0.0
      %v1767 = vmax.f32 %v806, 0.0
      %v1768 = vmax.f32 %v808, 0.0
      %v1769 = vmax.f32 %v1159, 0.0
      %v1770 = vmax.f32 %v1161, 0.0
      %v1771 = vmax.f32 %v1469, 0.0
      %v1772 = vmax.f32 %v812, 0.0
      %v1773 = vmax.f32 %v814, 0.0
      %v1774 = vmax.f32 %v1165, 0.0
      %v1775 = vmax.f32 %v1167, 0.0
      %v1776 = vmax.f32 %v1474, 0.0
      %v1777 = vmax.f32 %v816, 0.0
      %v1778 = vmax.f32 %v818, 0.0
      %v1779 = vmax.f32 %v1169, 0.0
      %v1780 = vmax.f32 %v1171, 0.0
      %v1781 = vmax.f32 %v1477, 0.0
      %v1782 = vmax.f32 %v822, 0.0
      %v1783 = vmax.f32 %v824, 0.0
      %v1784 = vmax.f32 %v1175, 0.0
      %v1785 = vmax.f32 %v1177, 0.0
      %v1786 = vmax.f32 %v1482, 0.0
      %v1787 = vmax.f32 %v826, 0.0
      %v1788 = vmax.f32 %v828, 0.0
      %v1789 = vmax.f32 %v1179, 0.0
      %v1790 = vmax.f32 %v1181, 0.0
      %v1791 = vmax.f32 %v1485, 0.0
      %v1792 = vmax.f32 %v832, 0.0
      %v1793 = vmax.f32 %v834, 0.0
      %v1794 = vmax.f32 %v1185, 0.0
      %v1795 = vmax.f32 %v1187, 0.0
      %v1796 = vmax.f32 %v1490, 0.0
      %v1797 = vmax.f32 %v836, 0.0
      %v1798 = vmax.f32 %v838, 0.0
      %v1799 = vmax.f32 %v1189, 0.0
      %v1800 = vmax.f32 %v1191, 0.0
      %v1801 = vmax.f32 %v1493, 0.0
      %v1802 = vmax.f32 %v842, 0.0
      %v1803 = vmax.f32 %v844, 0.0
      %v1804 = vmax.f32 %v1195, 0.0
      %v1805 = vmax.f32 %v1197, 0.0
      %v1806 = vmax.f32 %v1498, 0.0
      %v1807 = vmax.f32 %v846, 0.0
      %v1808 = vmax.f32 %v848, 0.0
      %v1809 = vmax.f32 %v1199, 0.0
      %v1810 = vmax.f32 %v1201, 0.0
      %v1811 = vmax.f32 %v1501, 0.0
      %v1812 = vmax.f32 %v852, 0.0
      %v1813 = vmax.f32 %v854, 0.0
      %v1814 = vmax.f32 %v1205, 0.0
      %v1815 = vmax.f32 %v1207, 0.0
      %v1816 = vmax.f32 %v1506, 0.0
      %v1817 = vmax.f32 %v856, 0.0
      %v1818 = vmax.f32 %v858, 0.0
      %v1819 = vmax.f32 %v1209, 0.0
      %v1820 = vmax.f32 %v1211, 0.0
      %v1821 = vmax.f32 %v1509, 0.0
      %v1822 = vmax.f32 %v862, 0.0
      %v1823 = vmax.f32 %v864, 0.0
      %v1824 = vmax.f32 %v1215, 0.0
      %v1825 = vmax.f32 %v1217, 0.0
      %v1826 = vmax.f32 %v1514, 0.0
      %v1827 = vmax.f32 %v866, 0.0
      %v1828 = vmax.f32 %v868, 0.0
      %v1829 = vmax.f32 %v1219, 0.0
      %v1830 = vmax.f32 %v1221, 0.0
      %v1831 = vmax.f32 %v1517, 0.0
      %v1832 = vmax.f32 %v872, 0.0
      %v1833 = vmax.f32 %v874, 0.0
      %v1834 = vmax.f32 %v1225, 0.0
      %v1835 = vmax.f32 %v1227, 0.0
      %v1836 = vmax.f32 %v1522, 0.0
      %v1837 = vmax.f32 %v876, 0.0
      %v1838 = vmax.f32 %v878, 0.0
      %v1839 = vmax.f32 %v1229, 0.0
      %v1840 = vmax.f32 %v1231, 0.0
      %v1841 = vmax.f32 %v1525, 0.0
      %v1842 = vmax.f32 %v882, 0.0
      %v1843 = vmax.f32 %v884, 0.0
      %v1844 = vmax.f32 %v1235, 0.0
      %v1845 = vmax.f32 %v1237, 0.0
      %v1846 = vmax.f32 %v1530, 0.0
      %v1847 = vmax.f32 %v886, 0.0
      %v1848 = vmax.f32 %v888, 0.0
      %v1849 = vmax.f32 %v1239, 0.0
      %v1850 = vmax.f32 %v1241, 0.0
      %v1851 = vmax.f32 %v1533, 0.0
      %v1852 = vmax.f32 %v892, 0.0
      %v1853 = vmax.f32 %v894, 0.0
      %v1854 = vmax.f32 %v1245, 0.0
      %v1855 = vmax.f32 %v1247, 0.0
      %v1856 = vmax.f32 %v1538, 0.0
      %v1857 = vmax.f32 %v896, 0.0
      %v1858 = vmax.f32 %v898, 0.0
      %v1859 = vmax.f32 %v1249, 0.0
      %v1860 = vmax.f32 %v1251, 0.0
      %v1861 = vmax.f32 %v1541, 0.0
      %v1862 = vmax.f32 %v902, 0.0
      %v1863 = vmax.f32 %v904, 0.0
      %v1864 = vmax.f32 %v1255, 0.0
      %v1865 = vmax.f32 %v1257, 0.0
      %v1866 = vmax.f32 %v1546, 0.0
      %v1867 = vmax.f32 %v906, 0.0
      %v1868 = vmax.f32 %v908, 0.0
      %v1869 = vmax.f32 %v1259, 0.0
      %v1870 = vmax.f32 %v1261, 0.0
      %v1871 = vmax.f32 %v1549, 0.0
      %1872 = vst [vmem:[%s174] sm:$0xff] %v1552
      %1873 = vst [vmem:[%s174 + $0x8] sm:$0xff] %v1553
      %1874 = vst [vmem:[%s174 + $0x10] sm:$0xff] %v1554
      %1875 = vst [vmem:[%s174 + $0x18] sm:$0xff] %v1555
      %1876 = vst [vmem:[%s174 + $0x20] sm:$0xff] %v1556
      %1877 = vst [vmem:[%s174 + $0x28] sm:$0xff] %v1557
      %1878 = vst [vmem:[%s174 + $0x30] sm:$0xff] %v1558
      %1879 = vst [vmem:[%s174 + $0x38] sm:$0xff] %v1559
      %1880 = vst [vmem:[%s174 + $0x40] sm:$0xff] %v1560
      %1881 = vst [vmem:[%s174 + $0x48] sm:$0xff] %v1561
      %1882 = vst [vmem:[%s174 + $0x50] sm:$0xff] %v1562
      %1883 = vst [vmem:[%s174 + $0x58] sm:$0xff] %v1563
      %1884 = vst [vmem:[%s174 + $0x60] sm:$0xff] %v1564
      %1885 = vst [vmem:[%s174 + $0x68] sm:$0xff] %v1565
      %1886 = vst [vmem:[%s174 + $0x70] sm:$0xff] %v1566
      %1887 = vst [vmem:[%s174 + $0x78] sm:$0xff] %v1567
      %1888 = vst [vmem:[%s174 + $0x80] sm:$0xff] %v1568
      %1889 = vst [vmem:[%s174 + $0x88] sm:$0xff] %v1569
      %1890 = vst [vmem:[%s174 + $0x90] sm:$0xff] %v1570
      %1891 = vst [vmem:[%s174 + $0x98] sm:$0xff] %v1571
      %1892 = vst [vmem:[%s174 + $0xa0] sm:$0xff] %v1572
      %1893 = vst [vmem:[%s174 + $0xa8] sm:$0xff] %v1573
      %1894 = vst [vmem:[%s174 + $0xb0] sm:$0xff] %v1574
      %1895 = vst [vmem:[%s174 + $0xb8] sm:$0xff] %v1575
      %1896 = vst [vmem:[%s174 + $0xc0] sm:$0xff] %v1576
      %1897 = vst [vmem:[%s174 + $0xc8] sm:$0xff] %v1577
      %1898 = vst [vmem:[%s174 + $0xd0] sm:$0xff] %v1578
      %1899 = vst [vmem:[%s174 + $0xd8] sm:$0xff] %v1579
      %1900 = vst [vmem:[%s174 + $0xe0] sm:$0xff] %v1580
      %1901 = vst [vmem:[%s174 + $0xe8] sm:$0xff] %v1581
      %1902 = vst [vmem:[%s174 + $0xf0] sm:$0xff] %v1582
      %1903 = vst [vmem:[%s174 + $0xf8] sm:$0xff] %v1583
      %1904 = vst [vmem:[%s174 + $0x100] sm:$0xff] %v1584
      %1905 = vst [vmem:[%s174 + $0x108] sm:$0xff] %v1585
      %1906 = vst [vmem:[%s174 + $0x110] sm:$0xff] %v1586
      %1907 = vst [vmem:[%s174 + $0x118] sm:$0xff] %v1587
      %1908 = vst [vmem:[%s174 + $0x120] sm:$0xff] %v1588
      %1909 = vst [vmem:[%s174 + $0x128] sm:$0xff] %v1589
      %1910 = vst [vmem:[%s174 + $0x130] sm:$0xff] %v1590
      %1911 = vst [vmem:[%s174 + $0x138] sm:$0xff] %v1591
      %1912 = vst [vmem:[%s174 + $0x140] sm:$0xff] %v1592
      %1913 = vst [vmem:[%s174 + $0x148] sm:$0xff] %v1593
      %1914 = vst [vmem:[%s174 + $0x150] sm:$0xff] %v1594
      %1915 = vst [vmem:[%s174 + $0x158] sm:$0xff] %v1595
      %1916 = vst [vmem:[%s174 + $0x160] sm:$0xff] %v1596
      %1917 = vst [vmem:[%s174 + $0x168] sm:$0xff] %v1597
      %1918 = vst [vmem:[%s174 + $0x170] sm:$0xff] %v1598
      %1919 = vst [vmem:[%s174 + $0x178] sm:$0xff] %v1599
      %1920 = vst [vmem:[%s174 + $0x180] sm:$0xff] %v1600
      %1921 = vst [vmem:[%s174 + $0x188] sm:$0xff] %v1601
      %1922 = vst [vmem:[%s174 + $0x190] sm:$0xff] %v1602
      %1923 = vst [vmem:[%s174 + $0x198] sm:$0xff] %v1603
      %1924 = vst [vmem:[%s174 + $0x1a0] sm:$0xff] %v1604
      %1925 = vst [vmem:[%s174 + $0x1a8] sm:$0xff] %v1605
      %1926 = vst [vmem:[%s174 + $0x1b0] sm:$0xff] %v1606
      %1927 = vst [vmem:[%s174 + $0x1b8] sm:$0xff] %v1607
      %1928 = vst [vmem:[%s174 + $0x1c0] sm:$0xff] %v1608
      %1929 = vst [vmem:[%s174 + $0x1c8] sm:$0xff] %v1609
      %1930 = vst [vmem:[%s174 + $0x1d0] sm:$0xff] %v1610
      %1931 = vst [vmem:[%s174 + $0x1d8] sm:$0xff] %v1611
      %1932 = vst [vmem:[%s174 + $0x1e0] sm:$0xff] %v1612
      %1933 = vst [vmem:[%s174 + $0x1e8] sm:$0xff] %v1613
      %1934 = vst [vmem:[%s174 + $0x1f0] sm:$0xff] %v1614
      %1935 = vst [vmem:[%s174 + $0x1f8] sm:$0xff] %v1615
      %1936 = vst [vmem:[%s174 + $0x200] sm:$0xff] %v1616
      %1937 = vst [vmem:[%s174 + $0x208] sm:$0xff] %v1617
      %1938 = vst [vmem:[%s174 + $0x210] sm:$0xff] %v1618
      %1939 = vst [vmem:[%s174 + $0x218] sm:$0xff] %v1619
      %1940 = vst [vmem:[%s174 + $0x220] sm:$0xff] %v1620
      %1941 = vst [vmem:[%s174 + $0x228] sm:$0xff] %v1621
      %1942 = vst [vmem:[%s174 + $0x230] sm:$0xff] %v1622
      %1943 = vst [vmem:[%s174 + $0x238] sm:$0xff] %v1623
      %1944 = vst [vmem:[%s174 + $0x240] sm:$0xff] %v1624
      %1945 = vst [vmem:[%s174 + $0x248] sm:$0xff] %v1625
      %1946 = vst [vmem:[%s174 + $0x250] sm:$0xff] %v1626
      %1947 = vst [vmem:[%s174 + $0x258] sm:$0xff] %v1627
      %1948 = vst [vmem:[%s174 + $0x260] sm:$0xff] %v1628
      %1949 = vst [vmem:[%s174 + $0x268] sm:$0xff] %v1629
      %1950 = vst [vmem:[%s174 + $0x270] sm:$0xff] %v1630
      %1951 = vst [vmem:[%s174 + $0x278] sm:$0xff] %v1631
      %1952 = vst [vmem:[%s174 + $0x280] sm:$0xff] %v1632
      %1953 = vst [vmem:[%s174 + $0x288] sm:$0xff] %v1633
      %1954 = vst [vmem:[%s174 + $0x290] sm:$0xff] %v1634
      %1955 = vst [vmem:[%s174 + $0x298] sm:$0xff] %v1635
      %1956 = vst [vmem:[%s174 + $0x2a0] sm:$0xff] %v1636
      %1957 = vst [vmem:[%s174 + $0x2a8] sm:$0xff] %v1637
      %1958 = vst [vmem:[%s174 + $0x2b0] sm:$0xff] %v1638
      %1959 = vst [vmem:[%s174 + $0x2b8] sm:$0xff] %v1639
      %1960 = vst [vmem:[%s174 + $0x2c0] sm:$0xff] %v1640
      %1961 = vst [vmem:[%s174 + $0x2c8] sm:$0xff] %v1641
      %1962 = vst [vmem:[%s174 + $0x2d0] sm:$0xff] %v1642
      %1963 = vst [vmem:[%s174 + $0x2d8] sm:$0xff] %v1643
      %1964 = vst [vmem:[%s174 + $0x2e0] sm:$0xff] %v1644
      %1965 = vst [vmem:[%s174 + $0x2e8] sm:$0xff] %v1645
      %1966 = vst [vmem:[%s174 + $0x2f0] sm:$0xff] %v1646
      %1967 = vst [vmem:[%s174 + $0x2f8] sm:$0xff] %v1647
      %1968 = vst [vmem:[%s174 + $0x300] sm:$0xff] %v1648
      %1969 = vst [vmem:[%s174 + $0x308] sm:$0xff] %v1649
      %1970 = vst [vmem:[%s174 + $0x310] sm:$0xff] %v1650
      %1971 = vst [vmem:[%s174 + $0x318] sm:$0xff] %v1651
      %1972 = vst [vmem:[%s174 + $0x320] sm:$0xff] %v1652
      %1973 = vst [vmem:[%s174 + $0x328] sm:$0xff] %v1653
      %1974 = vst [vmem:[%s174 + $0x330] sm:$0xff] %v1654
      %1975 = vst [vmem:[%s174 + $0x338] sm:$0xff] %v1655
      %1976 = vst [vmem:[%s174 + $0x340] sm:$0xff] %v1656
      %1977 = vst [vmem:[%s174 + $0x348] sm:$0xff] %v1657
      %1978 = vst [vmem:[%s174 + $0x350] sm:$0xff] %v1658
      %1979 = vst [vmem:[%s174 + $0x358] sm:$0xff] %v1659
      %1980 = vst [vmem:[%s174 + $0x360] sm:$0xff] %v1660
      %1981 = vst [vmem:[%s174 + $0x368] sm:$0xff] %v1661
      %1982 = vst [vmem:[%s174 + $0x370] sm:$0xff] %v1662
      %1983 = vst [vmem:[%s174 + $0x378] sm:$0xff] %v1663
      %1984 = vst [vmem:[%s174 + $0x380] sm:$0xff] %v1664
      %1985 = vst [vmem:[%s174 + $0x388] sm:$0xff] %v1665
      %1986 = vst [vmem:[%s174 + $0x390] sm:$0xff] %v1666
      %1987 = vst [vmem:[%s174 + $0x398] sm:$0xff] %v1667
      %1988 = vst [vmem:[%s174 + $0x3a0] sm:$0xff] %v1668
      %1989 = vst [vmem:[%s174 + $0x3a8] sm:$0xff] %v1669
      %1990 = vst [vmem:[%s174 + $0x3b0] sm:$0xff] %v1670
      %1991 = vst [vmem:[%s174 + $0x3b8] sm:$0xff] %v1671
      %1992 = vst [vmem:[%s174 + $0x3c0] sm:$0xff] %v1672
      %1993 = vst [vmem:[%s174 + $0x3c8] sm:$0xff] %v1673
      %1994 = vst [vmem:[%s174 + $0x3d0] sm:$0xff] %v1674
      %1995 = vst [vmem:[%s174 + $0x3d8] sm:$0xff] %v1675
      %1996 = vst [vmem:[%s174 + $0x3e0] sm:$0xff] %v1676
      %1997 = vst [vmem:[%s174 + $0x3e8] sm:$0xff] %v1677
      %1998 = vst [vmem:[%s174 + $0x3f0] sm:$0xff] %v1678
      %1999 = vst [vmem:[%s174 + $0x3f8] sm:$0xff] %v1679
      %2000 = vst [vmem:[%s174 + $0x400] sm:$0xff] %v1680
      %2001 = vst [vmem:[%s174 + $0x408] sm:$0xff] %v1681
      %2002 = vst [vmem:[%s174 + $0x410] sm:$0xff] %v1682
      %2003 = vst [vmem:[%s174 + $0x418] sm:$0xff] %v1683
      %2004 = vst [vmem:[%s174 + $0x420] sm:$0xff] %v1684
      %2005 = vst [vmem:[%s174 + $0x428] sm:$0xff] %v1685
      %2006 = vst [vmem:[%s174 + $0x430] sm:$0xff] %v1686
      %2007 = vst [vmem:[%s174 + $0x438] sm:$0xff] %v1687
      %2008 = vst [vmem:[%s174 + $0x440] sm:$0xff] %v1688
      %2009 = vst [vmem:[%s174 + $0x448] sm:$0xff] %v1689
      %2010 = vst [vmem:[%s174 + $0x450] sm:$0xff] %v1690
      %2011 = vst [vmem:[%s174 + $0x458] sm:$0xff] %v1691
      %2012 = vst [vmem:[%s174 + $0x460] sm:$0xff] %v1692
      %2013 = vst [vmem:[%s174 + $0x468] sm:$0xff] %v1693
      %2014 = vst [vmem:[%s174 + $0x470] sm:$0xff] %v1694
      %2015 = vst [vmem:[%s174 + $0x478] sm:$0xff] %v1695
      %2016 = vst [vmem:[%s174 + $0x480] sm:$0xff] %v1696
      %2017 = vst [vmem:[%s174 + $0x488] sm:$0xff] %v1697
      %2018 = vst [vmem:[%s174 + $0x490] sm:$0xff] %v1698
      %2019 = vst [vmem:[%s174 + $0x498] sm:$0xff] %v1699
      %2020 = vst [vmem:[%s174 + $0x4a0] sm:$0xff] %v1700
      %2021 = vst [vmem:[%s174 + $0x4a8] sm:$0xff] %v1701
      %2022 = vst [vmem:[%s174 + $0x4b0] sm:$0xff] %v1702
      %2023 = vst [vmem:[%s174 + $0x4b8] sm:$0xff] %v1703
      %2024 = vst [vmem:[%s174 + $0x4c0] sm:$0xff] %v1704
      %2025 = vst [vmem:[%s174 + $0x4c8] sm:$0xff] %v1705
      %2026 = vst [vmem:[%s174 + $0x4d0] sm:$0xff] %v1706
      %2027 = vst [vmem:[%s174 + $0x4d8] sm:$0xff] %v1707
      %2028 = vst [vmem:[%s174 + $0x4e0] sm:$0xff] %v1708
      %2029 = vst [vmem:[%s174 + $0x4e8] sm:$0xff] %v1709
      %2030 = vst [vmem:[%s174 + $0x4f0] sm:$0xff] %v1710
      %2031 = vst [vmem:[%s174 + $0x4f8] sm:$0xff] %v1711
      %2032 = vst [vmem:[%s174 + $0x500] sm:$0xff] %v1712
      %2033 = vst [vmem:[%s174 + $0x508] sm:$0xff] %v1713
      %2034 = vst [vmem:[%s174 + $0x510] sm:$0xff] %v1714
      %2035 = vst [vmem:[%s174 + $0x518] sm:$0xff] %v1715
      %2036 = vst [vmem:[%s174 + $0x520] sm:$0xff] %v1716
      %2037 = vst [vmem:[%s174 + $0x528] sm:$0xff] %v1717
      %2038 = vst [vmem:[%s174 + $0x530] sm:$0xff] %v1718
      %2039 = vst [vmem:[%s174 + $0x538] sm:$0xff] %v1719
      %2040 = vst [vmem:[%s174 + $0x540] sm:$0xff] %v1720
      %2041 = vst [vmem:[%s174 + $0x548] sm:$0xff] %v1721
      %2042 = vst [vmem:[%s174 + $0x550] sm:$0xff] %v1722
      %2043 = vst [vmem:[%s174 + $0x558] sm:$0xff] %v1723
      %2044 = vst [vmem:[%s174 + $0x560] sm:$0xff] %v1724
      %2045 = vst [vmem:[%s174 + $0x568] sm:$0xff] %v1725
      %2046 = vst [vmem:[%s174 + $0x570] sm:$0xff] %v1726
      %2047 = vst [vmem:[%s174 + $0x578] sm:$0xff] %v1727
      %2048 = vst [vmem:[%s174 + $0x580] sm:$0xff] %v1728
      %2049 = vst [vmem:[%s174 + $0x588] sm:$0xff] %v1729
      %2050 = vst [vmem:[%s174 + $0x590] sm:$0xff] %v1730
      %2051 = vst [vmem:[%s174 + $0x598] sm:$0xff] %v1731
      %2052 = vst [vmem:[%s174 + $0x5a0] sm:$0xff] %v1732
      %2053 = vst [vmem:[%s174 + $0x5a8] sm:$0xff] %v1733
      %2054 = vst [vmem:[%s174 + $0x5b0] sm:$0xff] %v1734
      %2055 = vst [vmem:[%s174 + $0x5b8] sm:$0xff] %v1735
      %2056 = vst [vmem:[%s174 + $0x5c0] sm:$0xff] %v1736
      %2057 = vst [vmem:[%s174 + $0x5c8] sm:$0xff] %v1737
      %2058 = vst [vmem:[%s174 + $0x5d0] sm:$0xff] %v1738
      %2059 = vst [vmem:[%s174 + $0x5d8] sm:$0xff] %v1739
      %2060 = vst [vmem:[%s174 + $0x5e0] sm:$0xff] %v1740
      %2061 = vst [vmem:[%s174 + $0x5e8] sm:$0xff] %v1741
      %2062 = vst [vmem:[%s174 + $0x5f0] sm:$0xff] %v1742
      %2063 = vst [vmem:[%s174 + $0x5f8] sm:$0xff] %v1743
      %2064 = vst [vmem:[%s174 + $0x600] sm:$0xff] %v1744
      %2065 = vst [vmem:[%s174 + $0x608] sm:$0xff] %v1745
      %2066 = vst [vmem:[%s174 + $0x610] sm:$0xff] %v1746
      %2067 = vst [vmem:[%s174 + $0x618] sm:$0xff] %v1747
      %2068 = vst [vmem:[%s174 + $0x620] sm:$0xff] %v1748
      %2069 = vst [vmem:[%s174 + $0x628] sm:$0xff] %v1749
      %2070 = vst [vmem:[%s174 + $0x630] sm:$0xff] %v1750
      %2071 = vst [vmem:[%s174 + $0x638] sm:$0xff] %v1751
      %2072 = vst [vmem:[%s174 + $0x640] sm:$0xff] %v1752
      %2073 = vst [vmem:[%s174 + $0x648] sm:$0xff] %v1753
      %2074 = vst [vmem:[%s174 + $0x650] sm:$0xff] %v1754
      %2075 = vst [vmem:[%s174 + $0x658] sm:$0xff] %v1755
      %2076 = vst [vmem:[%s174 + $0x660] sm:$0xff] %v1756
      %2077 = vst [vmem:[%s174 + $0x668] sm:$0xff] %v1757
      %2078 = vst [vmem:[%s174 + $0x670] sm:$0xff] %v1758
      %2079 = vst [vmem:[%s174 + $0x678] sm:$0xff] %v1759
      %2080 = vst [vmem:[%s174 + $0x680] sm:$0xff] %v1760
      %2081 = vst [vmem:[%s174 + $0x688] sm:$0xff] %v1761
      %2082 = vst [vmem:[%s174 + $0x690] sm:$0xff] %v1762
      %2083 = vst [vmem:[%s174 + $0x698] sm:$0xff] %v1763
      %2084 = vst [vmem:[%s174 + $0x6a0] sm:$0xff] %v1764
      %2085 = vst [vmem:[%s174 + $0x6a8] sm:$0xff] %v1765
      %2086 = vst [vmem:[%s174 + $0x6b0] sm:$0xff] %v1766
      %2087 = vst [vmem:[%s174 + $0x6b8] sm:$0xff] %v1767
      %2088 = vst [vmem:[%s174 + $0x6c0] sm:$0xff] %v1768
      %2089 = vst [vmem:[%s174 + $0x6c8] sm:$0xff] %v1769
      %2090 = vst [vmem:[%s174 + $0x6d0] sm:$0xff] %v1770
      %2091 = vst [vmem:[%s174 + $0x6d8] sm:$0xff] %v1771
      %2092 = vst [vmem:[%s174 + $0x6e0] sm:$0xff] %v1772
      %2093 = vst [vmem:[%s174 + $0x6e8] sm:$0xff] %v1773
      %2094 = vst [vmem:[%s174 + $0x6f0] sm:$0xff] %v1774
      %2095 = vst [vmem:[%s174 + $0x6f8] sm:$0xff] %v1775
      %2096 = vst [vmem:[%s174 + $0x700] sm:$0xff] %v1776
      %2097 = vst [vmem:[%s174 + $0x708] sm:$0xff] %v1777
      %2098 = vst [vmem:[%s174 + $0x710] sm:$0xff] %v1778
      %2099 = vst [vmem:[%s174 + $0x718] sm:$0xff] %v1779
      %2100 = vst [vmem:[%s174 + $0x720] sm:$0xff] %v1780
      %2101 = vst [vmem:[%s174 + $0x728] sm:$0xff] %v1781
      %2102 = vst [vmem:[%s174 + $0x730] sm:$0xff] %v1782
      %2103 = vst [vmem:[%s174 + $0x738] sm:$0xff] %v1783
      %2104 = vst [vmem:[%s174 + $0x740] sm:$0xff] %v1784
      %2105 = vst [vmem:[%s174 + $0x748] sm:$0xff] %v1785
      %2106 = vst [vmem:[%s174 + $0x750] sm:$0xff] %v1786
      %2107 = vst [vmem:[%s174 + $0x758] sm:$0xff] %v1787
      %2108 = vst [vmem:[%s174 + $0x760] sm:$0xff] %v1788
      %2109 = vst [vmem:[%s174 + $0x768] sm:$0xff] %v1789
      %2110 = vst [vmem:[%s174 + $0x770] sm:$0xff] %v1790
      %2111 = vst [vmem:[%s174 + $0x778] sm:$0xff] %v1791
      %2112 = vst [vmem:[%s174 + $0x780] sm:$0xff] %v1792
      %2113 = vst [vmem:[%s174 + $0x788] sm:$0xff] %v1793
      %2114 = vst [vmem:[%s174 + $0x790] sm:$0xff] %v1794
      %2115 = vst [vmem:[%s174 + $0x798] sm:$0xff] %v1795
      %2116 = vst [vmem:[%s174 + $0x7a0] sm:$0xff] %v1796
      %2117 = vst [vmem:[%s174 + $0x7a8] sm:$0xff] %v1797
      %2118 = vst [vmem:[%s174 + $0x7b0] sm:$0xff] %v1798
      %2119 = vst [vmem:[%s174 + $0x7b8] sm:$0xff] %v1799
      %2120 = vst [vmem:[%s174 + $0x7c0] sm:$0xff] %v1800
      %2121 = vst [vmem:[%s174 + $0x7c8] sm:$0xff] %v1801
      %2122 = vst [vmem:[%s174 + $0x7d0] sm:$0xff] %v1802
      %2123 = vst [vmem:[%s174 + $0x7d8] sm:$0xff] %v1803
      %2124 = vst [vmem:[%s174 + $0x7e0] sm:$0xff] %v1804
      %2125 = vst [vmem:[%s174 + $0x7e8] sm:$0xff] %v1805
      %2126 = vst [vmem:[%s174 + $0x7f0] sm:$0xff] %v1806
      %2127 = vst [vmem:[%s174 + $0x7f8] sm:$0xff] %v1807
      %2128 = vst [vmem:[%s174 + $0x800] sm:$0xff] %v1808
      %2129 = vst [vmem:[%s174 + $0x808] sm:$0xff] %v1809
      %2130 = vst [vmem:[%s174 + $0x810] sm:$0xff] %v1810
      %2131 = vst [vmem:[%s174 + $0x818] sm:$0xff] %v1811
      %2132 = vst [vmem:[%s174 + $0x820] sm:$0xff] %v1812
      %2133 = vst [vmem:[%s174 + $0x828] sm:$0xff] %v1813
      %2134 = vst [vmem:[%s174 + $0x830] sm:$0xff] %v1814
      %2135 = vst [vmem:[%s174 + $0x838] sm:$0xff] %v1815
      %2136 = vst [vmem:[%s174 + $0x840] sm:$0xff] %v1816
      %2137 = vst [vmem:[%s174 + $0x848] sm:$0xff] %v1817
      %2138 = vst [vmem:[%s174 + $0x850] sm:$0xff] %v1818
      %2139 = vst [vmem:[%s174 + $0x858] sm:$0xff] %v1819
      %2140 = vst [vmem:[%s174 + $0x860] sm:$0xff] %v1820
      %2141 = vst [vmem:[%s174 + $0x868] sm:$0xff] %v1821
      %2142 = vst [vmem:[%s174 + $0x870] sm:$0xff] %v1822
      %2143 = vst [vmem:[%s174 + $0x878] sm:$0xff] %v1823
      %2144 = vst [vmem:[%s174 + $0x880] sm:$0xff] %v1824
      %2145 = vst [vmem:[%s174 + $0x888] sm:$0xff] %v1825
      %2146 = vst [vmem:[%s174 + $0x890] sm:$0xff] %v1826
      %2147 = vst [vmem:[%s174 + $0x898] sm:$0xff] %v1827
      %2148 = vst [vmem:[%s174 + $0x8a0] sm:$0xff] %v1828
      %2149 = vst [vmem:[%s174 + $0x8a8] sm:$0xff] %v1829
      %2150 = vst [vmem:[%s174 + $0x8b0] sm:$0xff] %v1830
      %2151 = vst [vmem:[%s174 + $0x8b8] sm:$0xff] %v1831
      %2152 = vst [vmem:[%s174 + $0x8c0] sm:$0xff] %v1832
      %2153 = vst [vmem:[%s174 + $0x8c8] sm:$0xff] %v1833
      %2154 = vst [vmem:[%s174 + $0x8d0] sm:$0xff] %v1834
      %2155 = vst [vmem:[%s174 + $0x8d8] sm:$0xff] %v1835
      %2156 = vst [vmem:[%s174 + $0x8e0] sm:$0xff] %v1836
      %2157 = vst [vmem:[%s174 + $0x8e8] sm:$0xff] %v1837
      %2158 = vst [vmem:[%s174 + $0x8f0] sm:$0xff] %v1838
      %2159 = vst [vmem:[%s174 + $0x8f8] sm:$0xff] %v1839
      %2160 = vst [vmem:[%s174 + $0x900] sm:$0xff] %v1840
      %2161 = vst [vmem:[%s174 + $0x908] sm:$0xff] %v1841
      %2162 = vst [vmem:[%s174 + $0x910] sm:$0xff] %v1842
      %2163 = vst [vmem:[%s174 + $0x918] sm:$0xff] %v1843
      %2164 = vst [vmem:[%s174 + $0x920] sm:$0xff] %v1844
      %2165 = vst [vmem:[%s174 + $0x928] sm:$0xff] %v1845
      %2166 = vst [vmem:[%s174 + $0x930] sm:$0xff] %v1846
      %2167 = vst [vmem:[%s174 + $0x938] sm:$0xff] %v1847
      %2168 = vst [vmem:[%s174 + $0x940] sm:$0xff] %v1848
      %2169 = vst [vmem:[%s174 + $0x948] sm:$0xff] %v1849
      %2170 = vst [vmem:[%s174 + $0x950] sm:$0xff] %v1850
      %2171 = vst [vmem:[%s174 + $0x958] sm:$0xff] %v1851
      %2172 = vst [vmem:[%s174 + $0x960] sm:$0xff] %v1852
      %2173 = vst [vmem:[%s174 + $0x968] sm:$0xff] %v1853
      %2174 = vst [vmem:[%s174 + $0x970] sm:$0xff] %v1854
      %2175 = vst [vmem:[%s174 + $0x978] sm:$0xff] %v1855
      %2176 = vst [vmem:[%s174 + $0x980] sm:$0xff] %v1856
      %2177 = vst [vmem:[%s174 + $0x988] sm:$0xff] %v1857
      %2178 = vst [vmem:[%s174 + $0x990] sm:$0xff] %v1858
      %2179 = vst [vmem:[%s174 + $0x998] sm:$0xff] %v1859
      %2180 = vst [vmem:[%s174 + $0x9a0] sm:$0xff] %v1860
      %2181 = vst [vmem:[%s174 + $0x9a8] sm:$0xff] %v1861
      %2182 = vst [vmem:[%s174 + $0x9b0] sm:$0xff] %v1862
      %2183 = vst [vmem:[%s174 + $0x9b8] sm:$0xff] %v1863
      %2184 = vst [vmem:[%s174 + $0x9c0] sm:$0xff] %v1864
      %2185 = vst [vmem:[%s174 + $0x9c8] sm:$0xff] %v1865
      %2186 = vst [vmem:[%s174 + $0x9d0] sm:$0xff] %v1866
      %2187 = vst [vmem:[%s174 + $0x9d8] sm:$0xff] %v1867
      %2188 = vst [vmem:[%s174 + $0x9e0] sm:$0xff] %v1868
      %2189 = vst [vmem:[%s174 + $0x9e8] sm:$0xff] %v1869
      %2190 = vst [vmem:[%s174 + $0x9f0] sm:$0xff] %v1870
      %2191 = vst [vmem:[%s174 + $0x9f8] sm:$0xff] %v1871
      %s2192 = smul.u32 64, %s14
      %p2193 = scmp.lt.s32.totalorder %s2192, 127
      %s2194 = scalar_select %p2193, %s2192, 127
      %s2195 = smul.addr %s2194, 5
      %s2196 = smul.addr %s2195, 8
      %s2197 = scalar_lea.vmem %s3, %s2196
      // Predicated region
      $region33: #{_lambda_.17} parent=31 // pred_check
        %p2198 = pneg %p100
      $region34: #{_lambda_.17} parent=31 // pred_check_branch
        %2200 = sbr.rel (%p2198) target = $region36
      $region35: #{_lambda_.17} parent=31 // pred_region
        %s2201 = smul.u32 64, %s14
      $region36: #{_lambda_.17} parent=31 // pred_fallthru
        _
    $region32: #{_lambda_.17} parent=5 // pred_fallthru
      _
    %p2202 = scmp.le.s32.totalorder 2, %s9
    // Predicated region
    $region37: #{_lambda_.17} parent=5 // pred_check
      %p2203 = pneg %p2202
    $region38: #{_lambda_.17} parent=5 // pred_check_branch
      %2205 = sbr.rel (%p2203) target = $region40
    $region39: #{_lambda_.17} parent=5 // pred_region
      %s2206 = ssub.s32 %s9, 2
      // Predicated region
      $region41: #{_lambda_.17} parent=39 // pred_check
        %p2207 = pneg %p106
      $region42: #{_lambda_.17} parent=39 // pred_check_branch
        %2209 = sbr.rel (%p2207) target = $region44
      $region43: #{_lambda_.17} parent=39 // pred_region
        %s2210 = smul.u32 64, %s15
        %p2211 = scmp.lt.s32.totalorder %s2210, 127
        %s2212 = scalar_select %p2211, %s2210, 127
        %s2213 = smul.addr %s2212, 5
        %s2214 = smul.addr %s2213, 8
        %s2215 = scalar_lea.vmem %s3, %s2214
      $region44: #{_lambda_.17} parent=39 // pred_fallthru
        _
    $region40: #{_lambda_.17} parent=5 // pred_fallthru
      _
  $region6: #{_lambda_.17} parent=0 // loop_footer
    %s13 = sadd.s32 1, %s9
  $region7: #{_lambda_.17} parent=0 // loop_footer_branch
    %8 = sbr.rel target = $region3
  $region8: #{_lambda_.17} parent=0 // loop_exit
    _

// kernel: _lambda_.18
$region0: #{_lambda_.18}
  #allocation0 [shape = 'u32[]', space=smem, size = 0x4, offset = 0x4, fixed_abs, tag = 'smem constant byte address 0x4 - core index']
  #allocation1 [shape = 'u32[144,128]{1,0:T(1,128)}', space=vmem, size = 0x12000, scoped, tag = 'internal scratch']
  %s0 = inlined_call_operand.vmem [shape: bf16[1024,640], index: 0, kind: input, shape index: {}]
  %s1 = inlined_call_operand.vmem [shape: bf16[640,40], index: 1, kind: input, shape index: {}]
  %s2 = inlined_call_operand.vmem [shape: f32[1,40], index: 2, kind: input, shape index: {}]
  %s3 = inlined_call_operand.vmem [shape: f32[1024,40], index: 3, kind: output, shape index: {}]
  %s4 = sld [smem:[#allocation0]]
  $region45: #{_lambda_.18} parent=0
    _
  %s6 = ssub.s32 1, %s4
  %s7 = scalar_select 0, %s6, %s4
  loop: start=0, step=1, limit=4
  $region2: #{_lambda_.18} parent=0 // loop_pre_header
    _
  $region3: #{_lambda_.18} parent=0 // loop_header
    %s9 = sphi 0, %s13
    %p10 = scmp.ge.s32.totalorder %s9, 4
    %s19 = sphi 0, %s21
    %s22 = sphi 0, %s19
    %s23 = sphi 0, %s22
    %s39 = sphi 0, %s23
    %s43 = sphi 0, %s43
    %s45 = sphi 0, %s43
    %s46 = sphi 0, %s45
    %s60 = sphi 0, %s46
    %s64 = sphi 0, %s64
    %s66 = sphi 0, %s64
    %s67 = sphi 0, %s66
    %s81 = sphi 0, %s67
    %s87 = sphi 0, %s89
    %s90 = sphi 0, %s87
    %s91 = sphi 0, %s90
    %s107 = sphi 0, %s91
  $region4: #{_lambda_.18} parent=0 // loop_header_branch
    %12 = sbr.rel (%p10) target = $region8
  $region5: #{_lambda_.18} parent=0 // loop_body
    %s14 = ssub.s32 %s9, 1
    %s15 = ssub.s32 %s9, 2
    %s16 = sadd.s32 %s9, 1
    %s17 = ssub.s32 %s9, %s16
    %p18 = scmp.eq.s32.totalorder %s17, 0
    %s20 = sadd.s32 %s19, 1
    %s21 = scalar_select %p18, %s19, %s20
    %p24 = pneg %p18
    %p25 = scmp.eq.s32.totalorder %s9, 1
    %p26 = por %p24, %p25
    %p27 = scmp.ne.s32.totalorder %s19, %s22
    %p28 = scmp.eq.s32.totalorder %s9, 0
    %p29 = por %p27, %p28
    %p30 = scmp.ne.s32.totalorder %s19, %s22
    %p31 = scmp.eq.s32.totalorder %s14, 1
    %p32 = por %p30, %p31
    %p33 = scmp.ne.s32.totalorder %s22, %s23
    %p34 = scmp.eq.s32.totalorder %s14, 0
    %p35 = por %p33, %p34
    %p36 = scmp.ne.s32.totalorder %s22, %s23
    %p37 = scmp.eq.s32.totalorder %s15, 1
    %p38 = por %p36, %p37
    %p40 = scmp.ne.s32.totalorder %s23, %s39
    %p41 = scmp.eq.s32.totalorder %s15, 0
    %p42 = por %p40, %p41
    %s44 = sadd.s32 %s43, 1
    %p47 = scmp.eq.s32.totalorder %s9, 1
    %p48 = scmp.ne.s32.totalorder %s43, %s45
    %p49 = scmp.eq.s32.totalorder %s9, 0
    %p50 = por %p48, %p49
    %p51 = scmp.ne.s32.totalorder %s43, %s45
    %p52 = scmp.eq.s32.totalorder %s14, 1
    %p53 = por %p51, %p52
    %p54 = scmp.ne.s32.totalorder %s45, %s46
    %p55 = scmp.eq.s32.totalorder %s14, 0
    %p56 = por %p54, %p55
    %p57 = scmp.ne.s32.totalorder %s45, %s46
    %p58 = scmp.eq.s32.totalorder %s15, 1
    %p59 = por %p57, %p58
    %p61 = scmp.ne.s32.totalorder %s46, %s60
    %p62 = scmp.eq.s32.totalorder %s15, 0
    %p63 = por %p61, %p62
    %s65 = sadd.s32 %s64, 1
    %p68 = scmp.eq.s32.totalorder %s9, 1
    %p69 = scmp.ne.s32.totalorder %s64, %s66
    %p70 = scmp.eq.s32.totalorder %s9, 0
    %p71 = por %p69, %p70
    %p72 = scmp.ne.s32.totalorder %s64, %s66
    %p73 = scmp.eq.s32.totalorder %s14, 1
    %p74 = por %p72, %p73
    %p75 = scmp.ne.s32.totalorder %s66, %s67
    %p76 = scmp.eq.s32.totalorder %s14, 0
    %p77 = por %p75, %p76
    %p78 = scmp.ne.s32.totalorder %s66, %s67
    %p79 = scmp.eq.s32.totalorder %s15, 1
    %p80 = por %p78, %p79
    %p82 = scmp.ne.s32.totalorder %s67, %s81
    %p83 = scmp.eq.s32.totalorder %s15, 0
    %p84 = por %p82, %p83
    %s85 = ssub.s32 %s9, %s16
    %p86 = scmp.eq.s32.totalorder %s85, 0
    %s88 = sadd.s32 %s87, 1
    %s89 = scalar_select %p86, %s87, %s88
    %p92 = pneg %p86
    %p93 = scmp.eq.s32.totalorder %s9, 1
    %p94 = por %p92, %p93
    %p95 = scmp.ne.s32.totalorder %s87, %s90
    %p96 = scmp.eq.s32.totalorder %s9, 0
    %p97 = por %p95, %p96
    %p98 = scmp.ne.s32.totalorder %s87, %s90
    %p99 = scmp.eq.s32.totalorder %s14, 1
    %p100 = por %p98, %p99
    %p101 = scmp.ne.s32.totalorder %s90, %s91
    %p102 = scmp.eq.s32.totalorder %s14, 0
    %p103 = por %p101, %p102
    %p104 = scmp.ne.s32.totalorder %s90, %s91
    %p105 = scmp.eq.s32.totalorder %s15, 1
    %p106 = por %p104, %p105
    %p108 = scmp.ne.s32.totalorder %s91, %s107
    %p109 = scmp.eq.s32.totalorder %s15, 0
    %p110 = por %p108, %p109
    %p111 = scmp.le.s32.totalorder 1, %s9
    %p112 = scmp.lt.s32.totalorder %s9, 3
    %p113 = pnand %p111, %p112
    %p114 = pneg %p113
    // Predicated region
    $region9: #{_lambda_.18} parent=5 // pred_check
      _
    $region10: #{_lambda_.18} parent=5 // pred_check_branch
      %116 = sbr.rel (%p113) target = $region12
    $region11: #{_lambda_.18} parent=5 // pred_region
      %s117 = ssub.s32 %s9, 1
      // Predicated region
      $region13: #{_lambda_.18} parent=11 // pred_check
        %p118 = pneg %p56
      $region14: #{_lambda_.18} parent=11 // pred_check_branch
        %120 = sbr.rel (%p118) target = $region16
      $region15: #{_lambda_.18} parent=11 // pred_region
        _
      $region16: #{_lambda_.18} parent=11 // pred_fallthru
        _
      // Predicated region
      $region17: #{_lambda_.18} parent=11 // pred_check
        %p121 = pneg %p77
      $region18: #{_lambda_.18} parent=11 // pred_check_branch
        %123 = sbr.rel (%p121) target = $region20
      $region19: #{_lambda_.18} parent=11 // pred_region
        _
      $region20: #{_lambda_.18} parent=11 // pred_fallthru
        _
    $region12: #{_lambda_.18} parent=5 // pred_fallthru
      _
    %p124 = scmp.lt.s32.totalorder %s9, 2
    // Predicated region
    $region21: #{_lambda_.18} parent=5 // pred_check
      %p125 = pneg %p124
    $region22: #{_lambda_.18} parent=5 // pred_check_branch
      %127 = sbr.rel (%p125) target = $region24
    $region23: #{_lambda_.18} parent=5 // pred_region
      // Predicated region
      $region25: #{_lambda_.18} parent=23 // pred_check
        %p128 = pneg %p29
      $region26: #{_lambda_.18} parent=23 // pred_check_branch
        %130 = sbr.rel (%p128) target = $region28
      $region27: #{_lambda_.18} parent=23 // pred_region
        %s131 = smul.u32 64, %s9
        %p132 = scmp.lt.s32.totalorder %s131, 127
        %s133 = scalar_select %p132, %s131, 127
        %s134 = smul.addr %s133, 5
        %s135 = smul.addr %s134, 4
        %s136 = scalar_lea.vmem %s0, %s135
        %s137 = smul.u32 64, %s9
      $region28: #{_lambda_.18} parent=23 // pred_fallthru
        _
    $region24: #{_lambda_.18} parent=5 // pred_fallthru
      _
    %p138 = scmp.le.s32.totalorder 1, %s9
    %p139 = scmp.lt.s32.totalorder %s9, 3
    %p140 = pnand %p138, %p139
    %p141 = pneg %p140
    // Predicated region
    $region29: #{_lambda_.18} parent=5 // pred_check
      _
    $region30: #{_lambda_.18} parent=5 // pred_check_branch
      %143 = sbr.rel (%p140) target = $region32
    $region31: #{_lambda_.18} parent=5 // pred_region
      %s144 = ssub.s32 %s9, 1
      %s145 = smul.u32 64, %s14
      %p146 = scmp.lt.s32.totalorder %s145, 127
      %s147 = scalar_select %p146, %s145, 127
      %s148 = smul.addr %s147, 5
      %s149 = smul.addr %s148, 4
      %s150 = scalar_lea.vmem %s0, %s149
      %p151 = pneg %p35
      %p152 = pneg %p32
      %p153 = pneg %p56
      %p154 = pneg %p53
      %p155 = pneg %p77
      %p156 = pneg %p74
      %p157 = pneg %p103
      %p158 = pneg %p100
      %s159 = smul.u32 64, %s14
      %p160 = scmp.lt.s32.totalorder %s159, 127
      %s161 = scalar_select %p160, %s159, 127
      %s162 = smul.addr %s161, 8
      %s163 = scalar_lea.vmem %s3, %s162
      %s164 = smul.u32 64, %s14
      %p165 = scmp.lt.s32.totalorder %s164, 127
      %s166 = scalar_select %p165, %s164, 127
      %s167 = smul.addr %s166, 5
      %s168 = smul.addr %s167, 4
      %s169 = scalar_lea.vmem %s0, %s168
      %s170 = smul.u32 64, %s14
      %s171 = smul.u32 64, %s14
      %p172 = scmp.lt.s32.totalorder %s171, 127
      %s173 = scalar_select %p172, %s171, 127
      %s174 = smul.addr %s173, 8
      %s175 = scalar_lea.vmem %s3, %s174
      %s176 = smul.u32 64, %s14
      %v178 = vld [vmem:[%s169] sm:$0xff]
      %v179 = vld [vmem:[%s169 + $0x8] sm:$0xff]
      %v180 = vld [vmem:[%s169 + $0x10] sm:$0xf]
      %v181 = vld [vmem:[%s169 + $0x14] sm:$0xff]
      %v182 = vld [vmem:[%s169 + $0x1c] sm:$0xff]
      %v183 = vld [vmem:[%s169 + $0x24] sm:$0xf]
      %v184 = vld [vmem:[%s169 + $0x28] sm:$0xff]
      %v185 = vld [vmem:[%s169 + $0x30] sm:$0xff]
      %v186 = vld [vmem:[%s169 + $0x38] sm:$0xf]
      %v187 = vld [vmem:[%s169 + $0x3c] sm:$0xff]
      %v188 = vld [vmem:[%s169 + $0x44] sm:$0xff]
      %v189 = vld [vmem:[%s169 + $0x4c] sm:$0xf]
      %v190 = vld [vmem:[%s169 + $0x50] sm:$0xff]
      %v191 = vld [vmem:[%s169 + $0x58] sm:$0xff]
      %v192 = vld [vmem:[%s169 + $0x60] sm:$0xf]
      %v193 = vld [vmem:[%s169 + $0x64] sm:$0xff]
      %v194 = vld [vmem:[%s169 + $0x6c] sm:$0xff]
      %v195 = vld [vmem:[%s169 + $0x74] sm:$0xf]
      %v196 = vld [vmem:[%s169 + $0x78] sm:$0xff]
      %v197 = vld [vmem:[%s169 + $0x80] sm:$0xff]
      %v198 = vld [vmem:[%s169 + $0x88] sm:$0xf]
      %v199 = vld [vmem:[%s169 + $0x8c] sm:$0xff]
      %v200 = vld [vmem:[%s169 + $0x94] sm:$0xff]
      %v201 = vld [vmem:[%s169 + $0x9c] sm:$0xf]
      %v202 = vld [vmem:[%s169 + $0xa0] sm:$0xff]
      %v203 = vld [vmem:[%s169 + $0xa8] sm:$0xff]
      %v204 = vld [vmem:[%s169 + $0xb0] sm:$0xf]
      %v205 = vld [vmem:[%s169 + $0xb4] sm:$0xff]
      %v206 = vld [vmem:[%s169 + $0xbc] sm:$0xff]
      %v207 = vld [vmem:[%s169 + $0xc4] sm:$0xf]
      %v208 = vld [vmem:[%s169 + $0xc8] sm:$0xff]
      %v209 = vld [vmem:[%s169 + $0xd0] sm:$0xff]
      %v210 = vld [vmem:[%s169 + $0xd8] sm:$0xf]
      %v211 = vld [vmem:[%s169 + $0xdc] sm:$0xff]
      %v212 = vld [vmem:[%s169 + $0xe4] sm:$0xff]
      %v213 = vld [vmem:[%s169 + $0xec] sm:$0xf]
      %v214 = vld [vmem:[%s169 + $0xf0] sm:$0xff]
      %v215 = vld [vmem:[%s169 + $0xf8] sm:$0xff]
      %v216 = vld [vmem:[%s169 + $0x100] sm:$0xf]
      %v217 = vld [vmem:[%s169 + $0x104] sm:$0xff]
      %v218 = vld [vmem:[%s169 + $0x10c] sm:$0xff]
      %v219 = vld [vmem:[%s169 + $0x114] sm:$0xf]
      %v220 = vld [vmem:[%s169 + $0x118] sm:$0xff]
      %v221 = vld [vmem:[%s169 + $0x120] sm:$0xff]
      %v222 = vld [vmem:[%s169 + $0x128] sm:$0xf]
      %v223 = vld [vmem:[%s169 + $0x12c] sm:$0xff]
      %v224 = vld [vmem:[%s169 + $0x134] sm:$0xff]
      %v225 = vld [vmem:[%s169 + $0x13c] sm:$0xf]
      %v226 = vld [vmem:[%s169 + $0x140] sm:$0xff]
      %v227 = vld [vmem:[%s169 + $0x148] sm:$0xff]
      %v228 = vld [vmem:[%s169 + $0x150] sm:$0xf]
      %v229 = vld [vmem:[%s169 + $0x154] sm:$0xff]
      %v230 = vld [vmem:[%s169 + $0x15c] sm:$0xff]
      %v231 = vld [vmem:[%s169 + $0x164] sm:$0xf]
      %v232 = vld [vmem:[%s169 + $0x168] sm:$0xff]
      %v233 = vld [vmem:[%s169 + $0x170] sm:$0xff]
      %v234 = vld [vmem:[%s169 + $0x178] sm:$0xf]
      %v235 = vld [vmem:[%s169 + $0x17c] sm:$0xff]
      %v236 = vld [vmem:[%s169 + $0x184] sm:$0xff]
      %v237 = vld [vmem:[%s169 + $0x18c] sm:$0xf]
      %v238 = vld [vmem:[%s169 + $0x190] sm:$0xff]
      %v239 = vld [vmem:[%s169 + $0x198] sm:$0xff]
      %v240 = vld [vmem:[%s169 + $0x1a0] sm:$0xf]
      %v241 = vld [vmem:[%s169 + $0x1a4] sm:$0xff]
      %v242 = vld [vmem:[%s169 + $0x1ac] sm:$0xff]
      %v243 = vld [vmem:[%s169 + $0x1b4] sm:$0xf]
      %v244 = vld [vmem:[%s169 + $0x1b8] sm:$0xff]
      %v245 = vld [vmem:[%s169 + $0x1c0] sm:$0xff]
      %v246 = vld [vmem:[%s169 + $0x1c8] sm:$0xf]
      %v247 = vld [vmem:[%s169 + $0x1cc] sm:$0xff]
      %v248 = vld [vmem:[%s169 + $0x1d4] sm:$0xff]
      %v249 = vld [vmem:[%s169 + $0x1dc] sm:$0xf]
      %v250 = vld [vmem:[%s169 + $0x1e0] sm:$0xff]
      %v251 = vld [vmem:[%s169 + $0x1e8] sm:$0xff]
      %v252 = vld [vmem:[%s169 + $0x1f0] sm:$0xf]
      %v253 = vld [vmem:[%s169 + $0x1f4] sm:$0xff]
      %v254 = vld [vmem:[%s169 + $0x1fc] sm:$0xff]
      %v255 = vld [vmem:[%s169 + $0x204] sm:$0xf]
      %v256 = vld [vmem:[%s169 + $0x208] sm:$0xff]
      %v257 = vld [vmem:[%s169 + $0x210] sm:$0xff]
      %v258 = vld [vmem:[%s169 + $0x218] sm:$0xf]
      %v259 = vld [vmem:[%s169 + $0x21c] sm:$0xff]
      %v260 = vld [vmem:[%s169 + $0x224] sm:$0xff]
      %v261 = vld [vmem:[%s169 + $0x22c] sm:$0xf]
      %v262 = vld [vmem:[%s169 + $0x230] sm:$0xff]
      %v263 = vld [vmem:[%s169 + $0x238] sm:$0xff]
      %v264 = vld [vmem:[%s169 + $0x240] sm:$0xf]
      %v265 = vld [vmem:[%s169 + $0x244] sm:$0xff]
      %v266 = vld [vmem:[%s169 + $0x24c] sm:$0xff]
      %v267 = vld [vmem:[%s169 + $0x254] sm:$0xf]
      %v268 = vld [vmem:[%s169 + $0x258] sm:$0xff]
      %v269 = vld [vmem:[%s169 + $0x260] sm:$0xff]
      %v270 = vld [vmem:[%s169 + $0x268] sm:$0xf]
      %v271 = vld [vmem:[%s169 + $0x26c] sm:$0xff]
      %v272 = vld [vmem:[%s169 + $0x274] sm:$0xff]
      %v273 = vld [vmem:[%s169 + $0x27c] sm:$0xf]
      %v274 = vld [vmem:[%s169 + $0x280] sm:$0xff]
      %v275 = vld [vmem:[%s169 + $0x288] sm:$0xff]
      %v276 = vld [vmem:[%s169 + $0x290] sm:$0xf]
      %v277 = vld [vmem:[%s169 + $0x294] sm:$0xff]
      %v278 = vld [vmem:[%s169 + $0x29c] sm:$0xff]
      %v279 = vld [vmem:[%s169 + $0x2a4] sm:$0xf]
      %v280 = vld [vmem:[%s169 + $0x2a8] sm:$0xff]
      %v281 = vld [vmem:[%s169 + $0x2b0] sm:$0xff]
      %v282 = vld [vmem:[%s169 + $0x2b8] sm:$0xf]
      %v283 = vld [vmem:[%s169 + $0x2bc] sm:$0xff]
      %v284 = vld [vmem:[%s169 + $0x2c4] sm:$0xff]
      %v285 = vld [vmem:[%s169 + $0x2cc] sm:$0xf]
      %v286 = vld [vmem:[%s169 + $0x2d0] sm:$0xff]
      %v287 = vld [vmem:[%s169 + $0x2d8] sm:$0xff]
      %v288 = vld [vmem:[%s169 + $0x2e0] sm:$0xf]
      %v289 = vld [vmem:[%s169 + $0x2e4] sm:$0xff]
      %v290 = vld [vmem:[%s169 + $0x2ec] sm:$0xff]
      %v291 = vld [vmem:[%s169 + $0x2f4] sm:$0xf]
      %v292 = vld [vmem:[%s169 + $0x2f8] sm:$0xff]
      %v293 = vld [vmem:[%s169 + $0x300] sm:$0xff]
      %v294 = vld [vmem:[%s169 + $0x308] sm:$0xf]
      %v295 = vld [vmem:[%s169 + $0x30c] sm:$0xff]
      %v296 = vld [vmem:[%s169 + $0x314] sm:$0xff]
      %v297 = vld [vmem:[%s169 + $0x31c] sm:$0xf]
      %v298 = vld [vmem:[%s169 + $0x320] sm:$0xff]
      %v299 = vld [vmem:[%s169 + $0x328] sm:$0xff]
      %v300 = vld [vmem:[%s169 + $0x330] sm:$0xf]
      %v301 = vld [vmem:[%s169 + $0x334] sm:$0xff]
      %v302 = vld [vmem:[%s169 + $0x33c] sm:$0xff]
      %v303 = vld [vmem:[%s169 + $0x344] sm:$0xf]
      %v304 = vld [vmem:[%s169 + $0x348] sm:$0xff]
      %v305 = vld [vmem:[%s169 + $0x350] sm:$0xff]
      %v306 = vld [vmem:[%s169 + $0x358] sm:$0xf]
      %v307 = vld [vmem:[%s169 + $0x35c] sm:$0xff]
      %v308 = vld [vmem:[%s169 + $0x364] sm:$0xff]
      %v309 = vld [vmem:[%s169 + $0x36c] sm:$0xf]
      %v310 = vld [vmem:[%s169 + $0x370] sm:$0xff]
      %v311 = vld [vmem:[%s169 + $0x378] sm:$0xff]
      %v312 = vld [vmem:[%s169 + $0x380] sm:$0xf]
      %v313 = vld [vmem:[%s169 + $0x384] sm:$0xff]
      %v314 = vld [vmem:[%s169 + $0x38c] sm:$0xff]
      %v315 = vld [vmem:[%s169 + $0x394] sm:$0xf]
      %v316 = vld [vmem:[%s169 + $0x398] sm:$0xff]
      %v317 = vld [vmem:[%s169 + $0x3a0] sm:$0xff]
      %v318 = vld [vmem:[%s169 + $0x3a8] sm:$0xf]
      %v319 = vld [vmem:[%s169 + $0x3ac] sm:$0xff]
      %v320 = vld [vmem:[%s169 + $0x3b4] sm:$0xff]
      %v321 = vld [vmem:[%s169 + $0x3bc] sm:$0xf]
      %v322 = vld [vmem:[%s169 + $0x3c0] sm:$0xff]
      %v323 = vld [vmem:[%s169 + $0x3c8] sm:$0xff]
      %v324 = vld [vmem:[%s169 + $0x3d0] sm:$0xf]
      %v325 = vld [vmem:[%s169 + $0x3d4] sm:$0xff]
      %v326 = vld [vmem:[%s169 + $0x3dc] sm:$0xff]
      %v327 = vld [vmem:[%s169 + $0x3e4] sm:$0xf]
      %v328 = vld [vmem:[%s169 + $0x3e8] sm:$0xff]
      %v329 = vld [vmem:[%s169 + $0x3f0] sm:$0xff]
      %v330 = vld [vmem:[%s169 + $0x3f8] sm:$0xf]
      %v331 = vld [vmem:[%s169 + $0x3fc] sm:$0xff]
      %v332 = vld [vmem:[%s169 + $0x404] sm:$0xff]
      %v333 = vld [vmem:[%s169 + $0x40c] sm:$0xf]
      %v334 = vld [vmem:[%s169 + $0x410] sm:$0xff]
      %v335 = vld [vmem:[%s169 + $0x418] sm:$0xff]
      %v336 = vld [vmem:[%s169 + $0x420] sm:$0xf]
      %v337 = vld [vmem:[%s169 + $0x424] sm:$0xff]
      %v338 = vld [vmem:[%s169 + $0x42c] sm:$0xff]
      %v339 = vld [vmem:[%s169 + $0x434] sm:$0xf]
      %v340 = vld [vmem:[%s169 + $0x438] sm:$0xff]
      %v341 = vld [vmem:[%s169 + $0x440] sm:$0xff]
      %v342 = vld [vmem:[%s169 + $0x448] sm:$0xf]
      %v343 = vld [vmem:[%s169 + $0x44c] sm:$0xff]
      %v344 = vld [vmem:[%s169 + $0x454] sm:$0xff]
      %v345 = vld [vmem:[%s169 + $0x45c] sm:$0xf]
      %v346 = vld [vmem:[%s169 + $0x460] sm:$0xff]
      %v347 = vld [vmem:[%s169 + $0x468] sm:$0xff]
      %v348 = vld [vmem:[%s169 + $0x470] sm:$0xf]
      %v349 = vld [vmem:[%s169 + $0x474] sm:$0xff]
      %v350 = vld [vmem:[%s169 + $0x47c] sm:$0xff]
      %v351 = vld [vmem:[%s169 + $0x484] sm:$0xf]
      %v352 = vld [vmem:[%s169 + $0x488] sm:$0xff]
      %v353 = vld [vmem:[%s169 + $0x490] sm:$0xff]
      %v354 = vld [vmem:[%s169 + $0x498] sm:$0xf]
      %v355 = vld [vmem:[%s169 + $0x49c] sm:$0xff]
      %v356 = vld [vmem:[%s169 + $0x4a4] sm:$0xff]
      %v357 = vld [vmem:[%s169 + $0x4ac] sm:$0xf]
      %v358 = vld [vmem:[%s169 + $0x4b0] sm:$0xff]
      %v359 = vld [vmem:[%s169 + $0x4b8] sm:$0xff]
      %v360 = vld [vmem:[%s169 + $0x4c0] sm:$0xf]
      %v361 = vld [vmem:[%s169 + $0x4c4] sm:$0xff]
      %v362 = vld [vmem:[%s169 + $0x4cc] sm:$0xff]
      %v363 = vld [vmem:[%s169 + $0x4d4] sm:$0xf]
      %v364 = vld [vmem:[%s169 + $0x4d8] sm:$0xff]
      %v365 = vld [vmem:[%s169 + $0x4e0] sm:$0xff]
      %v366 = vld [vmem:[%s169 + $0x4e8] sm:$0xf]
      %v367 = vld [vmem:[%s169 + $0x4ec] sm:$0xff]
      %v368 = vld [vmem:[%s169 + $0x4f4] sm:$0xff]
      %v369 = vld [vmem:[%s169 + $0x4fc] sm:$0xf]
      %v370 = vld [vmem:[%s1] sm:$0xf]
      %v371 = vld [vmem:[%s1 + $0x4] sm:$0xf]
      %v372 = vld [vmem:[%s1 + $0x8] sm:$0xf]
      %v373 = vld [vmem:[%s1 + $0xc] sm:$0xf]
      %v374 = vld [vmem:[%s1 + $0x10] sm:$0xf]
      %v375 = vld [vmem:[%s1 + $0x14] sm:$0xf]
      %v376 = vld [vmem:[%s1 + $0x18] sm:$0xf]
      %v377 = vld [vmem:[%s1 + $0x1c] sm:$0xf]
      %v378 = vld [vmem:[%s1 + $0x20] sm:$0xf]
      %v379 = vld [vmem:[%s1 + $0x24] sm:$0xf]
      %v380 = vld [vmem:[%s1 + $0x28] sm:$0xf]
      %v381 = vld [vmem:[%s1 + $0x2c] sm:$0xf]
      %v382 = vld [vmem:[%s1 + $0x30] sm:$0xf]
      %v383 = vld [vmem:[%s1 + $0x34] sm:$0xf]
      %v384 = vld [vmem:[%s1 + $0x38] sm:$0xf]
      %v385 = vld [vmem:[%s1 + $0x3c] sm:$0xf]
      %v386 = vld [vmem:[%s1 + $0x40] sm:$0xf]
      %v387 = vld [vmem:[%s1 + $0x44] sm:$0xf]
      %v388 = vld [vmem:[%s1 + $0x48] sm:$0xf]
      %v389 = vld [vmem:[%s1 + $0x4c] sm:$0xf]
      %v390 = vld [vmem:[%s1 + $0x50] sm:$0xf]
      %v391 = vld [vmem:[%s1 + $0x54] sm:$0xf]
      %v392 = vld [vmem:[%s1 + $0x58] sm:$0xf]
      %v393 = vld [vmem:[%s1 + $0x5c] sm:$0xf]
      %v394 = vld [vmem:[%s1 + $0x60] sm:$0xf]
      %v395 = vld [vmem:[%s1 + $0x64] sm:$0xf]
      %v396 = vld [vmem:[%s1 + $0x68] sm:$0xf]
      %v397 = vld [vmem:[%s1 + $0x6c] sm:$0xf]
      %v398 = vld [vmem:[%s1 + $0x70] sm:$0xf]
      %v399 = vld [vmem:[%s1 + $0x74] sm:$0xf]
      %v400 = vld [vmem:[%s1 + $0x78] sm:$0xf]
      %v401 = vld [vmem:[%s1 + $0x7c] sm:$0xf]
      %v402 = vld [vmem:[%s1 + $0x80] sm:$0xf]
      %v403 = vld [vmem:[%s1 + $0x84] sm:$0xf]
      %v404 = vld [vmem:[%s1 + $0x88] sm:$0xf]
      %v405 = vld [vmem:[%s1 + $0x8c] sm:$0xf]
      %v406 = vld [vmem:[%s1 + $0x90] sm:$0xf]
      %v407 = vld [vmem:[%s1 + $0x94] sm:$0xf]
      %v408 = vld [vmem:[%s1 + $0x98] sm:$0xf]
      %v409 = vld [vmem:[%s1 + $0x9c] sm:$0xf]
      %v410 = vld [vmem:[%s1 + $0xa0] sm:$0xf]
      %v411 = vld [vmem:[%s1 + $0xa4] sm:$0xf]
      %v412 = vld [vmem:[%s1 + $0xa8] sm:$0xf]
      %v413 = vld [vmem:[%s1 + $0xac] sm:$0xf]
      %v414 = vld [vmem:[%s1 + $0xb0] sm:$0xf]
      %v415 = vld [vmem:[%s1 + $0xb4] sm:$0xf]
      %v416 = vld [vmem:[%s1 + $0xb8] sm:$0xf]
      %v417 = vld [vmem:[%s1 + $0xbc] sm:$0xf]
      %v418 = vld [vmem:[%s1 + $0xc0] sm:$0xf]
      %v419 = vld [vmem:[%s1 + $0xc4] sm:$0xf]
      %v420 = vld [vmem:[%s1 + $0xc8] sm:$0xf]
      %v421 = vld [vmem:[%s1 + $0xcc] sm:$0xf]
      %v422 = vld [vmem:[%s1 + $0xd0] sm:$0xf]
      %v423 = vld [vmem:[%s1 + $0xd4] sm:$0xf]
      %v424 = vld [vmem:[%s1 + $0xd8] sm:$0xf]
      %v425 = vld [vmem:[%s1 + $0xdc] sm:$0xf]
      %v426 = vld [vmem:[%s1 + $0xe0] sm:$0xf]
      %v427 = vld [vmem:[%s1 + $0xe4] sm:$0xf]
      %v428 = vld [vmem:[%s1 + $0xe8] sm:$0xf]
      %v429 = vld [vmem:[%s1 + $0xec] sm:$0xf]
      %v430 = vld [vmem:[%s1 + $0xf0] sm:$0xf]
      %v431 = vld [vmem:[%s1 + $0xf4] sm:$0xf]
      %v432 = vld [vmem:[%s1 + $0xf8] sm:$0xf]
      %v433 = vld [vmem:[%s1 + $0xfc] sm:$0xf]
      %v434 = vld [vmem:[%s1 + $0x100] sm:$0xf]
      %v435 = vld [vmem:[%s1 + $0x104] sm:$0xf]
      %v436 = vld [vmem:[%s1 + $0x108] sm:$0xf]
      %v437 = vld [vmem:[%s1 + $0x10c] sm:$0xf]
      %v438 = vld [vmem:[%s1 + $0x110] sm:$0xf]
      %v439 = vld [vmem:[%s1 + $0x114] sm:$0xf]
      %v440 = vld [vmem:[%s1 + $0x118] sm:$0xf]
      %v441 = vld [vmem:[%s1 + $0x11c] sm:$0xf]
      %v442 = vld [vmem:[%s1 + $0x120] sm:$0xf]
      %v443 = vld [vmem:[%s1 + $0x124] sm:$0xf]
      %v444 = vld [vmem:[%s1 + $0x128] sm:$0xf]
      %v445 = vld [vmem:[%s1 + $0x12c] sm:$0xf]
      %v446 = vld [vmem:[%s1 + $0x130] sm:$0xf]
      %v447 = vld [vmem:[%s1 + $0x134] sm:$0xf]
      %v448 = vld [vmem:[%s1 + $0x138] sm:$0xf]
      %v449 = vld [vmem:[%s1 + $0x13c] sm:$0xf]
      %v450 = vld [vmem:[%s2] sm:$0x1]
      %v452 = vlaneseq
      %v453 = vshrl.u32 %v452, 7
      %v454 = vsub.s32 0, %v453
      %v455 = vrot.slane %v450, %v454
      %v649 = vunpack.c.l.b16 %v178
      %v650 = vunpack.c.h.b16 %v178
      %v651 = vunpack.c.l.b16 %v179
      %v652 = vunpack.c.h.b16 %v179
      %v653 = vunpack.c.l.b16 %v180
      %v654 = vunpack.c.l.b16 %v181
      %v655 = vunpack.c.h.b16 %v181
      %v656 = vunpack.c.l.b16 %v182
      %v657 = vunpack.c.h.b16 %v182
      %v658 = vunpack.c.l.b16 %v183
      %v659 = vunpack.c.l.b16 %v184
      %v660 = vunpack.c.h.b16 %v184
      %v661 = vunpack.c.l.b16 %v185
      %v662 = vunpack.c.h.b16 %v185
      %v663 = vunpack.c.l.b16 %v186
      %v664 = vunpack.c.l.b16 %v187
      %v665 = vunpack.c.h.b16 %v187
      %v666 = vunpack.c.l.b16 %v188
      %v667 = vunpack.c.h.b16 %v188
      %v668 = vunpack.c.l.b16 %v189
      %v669 = vunpack.c.l.b16 %v190
      %v670 = vunpack.c.h.b16 %v190
      %v671 = vunpack.c.l.b16 %v191
      %v672 = vunpack.c.h.b16 %v191
      %v673 = vunpack.c.l.b16 %v192
      %v674 = vunpack.c.l.b16 %v193
      %v675 = vunpack.c.h.b16 %v193
      %v676 = vunpack.c.l.b16 %v194
      %v677 = vunpack.c.h.b16 %v194
      %v678 = vunpack.c.l.b16 %v195
      %v679 = vunpack.c.l.b16 %v196
      %v680 = vunpack.c.h.b16 %v196
      %v681 = vunpack.c.l.b16 %v197
      %v682 = vunpack.c.h.b16 %v197
      %v683 = vunpack.c.l.b16 %v198
      %v684 = vunpack.c.l.b16 %v199
      %v685 = vunpack.c.h.b16 %v199
      %v686 = vunpack.c.l.b16 %v200
      %v687 = vunpack.c.h.b16 %v200
      %v688 = vunpack.c.l.b16 %v201
      %v689 = vunpack.c.l.b16 %v202
      %v690 = vunpack.c.h.b16 %v202
      %v691 = vunpack.c.l.b16 %v203
      %v692 = vunpack.c.h.b16 %v203
      %v693 = vunpack.c.l.b16 %v204
      %v694 = vunpack.c.l.b16 %v205
      %v695 = vunpack.c.h.b16 %v205
      %v696 = vunpack.c.l.b16 %v206
      %v697 = vunpack.c.h.b16 %v206
      %v698 = vunpack.c.l.b16 %v207
      %v699 = vunpack.c.l.b16 %v208
      %v700 = vunpack.c.h.b16 %v208
      %v701 = vunpack.c.l.b16 %v209
      %v702 = vunpack.c.h.b16 %v209
      %v703 = vunpack.c.l.b16 %v210
      %v704 = vunpack.c.l.b16 %v211
      %v705 = vunpack.c.h.b16 %v211
      %v706 = vunpack.c.l.b16 %v212
      %v707 = vunpack.c.h.b16 %v212
      %v708 = vunpack.c.l.b16 %v213
      %v709 = vunpack.c.l.b16 %v214
      %v710 = vunpack.c.h.b16 %v214
      %v711 = vunpack.c.l.b16 %v215
      %v712 = vunpack.c.h.b16 %v215
      %v713 = vunpack.c.l.b16 %v216
      %v714 = vunpack.c.l.b16 %v217
      %v715 = vunpack.c.h.b16 %v217
      %v716 = vunpack.c.l.b16 %v218
      %v717 = vunpack.c.h.b16 %v218
      %v718 = vunpack.c.l.b16 %v219
      %v719 = vunpack.c.l.b16 %v220
      %v720 = vunpack.c.h.b16 %v220
      %v721 = vunpack.c.l.b16 %v221
      %v722 = vunpack.c.h.b16 %v221
      %v723 = vunpack.c.l.b16 %v222
      %v724 = vunpack.c.l.b16 %v223
      %v725 = vunpack.c.h.b16 %v223
      %v726 = vunpack.c.l.b16 %v224
      %v727 = vunpack.c.h.b16 %v224
      %v728 = vunpack.c.l.b16 %v225
      %v729 = vunpack.c.l.b16 %v226
      %v730 = vunpack.c.h.b16 %v226
      %v731 = vunpack.c.l.b16 %v227
      %v732 = vunpack.c.h.b16 %v227
      %v733 = vunpack.c.l.b16 %v228
      %v734 = vunpack.c.l.b16 %v229
      %v735 = vunpack.c.h.b16 %v229
      %v736 = vunpack.c.l.b16 %v230
      %v737 = vunpack.c.h.b16 %v230
      %v738 = vunpack.c.l.b16 %v231
      %v739 = vunpack.c.l.b16 %v232
      %v740 = vunpack.c.h.b16 %v232
      %v741 = vunpack.c.l.b16 %v233
      %v742 = vunpack.c.h.b16 %v233
      %v743 = vunpack.c.l.b16 %v234
      %v744 = vunpack.c.l.b16 %v235
      %v745 = vunpack.c.h.b16 %v235
      %v746 = vunpack.c.l.b16 %v236
      %v747 = vunpack.c.h.b16 %v236
      %v748 = vunpack.c.l.b16 %v237
      %v749 = vunpack.c.l.b16 %v238
      %v750 = vunpack.c.h.b16 %v238
      %v751 = vunpack.c.l.b16 %v239
      %v752 = vunpack.c.h.b16 %v239
      %v753 = vunpack.c.l.b16 %v240
      %v754 = vunpack.c.l.b16 %v241
      %v755 = vunpack.c.h.b16 %v241
      %v756 = vunpack.c.l.b16 %v242
      %v757 = vunpack.c.h.b16 %v242
      %v758 = vunpack.c.l.b16 %v243
      %v759 = vunpack.c.l.b16 %v244
      %v760 = vunpack.c.h.b16 %v244
      %v761 = vunpack.c.l.b16 %v245
      %v762 = vunpack.c.h.b16 %v245
      %v763 = vunpack.c.l.b16 %v246
      %v764 = vunpack.c.l.b16 %v247
      %v765 = vunpack.c.h.b16 %v247
      %v766 = vunpack.c.l.b16 %v248
      %v767 = vunpack.c.h.b16 %v248
      %v768 = vunpack.c.l.b16 %v249
      %v769 = vunpack.c.l.b16 %v250
      %v770 = vunpack.c.h.b16 %v250
      %v771 = vunpack.c.l.b16 %v251
      %v772 = vunpack.c.h.b16 %v251
      %v773 = vunpack.c.l.b16 %v252
      %v774 = vunpack.c.l.b16 %v253
      %v775 = vunpack.c.h.b16 %v253
      %v776 = vunpack.c.l.b16 %v254
      %v777 = vunpack.c.h.b16 %v254
      %v778 = vunpack.c.l.b16 %v255
      %v779 = vunpack.c.l.b16 %v256
      %v780 = vunpack.c.h.b16 %v256
      %v781 = vunpack.c.l.b16 %v257
      %v782 = vunpack.c.h.b16 %v257
      %v783 = vunpack.c.l.b16 %v258
      %v784 = vunpack.c.l.b16 %v259
      %v785 = vunpack.c.h.b16 %v259
      %v786 = vunpack.c.l.b16 %v260
      %v787 = vunpack.c.h.b16 %v260
      %v788 = vunpack.c.l.b16 %v261
      %v789 = vunpack.c.l.b16 %v262
      %v790 = vunpack.c.h.b16 %v262
      %v791 = vunpack.c.l.b16 %v263
      %v792 = vunpack.c.h.b16 %v263
      %v793 = vunpack.c.l.b16 %v264
      %v794 = vunpack.c.l.b16 %v265
      %v795 = vunpack.c.h.b16 %v265
      %v796 = vunpack.c.l.b16 %v266
      %v797 = vunpack.c.h.b16 %v266
      %v798 = vunpack.c.l.b16 %v267
      %v799 = vunpack.c.l.b16 %v268
      %v800 = vunpack.c.h.b16 %v268
      %v801 = vunpack.c.l.b16 %v269
      %v802 = vunpack.c.h.b16 %v269
      %v803 = vunpack.c.l.b16 %v270
      %v804 = vunpack.c.l.b16 %v271
      %v805 = vunpack.c.h.b16 %v271
      %v806 = vunpack.c.l.b16 %v272
      %v807 = vunpack.c.h.b16 %v272
      %v808 = vunpack.c.l.b16 %v273
      %v809 = vunpack.c.l.b16 %v274
      %v810 = vunpack.c.h.b16 %v274
      %v811 = vunpack.c.l.b16 %v275
      %v812 = vunpack.c.h.b16 %v275
      %v813 = vunpack.c.l.b16 %v276
      %v814 = vunpack.c.l.b16 %v277
      %v815 = vunpack.c.h.b16 %v277
      %v816 = vunpack.c.l.b16 %v278
      %v817 = vunpack.c.h.b16 %v278
      %v818 = vunpack.c.l.b16 %v279
      %v819 = vunpack.c.l.b16 %v280
      %v820 = vunpack.c.h.b16 %v280
      %v821 = vunpack.c.l.b16 %v281
      %v822 = vunpack.c.h.b16 %v281
      %v823 = vunpack.c.l.b16 %v282
      %v824 = vunpack.c.l.b16 %v283
      %v825 = vunpack.c.h.b16 %v283
      %v826 = vunpack.c.l.b16 %v284
      %v827 = vunpack.c.h.b16 %v284
      %v828 = vunpack.c.l.b16 %v285
      %v829 = vunpack.c.l.b16 %v286
      %v830 = vunpack.c.h.b16 %v286
      %v831 = vunpack.c.l.b16 %v287
      %v832 = vunpack.c.h.b16 %v287
      %v833 = vunpack.c.l.b16 %v288
      %v834 = vunpack.c.l.b16 %v289
      %v835 = vunpack.c.h.b16 %v289
      %v836 = vunpack.c.l.b16 %v290
      %v837 = vunpack.c.h.b16 %v290
      %v838 = vunpack.c.l.b16 %v291
      %v839 = vunpack.c.l.b16 %v292
      %v840 = vunpack.c.h.b16 %v292
      %v841 = vunpack.c.l.b16 %v293
      %v842 = vunpack.c.h.b16 %v293
      %v843 = vunpack.c.l.b16 %v294
      %v844 = vunpack.c.l.b16 %v295
      %v845 = vunpack.c.h.b16 %v295
      %v846 = vunpack.c.l.b16 %v296
      %v847 = vunpack.c.h.b16 %v296
      %v848 = vunpack.c.l.b16 %v297
      %v849 = vunpack.c.l.b16 %v298
      %v850 = vunpack.c.h.b16 %v298
      %v851 = vunpack.c.l.b16 %v299
      %v852 = vunpack.c.h.b16 %v299
      %v853 = vunpack.c.l.b16 %v300
      %v854 = vunpack.c.l.b16 %v301
      %v855 = vunpack.c.h.b16 %v301
      %v856 = vunpack.c.l.b16 %v302
      %v857 = vunpack.c.h.b16 %v302
      %v858 = vunpack.c.l.b16 %v303
      %v859 = vunpack.c.l.b16 %v304
      %v860 = vunpack.c.h.b16 %v304
      %v861 = vunpack.c.l.b16 %v305
      %v862 = vunpack.c.h.b16 %v305
      %v863 = vunpack.c.l.b16 %v306
      %v864 = vunpack.c.l.b16 %v307
      %v865 = vunpack.c.h.b16 %v307
      %v866 = vunpack.c.l.b16 %v308
      %v867 = vunpack.c.h.b16 %v308
      %v868 = vunpack.c.l.b16 %v309
      %v869 = vunpack.c.l.b16 %v310
      %v870 = vunpack.c.h.b16 %v310
      %v871 = vunpack.c.l.b16 %v311
      %v872 = vunpack.c.h.b16 %v311
      %v873 = vunpack.c.l.b16 %v312
      %v874 = vunpack.c.l.b16 %v313
      %v875 = vunpack.c.h.b16 %v313
      %v876 = vunpack.c.l.b16 %v314
      %v877 = vunpack.c.h.b16 %v314
      %v878 = vunpack.c.l.b16 %v315
      %v879 = vunpack.c.l.b16 %v316
      %v880 = vunpack.c.h.b16 %v316
      %v881 = vunpack.c.l.b16 %v317
      %v882 = vunpack.c.h.b16 %v317
      %v883 = vunpack.c.l.b16 %v318
      %v884 = vunpack.c.l.b16 %v319
      %v885 = vunpack.c.h.b16 %v319
      %v886 = vunpack.c.l.b16 %v320
      %v887 = vunpack.c.h.b16 %v320
      %v888 = vunpack.c.l.b16 %v321
      %v889 = vunpack.c.l.b16 %v322
      %v890 = vunpack.c.h.b16 %v322
      %v891 = vunpack.c.l.b16 %v323
      %v892 = vunpack.c.h.b16 %v323
      %v893 = vunpack.c.l.b16 %v324
      %v894 = vunpack.c.l.b16 %v325
      %v895 = vunpack.c.h.b16 %v325
      %v896 = vunpack.c.l.b16 %v326
      %v897 = vunpack.c.h.b16 %v326
      %v898 = vunpack.c.l.b16 %v327
      %v899 = vunpack.c.l.b16 %v328
      %v900 = vunpack.c.h.b16 %v328
      %v901 = vunpack.c.l.b16 %v329
      %v902 = vunpack.c.h.b16 %v329
      %v903 = vunpack.c.l.b16 %v330
      %v904 = vunpack.c.l.b16 %v331
      %v905 = vunpack.c.h.b16 %v331
      %v906 = vunpack.c.l.b16 %v332
      %v907 = vunpack.c.h.b16 %v332
      %v908 = vunpack.c.l.b16 %v333
      %v909 = vunpack.c.l.b16 %v334
      %v910 = vunpack.c.h.b16 %v334
      %v911 = vunpack.c.l.b16 %v335
      %v912 = vunpack.c.h.b16 %v335
      %v913 = vunpack.c.l.b16 %v336
      %v914 = vunpack.c.l.b16 %v337
      %v915 = vunpack.c.h.b16 %v337
      %v916 = vunpack.c.l.b16 %v338
      %v917 = vunpack.c.h.b16 %v338
      %v918 = vunpack.c.l.b16 %v339
      %v919 = vunpack.c.l.b16 %v340
      %v920 = vunpack.c.h.b16 %v340
      %v921 = vunpack.c.l.b16 %v341
      %v922 = vunpack.c.h.b16 %v341
      %v923 = vunpack.c.l.b16 %v342
      %v924 = vunpack.c.l.b16 %v343
      %v925 = vunpack.c.h.b16 %v343
      %v926 = vunpack.c.l.b16 %v344
      %v927 = vunpack.c.h.b16 %v344
      %v928 = vunpack.c.l.b16 %v345
      %v929 = vunpack.c.l.b16 %v346
      %v930 = vunpack.c.h.b16 %v346
      %v931 = vunpack.c.l.b16 %v347
      %v932 = vunpack.c.h.b16 %v347
      %v933 = vunpack.c.l.b16 %v348
      %v934 = vunpack.c.l.b16 %v349
      %v935 = vunpack.c.h.b16 %v349
      %v936 = vunpack.c.l.b16 %v350
      %v937 = vunpack.c.h.b16 %v350
      %v938 = vunpack.c.l.b16 %v351
      %v939 = vunpack.c.l.b16 %v352
      %v940 = vunpack.c.h.b16 %v352
      %v941 = vunpack.c.l.b16 %v353
      %v942 = vunpack.c.h.b16 %v353
      %v943 = vunpack.c.l.b16 %v354
      %v944 = vunpack.c.l.b16 %v355
      %v945 = vunpack.c.h.b16 %v355
      %v946 = vunpack.c.l.b16 %v356
      %v947 = vunpack.c.h.b16 %v356
      %v948 = vunpack.c.l.b16 %v357
      %v949 = vunpack.c.l.b16 %v358
      %v950 = vunpack.c.h.b16 %v358
      %v951 = vunpack.c.l.b16 %v359
      %v952 = vunpack.c.h.b16 %v359
      %v953 = vunpack.c.l.b16 %v360
      %v954 = vunpack.c.l.b16 %v361
      %v955 = vunpack.c.h.b16 %v361
      %v956 = vunpack.c.l.b16 %v362
      %v957 = vunpack.c.h.b16 %v362
      %v958 = vunpack.c.l.b16 %v363
      %v959 = vunpack.c.l.b16 %v364
      %v960 = vunpack.c.h.b16 %v364
      %v961 = vunpack.c.l.b16 %v365
      %v962 = vunpack.c.h.b16 %v365
      %v963 = vunpack.c.l.b16 %v366
      %v964 = vunpack.c.l.b16 %v367
      %v965 = vunpack.c.h.b16 %v367
      %v966 = vunpack.c.l.b16 %v368
      %v967 = vunpack.c.h.b16 %v368
      %v968 = vunpack.c.l.b16 %v369
      %v969 = vpack.c.b16 %v654, %v649
      %v970 = vpack.c.b16 %v655, %v650
      %v971 = vpack.c.b16 %v656, %v651
      %v972 = vpack.c.b16 %v657, %v652
      %v973 = vpack.c.b16 %v658, %v653
      %v974 = vpack.c.b16 %v664, %v659
      %v975 = vpack.c.b16 %v665, %v660
      %v976 = vpack.c.b16 %v666, %v661
      %v977 = vpack.c.b16 %v667, %v662
      %v978 = vpack.c.b16 %v668, %v663
      %v979 = vpack.c.b16 %v674, %v669
      %v980 = vpack.c.b16 %v675, %v670
      %v981 = vpack.c.b16 %v676, %v671
      %v982 = vpack.c.b16 %v677, %v672
      %v983 = vpack.c.b16 %v678, %v673
      %v984 = vpack.c.b16 %v684, %v679
      %v985 = vpack.c.b16 %v685, %v680
      %v986 = vpack.c.b16 %v686, %v681
      %v987 = vpack.c.b16 %v687, %v682
      %v988 = vpack.c.b16 %v688, %v683
      %v989 = vpack.c.b16 %v694, %v689
      %v990 = vpack.c.b16 %v695, %v690
      %v991 = vpack.c.b16 %v696, %v691
      %v992 = vpack.c.b16 %v697, %v692
      %v993 = vpack.c.b16 %v698, %v693
      %v994 = vpack.c.b16 %v704, %v699
      %v995 = vpack.c.b16 %v705, %v700
      %v996 = vpack.c.b16 %v706, %v701
      %v997 = vpack.c.b16 %v707, %v702
      %v998 = vpack.c.b16 %v708, %v703
      %v999 = vpack.c.b16 %v714, %v709
      %v1000 = vpack.c.b16 %v715, %v710
      %v1001 = vpack.c.b16 %v716, %v711
      %v1002 = vpack.c.b16 %v717, %v712
      %v1003 = vpack.c.b16 %v718, %v713
      %v1004 = vpack.c.b16 %v724, %v719
      %v1005 = vpack.c.b16 %v725, %v720
      %v1006 = vpack.c.b16 %v726, %v721
      %v1007 = vpack.c.b16 %v727, %v722
      %v1008 = vpack.c.b16 %v728, %v723
      %v1009 = vpack.c.b16 %v734, %v729
      %v1010 = vpack.c.b16 %v735, %v730
      %v1011 = vpack.c.b16 %v736, %v731
      %v1012 = vpack.c.b16 %v737, %v732
      %v1013 = vpack.c.b16 %v738, %v733
      %v1014 = vpack.c.b16 %v744, %v739
      %v1015 = vpack.c.b16 %v745, %v740
      %v1016 = vpack.c.b16 %v746, %v741
      %v1017 = vpack.c.b16 %v747, %v742
      %v1018 = vpack.c.b16 %v748, %v743
      %v1019 = vpack.c.b16 %v754, %v749
      %v1020 = vpack.c.b16 %v755, %v750
      %v1021 = vpack.c.b16 %v756, %v751
      %v1022 = vpack.c.b16 %v757, %v752
      %v1023 = vpack.c.b16 %v758, %v753
      %v1024 = vpack.c.b16 %v764, %v759
      %v1025 = vpack.c.b16 %v765, %v760
      %v1026 = vpack.c.b16 %v766, %v761
      %v1027 = vpack.c.b16 %v767, %v762
      %v1028 = vpack.c.b16 %v768, %v763
      %v1029 = vpack.c.b16 %v774, %v769
      %v1030 = vpack.c.b16 %v775, %v770
      %v1031 = vpack.c.b16 %v776, %v771
      %v1032 = vpack.c.b16 %v777, %v772
      %v1033 = vpack.c.b16 %v778, %v773
      %v1034 = vpack.c.b16 %v784, %v779
      %v1035 = vpack.c.b16 %v785, %v780
      %v1036 = vpack.c.b16 %v786, %v781
      %v1037 = vpack.c.b16 %v787, %v782
      %v1038 = vpack.c.b16 %v788, %v783
      %v1039 = vpack.c.b16 %v794, %v789
      %v1040 = vpack.c.b16 %v795, %v790
      %v1041 = vpack.c.b16 %v796, %v791
      %v1042 = vpack.c.b16 %v797, %v792
      %v1043 = vpack.c.b16 %v798, %v793
      %v1044 = vpack.c.b16 %v804, %v799
      %v1045 = vpack.c.b16 %v805, %v800
      %v1046 = vpack.c.b16 %v806, %v801
      %v1047 = vpack.c.b16 %v807, %v802
      %v1048 = vpack.c.b16 %v808, %v803
      %v1049 = vpack.c.b16 %v814, %v809
      %v1050 = vpack.c.b16 %v815, %v810
      %v1051 = vpack.c.b16 %v816, %v811
      %v1052 = vpack.c.b16 %v817, %v812
      %v1053 = vpack.c.b16 %v818, %v813
      %v1054 = vpack.c.b16 %v824, %v819
      %v1055 = vpack.c.b16 %v825, %v820
      %v1056 = vpack.c.b16 %v826, %v821
      %v1057 = vpack.c.b16 %v827, %v822
      %v1058 = vpack.c.b16 %v828, %v823
      %v1059 = vpack.c.b16 %v834, %v829
      %v1060 = vpack.c.b16 %v835, %v830
      %v1061 = vpack.c.b16 %v836, %v831
      %v1062 = vpack.c.b16 %v837, %v832
      %v1063 = vpack.c.b16 %v838, %v833
      %v1064 = vpack.c.b16 %v844, %v839
      %v1065 = vpack.c.b16 %v845, %v840
      %v1066 = vpack.c.b16 %v846, %v841
      %v1067 = vpack.c.b16 %v847, %v842
      %v1068 = vpack.c.b16 %v848, %v843
      %v1069 = vpack.c.b16 %v854, %v849
      %v1070 = vpack.c.b16 %v855, %v850
      %v1071 = vpack.c.b16 %v856, %v851
      %v1072 = vpack.c.b16 %v857, %v852
      %v1073 = vpack.c.b16 %v858, %v853
      %v1074 = vpack.c.b16 %v864, %v859
      %v1075 = vpack.c.b16 %v865, %v860
      %v1076 = vpack.c.b16 %v866, %v861
      %v1077 = vpack.c.b16 %v867, %v862
      %v1078 = vpack.c.b16 %v868, %v863
      %v1079 = vpack.c.b16 %v874, %v869
      %v1080 = vpack.c.b16 %v875, %v870
      %v1081 = vpack.c.b16 %v876, %v871
      %v1082 = vpack.c.b16 %v877, %v872
      %v1083 = vpack.c.b16 %v878, %v873
      %v1084 = vpack.c.b16 %v884, %v879
      %v1085 = vpack.c.b16 %v885, %v880
      %v1086 = vpack.c.b16 %v886, %v881
      %v1087 = vpack.c.b16 %v887, %v882
      %v1088 = vpack.c.b16 %v888, %v883
      %v1089 = vpack.c.b16 %v894, %v889
      %v1090 = vpack.c.b16 %v895, %v890
      %v1091 = vpack.c.b16 %v896, %v891
      %v1092 = vpack.c.b16 %v897, %v892
      %v1093 = vpack.c.b16 %v898, %v893
      %v1094 = vpack.c.b16 %v904, %v899
      %v1095 = vpack.c.b16 %v905, %v900
      %v1096 = vpack.c.b16 %v906, %v901
      %v1097 = vpack.c.b16 %v907, %v902
      %v1098 = vpack.c.b16 %v908, %v903
      %v1099 = vpack.c.b16 %v914, %v909
      %v1100 = vpack.c.b16 %v915, %v910
      %v1101 = vpack.c.b16 %v916, %v911
      %v1102 = vpack.c.b16 %v917, %v912
      %v1103 = vpack.c.b16 %v918, %v913
      %v1104 = vpack.c.b16 %v924, %v919
      %v1105 = vpack.c.b16 %v925, %v920
      %v1106 = vpack.c.b16 %v926, %v921
      %v1107 = vpack.c.b16 %v927, %v922
      %v1108 = vpack.c.b16 %v928, %v923
      %v1109 = vpack.c.b16 %v934, %v929
      %v1110 = vpack.c.b16 %v935, %v930
      %v1111 = vpack.c.b16 %v936, %v931
      %v1112 = vpack.c.b16 %v937, %v932
      %v1113 = vpack.c.b16 %v938, %v933
      %v1114 = vpack.c.b16 %v944, %v939
      %v1115 = vpack.c.b16 %v945, %v940
      %v1116 = vpack.c.b16 %v946, %v941
      %v1117 = vpack.c.b16 %v947, %v942
      %v1118 = vpack.c.b16 %v948, %v943
      %v1119 = vpack.c.b16 %v954, %v949
      %v1120 = vpack.c.b16 %v955, %v950
      %v1121 = vpack.c.b16 %v956, %v951
      %v1122 = vpack.c.b16 %v957, %v952
      %v1123 = vpack.c.b16 %v958, %v953
      %v1124 = vpack.c.b16 %v964, %v959
      %v1125 = vpack.c.b16 %v965, %v960
      %v1126 = vpack.c.b16 %v966, %v961
      %v1127 = vpack.c.b16 %v967, %v962
      %v1128 = vpack.c.b16 %v968, %v963
      %v1369 = vunpack.c.l.b16 %v370
      %v1370 = vunpack.c.l.b16 %v371
      %v1371 = vunpack.c.l.b16 %v372
      %v1372 = vunpack.c.l.b16 %v373
      %v1373 = vunpack.c.l.b16 %v374
      %v1374 = vunpack.c.l.b16 %v375
      %v1375 = vunpack.c.l.b16 %v376
      %v1376 = vunpack.c.l.b16 %v377
      %v1377 = vunpack.c.l.b16 %v378
      %v1378 = vunpack.c.l.b16 %v379
      %v1379 = vunpack.c.l.b16 %v380
      %v1380 = vunpack.c.l.b16 %v381
      %v1381 = vunpack.c.l.b16 %v382
      %v1382 = vunpack.c.l.b16 %v383
      %v1383 = vunpack.c.l.b16 %v384
      %v1384 = vunpack.c.l.b16 %v385
      %v1385 = vunpack.c.l.b16 %v386
      %v1386 = vunpack.c.l.b16 %v387
      %v1387 = vunpack.c.l.b16 %v388
      %v1388 = vunpack.c.l.b16 %v389
      %v1389 = vunpack.c.l.b16 %v390
      %v1390 = vunpack.c.l.b16 %v391
      %v1391 = vunpack.c.l.b16 %v392
      %v1392 = vunpack.c.l.b16 %v393
      %v1393 = vunpack.c.l.b16 %v394
      %v1394 = vunpack.c.l.b16 %v395
      %v1395 = vunpack.c.l.b16 %v396
      %v1396 = vunpack.c.l.b16 %v397
      %v1397 = vunpack.c.l.b16 %v398
      %v1398 = vunpack.c.l.b16 %v399
      %v1399 = vunpack.c.l.b16 %v400
      %v1400 = vunpack.c.l.b16 %v401
      %v1401 = vunpack.c.l.b16 %v402
      %v1402 = vunpack.c.l.b16 %v403
      %v1403 = vunpack.c.l.b16 %v404
      %v1404 = vunpack.c.l.b16 %v405
      %v1405 = vunpack.c.l.b16 %v406
      %v1406 = vunpack.c.l.b16 %v407
      %v1407 = vunpack.c.l.b16 %v408
      %v1408 = vunpack.c.l.b16 %v409
      %v1409 = vunpack.c.l.b16 %v410
      %v1410 = vunpack.c.l.b16 %v411
      %v1411 = vunpack.c.l.b16 %v412
      %v1412 = vunpack.c.l.b16 %v413
      %v1413 = vunpack.c.l.b16 %v414
      %v1414 = vunpack.c.l.b16 %v415
      %v1415 = vunpack.c.l.b16 %v416
      %v1416 = vunpack.c.l.b16 %v417
      %v1417 = vunpack.c.l.b16 %v418
      %v1418 = vunpack.c.l.b16 %v419
      %v1419 = vunpack.c.l.b16 %v420
      %v1420 = vunpack.c.l.b16 %v421
      %v1421 = vunpack.c.l.b16 %v422
      %v1422 = vunpack.c.l.b16 %v423
      %v1423 = vunpack.c.l.b16 %v424
      %v1424 = vunpack.c.l.b16 %v425
      %v1425 = vunpack.c.l.b16 %v426
      %v1426 = vunpack.c.l.b16 %v427
      %v1427 = vunpack.c.l.b16 %v428
      %v1428 = vunpack.c.l.b16 %v429
      %v1429 = vunpack.c.l.b16 %v430
      %v1430 = vunpack.c.l.b16 %v431
      %v1431 = vunpack.c.l.b16 %v432
      %v1432 = vunpack.c.l.b16 %v433
      %v1433 = vunpack.c.l.b16 %v434
      %v1434 = vunpack.c.l.b16 %v435
      %v1435 = vunpack.c.l.b16 %v436
      %v1436 = vunpack.c.l.b16 %v437
      %v1437 = vunpack.c.l.b16 %v438
      %v1438 = vunpack.c.l.b16 %v439
      %v1439 = vunpack.c.l.b16 %v440
      %v1440 = vunpack.c.l.b16 %v441
      %v1441 = vunpack.c.l.b16 %v442
      %v1442 = vunpack.c.l.b16 %v443
      %v1443 = vunpack.c.l.b16 %v444
      %v1444 = vunpack.c.l.b16 %v445
      %v1445 = vunpack.c.l.b16 %v446
      %v1446 = vunpack.c.l.b16 %v447
      %v1447 = vunpack.c.l.b16 %v448
      %v1448 = vunpack.c.l.b16 %v449
      %v1449 = vpack.c.b16 %v1370, %v1369
      %v1450 = vpack.c.b16 %v1372, %v1371
      %v1451 = vpack.c.b16 %v1374, %v1373
      %v1452 = vpack.c.b16 %v1376, %v1375
      %v1453 = vpack.c.b16 %v1378, %v1377
      %v1454 = vpack.c.b16 %v1380, %v1379
      %v1455 = vpack.c.b16 %v1382, %v1381
      %v1456 = vpack.c.b16 %v1384, %v1383
      %v1457 = vpack.c.b16 %v1386, %v1385
      %v1458 = vpack.c.b16 %v1388, %v1387
      %v1459 = vpack.c.b16 %v1390, %v1389
      %v1460 = vpack.c.b16 %v1392, %v1391
      %v1461 = vpack.c.b16 %v1394, %v1393
      %v1462 = vpack.c.b16 %v1396, %v1395
      %v1463 = vpack.c.b16 %v1398, %v1397
      %v1464 = vpack.c.b16 %v1400, %v1399
      %v1465 = vpack.c.b16 %v1402, %v1401
      %v1466 = vpack.c.b16 %v1404, %v1403
      %v1467 = vpack.c.b16 %v1406, %v1405
      %v1468 = vpack.c.b16 %v1408, %v1407
      %v1469 = vpack.c.b16 %v1410, %v1409
      %v1470 = vpack.c.b16 %v1412, %v1411
      %v1471 = vpack.c.b16 %v1414, %v1413
      %v1472 = vpack.c.b16 %v1416, %v1415
      %v1473 = vpack.c.b16 %v1418, %v1417
      %v1474 = vpack.c.b16 %v1420, %v1419
      %v1475 = vpack.c.b16 %v1422, %v1421
      %v1476 = vpack.c.b16 %v1424, %v1423
      %v1477 = vpack.c.b16 %v1426, %v1425
      %v1478 = vpack.c.b16 %v1428, %v1427
      %v1479 = vpack.c.b16 %v1430, %v1429
      %v1480 = vpack.c.b16 %v1432, %v1431
      %v1481 = vpack.c.b16 %v1434, %v1433
      %v1482 = vpack.c.b16 %v1436, %v1435
      %v1483 = vpack.c.b16 %v1438, %v1437
      %v1484 = vpack.c.b16 %v1440, %v1439
      %v1485 = vpack.c.b16 %v1442, %v1441
      %v1486 = vpack.c.b16 %v1444, %v1443
      %v1487 = vpack.c.b16 %v1446, %v1445
      %v1488 = vpack.c.b16 %v1448, %v1447
      %1529 = vmatprep.subr.bf16.mxu0 0
      %1530 = vmatpush1.bf16.msra.mxu0 %v1449
      %1531 = vmatprep.subr.bf16.mxu0 0
      %1532 = vmatpush1.bf16.msra.mxu0 %v1450
      %1533 = vmatprep.subr.bf16.mxu0 0
      %1534 = vmatpush1.bf16.msra.mxu0 %v1451
      %1535 = vmatprep.subr.bf16.mxu0 0
      %1536 = vmatpush1.bf16.msra.mxu0 %v1452
      %1537 = vmatprep.subr.bf16.mxu0 0
      %1538 = vmatpush1.bf16.msra.mxu0 %v1453
      %1539 = vmatprep.subr.bf16.mxu0 0
      %1540 = vmatpush1.bf16.msra.mxu0 %v1454
      %1541 = vmatprep.subr.bf16.mxu0 0
      %1542 = vmatpush1.bf16.msra.mxu0 %v1455
      %1543 = vmatprep.subr.bf16.mxu0 0
      %1544 = vmatpush1.bf16.msra.mxu0 %v1456
      %1545 = vmatprep.subr.bf16.mxu0 0
      %1546 = vmatpush1.bf16.msra.mxu0 %v1457
      %1547 = vmatprep.subr.bf16.mxu0 0
      %1548 = vmatpush1.bf16.msra.mxu0 %v1458
      %1549 = vmatprep.subr.bf16.mxu0 0
      %1550 = vmatpush1.bf16.msra.mxu0 %v1459
      %1551 = vmatprep.subr.bf16.mxu0 0
      %1552 = vmatpush1.bf16.msra.mxu0 %v1460
      %1553 = vmatprep.subr.bf16.mxu0 0
      %1554 = vmatpush1.bf16.msra.mxu0 %v1461
      %1555 = vmatprep.subr.bf16.mxu0 0
      %1556 = vmatpush1.bf16.msra.mxu0 %v1462
      %1557 = vmatprep.subr.bf16.mxu0 0
      %1558 = vmatpush1.bf16.msra.mxu0 %v1463
      %1559 = vmatprep.subr.bf16.mxu0 0
      %1560 = vmatpush1.bf16.msra.mxu0 %v1464
      %1561 = vmatprep.mubr.bf16.mxu0 %v970
      %1562 = vmatmul.mubr.bf16.gmra.mrb[0].mxu0 %v969
      %v1563 = vpop.f32.mrb[0].mxu0
      %v1564 = vadd.f32 %v455, %v1563
      %v1565 = vpop.f32.mrb[0].mxu0
      %v1566 = vpop.f32.mrb[0].mxu0
      %v1567 = vadd.f32 %v455, %v1566
      %v1568 = vpop.f32.mrb[0].mxu0
      %1569 = vmatprep.mubr.bf16.mxu0 %v975
      %1570 = vmatmul.mubr.bf16.gmra.mrb[0].mxu0 %v974
      %v1571 = vpop.f32.mrb[0].mxu0
      %v1572 = vadd.f32 %v455, %v1571
      %v1573 = vpop.f32.mrb[0].mxu0
      %v1574 = vpop.f32.mrb[0].mxu0
      %v1575 = vadd.f32 %v455, %v1574
      %v1576 = vpop.f32.mrb[0].mxu0
      %1577 = vmatprep.mubr.bf16.mxu0 %v980
      %1578 = vmatmul.mubr.bf16.gmra.mrb[0].mxu0 %v979
      %v1579 = vpop.f32.mrb[0].mxu0
      %v1580 = vadd.f32 %v455, %v1579
      %v1581 = vpop.f32.mrb[0].mxu0
      %v1582 = vpop.f32.mrb[0].mxu0
      %v1583 = vadd.f32 %v455, %v1582
      %v1584 = vpop.f32.mrb[0].mxu0
      %1585 = vmatprep.mubr.bf16.mxu0 %v985
      %1586 = vmatmul.mubr.bf16.gmra.mrb[0].mxu0 %v984
      %v1587 = vpop.f32.mrb[0].mxu0
      %v1588 = vadd.f32 %v455, %v1587
      %v1589 = vpop.f32.mrb[0].mxu0
      %v1590 = vpop.f32.mrb[0].mxu0
      %v1591 = vadd.f32 %v455, %v1590
      %v1592 = vpop.f32.mrb[0].mxu0
      %1593 = vmatprep.mubr.bf16.mxu0 %v990
      %1594 = vmatmul.mubr.bf16.gmra.mrb[0].mxu0 %v989
      %v1595 = vpop.f32.mrb[0].mxu0
      %v1596 = vadd.f32 %v455, %v1595
      %v1597 = vpop.f32.mrb[0].mxu0
      %v1598 = vpop.f32.mrb[0].mxu0
      %v1599 = vadd.f32 %v455, %v1598
      %v1600 = vpop.f32.mrb[0].mxu0
      %1601 = vmatprep.mubr.bf16.mxu0 %v995
      %1602 = vmatmul.mubr.bf16.gmra.mrb[0].mxu0 %v994
      %v1603 = vpop.f32.mrb[0].mxu0
      %v1604 = vadd.f32 %v455, %v1603
      %v1605 = vpop.f32.mrb[0].mxu0
      %v1606 = vpop.f32.mrb[0].mxu0
      %v1607 = vadd.f32 %v455, %v1606
      %v1608 = vpop.f32.mrb[0].mxu0
      %1609 = vmatprep.mubr.bf16.mxu0 %v1000
      %1610 = vmatmul.mubr.bf16.gmra.mrb[0].mxu0 %v999
      %v1611 = vpop.f32.mrb[0].mxu0
      %v1612 = vadd.f32 %v455, %v1611
      %v1613 = vpop.f32.mrb[0].mxu0
      %v1614 = vpop.f32.mrb[0].mxu0
      %v1615 = vadd.f32 %v455, %v1614
      %v1616 = vpop.f32.mrb[0].mxu0
      %1617 = vmatprep.mubr.bf16.mxu0 %v1005
      %1618 = vmatmul.mubr.bf16.gmra.mrb[0].mxu0 %v1004
      %v1619 = vpop.f32.mrb[0].mxu0
      %v1620 = vadd.f32 %v455, %v1619
      %v1621 = vpop.f32.mrb[0].mxu0
      %v1622 = vpop.f32.mrb[0].mxu0
      %v1623 = vadd.f32 %v455, %v1622
      %v1624 = vpop.f32.mrb[0].mxu0
      %1625 = vmatprep.mubr.bf16.mxu0 %v1010
      %1626 = vmatmul.mubr.bf16.gmra.mrb[0].mxu0 %v1009
      %v1627 = vpop.f32.mrb[0].mxu0
      %v1628 = vadd.f32 %v455, %v1627
      %v1629 = vpop.f32.mrb[0].mxu0
      %v1630 = vpop.f32.mrb[0].mxu0
      %v1631 = vadd.f32 %v455, %v1630
      %v1632 = vpop.f32.mrb[0].mxu0
      %1633 = vmatprep.mubr.bf16.mxu0 %v1015
      %1634 = vmatmul.mubr.bf16.gmra.mrb[0].mxu0 %v1014
      %v1635 = vpop.f32.mrb[0].mxu0
      %v1636 = vadd.f32 %v455, %v1635
      %v1637 = vpop.f32.mrb[0].mxu0
      %v1638 = vpop.f32.mrb[0].mxu0
      %v1639 = vadd.f32 %v455, %v1638
      %v1640 = vpop.f32.mrb[0].mxu0
      %1641 = vmatprep.mubr.bf16.mxu0 %v1020
      %1642 = vmatmul.mubr.bf16.gmra.mrb[0].mxu0 %v1019
      %v1643 = vpop.f32.mrb[0].mxu0
      %v1644 = vadd.f32 %v455, %v1643
      %v1645 = vpop.f32.mrb[0].mxu0
      %v1646 = vpop.f32.mrb[0].mxu0
      %v1647 = vadd.f32 %v455, %v1646
      %v1648 = vpop.f32.mrb[0].mxu0
      %1649 = vmatprep.mubr.bf16.mxu0 %v1025
      %1650 = vmatmul.mubr.bf16.gmra.mrb[0].mxu0 %v1024
      %v1651 = vpop.f32.mrb[0].mxu0
      %v1652 = vadd.f32 %v455, %v1651
      %v1653 = vpop.f32.mrb[0].mxu0
      %v1654 = vpop.f32.mrb[0].mxu0
      %v1655 = vadd.f32 %v455, %v1654
      %v1656 = vpop.f32.mrb[0].mxu0
      %1657 = vmatprep.mubr.bf16.mxu0 %v1030
      %1658 = vmatmul.mubr.bf16.gmra.mrb[0].mxu0 %v1029
      %v1659 = vpop.f32.mrb[0].mxu0
      %v1660 = vadd.f32 %v455, %v1659
      %v1661 = vpop.f32.mrb[0].mxu0
      %v1662 = vpop.f32.mrb[0].mxu0
      %v1663 = vadd.f32 %v455, %v1662
      %v1664 = vpop.f32.mrb[0].mxu0
      %1665 = vmatprep.mubr.bf16.mxu0 %v1035
      %1666 = vmatmul.mubr.bf16.gmra.mrb[0].mxu0 %v1034
      %v1667 = vpop.f32.mrb[0].mxu0
      %v1668 = vadd.f32 %v455, %v1667
      %v1669 = vpop.f32.mrb[0].mxu0
      %v1670 = vpop.f32.mrb[0].mxu0
      %v1671 = vadd.f32 %v455, %v1670
      %v1672 = vpop.f32.mrb[0].mxu0
      %1673 = vmatprep.mubr.bf16.mxu0 %v1040
      %1674 = vmatmul.mubr.bf16.gmra.mrb[0].mxu0 %v1039
      %v1675 = vpop.f32.mrb[0].mxu0
      %v1676 = vadd.f32 %v455, %v1675
      %v1677 = vpop.f32.mrb[0].mxu0
      %v1678 = vpop.f32.mrb[0].mxu0
      %v1679 = vadd.f32 %v455, %v1678
      %v1680 = vpop.f32.mrb[0].mxu0
      %1681 = vmatprep.mubr.bf16.mxu0 %v1045
      %1682 = vmatmul.mubr.bf16.gmra.mrb[0].mxu0 %v1044
      %v1683 = vpop.f32.mrb[0].mxu0
      %v1684 = vadd.f32 %v455, %v1683
      %v1685 = vpop.f32.mrb[0].mxu0
      %v1686 = vpop.f32.mrb[0].mxu0
      %v1687 = vadd.f32 %v455, %v1686
      %v1688 = vpop.f32.mrb[0].mxu0
      %1689 = vmatprep.mubr.bf16.mxu0 %v1050
      %1690 = vmatmul.mubr.bf16.gmra.mrb[0].mxu0 %v1049
      %v1691 = vpop.f32.mrb[0].mxu0
      %v1692 = vadd.f32 %v455, %v1691
      %v1693 = vpop.f32.mrb[0].mxu0
      %v1694 = vpop.f32.mrb[0].mxu0
      %v1695 = vadd.f32 %v455, %v1694
      %v1696 = vpop.f32.mrb[0].mxu0
      %1697 = vmatprep.mubr.bf16.mxu0 %v1055
      %1698 = vmatmul.mubr.bf16.gmra.mrb[0].mxu0 %v1054
      %v1699 = vpop.f32.mrb[0].mxu0
      %v1700 = vadd.f32 %v455, %v1699
      %v1701 = vpop.f32.mrb[0].mxu0
      %v1702 = vpop.f32.mrb[0].mxu0
      %v1703 = vadd.f32 %v455, %v1702
      %v1704 = vpop.f32.mrb[0].mxu0
      %1705 = vmatprep.mubr.bf16.mxu0 %v1060
      %1706 = vmatmul.mubr.bf16.gmra.mrb[0].mxu0 %v1059
      %v1707 = vpop.f32.mrb[0].mxu0
      %v1708 = vadd.f32 %v455, %v1707
      %v1709 = vpop.f32.mrb[0].mxu0
      %v1710 = vpop.f32.mrb[0].mxu0
      %v1711 = vadd.f32 %v455, %v1710
      %v1712 = vpop.f32.mrb[0].mxu0
      %1713 = vmatprep.mubr.bf16.mxu0 %v1065
      %1714 = vmatmul.mubr.bf16.gmra.mrb[0].mxu0 %v1064
      %v1715 = vpop.f32.mrb[0].mxu0
      %v1716 = vadd.f32 %v455, %v1715
      %v1717 = vpop.f32.mrb[0].mxu0
      %v1718 = vpop.f32.mrb[0].mxu0
      %v1719 = vadd.f32 %v455, %v1718
      %v1720 = vpop.f32.mrb[0].mxu0
      %1721 = vmatprep.mubr.bf16.mxu0 %v1070
      %1722 = vmatmul.mubr.bf16.gmra.mrb[0].mxu0 %v1069
      %v1723 = vpop.f32.mrb[0].mxu0
      %v1724 = vadd.f32 %v455, %v1723
      %v1725 = vpop.f32.mrb[0].mxu0
      %v1726 = vpop.f32.mrb[0].mxu0
      %v1727 = vadd.f32 %v455, %v1726
      %v1728 = vpop.f32.mrb[0].mxu0
      %1729 = vmatprep.mubr.bf16.mxu0 %v1075
      %1730 = vmatmul.mubr.bf16.gmra.mrb[0].mxu0 %v1074
      %v1731 = vpop.f32.mrb[0].mxu0
      %v1732 = vadd.f32 %v455, %v1731
      %v1733 = vpop.f32.mrb[0].mxu0
      %v1734 = vpop.f32.mrb[0].mxu0
      %v1735 = vadd.f32 %v455, %v1734
      %v1736 = vpop.f32.mrb[0].mxu0
      %1737 = vmatprep.mubr.bf16.mxu0 %v1080
      %1738 = vmatmul.mubr.bf16.gmra.mrb[0].mxu0 %v1079
      %v1739 = vpop.f32.mrb[0].mxu0
      %v1740 = vadd.f32 %v455, %v1739
      %v1741 = vpop.f32.mrb[0].mxu0
      %v1742 = vpop.f32.mrb[0].mxu0
      %v1743 = vadd.f32 %v455, %v1742
      %v1744 = vpop.f32.mrb[0].mxu0
      %1745 = vmatprep.mubr.bf16.mxu0 %v1085
      %1746 = vmatmul.mubr.bf16.gmra.mrb[0].mxu0 %v1084
      %v1747 = vpop.f32.mrb[0].mxu0
      %v1748 = vadd.f32 %v455, %v1747
      %v1749 = vpop.f32.mrb[0].mxu0
      %v1750 = vpop.f32.mrb[0].mxu0
      %v1751 = vadd.f32 %v455, %v1750
      %v1752 = vpop.f32.mrb[0].mxu0
      %1753 = vmatprep.mubr.bf16.mxu0 %v1090
      %1754 = vmatmul.mubr.bf16.gmra.mrb[0].mxu0 %v1089
      %v1755 = vpop.f32.mrb[0].mxu0
      %v1756 = vadd.f32 %v455, %v1755
      %v1757 = vpop.f32.mrb[0].mxu0
      %v1758 = vpop.f32.mrb[0].mxu0
      %v1759 = vadd.f32 %v455, %v1758
      %v1760 = vpop.f32.mrb[0].mxu0
      %1761 = vmatprep.mubr.bf16.mxu0 %v1095
      %1762 = vmatmul.mubr.bf16.gmra.mrb[0].mxu0 %v1094
      %v1763 = vpop.f32.mrb[0].mxu0
      %v1764 = vadd.f32 %v455, %v1763
      %v1765 = vpop.f32.mrb[0].mxu0
      %v1766 = vpop.f32.mrb[0].mxu0
      %v1767 = vadd.f32 %v455, %v1766
      %v1768 = vpop.f32.mrb[0].mxu0
      %1769 = vmatprep.mubr.bf16.mxu0 %v1100
      %1770 = vmatmul.mubr.bf16.gmra.mrb[0].mxu0 %v1099
      %v1771 = vpop.f32.mrb[0].mxu0
      %v1772 = vadd.f32 %v455, %v1771
      %v1773 = vpop.f32.mrb[0].mxu0
      %v1774 = vpop.f32.mrb[0].mxu0
      %v1775 = vadd.f32 %v455, %v1774
      %v1776 = vpop.f32.mrb[0].mxu0
      %1777 = vmatprep.mubr.bf16.mxu0 %v1105
      %1778 = vmatmul.mubr.bf16.gmra.mrb[0].mxu0 %v1104
      %v1779 = vpop.f32.mrb[0].mxu0
      %v1780 = vadd.f32 %v455, %v1779
      %v1781 = vpop.f32.mrb[0].mxu0
      %v1782 = vpop.f32.mrb[0].mxu0
      %v1783 = vadd.f32 %v455, %v1782
      %v1784 = vpop.f32.mrb[0].mxu0
      %1785 = vmatprep.mubr.bf16.mxu0 %v1110
      %1786 = vmatmul.mubr.bf16.gmra.mrb[0].mxu0 %v1109
      %v1787 = vpop.f32.mrb[0].mxu0
      %v1788 = vadd.f32 %v455, %v1787
      %v1789 = vpop.f32.mrb[0].mxu0
      %v1790 = vpop.f32.mrb[0].mxu0
      %v1791 = vadd.f32 %v455, %v1790
      %v1792 = vpop.f32.mrb[0].mxu0
      %1793 = vmatprep.mubr.bf16.mxu0 %v1115
      %1794 = vmatmul.mubr.bf16.gmra.mrb[0].mxu0 %v1114
      %v1795 = vpop.f32.mrb[0].mxu0
      %v1796 = vadd.f32 %v455, %v1795
      %v1797 = vpop.f32.mrb[0].mxu0
      %v1798 = vpop.f32.mrb[0].mxu0
      %v1799 = vadd.f32 %v455, %v1798
      %v1800 = vpop.f32.mrb[0].mxu0
      %1801 = vmatprep.mubr.bf16.mxu0 %v1120
      %1802 = vmatmul.mubr.bf16.gmra.mrb[0].mxu0 %v1119
      %v1803 = vpop.f32.mrb[0].mxu0
      %v1804 = vadd.f32 %v455, %v1803
      %v1805 = vpop.f32.mrb[0].mxu0
      %v1806 = vpop.f32.mrb[0].mxu0
      %v1807 = vadd.f32 %v455, %v1806
      %v1808 = vpop.f32.mrb[0].mxu0
      %1809 = vmatprep.mubr.bf16.mxu0 %v1125
      %1810 = vmatmul.mubr.bf16.gmra.mrb[0].mxu0 %v1124
      %v1811 = vpop.f32.mrb[0].mxu0
      %v1812 = vadd.f32 %v455, %v1811
      %v1813 = vpop.f32.mrb[0].mxu0
      %v1814 = vpop.f32.mrb[0].mxu0
      %v1815 = vadd.f32 %v455, %v1814
      %v1816 = vpop.f32.mrb[0].mxu0
      %1817 = vdwg.mxu0
      %1818 = vmatprep.subr.bf16.mxu0 0
      %1819 = vmatpush1.bf16.msra.mxu0 %v1465
      %1820 = vmatprep.subr.bf16.mxu0 0
      %1821 = vmatpush1.bf16.msra.mxu0 %v1466
      %1822 = vmatprep.subr.bf16.mxu0 0
      %1823 = vmatpush1.bf16.msra.mxu0 %v1467
      %1824 = vmatprep.subr.bf16.mxu0 0
      %1825 = vmatpush1.bf16.msra.mxu0 %v1468
      %1826 = vmatprep.subr.bf16.mxu0 0
      %1827 = vmatpush1.bf16.msra.mxu0 %v1469
      %1828 = vmatprep.subr.bf16.mxu0 0
      %1829 = vmatpush1.bf16.msra.mxu0 %v1470
      %1830 = vmatprep.subr.bf16.mxu0 0
      %1831 = vmatpush1.bf16.msra.mxu0 %v1471
      %1832 = vmatprep.subr.bf16.mxu0 0
      %1833 = vmatpush1.bf16.msra.mxu0 %v1472
      %1834 = vmatprep.subr.bf16.mxu0 0
      %1835 = vmatpush1.bf16.msra.mxu0 %v1473
      %1836 = vmatprep.subr.bf16.mxu0 0
      %1837 = vmatpush1.bf16.msra.mxu0 %v1474
      %1838 = vmatprep.subr.bf16.mxu0 0
      %1839 = vmatpush1.bf16.msra.mxu0 %v1475
      %1840 = vmatprep.subr.bf16.mxu0 0
      %1841 = vmatpush1.bf16.msra.mxu0 %v1476
      %1842 = vmatprep.subr.bf16.mxu0 0
      %1843 = vmatpush1.bf16.msra.mxu0 %v1477
      %1844 = vmatprep.subr.bf16.mxu0 0
      %1845 = vmatpush1.bf16.msra.mxu0 %v1478
      %1846 = vmatprep.subr.bf16.mxu0 0
      %1847 = vmatpush1.bf16.msra.mxu0 %v1479
      %1848 = vmatprep.subr.bf16.mxu0 0
      %1849 = vmatpush1.bf16.msra.mxu0 %v1480
      %1850 = vmatprep.mubr.bf16.mxu0 %v972
      %1851 = vmatmul.mubr.bf16.gmra.mrb[0].mxu0 %v971
      %v1852 = vpop.f32.mrb[0].mxu0
      %v1853 = vadd.f32 %v1564, %v1852
      %v1854 = vpop.f32.mrb[0].mxu0
      %v1855 = vpop.f32.mrb[0].mxu0
      %v1856 = vadd.f32 %v1567, %v1855
      %v1857 = vpop.f32.mrb[0].mxu0
      %1858 = vmatprep.mubr.bf16.mxu0 %v977
      %1859 = vmatmul.mubr.bf16.gmra.mrb[0].mxu0 %v976
      %v1860 = vpop.f32.mrb[0].mxu0
      %v1861 = vadd.f32 %v1572, %v1860
      %v1862 = vpop.f32.mrb[0].mxu0
      %v1863 = vpop.f32.mrb[0].mxu0
      %v1864 = vadd.f32 %v1575, %v1863
      %v1865 = vpop.f32.mrb[0].mxu0
      %1866 = vmatprep.mubr.bf16.mxu0 %v982
      %1867 = vmatmul.mubr.bf16.gmra.mrb[0].mxu0 %v981
      %v1868 = vpop.f32.mrb[0].mxu0
      %v1869 = vadd.f32 %v1580, %v1868
      %v1870 = vpop.f32.mrb[0].mxu0
      %v1871 = vpop.f32.mrb[0].mxu0
      %v1872 = vadd.f32 %v1583, %v1871
      %v1873 = vpop.f32.mrb[0].mxu0
      %1874 = vmatprep.mubr.bf16.mxu0 %v987
      %1875 = vmatmul.mubr.bf16.gmra.mrb[0].mxu0 %v986
      %v1876 = vpop.f32.mrb[0].mxu0
      %v1877 = vadd.f32 %v1588, %v1876
      %v1878 = vpop.f32.mrb[0].mxu0
      %v1879 = vpop.f32.mrb[0].mxu0
      %v1880 = vadd.f32 %v1591, %v1879
      %v1881 = vpop.f32.mrb[0].mxu0
      %1882 = vmatprep.mubr.bf16.mxu0 %v992
      %1883 = vmatmul.mubr.bf16.gmra.mrb[0].mxu0 %v991
      %v1884 = vpop.f32.mrb[0].mxu0
      %v1885 = vadd.f32 %v1596, %v1884
      %v1886 = vpop.f32.mrb[0].mxu0
      %v1887 = vpop.f32.mrb[0].mxu0
      %v1888 = vadd.f32 %v1599, %v1887
      %v1889 = vpop.f32.mrb[0].mxu0
      %1890 = vmatprep.mubr.bf16.mxu0 %v997
      %1891 = vmatmul.mubr.bf16.gmra.mrb[0].mxu0 %v996
      %v1892 = vpop.f32.mrb[0].mxu0
      %v1893 = vadd.f32 %v1604, %v1892
      %v1894 = vpop.f32.mrb[0].mxu0
      %v1895 = vpop.f32.mrb[0].mxu0
      %v1896 = vadd.f32 %v1607, %v1895
      %v1897 = vpop.f32.mrb[0].mxu0
      %1898 = vmatprep.mubr.bf16.mxu0 %v1002
      %1899 = vmatmul.mubr.bf16.gmra.mrb[0].mxu0 %v1001
      %v1900 = vpop.f32.mrb[0].mxu0
      %v1901 = vadd.f32 %v1612, %v1900
      %v1902 = vpop.f32.mrb[0].mxu0
      %v1903 = vpop.f32.mrb[0].mxu0
      %v1904 = vadd.f32 %v1615, %v1903
      %v1905 = vpop.f32.mrb[0].mxu0
      %1906 = vmatprep.mubr.bf16.mxu0 %v1007
      %1907 = vmatmul.mubr.bf16.gmra.mrb[0].mxu0 %v1006
      %v1908 = vpop.f32.mrb[0].mxu0
      %v1909 = vadd.f32 %v1620, %v1908
      %v1910 = vpop.f32.mrb[0].mxu0
      %v1911 = vpop.f32.mrb[0].mxu0
      %v1912 = vadd.f32 %v1623, %v1911
      %v1913 = vpop.f32.mrb[0].mxu0
      %1914 = vmatprep.mubr.bf16.mxu0 %v1012
      %1915 = vmatmul.mubr.bf16.gmra.mrb[0].mxu0 %v1011
      %v1916 = vpop.f32.mrb[0].mxu0
      %v1917 = vadd.f32 %v1628, %v1916
      %v1918 = vpop.f32.mrb[0].mxu0
      %v1919 = vpop.f32.mrb[0].mxu0
      %v1920 = vadd.f32 %v1631, %v1919
      %v1921 = vpop.f32.mrb[0].mxu0
      %1922 = vmatprep.mubr.bf16.mxu0 %v1017
      %1923 = vmatmul.mubr.bf16.gmra.mrb[0].mxu0 %v1016
      %v1924 = vpop.f32.mrb[0].mxu0
      %v1925 = vadd.f32 %v1636, %v1924
      %v1926 = vpop.f32.mrb[0].mxu0
      %v1927 = vpop.f32.mrb[0].mxu0
      %v1928 = vadd.f32 %v1639, %v1927
      %v1929 = vpop.f32.mrb[0].mxu0
      %1930 = vmatprep.mubr.bf16.mxu0 %v1022
      %1931 = vmatmul.mubr.bf16.gmra.mrb[0].mxu0 %v1021
      %v1932 = vpop.f32.mrb[0].mxu0
      %v1933 = vadd.f32 %v1644, %v1932
      %v1934 = vpop.f32.mrb[0].mxu0
      %v1935 = vpop.f32.mrb[0].mxu0
      %v1936 = vadd.f32 %v1647, %v1935
      %v1937 = vpop.f32.mrb[0].mxu0
      %1938 = vmatprep.mubr.bf16.mxu0 %v1027
      %1939 = vmatmul.mubr.bf16.gmra.mrb[0].mxu0 %v1026
      %v1940 = vpop.f32.mrb[0].mxu0
      %v1941 = vadd.f32 %v1652, %v1940
      %v1942 = vpop.f32.mrb[0].mxu0
      %v1943 = vpop.f32.mrb[0].mxu0
      %v1944 = vadd.f32 %v1655, %v1943
      %v1945 = vpop.f32.mrb[0].mxu0
      %1946 = vmatprep.mubr.bf16.mxu0 %v1032
      %1947 = vmatmul.mubr.bf16.gmra.mrb[0].mxu0 %v1031
      %v1948 = vpop.f32.mrb[0].mxu0
      %v1949 = vadd.f32 %v1660, %v1948
      %v1950 = vpop.f32.mrb[0].mxu0
      %v1951 = vpop.f32.mrb[0].mxu0
      %v1952 = vadd.f32 %v1663, %v1951
      %v1953 = vpop.f32.mrb[0].mxu0
      %1954 = vmatprep.mubr.bf16.mxu0 %v1037
      %1955 = vmatmul.mubr.bf16.gmra.mrb[0].mxu0 %v1036
      %v1956 = vpop.f32.mrb[0].mxu0
      %v1957 = vadd.f32 %v1668, %v1956
      %v1958 = vpop.f32.mrb[0].mxu0
      %v1959 = vpop.f32.mrb[0].mxu0
      %v1960 = vadd.f32 %v1671, %v1959
      %v1961 = vpop.f32.mrb[0].mxu0
      %1962 = vmatprep.mubr.bf16.mxu0 %v1042
      %1963 = vmatmul.mubr.bf16.gmra.mrb[0].mxu0 %v1041
      %v1964 = vpop.f32.mrb[0].mxu0
      %v1965 = vadd.f32 %v1676, %v1964
      %v1966 = vpop.f32.mrb[0].mxu0
      %v1967 = vpop.f32.mrb[0].mxu0
      %v1968 = vadd.f32 %v1679, %v1967
      %v1969 = vpop.f32.mrb[0].mxu0
      %1970 = vmatprep.mubr.bf16.mxu0 %v1047
      %1971 = vmatmul.mubr.bf16.gmra.mrb[0].mxu0 %v1046
      %v1972 = vpop.f32.mrb[0].mxu0
      %v1973 = vadd.f32 %v1684, %v1972
      %v1974 = vpop.f32.mrb[0].mxu0
      %v1975 = vpop.f32.mrb[0].mxu0
      %v1976 = vadd.f32 %v1687, %v1975
      %v1977 = vpop.f32.mrb[0].mxu0
      %1978 = vmatprep.mubr.bf16.mxu0 %v1052
      %1979 = vmatmul.mubr.bf16.gmra.mrb[0].mxu0 %v1051
      %v1980 = vpop.f32.mrb[0].mxu0
      %v1981 = vadd.f32 %v1692, %v1980
      %v1982 = vpop.f32.mrb[0].mxu0
      %v1983 = vpop.f32.mrb[0].mxu0
      %v1984 = vadd.f32 %v1695, %v1983
      %v1985 = vpop.f32.mrb[0].mxu0
      %1986 = vmatprep.mubr.bf16.mxu0 %v1057
      %1987 = vmatmul.mubr.bf16.gmra.mrb[0].mxu0 %v1056
      %v1988 = vpop.f32.mrb[0].mxu0
      %v1989 = vadd.f32 %v1700, %v1988
      %v1990 = vpop.f32.mrb[0].mxu0
      %v1991 = vpop.f32.mrb[0].mxu0
      %v1992 = vadd.f32 %v1703, %v1991
      %v1993 = vpop.f32.mrb[0].mxu0
      %1994 = vmatprep.mubr.bf16.mxu0 %v1062
      %1995 = vmatmul.mubr.bf16.gmra.mrb[0].mxu0 %v1061
      %v1996 = vpop.f32.mrb[0].mxu0
      %v1997 = vadd.f32 %v1708, %v1996
      %v1998 = vpop.f32.mrb[0].mxu0
      %v1999 = vpop.f32.mrb[0].mxu0
      %v2000 = vadd.f32 %v1711, %v1999
      %v2001 = vpop.f32.mrb[0].mxu0
      %2002 = vmatprep.mubr.bf16.mxu0 %v1067
      %2003 = vmatmul.mubr.bf16.gmra.mrb[0].mxu0 %v1066
      %v2004 = vpop.f32.mrb[0].mxu0
      %v2005 = vadd.f32 %v1716, %v2004
      %v2006 = vpop.f32.mrb[0].mxu0
      %v2007 = vpop.f32.mrb[0].mxu0
      %v2008 = vadd.f32 %v1719, %v2007
      %v2009 = vpop.f32.mrb[0].mxu0
      %2010 = vmatprep.mubr.bf16.mxu0 %v1072
      %2011 = vmatmul.mubr.bf16.gmra.mrb[0].mxu0 %v1071
      %v2012 = vpop.f32.mrb[0].mxu0
      %v2013 = vadd.f32 %v1724, %v2012
      %v2014 = vpop.f32.mrb[0].mxu0
      %v2015 = vpop.f32.mrb[0].mxu0
      %v2016 = vadd.f32 %v1727, %v2015
      %v2017 = vpop.f32.mrb[0].mxu0
      %2018 = vmatprep.mubr.bf16.mxu0 %v1077
      %2019 = vmatmul.mubr.bf16.gmra.mrb[0].mxu0 %v1076
      %v2020 = vpop.f32.mrb[0].mxu0
      %v2021 = vadd.f32 %v1732, %v2020
      %v2022 = vpop.f32.mrb[0].mxu0
      %v2023 = vpop.f32.mrb[0].mxu0
      %v2024 = vadd.f32 %v1735, %v2023
      %v2025 = vpop.f32.mrb[0].mxu0
      %2026 = vmatprep.mubr.bf16.mxu0 %v1082
      %2027 = vmatmul.mubr.bf16.gmra.mrb[0].mxu0 %v1081
      %v2028 = vpop.f32.mrb[0].mxu0
      %v2029 = vadd.f32 %v1740, %v2028
      %v2030 = vpop.f32.mrb[0].mxu0
      %v2031 = vpop.f32.mrb[0].mxu0
      %v2032 = vadd.f32 %v1743, %v2031
      %v2033 = vpop.f32.mrb[0].mxu0
      %2034 = vmatprep.mubr.bf16.mxu0 %v1087
      %2035 = vmatmul.mubr.bf16.gmra.mrb[0].mxu0 %v1086
      %v2036 = vpop.f32.mrb[0].mxu0
      %v2037 = vadd.f32 %v1748, %v2036
      %v2038 = vpop.f32.mrb[0].mxu0
      %v2039 = vpop.f32.mrb[0].mxu0
      %v2040 = vadd.f32 %v1751, %v2039
      %v2041 = vpop.f32.mrb[0].mxu0
      %2042 = vmatprep.mubr.bf16.mxu0 %v1092
      %2043 = vmatmul.mubr.bf16.gmra.mrb[0].mxu0 %v1091
      %v2044 = vpop.f32.mrb[0].mxu0
      %v2045 = vadd.f32 %v1756, %v2044
      %v2046 = vpop.f32.mrb[0].mxu0
      %v2047 = vpop.f32.mrb[0].mxu0
      %v2048 = vadd.f32 %v1759, %v2047
      %v2049 = vpop.f32.mrb[0].mxu0
      %2050 = vmatprep.mubr.bf16.mxu0 %v1097
      %2051 = vmatmul.mubr.bf16.gmra.mrb[0].mxu0 %v1096
      %v2052 = vpop.f32.mrb[0].mxu0
      %v2053 = vadd.f32 %v1764, %v2052
      %v2054 = vpop.f32.mrb[0].mxu0
      %v2055 = vpop.f32.mrb[0].mxu0
      %v2056 = vadd.f32 %v1767, %v2055
      %v2057 = vpop.f32.mrb[0].mxu0
      %2058 = vmatprep.mubr.bf16.mxu0 %v1102
      %2059 = vmatmul.mubr.bf16.gmra.mrb[0].mxu0 %v1101
      %v2060 = vpop.f32.mrb[0].mxu0
      %v2061 = vadd.f32 %v1772, %v2060
      %v2062 = vpop.f32.mrb[0].mxu0
      %v2063 = vpop.f32.mrb[0].mxu0
      %v2064 = vadd.f32 %v1775, %v2063
      %v2065 = vpop.f32.mrb[0].mxu0
      %2066 = vmatprep.mubr.bf16.mxu0 %v1107
      %2067 = vmatmul.mubr.bf16.gmra.mrb[0].mxu0 %v1106
      %v2068 = vpop.f32.mrb[0].mxu0
      %v2069 = vadd.f32 %v1780, %v2068
      %v2070 = vpop.f32.mrb[0].mxu0
      %v2071 = vpop.f32.mrb[0].mxu0
      %v2072 = vadd.f32 %v1783, %v2071
      %v2073 = vpop.f32.mrb[0].mxu0
      %2074 = vmatprep.mubr.bf16.mxu0 %v1112
      %2075 = vmatmul.mubr.bf16.gmra.mrb[0].mxu0 %v1111
      %v2076 = vpop.f32.mrb[0].mxu0
      %v2077 = vadd.f32 %v1788, %v2076
      %v2078 = vpop.f32.mrb[0].mxu0
      %v2079 = vpop.f32.mrb[0].mxu0
      %v2080 = vadd.f32 %v1791, %v2079
      %v2081 = vpop.f32.mrb[0].mxu0
      %2082 = vmatprep.mubr.bf16.mxu0 %v1117
      %2083 = vmatmul.mubr.bf16.gmra.mrb[0].mxu0 %v1116
      %v2084 = vpop.f32.mrb[0].mxu0
      %v2085 = vadd.f32 %v1796, %v2084
      %v2086 = vpop.f32.mrb[0].mxu0
      %v2087 = vpop.f32.mrb[0].mxu0
      %v2088 = vadd.f32 %v1799, %v2087
      %v2089 = vpop.f32.mrb[0].mxu0
      %2090 = vmatprep.mubr.bf16.mxu0 %v1122
      %2091 = vmatmul.mubr.bf16.gmra.mrb[0].mxu0 %v1121
      %v2092 = vpop.f32.mrb[0].mxu0
      %v2093 = vadd.f32 %v1804, %v2092
      %v2094 = vpop.f32.mrb[0].mxu0
      %v2095 = vpop.f32.mrb[0].mxu0
      %v2096 = vadd.f32 %v1807, %v2095
      %v2097 = vpop.f32.mrb[0].mxu0
      %2098 = vmatprep.mubr.bf16.mxu0 %v1127
      %2099 = vmatmul.mubr.bf16.gmra.mrb[0].mxu0 %v1126
      %v2100 = vpop.f32.mrb[0].mxu0
      %v2101 = vadd.f32 %v1812, %v2100
      %v2102 = vpop.f32.mrb[0].mxu0
      %v2103 = vpop.f32.mrb[0].mxu0
      %v2104 = vadd.f32 %v1815, %v2103
      %v2105 = vpop.f32.mrb[0].mxu0
      %2106 = vdwg.mxu0
      %2107 = vmatprep.subr.bf16.mxu0 0
      %2108 = vmatpush1.bf16.msra.mxu0 %v1481
      %2109 = vmatprep.subr.bf16.mxu0 0
      %2110 = vmatpush1.bf16.msra.mxu0 %v1482
      %2111 = vmatprep.subr.bf16.mxu0 0
      %2112 = vmatpush1.bf16.msra.mxu0 %v1483
      %2113 = vmatprep.subr.bf16.mxu0 0
      %2114 = vmatpush1.bf16.msra.mxu0 %v1484
      %2115 = vmatprep.subr.bf16.mxu0 0
      %2116 = vmatpush1.bf16.msra.mxu0 %v1485
      %2117 = vmatprep.subr.bf16.mxu0 0
      %2118 = vmatpush1.bf16.msra.mxu0 %v1486
      %2119 = vmatprep.subr.bf16.mxu0 0
      %2120 = vmatpush1.bf16.msra.mxu0 %v1487
      %2121 = vmatprep.subr.bf16.mxu0 0
      %2122 = vmatpush1.bf16.msra.mxu0 %v1488
      %2123 = vmatprep.subr.bf16.mxu0 0
      %2124 = vmatpush1.bf16.msra.mxu0 0
      %2125 = vmatprep.subr.bf16.mxu0 0
      %2126 = vmatpush1.bf16.msra.mxu0 0
      %2127 = vmatprep.subr.bf16.mxu0 0
      %2128 = vmatpush1.bf16.msra.mxu0 0
      %2129 = vmatprep.subr.bf16.mxu0 0
      %2130 = vmatpush1.bf16.msra.mxu0 0
      %2131 = vmatprep.subr.bf16.mxu0 0
      %2132 = vmatpush1.bf16.msra.mxu0 0
      %2133 = vmatprep.subr.bf16.mxu0 0
      %2134 = vmatpush1.bf16.msra.mxu0 0
      %2135 = vmatprep.subr.bf16.mxu0 0
      %2136 = vmatpush1.bf16.msra.mxu0 0
      %2137 = vmatprep.subr.bf16.mxu0 0
      %2138 = vmatpush1.bf16.msra.mxu0 0
      %2139 = vmatprep.mubr.bf16.mxu0 0
      %2140 = vmatmul.mubr.bf16.gmra.mrb[0].mxu0 %v973
      %v2141 = vpop.f32.mrb[0].mxu0
      %v2142 = vadd.f32 %v1853, %v2141
      %v2143 = vpop.f32.mrb[0].mxu0
      %v2144 = vpop.f32.mrb[0].mxu0
      %v2145 = vadd.f32 %v1856, %v2144
      %v2146 = vpop.f32.mrb[0].mxu0
      %2147 = vmatprep.mubr.bf16.mxu0 0
      %2148 = vmatmul.mubr.bf16.gmra.mrb[0].mxu0 %v978
      %v2149 = vpop.f32.mrb[0].mxu0
      %v2150 = vadd.f32 %v1861, %v2149
      %v2151 = vpop.f32.mrb[0].mxu0
      %v2152 = vpop.f32.mrb[0].mxu0
      %v2153 = vadd.f32 %v1864, %v2152
      %v2154 = vpop.f32.mrb[0].mxu0
      %2155 = vmatprep.mubr.bf16.mxu0 0
      %2156 = vmatmul.mubr.bf16.gmra.mrb[0].mxu0 %v983
      %v2157 = vpop.f32.mrb[0].mxu0
      %v2158 = vadd.f32 %v1869, %v2157
      %v2159 = vpop.f32.mrb[0].mxu0
      %v2160 = vpop.f32.mrb[0].mxu0
      %v2161 = vadd.f32 %v1872, %v2160
      %v2162 = vpop.f32.mrb[0].mxu0
      %2163 = vmatprep.mubr.bf16.mxu0 0
      %2164 = vmatmul.mubr.bf16.gmra.mrb[0].mxu0 %v988
      %v2165 = vpop.f32.mrb[0].mxu0
      %v2166 = vadd.f32 %v1877, %v2165
      %v2167 = vpop.f32.mrb[0].mxu0
      %v2168 = vpop.f32.mrb[0].mxu0
      %v2169 = vadd.f32 %v1880, %v2168
      %v2170 = vpop.f32.mrb[0].mxu0
      %2171 = vmatprep.mubr.bf16.mxu0 0
      %2172 = vmatmul.mubr.bf16.gmra.mrb[0].mxu0 %v993
      %v2173 = vpop.f32.mrb[0].mxu0
      %v2174 = vadd.f32 %v1885, %v2173
      %v2175 = vpop.f32.mrb[0].mxu0
      %v2176 = vpop.f32.mrb[0].mxu0
      %v2177 = vadd.f32 %v1888, %v2176
      %v2178 = vpop.f32.mrb[0].mxu0
      %2179 = vmatprep.mubr.bf16.mxu0 0
      %2180 = vmatmul.mubr.bf16.gmra.mrb[0].mxu0 %v998
      %v2181 = vpop.f32.mrb[0].mxu0
      %v2182 = vadd.f32 %v1893, %v2181
      %v2183 = vpop.f32.mrb[0].mxu0
      %v2184 = vpop.f32.mrb[0].mxu0
      %v2185 = vadd.f32 %v1896, %v2184
      %v2186 = vpop.f32.mrb[0].mxu0
      %2187 = vmatprep.mubr.bf16.mxu0 0
      %2188 = vmatmul.mubr.bf16.gmra.mrb[0].mxu0 %v1003
      %v2189 = vpop.f32.mrb[0].mxu0
      %v2190 = vadd.f32 %v1901, %v2189
      %v2191 = vpop.f32.mrb[0].mxu0
      %v2192 = vpop.f32.mrb[0].mxu0
      %v2193 = vadd.f32 %v1904, %v2192
      %v2194 = vpop.f32.mrb[0].mxu0
      %2195 = vmatprep.mubr.bf16.mxu0 0
      %2196 = vmatmul.mubr.bf16.gmra.mrb[0].mxu0 %v1008
      %v2197 = vpop.f32.mrb[0].mxu0
      %v2198 = vadd.f32 %v1909, %v2197
      %v2199 = vpop.f32.mrb[0].mxu0
      %v2200 = vpop.f32.mrb[0].mxu0
      %v2201 = vadd.f32 %v1912, %v2200
      %v2202 = vpop.f32.mrb[0].mxu0
      %2203 = vmatprep.mubr.bf16.mxu0 0
      %2204 = vmatmul.mubr.bf16.gmra.mrb[0].mxu0 %v1013
      %v2205 = vpop.f32.mrb[0].mxu0
      %v2206 = vadd.f32 %v1917, %v2205
      %v2207 = vpop.f32.mrb[0].mxu0
      %v2208 = vpop.f32.mrb[0].mxu0
      %v2209 = vadd.f32 %v1920, %v2208
      %v2210 = vpop.f32.mrb[0].mxu0
      %2211 = vmatprep.mubr.bf16.mxu0 0
      %2212 = vmatmul.mubr.bf16.gmra.mrb[0].mxu0 %v1018
      %v2213 = vpop.f32.mrb[0].mxu0
      %v2214 = vadd.f32 %v1925, %v2213
      %v2215 = vpop.f32.mrb[0].mxu0
      %v2216 = vpop.f32.mrb[0].mxu0
      %v2217 = vadd.f32 %v1928, %v2216
      %v2218 = vpop.f32.mrb[0].mxu0
      %2219 = vmatprep.mubr.bf16.mxu0 0
      %2220 = vmatmul.mubr.bf16.gmra.mrb[0].mxu0 %v1023
      %v2221 = vpop.f32.mrb[0].mxu0
      %v2222 = vadd.f32 %v1933, %v2221
      %v2223 = vpop.f32.mrb[0].mxu0
      %v2224 = vpop.f32.mrb[0].mxu0
      %v2225 = vadd.f32 %v1936, %v2224
      %v2226 = vpop.f32.mrb[0].mxu0
      %2227 = vmatprep.mubr.bf16.mxu0 0
      %2228 = vmatmul.mubr.bf16.gmra.mrb[0].mxu0 %v1028
      %v2229 = vpop.f32.mrb[0].mxu0
      %v2230 = vadd.f32 %v1941, %v2229
      %v2231 = vpop.f32.mrb[0].mxu0
      %v2232 = vpop.f32.mrb[0].mxu0
      %v2233 = vadd.f32 %v1944, %v2232
      %v2234 = vpop.f32.mrb[0].mxu0
      %2235 = vmatprep.mubr.bf16.mxu0 0
      %2236 = vmatmul.mubr.bf16.gmra.mrb[0].mxu0 %v1033
      %v2237 = vpop.f32.mrb[0].mxu0
      %v2238 = vadd.f32 %v1949, %v2237
      %v2239 = vpop.f32.mrb[0].mxu0
      %v2240 = vpop.f32.mrb[0].mxu0
      %v2241 = vadd.f32 %v1952, %v2240
      %v2242 = vpop.f32.mrb[0].mxu0
      %2243 = vmatprep.mubr.bf16.mxu0 0
      %2244 = vmatmul.mubr.bf16.gmra.mrb[0].mxu0 %v1038
      %v2245 = vpop.f32.mrb[0].mxu0
      %v2246 = vadd.f32 %v1957, %v2245
      %v2247 = vpop.f32.mrb[0].mxu0
      %v2248 = vpop.f32.mrb[0].mxu0
      %v2249 = vadd.f32 %v1960, %v2248
      %v2250 = vpop.f32.mrb[0].mxu0
      %2251 = vmatprep.mubr.bf16.mxu0 0
      %2252 = vmatmul.mubr.bf16.gmra.mrb[0].mxu0 %v1043
      %v2253 = vpop.f32.mrb[0].mxu0
      %v2254 = vadd.f32 %v1965, %v2253
      %v2255 = vpop.f32.mrb[0].mxu0
      %v2256 = vpop.f32.mrb[0].mxu0
      %v2257 = vadd.f32 %v1968, %v2256
      %v2258 = vpop.f32.mrb[0].mxu0
      %2259 = vmatprep.mubr.bf16.mxu0 0
      %2260 = vmatmul.mubr.bf16.gmra.mrb[0].mxu0 %v1048
      %v2261 = vpop.f32.mrb[0].mxu0
      %v2262 = vadd.f32 %v1973, %v2261
      %v2263 = vpop.f32.mrb[0].mxu0
      %v2264 = vpop.f32.mrb[0].mxu0
      %v2265 = vadd.f32 %v1976, %v2264
      %v2266 = vpop.f32.mrb[0].mxu0
      %2267 = vmatprep.mubr.bf16.mxu0 0
      %2268 = vmatmul.mubr.bf16.gmra.mrb[0].mxu0 %v1053
      %v2269 = vpop.f32.mrb[0].mxu0
      %v2270 = vadd.f32 %v1981, %v2269
      %v2271 = vpop.f32.mrb[0].mxu0
      %v2272 = vpop.f32.mrb[0].mxu0
      %v2273 = vadd.f32 %v1984, %v2272
      %v2274 = vpop.f32.mrb[0].mxu0
      %2275 = vmatprep.mubr.bf16.mxu0 0
      %2276 = vmatmul.mubr.bf16.gmra.mrb[0].mxu0 %v1058
      %v2277 = vpop.f32.mrb[0].mxu0
      %v2278 = vadd.f32 %v1989, %v2277
      %v2279 = vpop.f32.mrb[0].mxu0
      %v2280 = vpop.f32.mrb[0].mxu0
      %v2281 = vadd.f32 %v1992, %v2280
      %v2282 = vpop.f32.mrb[0].mxu0
      %2283 = vmatprep.mubr.bf16.mxu0 0
      %2284 = vmatmul.mubr.bf16.gmra.mrb[0].mxu0 %v1063
      %v2285 = vpop.f32.mrb[0].mxu0
      %v2286 = vadd.f32 %v1997, %v2285
      %v2287 = vpop.f32.mrb[0].mxu0
      %v2288 = vpop.f32.mrb[0].mxu0
      %v2289 = vadd.f32 %v2000, %v2288
      %v2290 = vpop.f32.mrb[0].mxu0
      %2291 = vmatprep.mubr.bf16.mxu0 0
      %2292 = vmatmul.mubr.bf16.gmra.mrb[0].mxu0 %v1068
      %v2293 = vpop.f32.mrb[0].mxu0
      %v2294 = vadd.f32 %v2005, %v2293
      %v2295 = vpop.f32.mrb[0].mxu0
      %v2296 = vpop.f32.mrb[0].mxu0
      %v2297 = vadd.f32 %v2008, %v2296
      %v2298 = vpop.f32.mrb[0].mxu0
      %2299 = vmatprep.mubr.bf16.mxu0 0
      %2300 = vmatmul.mubr.bf16.gmra.mrb[0].mxu0 %v1073
      %v2301 = vpop.f32.mrb[0].mxu0
      %v2302 = vadd.f32 %v2013, %v2301
      %v2303 = vpop.f32.mrb[0].mxu0
      %v2304 = vpop.f32.mrb[0].mxu0
      %v2305 = vadd.f32 %v2016, %v2304
      %v2306 = vpop.f32.mrb[0].mxu0
      %2307 = vmatprep.mubr.bf16.mxu0 0
      %2308 = vmatmul.mubr.bf16.gmra.mrb[0].mxu0 %v1078
      %v2309 = vpop.f32.mrb[0].mxu0
      %v2310 = vadd.f32 %v2021, %v2309
      %v2311 = vpop.f32.mrb[0].mxu0
      %v2312 = vpop.f32.mrb[0].mxu0
      %v2313 = vadd.f32 %v2024, %v2312
      %v2314 = vpop.f32.mrb[0].mxu0
      %2315 = vmatprep.mubr.bf16.mxu0 0
      %2316 = vmatmul.mubr.bf16.gmra.mrb[0].mxu0 %v1083
      %v2317 = vpop.f32.mrb[0].mxu0
      %v2318 = vadd.f32 %v2029, %v2317
      %v2319 = vpop.f32.mrb[0].mxu0
      %v2320 = vpop.f32.mrb[0].mxu0
      %v2321 = vadd.f32 %v2032, %v2320
      %v2322 = vpop.f32.mrb[0].mxu0
      %2323 = vmatprep.mubr.bf16.mxu0 0
      %2324 = vmatmul.mubr.bf16.gmra.mrb[0].mxu0 %v1088
      %v2325 = vpop.f32.mrb[0].mxu0
      %v2326 = vadd.f32 %v2037, %v2325
      %v2327 = vpop.f32.mrb[0].mxu0
      %v2328 = vpop.f32.mrb[0].mxu0
      %v2329 = vadd.f32 %v2040, %v2328
      %v2330 = vpop.f32.mrb[0].mxu0
      %2331 = vmatprep.mubr.bf16.mxu0 0
      %2332 = vmatmul.mubr.bf16.gmra.mrb[0].mxu0 %v1093
      %v2333 = vpop.f32.mrb[0].mxu0
      %v2334 = vadd.f32 %v2045, %v2333
      %v2335 = vpop.f32.mrb[0].mxu0
      %v2336 = vpop.f32.mrb[0].mxu0
      %v2337 = vadd.f32 %v2048, %v2336
      %v2338 = vpop.f32.mrb[0].mxu0
      %2339 = vmatprep.mubr.bf16.mxu0 0
      %2340 = vmatmul.mubr.bf16.gmra.mrb[0].mxu0 %v1098
      %v2341 = vpop.f32.mrb[0].mxu0
      %v2342 = vadd.f32 %v2053, %v2341
      %v2343 = vpop.f32.mrb[0].mxu0
      %v2344 = vpop.f32.mrb[0].mxu0
      %v2345 = vadd.f32 %v2056, %v2344
      %v2346 = vpop.f32.mrb[0].mxu0
      %2347 = vmatprep.mubr.bf16.mxu0 0
      %2348 = vmatmul.mubr.bf16.gmra.mrb[0].mxu0 %v1103
      %v2349 = vpop.f32.mrb[0].mxu0
      %v2350 = vadd.f32 %v2061, %v2349
      %v2351 = vpop.f32.mrb[0].mxu0
      %v2352 = vpop.f32.mrb[0].mxu0
      %v2353 = vadd.f32 %v2064, %v2352
      %v2354 = vpop.f32.mrb[0].mxu0
      %2355 = vmatprep.mubr.bf16.mxu0 0
      %2356 = vmatmul.mubr.bf16.gmra.mrb[0].mxu0 %v1108
      %v2357 = vpop.f32.mrb[0].mxu0
      %v2358 = vadd.f32 %v2069, %v2357
      %v2359 = vpop.f32.mrb[0].mxu0
      %v2360 = vpop.f32.mrb[0].mxu0
      %v2361 = vadd.f32 %v2072, %v2360
      %v2362 = vpop.f32.mrb[0].mxu0
      %2363 = vmatprep.mubr.bf16.mxu0 0
      %2364 = vmatmul.mubr.bf16.gmra.mrb[0].mxu0 %v1113
      %v2365 = vpop.f32.mrb[0].mxu0
      %v2366 = vadd.f32 %v2077, %v2365
      %v2367 = vpop.f32.mrb[0].mxu0
      %v2368 = vpop.f32.mrb[0].mxu0
      %v2369 = vadd.f32 %v2080, %v2368
      %v2370 = vpop.f32.mrb[0].mxu0
      %2371 = vmatprep.mubr.bf16.mxu0 0
      %2372 = vmatmul.mubr.bf16.gmra.mrb[0].mxu0 %v1118
      %v2373 = vpop.f32.mrb[0].mxu0
      %v2374 = vadd.f32 %v2085, %v2373
      %v2375 = vpop.f32.mrb[0].mxu0
      %v2376 = vpop.f32.mrb[0].mxu0
      %v2377 = vadd.f32 %v2088, %v2376
      %v2378 = vpop.f32.mrb[0].mxu0
      %2379 = vmatprep.mubr.bf16.mxu0 0
      %2380 = vmatmul.mubr.bf16.gmra.mrb[0].mxu0 %v1123
      %v2381 = vpop.f32.mrb[0].mxu0
      %v2382 = vadd.f32 %v2093, %v2381
      %v2383 = vpop.f32.mrb[0].mxu0
      %v2384 = vpop.f32.mrb[0].mxu0
      %v2385 = vadd.f32 %v2096, %v2384
      %v2386 = vpop.f32.mrb[0].mxu0
      %2387 = vmatprep.mubr.bf16.mxu0 0
      %2388 = vmatmul.mubr.bf16.gmra.mrb[0].mxu0 %v1128
      %v2389 = vpop.f32.mrb[0].mxu0
      %v2390 = vadd.f32 %v2101, %v2389
      %v2391 = vpop.f32.mrb[0].mxu0
      %v2392 = vpop.f32.mrb[0].mxu0
      %v2393 = vadd.f32 %v2104, %v2392
      %v2394 = vpop.f32.mrb[0].mxu0
      %2395 = vdwg.mxu0
      %vm2396 = vcmask 326656
      %2397 = vst.msk [vmem:[%s175] sm:$0xff] %vm2396, %v2142
      %2398 = vst.msk [vmem:[%s175 + $0x8] sm:$0xff] %vm2396, %v2145
      %2399 = vst.msk [vmem:[%s175 + $0x10] sm:$0xff] %vm2396, %v2150
      %2400 = vst.msk [vmem:[%s175 + $0x18] sm:$0xff] %vm2396, %v2153
      %2401 = vst.msk [vmem:[%s175 + $0x20] sm:$0xff] %vm2396, %v2158
      %2402 = vst.msk [vmem:[%s175 + $0x28] sm:$0xff] %vm2396, %v2161
      %2403 = vst.msk [vmem:[%s175 + $0x30] sm:$0xff] %vm2396, %v2166
      %2404 = vst.msk [vmem:[%s175 + $0x38] sm:$0xff] %vm2396, %v2169
      %2405 = vst.msk [vmem:[%s175 + $0x40] sm:$0xff] %vm2396, %v2174
      %2406 = vst.msk [vmem:[%s175 + $0x48] sm:$0xff] %vm2396, %v2177
      %2407 = vst.msk [vmem:[%s175 + $0x50] sm:$0xff] %vm2396, %v2182
      %2408 = vst.msk [vmem:[%s175 + $0x58] sm:$0xff] %vm2396, %v2185
      %2409 = vst.msk [vmem:[%s175 + $0x60] sm:$0xff] %vm2396, %v2190
      %2410 = vst.msk [vmem:[%s175 + $0x68] sm:$0xff] %vm2396, %v2193
      %2411 = vst.msk [vmem:[%s175 + $0x70] sm:$0xff] %vm2396, %v2198
      %2412 = vst.msk [vmem:[%s175 + $0x78] sm:$0xff] %vm2396, %v2201
      %2413 = vst.msk [vmem:[%s175 + $0x80] sm:$0xff] %vm2396, %v2206
      %2414 = vst.msk [vmem:[%s175 + $0x88] sm:$0xff] %vm2396, %v2209
      %2415 = vst.msk [vmem:[%s175 + $0x90] sm:$0xff] %vm2396, %v2214
      %2416 = vst.msk [vmem:[%s175 + $0x98] sm:$0xff] %vm2396, %v2217
      %2417 = vst.msk [vmem:[%s175 + $0xa0] sm:$0xff] %vm2396, %v2222
      %2418 = vst.msk [vmem:[%s175 + $0xa8] sm:$0xff] %vm2396, %v2225
      %2419 = vst.msk [vmem:[%s175 + $0xb0] sm:$0xff] %vm2396, %v2230
      %2420 = vst.msk [vmem:[%s175 + $0xb8] sm:$0xff] %vm2396, %v2233
      %2421 = vst.msk [vmem:[%s175 + $0xc0] sm:$0xff] %vm2396, %v2238
      %2422 = vst.msk [vmem:[%s175 + $0xc8] sm:$0xff] %vm2396, %v2241
      %2423 = vst.msk [vmem:[%s175 + $0xd0] sm:$0xff] %vm2396, %v2246
      %2424 = vst.msk [vmem:[%s175 + $0xd8] sm:$0xff] %vm2396, %v2249
      %2425 = vst.msk [vmem:[%s175 + $0xe0] sm:$0xff] %vm2396, %v2254
      %2426 = vst.msk [vmem:[%s175 + $0xe8] sm:$0xff] %vm2396, %v2257
      %2427 = vst.msk [vmem:[%s175 + $0xf0] sm:$0xff] %vm2396, %v2262
      %2428 = vst.msk [vmem:[%s175 + $0xf8] sm:$0xff] %vm2396, %v2265
      %2429 = vst.msk [vmem:[%s175 + $0x100] sm:$0xff] %vm2396, %v2270
      %2430 = vst.msk [vmem:[%s175 + $0x108] sm:$0xff] %vm2396, %v2273
      %2431 = vst.msk [vmem:[%s175 + $0x110] sm:$0xff] %vm2396, %v2278
      %2432 = vst.msk [vmem:[%s175 + $0x118] sm:$0xff] %vm2396, %v2281
      %2433 = vst.msk [vmem:[%s175 + $0x120] sm:$0xff] %vm2396, %v2286
      %2434 = vst.msk [vmem:[%s175 + $0x128] sm:$0xff] %vm2396, %v2289
      %2435 = vst.msk [vmem:[%s175 + $0x130] sm:$0xff] %vm2396, %v2294
      %2436 = vst.msk [vmem:[%s175 + $0x138] sm:$0xff] %vm2396, %v2297
      %2437 = vst.msk [vmem:[%s175 + $0x140] sm:$0xff] %vm2396, %v2302
      %2438 = vst.msk [vmem:[%s175 + $0x148] sm:$0xff] %vm2396, %v2305
      %2439 = vst.msk [vmem:[%s175 + $0x150] sm:$0xff] %vm2396, %v2310
      %2440 = vst.msk [vmem:[%s175 + $0x158] sm:$0xff] %vm2396, %v2313
      %2441 = vst.msk [vmem:[%s175 + $0x160] sm:$0xff] %vm2396, %v2318
      %2442 = vst.msk [vmem:[%s175 + $0x168] sm:$0xff] %vm2396, %v2321
      %2443 = vst.msk [vmem:[%s175 + $0x170] sm:$0xff] %vm2396, %v2326
      %2444 = vst.msk [vmem:[%s175 + $0x178] sm:$0xff] %vm2396, %v2329
      %2445 = vst.msk [vmem:[%s175 + $0x180] sm:$0xff] %vm2396, %v2334
      %2446 = vst.msk [vmem:[%s175 + $0x188] sm:$0xff] %vm2396, %v2337
      %2447 = vst.msk [vmem:[%s175 + $0x190] sm:$0xff] %vm2396, %v2342
      %2448 = vst.msk [vmem:[%s175 + $0x198] sm:$0xff] %vm2396, %v2345
      %2449 = vst.msk [vmem:[%s175 + $0x1a0] sm:$0xff] %vm2396, %v2350
      %2450 = vst.msk [vmem:[%s175 + $0x1a8] sm:$0xff] %vm2396, %v2353
      %2451 = vst.msk [vmem:[%s175 + $0x1b0] sm:$0xff] %vm2396, %v2358
      %2452 = vst.msk [vmem:[%s175 + $0x1b8] sm:$0xff] %vm2396, %v2361
      %2453 = vst.msk [vmem:[%s175 + $0x1c0] sm:$0xff] %vm2396, %v2366
      %2454 = vst.msk [vmem:[%s175 + $0x1c8] sm:$0xff] %vm2396, %v2369
      %2455 = vst.msk [vmem:[%s175 + $0x1d0] sm:$0xff] %vm2396, %v2374
      %2456 = vst.msk [vmem:[%s175 + $0x1d8] sm:$0xff] %vm2396, %v2377
      %2457 = vst.msk [vmem:[%s175 + $0x1e0] sm:$0xff] %vm2396, %v2382
      %2458 = vst.msk [vmem:[%s175 + $0x1e8] sm:$0xff] %vm2396, %v2385
      %2459 = vst.msk [vmem:[%s175 + $0x1f0] sm:$0xff] %vm2396, %v2390
      %2460 = vst.msk [vmem:[%s175 + $0x1f8] sm:$0xff] %vm2396, %v2393
      %s2461 = smul.u32 64, %s14
      %p2462 = scmp.lt.s32.totalorder %s2461, 127
      %s2463 = scalar_select %p2462, %s2461, 127
      %s2464 = smul.addr %s2463, 8
      %s2465 = scalar_lea.vmem %s3, %s2464
      // Predicated region
      $region33: #{_lambda_.18} parent=31 // pred_check
        %p2466 = pneg %p100
      $region34: #{_lambda_.18} parent=31 // pred_check_branch
        %2468 = sbr.rel (%p2466) target = $region36
      $region35: #{_lambda_.18} parent=31 // pred_region
        %s2469 = smul.u32 64, %s14
      $region36: #{_lambda_.18} parent=31 // pred_fallthru
        _
    $region32: #{_lambda_.18} parent=5 // pred_fallthru
      _
    %p2470 = scmp.le.s32.totalorder 2, %s9
    // Predicated region
    $region37: #{_lambda_.18} parent=5 // pred_check
      %p2471 = pneg %p2470
    $region38: #{_lambda_.18} parent=5 // pred_check_branch
      %2473 = sbr.rel (%p2471) target = $region40
    $region39: #{_lambda_.18} parent=5 // pred_region
      %s2474 = ssub.s32 %s9, 2
      // Predicated region
      $region41: #{_lambda_.18} parent=39 // pred_check
        %p2475 = pneg %p106
      $region42: #{_lambda_.18} parent=39 // pred_check_branch
        %2477 = sbr.rel (%p2475) target = $region44
      $region43: #{_lambda_.18} parent=39 // pred_region
        %s2478 = smul.u32 64, %s15
        %p2479 = scmp.lt.s32.totalorder %s2478, 127
        %s2480 = scalar_select %p2479, %s2478, 127
        %s2481 = smul.addr %s2480, 8
        %s2482 = scalar_lea.vmem %s3, %s2481
      $region44: #{_lambda_.18} parent=39 // pred_fallthru
        _
    $region40: #{_lambda_.18} parent=5 // pred_fallthru
      _
  $region6: #{_lambda_.18} parent=0 // loop_footer
    %s13 = sadd.s32 1, %s9
  $region7: #{_lambda_.18} parent=0 // loop_footer_branch
    %8 = sbr.rel target = $region3
  $region8: #{_lambda_.18} parent=0 // loop_exit
    _

// kernel: _lambda_.19
$region0: #{_lambda_.19}
  #allocation0 [shape = 'u32[]', space=smem, size = 0x4, offset = 0x4, fixed_abs, tag = 'smem constant byte address 0x4 - core index']
  #allocation1 [shape = 'u32[144,128]{1,0:T(1,128)}', space=vmem, size = 0x12000, scoped, tag = 'internal scratch']
  %s0 = inlined_call_operand.vmem [shape: bf16[240,90], index: 0, kind: input, shape index: {}]
  %s1 = inlined_call_operand.vmem [shape: bf16[90,230], index: 1, kind: input, shape index: {}]
  %s2 = inlined_call_operand.vmem [shape: f32[1,230], index: 2, kind: input, shape index: {}]
  %s3 = inlined_call_operand.vmem [shape: f32[240,230], index: 3, kind: output, shape index: {}]
  %s4 = sld [smem:[#allocation0]]
  $region22: #{_lambda_.19} parent=0
    _
  %s6 = ssub.s32 1, %s4
  %s7 = scalar_select 0, %s6, %s4
  // Predicated region
  $region2: #{_lambda_.19} parent=0 // pred_check
    _
  $region3: #{_lambda_.19} parent=0 // pred_check_branch
    %9 = sbr.rel (0) target = $region5
  $region4: #{_lambda_.19} parent=0 // pred_region
    _
  $region5: #{_lambda_.19} parent=0 // pred_fallthru
    _
  // Predicated region
  $region6: #{_lambda_.19} parent=0 // pred_check
    _
  $region7: #{_lambda_.19} parent=0 // pred_check_branch
    %11 = sbr.rel (0) target = $region9
  $region8: #{_lambda_.19} parent=0 // pred_region
    _
  $region9: #{_lambda_.19} parent=0 // pred_fallthru
    _
  // Predicated region
  $region10: #{_lambda_.19} parent=0 // pred_check
    _
  $region11: #{_lambda_.19} parent=0 // pred_check_branch
    %13 = sbr.rel (0) target = $region13
  $region12: #{_lambda_.19} parent=0 // pred_region
    _
  $region13: #{_lambda_.19} parent=0 // pred_fallthru
    _
  %v15 = vld [vmem:[%s0] sm:$0xf]
  %v16 = vld [vmem:[%s0 + $0x4] sm:$0xf]
  %v17 = vld [vmem:[%s0 + $0x8] sm:$0xf]
  %v18 = vld [vmem:[%s0 + $0xc] sm:$0xf]
  %v19 = vld [vmem:[%s0 + $0x10] sm:$0xf]
  %v20 = vld [vmem:[%s0 + $0x14] sm:$0xf]
  %v21 = vld [vmem:[%s0 + $0x18] sm:$0xf]
  %v22 = vld [vmem:[%s0 + $0x1c] sm:$0xf]
  %v23 = vld [vmem:[%s0 + $0x20] sm:$0xf]
  %v24 = vld [vmem:[%s0 + $0x24] sm:$0xf]
  %v25 = vld [vmem:[%s0 + $0x28] sm:$0xf]
  %v26 = vld [vmem:[%s0 + $0x2c] sm:$0xf]
  %v27 = vld [vmem:[%s0 + $0x30] sm:$0xf]
  %v28 = vld [vmem:[%s0 + $0x34] sm:$0xf]
  %v29 = vld [vmem:[%s0 + $0x38] sm:$0xf]
  %v30 = vld [vmem:[%s0 + $0x3c] sm:$0xf]
  %v31 = vld [vmem:[%s0 + $0x40] sm:$0xf]
  %v32 = vld [vmem:[%s0 + $0x44] sm:$0xf]
  %v33 = vld [vmem:[%s0 + $0x48] sm:$0xf]
  %v34 = vld [vmem:[%s0 + $0x4c] sm:$0xf]
  %v35 = vld [vmem:[%s0 + $0x50] sm:$0xf]
  %v36 = vld [vmem:[%s0 + $0x54] sm:$0xf]
  %v37 = vld [vmem:[%s0 + $0x58] sm:$0xf]
  %v38 = vld [vmem:[%s0 + $0x5c] sm:$0xf]
  %v39 = vld [vmem:[%s0 + $0x60] sm:$0xf]
  %v40 = vld [vmem:[%s0 + $0x64] sm:$0xf]
  %v41 = vld [vmem:[%s0 + $0x68] sm:$0xf]
  %v42 = vld [vmem:[%s0 + $0x6c] sm:$0xf]
  %v43 = vld [vmem:[%s0 + $0x70] sm:$0xf]
  %v44 = vld [vmem:[%s0 + $0x74] sm:$0xf]
  %v45 = vld [vmem:[%s1] sm:$0xff]
  %v46 = vld [vmem:[%s1 + $0x8] sm:$0xff]
  %v47 = vld [vmem:[%s1 + $0x10] sm:$0xff]
  %v48 = vld [vmem:[%s1 + $0x18] sm:$0xff]
  %v49 = vld [vmem:[%s1 + $0x20] sm:$0xff]
  %v50 = vld [vmem:[%s1 + $0x28] sm:$0xff]
  %v51 = vld [vmem:[%s1 + $0x30] sm:$0xff]
  %v52 = vld [vmem:[%s1 + $0x38] sm:$0xff]
  %v53 = vld [vmem:[%s1 + $0x40] sm:$0xff]
  %v54 = vld [vmem:[%s1 + $0x48] sm:$0xff]
  %v55 = vld [vmem:[%s1 + $0x50] sm:$0xff]
  %v56 = vld [vmem:[%s1 + $0x58] sm:$0x11]
  %v57 = vld [vmem:[%s2] sm:$0x3]
  %v59 = vlaneseq
  %v60 = vshrl.u32 %v59, 7
  %v61 = vsub.s32 0, %v60
  %v62 = vrot.slane %v57, %v61
  %v63 = vlaneseq
  %v64 = vshrl.u32 %v63, 7
  %v65 = vsub.s32 1, %v64
  %v66 = vrot.slane %v57, %v65
  %v99 = vunpack.c.l.b16 %v15
  %v100 = vunpack.c.l.b16 %v16
  %v101 = vunpack.c.l.b16 %v17
  %v102 = vunpack.c.l.b16 %v18
  %v103 = vunpack.c.l.b16 %v19
  %v104 = vunpack.c.l.b16 %v20
  %v105 = vunpack.c.l.b16 %v21
  %v106 = vunpack.c.l.b16 %v22
  %v107 = vunpack.c.l.b16 %v23
  %v108 = vunpack.c.l.b16 %v24
  %v109 = vunpack.c.l.b16 %v25
  %v110 = vunpack.c.l.b16 %v26
  %v111 = vunpack.c.l.b16 %v27
  %v112 = vunpack.c.l.b16 %v28
  %v113 = vunpack.c.l.b16 %v29
  %v114 = vunpack.c.l.b16 %v30
  %v115 = vunpack.c.l.b16 %v31
  %v116 = vunpack.c.l.b16 %v32
  %v117 = vunpack.c.l.b16 %v33
  %v118 = vunpack.c.l.b16 %v34
  %v119 = vunpack.c.l.b16 %v35
  %v120 = vunpack.c.l.b16 %v36
  %v121 = vunpack.c.l.b16 %v37
  %v122 = vunpack.c.l.b16 %v38
  %v123 = vunpack.c.l.b16 %v39
  %v124 = vunpack.c.l.b16 %v40
  %v125 = vunpack.c.l.b16 %v41
  %v126 = vunpack.c.l.b16 %v42
  %v127 = vunpack.c.l.b16 %v43
  %v128 = vunpack.c.l.b16 %v44
  %v129 = vpack.c.b16 %v100, %v99
  %v130 = vpack.c.b16 %v102, %v101
  %v131 = vpack.c.b16 %v104, %v103
  %v132 = vpack.c.b16 %v106, %v105
  %v133 = vpack.c.b16 %v108, %v107
  %v134 = vpack.c.b16 %v110, %v109
  %v135 = vpack.c.b16 %v112, %v111
  %v136 = vpack.c.b16 %v114, %v113
  %v137 = vpack.c.b16 %v116, %v115
  %v138 = vpack.c.b16 %v118, %v117
  %v139 = vpack.c.b16 %v120, %v119
  %v140 = vpack.c.b16 %v122, %v121
  %v141 = vpack.c.b16 %v124, %v123
  %v142 = vpack.c.b16 %v126, %v125
  %v143 = vpack.c.b16 %v128, %v127
  %v156 = vunpack.c.l.b16 %v45
  %v157 = vunpack.c.h.b16 %v45
  %v158 = vunpack.c.l.b16 %v46
  %v159 = vunpack.c.h.b16 %v46
  %v160 = vunpack.c.l.b16 %v47
  %v161 = vunpack.c.h.b16 %v47
  %v162 = vunpack.c.l.b16 %v48
  %v163 = vunpack.c.h.b16 %v48
  %v164 = vunpack.c.l.b16 %v49
  %v165 = vunpack.c.h.b16 %v49
  %v166 = vunpack.c.l.b16 %v50
  %v167 = vunpack.c.h.b16 %v50
  %v168 = vunpack.c.l.b16 %v51
  %v169 = vunpack.c.h.b16 %v51
  %v170 = vunpack.c.l.b16 %v52
  %v171 = vunpack.c.h.b16 %v52
  %v172 = vunpack.c.l.b16 %v53
  %v173 = vunpack.c.h.b16 %v53
  %v174 = vunpack.c.l.b16 %v54
  %v175 = vunpack.c.h.b16 %v54
  %v176 = vunpack.c.l.b16 %v55
  %v177 = vunpack.c.h.b16 %v55
  %v178 = vunpack.c.l.b16 %v56
  %v179 = vunpack.c.h.b16 %v56
  %v180 = vpack.c.b16 %v158, %v156
  %v181 = vpack.c.b16 %v159, %v157
  %v182 = vpack.c.b16 %v162, %v160
  %v183 = vpack.c.b16 %v163, %v161
  %v184 = vpack.c.b16 %v166, %v164
  %v185 = vpack.c.b16 %v167, %v165
  %v186 = vpack.c.b16 %v170, %v168
  %v187 = vpack.c.b16 %v171, %v169
  %v188 = vpack.c.b16 %v174, %v172
  %v189 = vpack.c.b16 %v175, %v173
  %v190 = vpack.c.b16 %v178, %v176
  %v191 = vpack.c.b16 %v179, %v177
  %vm202 = vcmask 736256
  %v204 = vsel %vm202, %v129, 0
  %v207 = vsel %vm202, %v130, 0
  %v210 = vsel %vm202, %v131, 0
  %v213 = vsel %vm202, %v132, 0
  %v216 = vsel %vm202, %v133, 0
  %v219 = vsel %vm202, %v134, 0
  %v222 = vsel %vm202, %v135, 0
  %v225 = vsel %vm202, %v136, 0
  %v228 = vsel %vm202, %v137, 0
  %v231 = vsel %vm202, %v138, 0
  %v234 = vsel %vm202, %v139, 0
  %v237 = vsel %vm202, %v140, 0
  %v240 = vsel %vm202, %v141, 0
  %v243 = vsel %vm202, %v142, 0
  %v246 = vsel %vm202, %v143, 0
  %vm248 = vcmask 1044480
  %v250 = vsel %vm248, %v190, 0
  %v253 = vsel %vm248, %v191, 0
  %255 = vmatprep.subr.bf16.mxu0 %v181
  %256 = vmatpush1.bf16.msra.mxu0 %v180
  %257 = vmatprep.subr.bf16.mxu0 %v183
  %258 = vmatpush1.bf16.msra.mxu0 %v182
  %259 = vmatprep.subr.bf16.mxu0 %v185
  %260 = vmatpush1.bf16.msra.mxu0 %v184
  %261 = vmatprep.subr.bf16.mxu0 %v187
  %262 = vmatpush1.bf16.msra.mxu0 %v186
  %263 = vmatprep.subr.bf16.mxu0 %v189
  %264 = vmatpush1.bf16.msra.mxu0 %v188
  %265 = vmatprep.subr.bf16.mxu0 %v253
  %266 = vmatpush1.bf16.msra.mxu0 %v250
  %267 = vmatprep.subr.bf16.mxu0 0
  %268 = vmatpush1.bf16.msra.mxu0 0
  %269 = vmatprep.subr.bf16.mxu0 0
  %270 = vmatpush1.bf16.msra.mxu0 0
  %271 = vmatprep.subr.bf16.mxu0 0
  %272 = vmatpush1.bf16.msra.mxu0 0
  %273 = vmatprep.subr.bf16.mxu0 0
  %274 = vmatpush1.bf16.msra.mxu0 0
  %275 = vmatprep.subr.bf16.mxu0 0
  %276 = vmatpush1.bf16.msra.mxu0 0
  %277 = vmatprep.subr.bf16.mxu0 0
  %278 = vmatpush1.bf16.msra.mxu0 0
  %279 = vmatprep.subr.bf16.mxu0 0
  %280 = vmatpush1.bf16.msra.mxu0 0
  %281 = vmatprep.subr.bf16.mxu0 0
  %282 = vmatpush1.bf16.msra.mxu0 0
  %283 = vmatprep.subr.bf16.mxu0 0
  %284 = vmatpush1.bf16.msra.mxu0 0
  %285 = vmatprep.subr.bf16.mxu0 0
  %286 = vmatpush1.bf16.msra.mxu0 0
  %287 = vmatprep.mubr.bf16.mxu0 0
  %288 = vmatmul.mubr.bf16.gmra.mrb[0].mxu0 %v204
  %v289 = vpop.f32.mrb[0].mxu0
  %v290 = vadd.f32 %v62, %v289
  %v291 = vpop.f32.mrb[0].mxu0
  %v292 = vadd.f32 %v66, %v291
  %v293 = vpop.f32.mrb[0].mxu0
  %v294 = vadd.f32 %v62, %v293
  %v295 = vpop.f32.mrb[0].mxu0
  %v296 = vadd.f32 %v66, %v295
  %297 = vmatprep.mubr.bf16.mxu0 0
  %298 = vmatmul.mubr.bf16.gmra.mrb[0].mxu0 %v207
  %v299 = vpop.f32.mrb[0].mxu0
  %v300 = vadd.f32 %v62, %v299
  %v301 = vpop.f32.mrb[0].mxu0
  %v302 = vadd.f32 %v66, %v301
  %v303 = vpop.f32.mrb[0].mxu0
  %v304 = vadd.f32 %v62, %v303
  %v305 = vpop.f32.mrb[0].mxu0
  %v306 = vadd.f32 %v66, %v305
  %307 = vmatprep.mubr.bf16.mxu0 0
  %308 = vmatmul.mubr.bf16.gmra.mrb[0].mxu0 %v210
  %v309 = vpop.f32.mrb[0].mxu0
  %v310 = vadd.f32 %v62, %v309
  %v311 = vpop.f32.mrb[0].mxu0
  %v312 = vadd.f32 %v66, %v311
  %v313 = vpop.f32.mrb[0].mxu0
  %v314 = vadd.f32 %v62, %v313
  %v315 = vpop.f32.mrb[0].mxu0
  %v316 = vadd.f32 %v66, %v315
  %317 = vmatprep.mubr.bf16.mxu0 0
  %318 = vmatmul.mubr.bf16.gmra.mrb[0].mxu0 %v213
  %v319 = vpop.f32.mrb[0].mxu0
  %v320 = vadd.f32 %v62, %v319
  %v321 = vpop.f32.mrb[0].mxu0
  %v322 = vadd.f32 %v66, %v321
  %v323 = vpop.f32.mrb[0].mxu0
  %v324 = vadd.f32 %v62, %v323
  %v325 = vpop.f32.mrb[0].mxu0
  %v326 = vadd.f32 %v66, %v325
  %327 = vmatprep.mubr.bf16.mxu0 0
  %328 = vmatmul.mubr.bf16.gmra.mrb[0].mxu0 %v216
  %v329 = vpop.f32.mrb[0].mxu0
  %v330 = vadd.f32 %v62, %v329
  %v331 = vpop.f32.mrb[0].mxu0
  %v332 = vadd.f32 %v66, %v331
  %v333 = vpop.f32.mrb[0].mxu0
  %v334 = vadd.f32 %v62, %v333
  %v335 = vpop.f32.mrb[0].mxu0
  %v336 = vadd.f32 %v66, %v335
  %337 = vmatprep.mubr.bf16.mxu0 0
  %338 = vmatmul.mubr.bf16.gmra.mrb[0].mxu0 %v219
  %v339 = vpop.f32.mrb[0].mxu0
  %v340 = vadd.f32 %v62, %v339
  %v341 = vpop.f32.mrb[0].mxu0
  %v342 = vadd.f32 %v66, %v341
  %v343 = vpop.f32.mrb[0].mxu0
  %v344 = vadd.f32 %v62, %v343
  %v345 = vpop.f32.mrb[0].mxu0
  %v346 = vadd.f32 %v66, %v345
  %347 = vmatprep.mubr.bf16.mxu0 0
  %348 = vmatmul.mubr.bf16.gmra.mrb[0].mxu0 %v222
  %v349 = vpop.f32.mrb[0].mxu0
  %v350 = vadd.f32 %v62, %v349
  %v351 = vpop.f32.mrb[0].mxu0
  %v352 = vadd.f32 %v66, %v351
  %v353 = vpop.f32.mrb[0].mxu0
  %v354 = vadd.f32 %v62, %v353
  %v355 = vpop.f32.mrb[0].mxu0
  %v356 = vadd.f32 %v66, %v355
  %357 = vmatprep.mubr.bf16.mxu0 0
  %358 = vmatmul.mubr.bf16.gmra.mrb[0].mxu0 %v225
  %v359 = vpop.f32.mrb[0].mxu0
  %v360 = vadd.f32 %v62, %v359
  %v361 = vpop.f32.mrb[0].mxu0
  %v362 = vadd.f32 %v66, %v361
  %v363 = vpop.f32.mrb[0].mxu0
  %v364 = vadd.f32 %v62, %v363
  %v365 = vpop.f32.mrb[0].mxu0
  %v366 = vadd.f32 %v66, %v365
  %367 = vmatprep.mubr.bf16.mxu0 0
  %368 = vmatmul.mubr.bf16.gmra.mrb[0].mxu0 %v228
  %v369 = vpop.f32.mrb[0].mxu0
  %v370 = vadd.f32 %v62, %v369
  %v371 = vpop.f32.mrb[0].mxu0
  %v372 = vadd.f32 %v66, %v371
  %v373 = vpop.f32.mrb[0].mxu0
  %v374 = vadd.f32 %v62, %v373
  %v375 = vpop.f32.mrb[0].mxu0
  %v376 = vadd.f32 %v66, %v375
  %377 = vmatprep.mubr.bf16.mxu0 0
  %378 = vmatmul.mubr.bf16.gmra.mrb[0].mxu0 %v231
  %v379 = vpop.f32.mrb[0].mxu0
  %v380 = vadd.f32 %v62, %v379
  %v381 = vpop.f32.mrb[0].mxu0
  %v382 = vadd.f32 %v66, %v381
  %v383 = vpop.f32.mrb[0].mxu0
  %v384 = vadd.f32 %v62, %v383
  %v385 = vpop.f32.mrb[0].mxu0
  %v386 = vadd.f32 %v66, %v385
  %387 = vmatprep.mubr.bf16.mxu0 0
  %388 = vmatmul.mubr.bf16.gmra.mrb[0].mxu0 %v234
  %v389 = vpop.f32.mrb[0].mxu0
  %v390 = vadd.f32 %v62, %v389
  %v391 = vpop.f32.mrb[0].mxu0
  %v392 = vadd.f32 %v66, %v391
  %v393 = vpop.f32.mrb[0].mxu0
  %v394 = vadd.f32 %v62, %v393
  %v395 = vpop.f32.mrb[0].mxu0
  %v396 = vadd.f32 %v66, %v395
  %397 = vmatprep.mubr.bf16.mxu0 0
  %398 = vmatmul.mubr.bf16.gmra.mrb[0].mxu0 %v237
  %v399 = vpop.f32.mrb[0].mxu0
  %v400 = vadd.f32 %v62, %v399
  %v401 = vpop.f32.mrb[0].mxu0
  %v402 = vadd.f32 %v66, %v401
  %v403 = vpop.f32.mrb[0].mxu0
  %v404 = vadd.f32 %v62, %v403
  %v405 = vpop.f32.mrb[0].mxu0
  %v406 = vadd.f32 %v66, %v405
  %407 = vmatprep.mubr.bf16.mxu0 0
  %408 = vmatmul.mubr.bf16.gmra.mrb[0].mxu0 %v240
  %v409 = vpop.f32.mrb[0].mxu0
  %v410 = vadd.f32 %v62, %v409
  %v411 = vpop.f32.mrb[0].mxu0
  %v412 = vadd.f32 %v66, %v411
  %v413 = vpop.f32.mrb[0].mxu0
  %v414 = vadd.f32 %v62, %v413
  %v415 = vpop.f32.mrb[0].mxu0
  %v416 = vadd.f32 %v66, %v415
  %417 = vmatprep.mubr.bf16.mxu0 0
  %418 = vmatmul.mubr.bf16.gmra.mrb[0].mxu0 %v243
  %v419 = vpop.f32.mrb[0].mxu0
  %v420 = vadd.f32 %v62, %v419
  %v421 = vpop.f32.mrb[0].mxu0
  %v422 = vadd.f32 %v66, %v421
  %v423 = vpop.f32.mrb[0].mxu0
  %v424 = vadd.f32 %v62, %v423
  %v425 = vpop.f32.mrb[0].mxu0
  %v426 = vadd.f32 %v66, %v425
  %427 = vmatprep.mubr.bf16.mxu0 0
  %428 = vmatmul.mubr.bf16.gmra.mrb[0].mxu0 %v246
  %v429 = vpop.f32.mrb[0].mxu0
  %v430 = vadd.f32 %v62, %v429
  %v431 = vpop.f32.mrb[0].mxu0
  %v432 = vadd.f32 %v66, %v431
  %v433 = vpop.f32.mrb[0].mxu0
  %v434 = vadd.f32 %v62, %v433
  %v435 = vpop.f32.mrb[0].mxu0
  %v436 = vadd.f32 %v66, %v435
  %437 = vdwg.mxu0
  %v438 = vmax.f32 %v290, 0.0
  %v439 = vmax.f32 %v292, 0.0
  %v440 = vmax.f32 %v294, 0.0
  %v441 = vmax.f32 %v296, 0.0
  %v442 = vmax.f32 %v300, 0.0
  %v443 = vmax.f32 %v302, 0.0
  %v444 = vmax.f32 %v304, 0.0
  %v445 = vmax.f32 %v306, 0.0
  %v446 = vmax.f32 %v310, 0.0
  %v447 = vmax.f32 %v312, 0.0
  %v448 = vmax.f32 %v314, 0.0
  %v449 = vmax.f32 %v316, 0.0
  %v450 = vmax.f32 %v320, 0.0
  %v451 = vmax.f32 %v322, 0.0
  %v452 = vmax.f32 %v324, 0.0
  %v453 = vmax.f32 %v326, 0.0
  %v454 = vmax.f32 %v330, 0.0
  %v455 = vmax.f32 %v332, 0.0
  %v456 = vmax.f32 %v334, 0.0
  %v457 = vmax.f32 %v336, 0.0
  %v458 = vmax.f32 %v340, 0.0
  %v459 = vmax.f32 %v342, 0.0
  %v460 = vmax.f32 %v344, 0.0
  %v461 = vmax.f32 %v346, 0.0
  %v462 = vmax.f32 %v350, 0.0
  %v463 = vmax.f32 %v352, 0.0
  %v464 = vmax.f32 %v354, 0.0
  %v465 = vmax.f32 %v356, 0.0
  %v466 = vmax.f32 %v360, 0.0
  %v467 = vmax.f32 %v362, 0.0
  %v468 = vmax.f32 %v364, 0.0
  %v469 = vmax.f32 %v366, 0.0
  %v470 = vmax.f32 %v370, 0.0
  %v471 = vmax.f32 %v372, 0.0
  %v472 = vmax.f32 %v374, 0.0
  %v473 = vmax.f32 %v376, 0.0
  %v474 = vmax.f32 %v380, 0.0
  %v475 = vmax.f32 %v382, 0.0
  %v476 = vmax.f32 %v384, 0.0
  %v477 = vmax.f32 %v386, 0.0
  %v478 = vmax.f32 %v390, 0.0
  %v479 = vmax.f32 %v392, 0.0
  %v480 = vmax.f32 %v394, 0.0
  %v481 = vmax.f32 %v396, 0.0
  %v482 = vmax.f32 %v400, 0.0
  %v483 = vmax.f32 %v402, 0.0
  %v484 = vmax.f32 %v404, 0.0
  %v485 = vmax.f32 %v406, 0.0
  %v486 = vmax.f32 %v410, 0.0
  %v487 = vmax.f32 %v412, 0.0
  %v488 = vmax.f32 %v414, 0.0
  %v489 = vmax.f32 %v416, 0.0
  %v490 = vmax.f32 %v420, 0.0
  %v491 = vmax.f32 %v422, 0.0
  %v492 = vmax.f32 %v424, 0.0
  %v493 = vmax.f32 %v426, 0.0
  %v494 = vmax.f32 %v430, 0.0
  %v495 = vmax.f32 %v432, 0.0
  %v496 = vmax.f32 %v434, 0.0
  %v497 = vmax.f32 %v436, 0.0
  %498 = vst [vmem:[%s3] sm:$0xff] %v438
  %vm499 = vcmask 834560
  %500 = vst.msk [vmem:[%s3 + $0x8] sm:$0xff] %vm499, %v439
  %501 = vst [vmem:[%s3 + $0x10] sm:$0xff] %v440
  %502 = vst.msk [vmem:[%s3 + $0x18] sm:$0xff] %vm499, %v441
  %503 = vst [vmem:[%s3 + $0x20] sm:$0xff] %v442
  %504 = vst.msk [vmem:[%s3 + $0x28] sm:$0xff] %vm499, %v443
  %505 = vst [vmem:[%s3 + $0x30] sm:$0xff] %v444
  %506 = vst.msk [vmem:[%s3 + $0x38] sm:$0xff] %vm499, %v445
  %507 = vst [vmem:[%s3 + $0x40] sm:$0xff] %v446
  %508 = vst.msk [vmem:[%s3 + $0x48] sm:$0xff] %vm499, %v447
  %509 = vst [vmem:[%s3 + $0x50] sm:$0xff] %v448
  %510 = vst.msk [vmem:[%s3 + $0x58] sm:$0xff] %vm499, %v449
  %511 = vst [vmem:[%s3 + $0x60] sm:$0xff] %v450
  %512 = vst.msk [vmem:[%s3 + $0x68] sm:$0xff] %vm499, %v451
  %513 = vst [vmem:[%s3 + $0x70] sm:$0xff] %v452
  %514 = vst.msk [vmem:[%s3 + $0x78] sm:$0xff] %vm499, %v453
  %515 = vst [vmem:[%s3 + $0x80] sm:$0xff] %v454
  %516 = vst.msk [vmem:[%s3 + $0x88] sm:$0xff] %vm499, %v455
  %517 = vst [vmem:[%s3 + $0x90] sm:$0xff] %v456
  %518 = vst.msk [vmem:[%s3 + $0x98] sm:$0xff] %vm499, %v457
  %519 = vst [vmem:[%s3 + $0xa0] sm:$0xff] %v458
  %520 = vst.msk [vmem:[%s3 + $0xa8] sm:$0xff] %vm499, %v459
  %521 = vst [vmem:[%s3 + $0xb0] sm:$0xff] %v460
  %522 = vst.msk [vmem:[%s3 + $0xb8] sm:$0xff] %vm499, %v461
  %523 = vst [vmem:[%s3 + $0xc0] sm:$0xff] %v462
  %524 = vst.msk [vmem:[%s3 + $0xc8] sm:$0xff] %vm499, %v463
  %525 = vst [vmem:[%s3 + $0xd0] sm:$0xff] %v464
  %526 = vst.msk [vmem:[%s3 + $0xd8] sm:$0xff] %vm499, %v465
  %527 = vst [vmem:[%s3 + $0xe0] sm:$0xff] %v466
  %528 = vst.msk [vmem:[%s3 + $0xe8] sm:$0xff] %vm499, %v467
  %529 = vst [vmem:[%s3 + $0xf0] sm:$0xff] %v468
  %530 = vst.msk [vmem:[%s3 + $0xf8] sm:$0xff] %vm499, %v469
  %531 = vst [vmem:[%s3 + $0x100] sm:$0xff] %v470
  %532 = vst.msk [vmem:[%s3 + $0x108] sm:$0xff] %vm499, %v471
  %533 = vst [vmem:[%s3 + $0x110] sm:$0xff] %v472
  %534 = vst.msk [vmem:[%s3 + $0x118] sm:$0xff] %vm499, %v473
  %535 = vst [vmem:[%s3 + $0x120] sm:$0xff] %v474
  %536 = vst.msk [vmem:[%s3 + $0x128] sm:$0xff] %vm499, %v475
  %537 = vst [vmem:[%s3 + $0x130] sm:$0xff] %v476
  %538 = vst.msk [vmem:[%s3 + $0x138] sm:$0xff] %vm499, %v477
  %539 = vst [vmem:[%s3 + $0x140] sm:$0xff] %v478
  %540 = vst.msk [vmem:[%s3 + $0x148] sm:$0xff] %vm499, %v479
  %541 = vst [vmem:[%s3 + $0x150] sm:$0xff] %v480
  %542 = vst.msk [vmem:[%s3 + $0x158] sm:$0xff] %vm499, %v481
  %543 = vst [vmem:[%s3 + $0x160] sm:$0xff] %v482
  %544 = vst.msk [vmem:[%s3 + $0x168] sm:$0xff] %vm499, %v483
  %545 = vst [vmem:[%s3 + $0x170] sm:$0xff] %v484
  %546 = vst.msk [vmem:[%s3 + $0x178] sm:$0xff] %vm499, %v485
  %547 = vst [vmem:[%s3 + $0x180] sm:$0xff] %v486
  %548 = vst.msk [vmem:[%s3 + $0x188] sm:$0xff] %vm499, %v487
  %549 = vst [vmem:[%s3 + $0x190] sm:$0xff] %v488
  %550 = vst.msk [vmem:[%s3 + $0x198] sm:$0xff] %vm499, %v489
  %551 = vst [vmem:[%s3 + $0x1a0] sm:$0xff] %v490
  %552 = vst.msk [vmem:[%s3 + $0x1a8] sm:$0xff] %vm499, %v491
  %553 = vst [vmem:[%s3 + $0x1b0] sm:$0xff] %v492
  %554 = vst.msk [vmem:[%s3 + $0x1b8] sm:$0xff] %vm499, %v493
  %555 = vst [vmem:[%s3 + $0x1c0] sm:$0xff] %v494
  %556 = vst.msk [vmem:[%s3 + $0x1c8] sm:$0xff] %vm499, %v495
  %557 = vst [vmem:[%s3 + $0x1d0] sm:$0xff] %v496
  %558 = vst.msk [vmem:[%s3 + $0x1d8] sm:$0xff] %vm499, %v497
  // Predicated region
  $region14: #{_lambda_.19} parent=0 // pred_check
    _
  $region15: #{_lambda_.19} parent=0 // pred_check_branch
    %560 = sbr.rel (0) target = $region17
  $region16: #{_lambda_.19} parent=0 // pred_region
    _
  $region17: #{_lambda_.19} parent=0 // pred_fallthru
    _
  // Predicated region
  $region18: #{_lambda_.19} parent=0 // pred_check
    _
  $region19: #{_lambda_.19} parent=0 // pred_check_branch
    %562 = sbr.rel (0) target = $region21
  $region20: #{_lambda_.19} parent=0 // pred_region
    _
  $region21: #{_lambda_.19} parent=0 // pred_fallthru
    _

// kernel: _lambda_.20
$region0: #{_lambda_.20}
  #allocation0 [shape = 'u32[]', space=smem, size = 0x4, offset = 0x4, fixed_abs, tag = 'smem constant byte address 0x4 - core index']
  #allocation1 [shape = 'u32[144,128]{1,0:T(1,128)}', space=vmem, size = 0x12000, scoped, tag = 'internal scratch']
  %s0 = inlined_call_operand.vmem [shape: bf16[240,230], index: 0, kind: input, shape index: {}]
  %s1 = inlined_call_operand.vmem [shape: bf16[230,50], index: 1, kind: input, shape index: {}]
  %s2 = inlined_call_operand.vmem [shape: f32[1,50], index: 2, kind: input, shape index: {}]
  %s3 = inlined_call_operand.vmem [shape: f32[240,50], index: 3, kind: output, shape index: {}]
  %s4 = sld [smem:[#allocation0]]
  $region22: #{_lambda_.20} parent=0
    _
  %s6 = ssub.s32 1, %s4
  %s7 = scalar_select 0, %s6, %s4
  // Predicated region
  $region2: #{_lambda_.20} parent=0 // pred_check
    _
  $region3: #{_lambda_.20} parent=0 // pred_check_branch
    %9 = sbr.rel (0) target = $region5
  $region4: #{_lambda_.20} parent=0 // pred_region
    _
  $region5: #{_lambda_.20} parent=0 // pred_fallthru
    _
  // Predicated region
  $region6: #{_lambda_.20} parent=0 // pred_check
    _
  $region7: #{_lambda_.20} parent=0 // pred_check_branch
    %11 = sbr.rel (0) target = $region9
  $region8: #{_lambda_.20} parent=0 // pred_region
    _
  $region9: #{_lambda_.20} parent=0 // pred_fallthru
    _
  // Predicated region
  $region10: #{_lambda_.20} parent=0 // pred_check
    _
  $region11: #{_lambda_.20} parent=0 // pred_check_branch
    %13 = sbr.rel (0) target = $region13
  $region12: #{_lambda_.20} parent=0 // pred_region
    _
  $region13: #{_lambda_.20} parent=0 // pred_fallthru
    _
  %v15 = vld [vmem:[%s0] sm:$0xff]
  %v16 = vld [vmem:[%s0 + $0x8] sm:$0xff]
  %v17 = vld [vmem:[%s0 + $0x10] sm:$0xff]
  %v18 = vld [vmem:[%s0 + $0x18] sm:$0xff]
  %v19 = vld [vmem:[%s0 + $0x20] sm:$0xff]
  %v20 = vld [vmem:[%s0 + $0x28] sm:$0xff]
  %v21 = vld [vmem:[%s0 + $0x30] sm:$0xff]
  %v22 = vld [vmem:[%s0 + $0x38] sm:$0xff]
  %v23 = vld [vmem:[%s0 + $0x40] sm:$0xff]
  %v24 = vld [vmem:[%s0 + $0x48] sm:$0xff]
  %v25 = vld [vmem:[%s0 + $0x50] sm:$0xff]
  %v26 = vld [vmem:[%s0 + $0x58] sm:$0xff]
  %v27 = vld [vmem:[%s0 + $0x60] sm:$0xff]
  %v28 = vld [vmem:[%s0 + $0x68] sm:$0xff]
  %v29 = vld [vmem:[%s0 + $0x70] sm:$0xff]
  %v30 = vld [vmem:[%s0 + $0x78] sm:$0xff]
  %v31 = vld [vmem:[%s0 + $0x80] sm:$0xff]
  %v32 = vld [vmem:[%s0 + $0x88] sm:$0xff]
  %v33 = vld [vmem:[%s0 + $0x90] sm:$0xff]
  %v34 = vld [vmem:[%s0 + $0x98] sm:$0xff]
  %v35 = vld [vmem:[%s0 + $0xa0] sm:$0xff]
  %v36 = vld [vmem:[%s0 + $0xa8] sm:$0xff]
  %v37 = vld [vmem:[%s0 + $0xb0] sm:$0xff]
  %v38 = vld [vmem:[%s0 + $0xb8] sm:$0xff]
  %v39 = vld [vmem:[%s0 + $0xc0] sm:$0xff]
  %v40 = vld [vmem:[%s0 + $0xc8] sm:$0xff]
  %v41 = vld [vmem:[%s0 + $0xd0] sm:$0xff]
  %v42 = vld [vmem:[%s0 + $0xd8] sm:$0xff]
  %v43 = vld [vmem:[%s0 + $0xe0] sm:$0xff]
  %v44 = vld [vmem:[%s0 + $0xe8] sm:$0xff]
  %v45 = vld [vmem:[%s1] sm:$0xf]
  %v46 = vld [vmem:[%s1 + $0x4] sm:$0xf]
  %v47 = vld [vmem:[%s1 + $0x8] sm:$0xf]
  %v48 = vld [vmem:[%s1 + $0xc] sm:$0xf]
  %v49 = vld [vmem:[%s1 + $0x10] sm:$0xf]
  %v50 = vld [vmem:[%s1 + $0x14] sm:$0xf]
  %v51 = vld [vmem:[%s1 + $0x18] sm:$0xf]
  %v52 = vld [vmem:[%s1 + $0x1c] sm:$0xf]
  %v53 = vld [vmem:[%s1 + $0x20] sm:$0xf]
  %v54 = vld [vmem:[%s1 + $0x24] sm:$0xf]
  %v55 = vld [vmem:[%s1 + $0x28] sm:$0xf]
  %v56 = vld [vmem:[%s1 + $0x2c] sm:$0xf]
  %v57 = vld [vmem:[%s1 + $0x30] sm:$0xf]
  %v58 = vld [vmem:[%s1 + $0x34] sm:$0xf]
  %v59 = vld [vmem:[%s1 + $0x38] sm:$0xf]
  %v60 = vld [vmem:[%s1 + $0x3c] sm:$0xf]
  %v61 = vld [vmem:[%s1 + $0x40] sm:$0xf]
  %v62 = vld [vmem:[%s1 + $0x44] sm:$0xf]
  %v63 = vld [vmem:[%s1 + $0x48] sm:$0xf]
  %v64 = vld [vmem:[%s1 + $0x4c] sm:$0xf]
  %v65 = vld [vmem:[%s1 + $0x50] sm:$0xf]
  %v66 = vld [vmem:[%s1 + $0x54] sm:$0xf]
  %v67 = vld [vmem:[%s1 + $0x58] sm:$0xf]
  %v68 = vld [vmem:[%s1 + $0x5c] sm:$0xf]
  %v69 = vld [vmem:[%s1 + $0x60] sm:$0xf]
  %v70 = vld [vmem:[%s1 + $0x64] sm:$0xf]
  %v71 = vld [vmem:[%s1 + $0x68] sm:$0xf]
  %v72 = vld [vmem:[%s1 + $0x6c] sm:$0xf]
  %v73 = vld [vmem:[%s1 + $0x70] sm:$0x7]
  %v74 = vld [vmem:[%s2] sm:$0x1]
  %v76 = vlaneseq
  %v77 = vshrl.u32 %v76, 7
  %v78 = vsub.s32 0, %v77
  %v79 = vrot.slane %v74, %v78
  %v111 = vunpack.c.l.b16 %v15
  %v112 = vunpack.c.h.b16 %v15
  %v113 = vunpack.c.l.b16 %v16
  %v114 = vunpack.c.h.b16 %v16
  %v115 = vunpack.c.l.b16 %v17
  %v116 = vunpack.c.h.b16 %v17
  %v117 = vunpack.c.l.b16 %v18
  %v118 = vunpack.c.h.b16 %v18
  %v119 = vunpack.c.l.b16 %v19
  %v120 = vunpack.c.h.b16 %v19
  %v121 = vunpack.c.l.b16 %v20
  %v122 = vunpack.c.h.b16 %v20
  %v123 = vunpack.c.l.b16 %v21
  %v124 = vunpack.c.h.b16 %v21
  %v125 = vunpack.c.l.b16 %v22
  %v126 = vunpack.c.h.b16 %v22
  %v127 = vunpack.c.l.b16 %v23
  %v128 = vunpack.c.h.b16 %v23
  %v129 = vunpack.c.l.b16 %v24
  %v130 = vunpack.c.h.b16 %v24
  %v131 = vunpack.c.l.b16 %v25
  %v132 = vunpack.c.h.b16 %v25
  %v133 = vunpack.c.l.b16 %v26
  %v134 = vunpack.c.h.b16 %v26
  %v135 = vunpack.c.l.b16 %v27
  %v136 = vunpack.c.h.b16 %v27
  %v137 = vunpack.c.l.b16 %v28
  %v138 = vunpack.c.h.b16 %v28
  %v139 = vunpack.c.l.b16 %v29
  %v140 = vunpack.c.h.b16 %v29
  %v141 = vunpack.c.l.b16 %v30
  %v142 = vunpack.c.h.b16 %v30
  %v143 = vunpack.c.l.b16 %v31
  %v144 = vunpack.c.h.b16 %v31
  %v145 = vunpack.c.l.b16 %v32
  %v146 = vunpack.c.h.b16 %v32
  %v147 = vunpack.c.l.b16 %v33
  %v148 = vunpack.c.h.b16 %v33
  %v149 = vunpack.c.l.b16 %v34
  %v150 = vunpack.c.h.b16 %v34
  %v151 = vunpack.c.l.b16 %v35
  %v152 = vunpack.c.h.b16 %v35
  %v153 = vunpack.c.l.b16 %v36
  %v154 = vunpack.c.h.b16 %v36
  %v155 = vunpack.c.l.b16 %v37
  %v156 = vunpack.c.h.b16 %v37
  %v157 = vunpack.c.l.b16 %v38
  %v158 = vunpack.c.h.b16 %v38
  %v159 = vunpack.c.l.b16 %v39
  %v160 = vunpack.c.h.b16 %v39
  %v161 = vunpack.c.l.b16 %v40
  %v162 = vunpack.c.h.b16 %v40
  %v163 = vunpack.c.l.b16 %v41
  %v164 = vunpack.c.h.b16 %v41
  %v165 = vunpack.c.l.b16 %v42
  %v166 = vunpack.c.h.b16 %v42
  %v167 = vunpack.c.l.b16 %v43
  %v168 = vunpack.c.h.b16 %v43
  %v169 = vunpack.c.l.b16 %v44
  %v170 = vunpack.c.h.b16 %v44
  %v171 = vpack.c.b16 %v113, %v111
  %v172 = vpack.c.b16 %v114, %v112
  %v173 = vpack.c.b16 %v117, %v115
  %v174 = vpack.c.b16 %v118, %v116
  %v175 = vpack.c.b16 %v121, %v119
  %v176 = vpack.c.b16 %v122, %v120
  %v177 = vpack.c.b16 %v125, %v123
  %v178 = vpack.c.b16 %v126, %v124
  %v179 = vpack.c.b16 %v129, %v127
  %v180 = vpack.c.b16 %v130, %v128
  %v181 = vpack.c.b16 %v133, %v131
  %v182 = vpack.c.b16 %v134, %v132
  %v183 = vpack.c.b16 %v137, %v135
  %v184 = vpack.c.b16 %v138, %v136
  %v185 = vpack.c.b16 %v141, %v139
  %v186 = vpack.c.b16 %v142, %v140
  %v187 = vpack.c.b16 %v145, %v143
  %v188 = vpack.c.b16 %v146, %v144
  %v189 = vpack.c.b16 %v149, %v147
  %v190 = vpack.c.b16 %v150, %v148
  %v191 = vpack.c.b16 %v153, %v151
  %v192 = vpack.c.b16 %v154, %v152
  %v193 = vpack.c.b16 %v157, %v155
  %v194 = vpack.c.b16 %v158, %v156
  %v195 = vpack.c.b16 %v161, %v159
  %v196 = vpack.c.b16 %v162, %v160
  %v197 = vpack.c.b16 %v165, %v163
  %v198 = vpack.c.b16 %v166, %v164
  %v199 = vpack.c.b16 %v169, %v167
  %v200 = vpack.c.b16 %v170, %v168
  %v245 = vunpack.c.l.b16 %v45
  %v246 = vunpack.c.l.b16 %v46
  %v247 = vunpack.c.l.b16 %v47
  %v248 = vunpack.c.l.b16 %v48
  %v249 = vunpack.c.l.b16 %v49
  %v250 = vunpack.c.l.b16 %v50
  %v251 = vunpack.c.l.b16 %v51
  %v252 = vunpack.c.l.b16 %v52
  %v253 = vunpack.c.l.b16 %v53
  %v254 = vunpack.c.l.b16 %v54
  %v255 = vunpack.c.l.b16 %v55
  %v256 = vunpack.c.l.b16 %v56
  %v257 = vunpack.c.l.b16 %v57
  %v258 = vunpack.c.l.b16 %v58
  %v259 = vunpack.c.l.b16 %v59
  %v260 = vunpack.c.l.b16 %v60
  %v261 = vunpack.c.l.b16 %v61
  %v262 = vunpack.c.l.b16 %v62
  %v263 = vunpack.c.l.b16 %v63
  %v264 = vunpack.c.l.b16 %v64
  %v265 = vunpack.c.l.b16 %v65
  %v266 = vunpack.c.l.b16 %v66
  %v267 = vunpack.c.l.b16 %v67
  %v268 = vunpack.c.l.b16 %v68
  %v269 = vunpack.c.l.b16 %v69
  %v270 = vunpack.c.l.b16 %v70
  %v271 = vunpack.c.l.b16 %v71
  %v272 = vunpack.c.l.b16 %v72
  %v273 = vunpack.c.l.b16 %v73
  %v274 = vpack.c.b16 %v246, %v245
  %v275 = vpack.c.b16 %v248, %v247
  %v276 = vpack.c.b16 %v250, %v249
  %v277 = vpack.c.b16 %v252, %v251
  %v278 = vpack.c.b16 %v254, %v253
  %v279 = vpack.c.b16 %v256, %v255
  %v280 = vpack.c.b16 %v258, %v257
  %v281 = vpack.c.b16 %v260, %v259
  %v282 = vpack.c.b16 %v262, %v261
  %v283 = vpack.c.b16 %v264, %v263
  %v284 = vpack.c.b16 %v266, %v265
  %v285 = vpack.c.b16 %v268, %v267
  %v286 = vpack.c.b16 %v270, %v269
  %v287 = vpack.c.b16 %v272, %v271
  %v288 = vpack.c.b16 %v273, %v273
  %vm303 = vcmask 834560
  %v305 = vsel %vm303, %v172, 0
  %v308 = vsel %vm303, %v174, 0
  %v311 = vsel %vm303, %v176, 0
  %v314 = vsel %vm303, %v178, 0
  %v317 = vsel %vm303, %v180, 0
  %v320 = vsel %vm303, %v182, 0
  %v323 = vsel %vm303, %v184, 0
  %v326 = vsel %vm303, %v186, 0
  %v329 = vsel %vm303, %v188, 0
  %v332 = vsel %vm303, %v190, 0
  %v335 = vsel %vm303, %v192, 0
  %v338 = vsel %vm303, %v194, 0
  %v341 = vsel %vm303, %v196, 0
  %v344 = vsel %vm303, %v198, 0
  %v347 = vsel %vm303, %v200, 0
  %vm349 = vcmask 1042432
  %v351 = vsel %vm349, %v288, 0
  %353 = vmatprep.subr.bf16.mxu0 0
  %354 = vmatpush1.bf16.msra.mxu0 %v274
  %355 = vmatprep.subr.bf16.mxu0 0
  %356 = vmatpush1.bf16.msra.mxu0 %v275
  %357 = vmatprep.subr.bf16.mxu0 0
  %358 = vmatpush1.bf16.msra.mxu0 %v276
  %359 = vmatprep.subr.bf16.mxu0 0
  %360 = vmatpush1.bf16.msra.mxu0 %v277
  %361 = vmatprep.subr.bf16.mxu0 0
  %362 = vmatpush1.bf16.msra.mxu0 %v278
  %363 = vmatprep.subr.bf16.mxu0 0
  %364 = vmatpush1.bf16.msra.mxu0 %v279
  %365 = vmatprep.subr.bf16.mxu0 0
  %366 = vmatpush1.bf16.msra.mxu0 %v280
  %367 = vmatprep.subr.bf16.mxu0 0
  %368 = vmatpush1.bf16.msra.mxu0 %v281
  %369 = vmatprep.subr.bf16.mxu0 0
  %370 = vmatpush1.bf16.msra.mxu0 %v282
  %371 = vmatprep.subr.bf16.mxu0 0
  %372 = vmatpush1.bf16.msra.mxu0 %v283
  %373 = vmatprep.subr.bf16.mxu0 0
  %374 = vmatpush1.bf16.msra.mxu0 %v284
  %375 = vmatprep.subr.bf16.mxu0 0
  %376 = vmatpush1.bf16.msra.mxu0 %v285
  %377 = vmatprep.subr.bf16.mxu0 0
  %378 = vmatpush1.bf16.msra.mxu0 %v286
  %379 = vmatprep.subr.bf16.mxu0 0
  %380 = vmatpush1.bf16.msra.mxu0 %v287
  %381 = vmatprep.subr.bf16.mxu0 0
  %382 = vmatpush1.bf16.msra.mxu0 %v351
  %383 = vmatprep.subr.bf16.mxu0 0
  %384 = vmatpush1.bf16.msra.mxu0 0
  %385 = vmatprep.mubr.bf16.mxu0 %v305
  %386 = vmatmul.mubr.bf16.gmra.mrb[0].mxu0 %v171
  %v387 = vpop.f32.mrb[0].mxu0
  %v388 = vadd.f32 %v79, %v387
  %v389 = vpop.f32.mrb[0].mxu0
  %v390 = vpop.f32.mrb[0].mxu0
  %v391 = vadd.f32 %v79, %v390
  %v392 = vpop.f32.mrb[0].mxu0
  %393 = vmatprep.mubr.bf16.mxu0 %v308
  %394 = vmatmul.mubr.bf16.gmra.mrb[0].mxu0 %v173
  %v395 = vpop.f32.mrb[0].mxu0
  %v396 = vadd.f32 %v79, %v395
  %v397 = vpop.f32.mrb[0].mxu0
  %v398 = vpop.f32.mrb[0].mxu0
  %v399 = vadd.f32 %v79, %v398
  %v400 = vpop.f32.mrb[0].mxu0
  %401 = vmatprep.mubr.bf16.mxu0 %v311
  %402 = vmatmul.mubr.bf16.gmra.mrb[0].mxu0 %v175
  %v403 = vpop.f32.mrb[0].mxu0
  %v404 = vadd.f32 %v79, %v403
  %v405 = vpop.f32.mrb[0].mxu0
  %v406 = vpop.f32.mrb[0].mxu0
  %v407 = vadd.f32 %v79, %v406
  %v408 = vpop.f32.mrb[0].mxu0
  %409 = vmatprep.mubr.bf16.mxu0 %v314
  %410 = vmatmul.mubr.bf16.gmra.mrb[0].mxu0 %v177
  %v411 = vpop.f32.mrb[0].mxu0
  %v412 = vadd.f32 %v79, %v411
  %v413 = vpop.f32.mrb[0].mxu0
  %v414 = vpop.f32.mrb[0].mxu0
  %v415 = vadd.f32 %v79, %v414
  %v416 = vpop.f32.mrb[0].mxu0
  %417 = vmatprep.mubr.bf16.mxu0 %v317
  %418 = vmatmul.mubr.bf16.gmra.mrb[0].mxu0 %v179
  %v419 = vpop.f32.mrb[0].mxu0
  %v420 = vadd.f32 %v79, %v419
  %v421 = vpop.f32.mrb[0].mxu0
  %v422 = vpop.f32.mrb[0].mxu0
  %v423 = vadd.f32 %v79, %v422
  %v424 = vpop.f32.mrb[0].mxu0
  %425 = vmatprep.mubr.bf16.mxu0 %v320
  %426 = vmatmul.mubr.bf16.gmra.mrb[0].mxu0 %v181
  %v427 = vpop.f32.mrb[0].mxu0
  %v428 = vadd.f32 %v79, %v427
  %v429 = vpop.f32.mrb[0].mxu0
  %v430 = vpop.f32.mrb[0].mxu0
  %v431 = vadd.f32 %v79, %v430
  %v432 = vpop.f32.mrb[0].mxu0
  %433 = vmatprep.mubr.bf16.mxu0 %v323
  %434 = vmatmul.mubr.bf16.gmra.mrb[0].mxu0 %v183
  %v435 = vpop.f32.mrb[0].mxu0
  %v436 = vadd.f32 %v79, %v435
  %v437 = vpop.f32.mrb[0].mxu0
  %v438 = vpop.f32.mrb[0].mxu0
  %v439 = vadd.f32 %v79, %v438
  %v440 = vpop.f32.mrb[0].mxu0
  %441 = vmatprep.mubr.bf16.mxu0 %v326
  %442 = vmatmul.mubr.bf16.gmra.mrb[0].mxu0 %v185
  %v443 = vpop.f32.mrb[0].mxu0
  %v444 = vadd.f32 %v79, %v443
  %v445 = vpop.f32.mrb[0].mxu0
  %v446 = vpop.f32.mrb[0].mxu0
  %v447 = vadd.f32 %v79, %v446
  %v448 = vpop.f32.mrb[0].mxu0
  %449 = vmatprep.mubr.bf16.mxu0 %v329
  %450 = vmatmul.mubr.bf16.gmra.mrb[0].mxu0 %v187
  %v451 = vpop.f32.mrb[0].mxu0
  %v452 = vadd.f32 %v79, %v451
  %v453 = vpop.f32.mrb[0].mxu0
  %v454 = vpop.f32.mrb[0].mxu0
  %v455 = vadd.f32 %v79, %v454
  %v456 = vpop.f32.mrb[0].mxu0
  %457 = vmatprep.mubr.bf16.mxu0 %v332
  %458 = vmatmul.mubr.bf16.gmra.mrb[0].mxu0 %v189
  %v459 = vpop.f32.mrb[0].mxu0
  %v460 = vadd.f32 %v79, %v459
  %v461 = vpop.f32.mrb[0].mxu0
  %v462 = vpop.f32.mrb[0].mxu0
  %v463 = vadd.f32 %v79, %v462
  %v464 = vpop.f32.mrb[0].mxu0
  %465 = vmatprep.mubr.bf16.mxu0 %v335
  %466 = vmatmul.mubr.bf16.gmra.mrb[0].mxu0 %v191
  %v467 = vpop.f32.mrb[0].mxu0
  %v468 = vadd.f32 %v79, %v467
  %v469 = vpop.f32.mrb[0].mxu0
  %v470 = vpop.f32.mrb[0].mxu0
  %v471 = vadd.f32 %v79, %v470
  %v472 = vpop.f32.mrb[0].mxu0
  %473 = vmatprep.mubr.bf16.mxu0 %v338
  %474 = vmatmul.mubr.bf16.gmra.mrb[0].mxu0 %v193
  %v475 = vpop.f32.mrb[0].mxu0
  %v476 = vadd.f32 %v79, %v475
  %v477 = vpop.f32.mrb[0].mxu0
  %v478 = vpop.f32.mrb[0].mxu0
  %v479 = vadd.f32 %v79, %v478
  %v480 = vpop.f32.mrb[0].mxu0
  %481 = vmatprep.mubr.bf16.mxu0 %v341
  %482 = vmatmul.mubr.bf16.gmra.mrb[0].mxu0 %v195
  %v483 = vpop.f32.mrb[0].mxu0
  %v484 = vadd.f32 %v79, %v483
  %v485 = vpop.f32.mrb[0].mxu0
  %v486 = vpop.f32.mrb[0].mxu0
  %v487 = vadd.f32 %v79, %v486
  %v488 = vpop.f32.mrb[0].mxu0
  %489 = vmatprep.mubr.bf16.mxu0 %v344
  %490 = vmatmul.mubr.bf16.gmra.mrb[0].mxu0 %v197
  %v491 = vpop.f32.mrb[0].mxu0
  %v492 = vadd.f32 %v79, %v491
  %v493 = vpop.f32.mrb[0].mxu0
  %v494 = vpop.f32.mrb[0].mxu0
  %v495 = vadd.f32 %v79, %v494
  %v496 = vpop.f32.mrb[0].mxu0
  %497 = vmatprep.mubr.bf16.mxu0 %v347
  %498 = vmatmul.mubr.bf16.gmra.mrb[0].mxu0 %v199
  %v499 = vpop.f32.mrb[0].mxu0
  %v500 = vadd.f32 %v79, %v499
  %v501 = vpop.f32.mrb[0].mxu0
  %v502 = vpop.f32.mrb[0].mxu0
  %v503 = vadd.f32 %v79, %v502
  %v504 = vpop.f32.mrb[0].mxu0
  %505 = vdwg.mxu0
  %vm506 = vcmask 408576
  %507 = vst.msk [vmem:[%s3] sm:$0xff] %vm506, %v388
  %508 = vst.msk [vmem:[%s3 + $0x8] sm:$0xff] %vm506, %v391
  %509 = vst.msk [vmem:[%s3 + $0x10] sm:$0xff] %vm506, %v396
  %510 = vst.msk [vmem:[%s3 + $0x18] sm:$0xff] %vm506, %v399
  %511 = vst.msk [vmem:[%s3 + $0x20] sm:$0xff] %vm506, %v404
  %512 = vst.msk [vmem:[%s3 + $0x28] sm:$0xff] %vm506, %v407
  %513 = vst.msk [vmem:[%s3 + $0x30] sm:$0xff] %vm506, %v412
  %514 = vst.msk [vmem:[%s3 + $0x38] sm:$0xff] %vm506, %v415
  %515 = vst.msk [vmem:[%s3 + $0x40] sm:$0xff] %vm506, %v420
  %516 = vst.msk [vmem:[%s3 + $0x48] sm:$0xff] %vm506, %v423
  %517 = vst.msk [vmem:[%s3 + $0x50] sm:$0xff] %vm506, %v428
  %518 = vst.msk [vmem:[%s3 + $0x58] sm:$0xff] %vm506, %v431
  %519 = vst.msk [vmem:[%s3 + $0x60] sm:$0xff] %vm506, %v436
  %520 = vst.msk [vmem:[%s3 + $0x68] sm:$0xff] %vm506, %v439
  %521 = vst.msk [vmem:[%s3 + $0x70] sm:$0xff] %vm506, %v444
  %522 = vst.msk [vmem:[%s3 + $0x78] sm:$0xff] %vm506, %v447
  %523 = vst.msk [vmem:[%s3 + $0x80] sm:$0xff] %vm506, %v452
  %524 = vst.msk [vmem:[%s3 + $0x88] sm:$0xff] %vm506, %v455
  %525 = vst.msk [vmem:[%s3 + $0x90] sm:$0xff] %vm506, %v460
  %526 = vst.msk [vmem:[%s3 + $0x98] sm:$0xff] %vm506, %v463
  %527 = vst.msk [vmem:[%s3 + $0xa0] sm:$0xff] %vm506, %v468
  %528 = vst.msk [vmem:[%s3 + $0xa8] sm:$0xff] %vm506, %v471
  %529 = vst.msk [vmem:[%s3 + $0xb0] sm:$0xff] %vm506, %v476
  %530 = vst.msk [vmem:[%s3 + $0xb8] sm:$0xff] %vm506, %v479
  %531 = vst.msk [vmem:[%s3 + $0xc0] sm:$0xff] %vm506, %v484
  %532 = vst.msk [vmem:[%s3 + $0xc8] sm:$0xff] %vm506, %v487
  %533 = vst.msk [vmem:[%s3 + $0xd0] sm:$0xff] %vm506, %v492
  %534 = vst.msk [vmem:[%s3 + $0xd8] sm:$0xff] %vm506, %v495
  %535 = vst.msk [vmem:[%s3 + $0xe0] sm:$0xff] %vm506, %v500
  %536 = vst.msk [vmem:[%s3 + $0xe8] sm:$0xff] %vm506, %v503
  // Predicated region
  $region14: #{_lambda_.20} parent=0 // pred_check
    _
  $region15: #{_lambda_.20} parent=0 // pred_check_branch
    %538 = sbr.rel (0) target = $region17
  $region16: #{_lambda_.20} parent=0 // pred_region
    _
  $region17: #{_lambda_.20} parent=0 // pred_fallthru
    _
  // Predicated region
  $region18: #{_lambda_.20} parent=0 // pred_check
    _
  $region19: #{_lambda_.20} parent=0 // pred_check_branch
    %540 = sbr.rel (0) target = $region21
  $region20: #{_lambda_.20} parent=0 // pred_region
    _
  $region21: #{_lambda_.20} parent=0 // pred_fallthru
    _

// kernel: _lambda_.21
$region0: #{_lambda_.21}
  #allocation0 [shape = 'u32[]', space=smem, size = 0x4, offset = 0x4, fixed_abs, tag = 'smem constant byte address 0x4 - core index']
  #allocation1 [shape = 'u32[144,128]{1,0:T(1,128)}', space=vmem, size = 0x12000, scoped, tag = 'internal scratch']
  %s0 = inlined_call_operand.vmem [shape: bf16[16,2000], index: 0, kind: input, shape index: {}]
  %s1 = inlined_call_operand.vmem [shape: bf16[2000,40], index: 1, kind: input, shape index: {}]
  %s2 = inlined_call_operand.vmem [shape: f32[1,40], index: 2, kind: input, shape index: {}]
  %s3 = inlined_call_operand.vmem [shape: f32[16,40], index: 3, kind: output, shape index: {}]
  %s4 = sld [smem:[#allocation0]]
  $region22: #{_lambda_.21} parent=0
    _
  %s6 = ssub.s32 1, %s4
  %s7 = scalar_select 0, %s6, %s4
  // Predicated region
  $region2: #{_lambda_.21} parent=0 // pred_check
    _
  $region3: #{_lambda_.21} parent=0 // pred_check_branch
    %9 = sbr.rel (0) target = $region5
  $region4: #{_lambda_.21} parent=0 // pred_region
    _
  $region5: #{_lambda_.21} parent=0 // pred_fallthru
    _
  // Predicated region
  $region6: #{_lambda_.21} parent=0 // pred_check
    _
  $region7: #{_lambda_.21} parent=0 // pred_check_branch
    %11 = sbr.rel (0) target = $region9
  $region8: #{_lambda_.21} parent=0 // pred_region
    _
  $region9: #{_lambda_.21} parent=0 // pred_fallthru
    _
  // Predicated region
  $region10: #{_lambda_.21} parent=0 // pred_check
    _
  $region11: #{_lambda_.21} parent=0 // pred_check_branch
    %13 = sbr.rel (0) target = $region13
  $region12: #{_lambda_.21} parent=0 // pred_region
    _
  $region13: #{_lambda_.21} parent=0 // pred_fallthru
    _
  %v15 = vld [vmem:[%s0] sm:$0xff]
  %v16 = vld [vmem:[%s0 + $0x8] sm:$0xff]
  %v17 = vld [vmem:[%s0 + $0x10] sm:$0xff]
  %v18 = vld [vmem:[%s0 + $0x18] sm:$0xff]
  %v19 = vld [vmem:[%s0 + $0x20] sm:$0xff]
  %v20 = vld [vmem:[%s0 + $0x28] sm:$0xff]
  %v21 = vld [vmem:[%s0 + $0x30] sm:$0xff]
  %v22 = vld [vmem:[%s0 + $0x38] sm:$0xff]
  %v23 = vld [vmem:[%s0 + $0x40] sm:$0xff]
  %v24 = vld [vmem:[%s0 + $0x48] sm:$0xff]
  %v25 = vld [vmem:[%s0 + $0x50] sm:$0xff]
  %v26 = vld [vmem:[%s0 + $0x58] sm:$0xff]
  %v27 = vld [vmem:[%s0 + $0x60] sm:$0xff]
  %v28 = vld [vmem:[%s0 + $0x68] sm:$0xff]
  %v29 = vld [vmem:[%s0 + $0x70] sm:$0xff]
  %v30 = vld [vmem:[%s0 + $0x78] sm:$0xff]
  %v31 = vld [vmem:[%s1] sm:$0xf]
  %v32 = vld [vmem:[%s1 + $0x4] sm:$0xf]
  %v33 = vld [vmem:[%s1 + $0x8] sm:$0xf]
  %v34 = vld [vmem:[%s1 + $0xc] sm:$0xf]
  %v35 = vld [vmem:[%s1 + $0x10] sm:$0xf]
  %v36 = vld [vmem:[%s1 + $0x14] sm:$0xf]
  %v37 = vld [vmem:[%s1 + $0x18] sm:$0xf]
  %v38 = vld [vmem:[%s1 + $0x1c] sm:$0xf]
  %v39 = vld [vmem:[%s1 + $0x20] sm:$0xf]
  %v40 = vld [vmem:[%s1 + $0x24] sm:$0xf]
  %v41 = vld [vmem:[%s1 + $0x28] sm:$0xf]
  %v42 = vld [vmem:[%s1 + $0x2c] sm:$0xf]
  %v43 = vld [vmem:[%s1 + $0x30] sm:$0xf]
  %v44 = vld [vmem:[%s1 + $0x34] sm:$0xf]
  %v45 = vld [vmem:[%s1 + $0x38] sm:$0xf]
  %v46 = vld [vmem:[%s1 + $0x3c] sm:$0xf]
  %v47 = vld [vmem:[%s1 + $0x40] sm:$0xf]
  %v48 = vld [vmem:[%s1 + $0x44] sm:$0xf]
  %v49 = vld [vmem:[%s1 + $0x48] sm:$0xf]
  %v50 = vld [vmem:[%s1 + $0x4c] sm:$0xf]
  %v51 = vld [vmem:[%s1 + $0x50] sm:$0xf]
  %v52 = vld [vmem:[%s1 + $0x54] sm:$0xf]
  %v53 = vld [vmem:[%s1 + $0x58] sm:$0xf]
  %v54 = vld [vmem:[%s1 + $0x5c] sm:$0xf]
  %v55 = vld [vmem:[%s1 + $0x60] sm:$0xf]
  %v56 = vld [vmem:[%s1 + $0x64] sm:$0xf]
  %v57 = vld [vmem:[%s1 + $0x68] sm:$0xf]
  %v58 = vld [vmem:[%s1 + $0x6c] sm:$0xf]
  %v59 = vld [vmem:[%s1 + $0x70] sm:$0xf]
  %v60 = vld [vmem:[%s1 + $0x74] sm:$0xf]
  %v61 = vld [vmem:[%s1 + $0x78] sm:$0xf]
  %v62 = vld [vmem:[%s1 + $0x7c] sm:$0xf]
  %v63 = vld [vmem:[%s1 + $0x80] sm:$0xf]
  %v64 = vld [vmem:[%s1 + $0x84] sm:$0xf]
  %v65 = vld [vmem:[%s1 + $0x88] sm:$0xf]
  %v66 = vld [vmem:[%s1 + $0x8c] sm:$0xf]
  %v67 = vld [vmem:[%s1 + $0x90] sm:$0xf]
  %v68 = vld [vmem:[%s1 + $0x94] sm:$0xf]
  %v69 = vld [vmem:[%s1 + $0x98] sm:$0xf]
  %v70 = vld [vmem:[%s1 + $0x9c] sm:$0xf]
  %v71 = vld [vmem:[%s1 + $0xa0] sm:$0xf]
  %v72 = vld [vmem:[%s1 + $0xa4] sm:$0xf]
  %v73 = vld [vmem:[%s1 + $0xa8] sm:$0xf]
  %v74 = vld [vmem:[%s1 + $0xac] sm:$0xf]
  %v75 = vld [vmem:[%s1 + $0xb0] sm:$0xf]
  %v76 = vld [vmem:[%s1 + $0xb4] sm:$0xf]
  %v77 = vld [vmem:[%s1 + $0xb8] sm:$0xf]
  %v78 = vld [vmem:[%s1 + $0xbc] sm:$0xf]
  %v79 = vld [vmem:[%s1 + $0xc0] sm:$0xf]
  %v80 = vld [vmem:[%s1 + $0xc4] sm:$0xf]
  %v81 = vld [vmem:[%s1 + $0xc8] sm:$0xf]
  %v82 = vld [vmem:[%s1 + $0xcc] sm:$0xf]
  %v83 = vld [vmem:[%s1 + $0xd0] sm:$0xf]
  %v84 = vld [vmem:[%s1 + $0xd4] sm:$0xf]
  %v85 = vld [vmem:[%s1 + $0xd8] sm:$0xf]
  %v86 = vld [vmem:[%s1 + $0xdc] sm:$0xf]
  %v87 = vld [vmem:[%s1 + $0xe0] sm:$0xf]
  %v88 = vld [vmem:[%s1 + $0xe4] sm:$0xf]
  %v89 = vld [vmem:[%s1 + $0xe8] sm:$0xf]
  %v90 = vld [vmem:[%s1 + $0xec] sm:$0xf]
  %v91 = vld [vmem:[%s1 + $0xf0] sm:$0xf]
  %v92 = vld [vmem:[%s1 + $0xf4] sm:$0xf]
  %v93 = vld [vmem:[%s1 + $0xf8] sm:$0xf]
  %v94 = vld [vmem:[%s1 + $0xfc] sm:$0xf]
  %v95 = vld [vmem:[%s1 + $0x100] sm:$0xf]
  %v96 = vld [vmem:[%s1 + $0x104] sm:$0xf]
  %v97 = vld [vmem:[%s1 + $0x108] sm:$0xf]
  %v98 = vld [vmem:[%s1 + $0x10c] sm:$0xf]
  %v99 = vld [vmem:[%s1 + $0x110] sm:$0xf]
  %v100 = vld [vmem:[%s1 + $0x114] sm:$0xf]
  %v101 = vld [vmem:[%s1 + $0x118] sm:$0xf]
  %v102 = vld [vmem:[%s1 + $0x11c] sm:$0xf]
  %v103 = vld [vmem:[%s1 + $0x120] sm:$0xf]
  %v104 = vld [vmem:[%s1 + $0x124] sm:$0xf]
  %v105 = vld [vmem:[%s1 + $0x128] sm:$0xf]
  %v106 = vld [vmem:[%s1 + $0x12c] sm:$0xf]
  %v107 = vld [vmem:[%s1 + $0x130] sm:$0xf]
  %v108 = vld [vmem:[%s1 + $0x134] sm:$0xf]
  %v109 = vld [vmem:[%s1 + $0x138] sm:$0xf]
  %v110 = vld [vmem:[%s1 + $0x13c] sm:$0xf]
  %v111 = vld [vmem:[%s1 + $0x140] sm:$0xf]
  %v112 = vld [vmem:[%s1 + $0x144] sm:$0xf]
  %v113 = vld [vmem:[%s1 + $0x148] sm:$0xf]
  %v114 = vld [vmem:[%s1 + $0x14c] sm:$0xf]
  %v115 = vld [vmem:[%s1 + $0x150] sm:$0xf]
  %v116 = vld [vmem:[%s1 + $0x154] sm:$0xf]
  %v117 = vld [vmem:[%s1 + $0x158] sm:$0xf]
  %v118 = vld [vmem:[%s1 + $0x15c] sm:$0xf]
  %v119 = vld [vmem:[%s1 + $0x160] sm:$0xf]
  %v120 = vld [vmem:[%s1 + $0x164] sm:$0xf]
  %v121 = vld [vmem:[%s1 + $0x168] sm:$0xf]
  %v122 = vld [vmem:[%s1 + $0x16c] sm:$0xf]
  %v123 = vld [vmem:[%s1 + $0x170] sm:$0xf]
  %v124 = vld [vmem:[%s1 + $0x174] sm:$0xf]
  %v125 = vld [vmem:[%s1 + $0x178] sm:$0xf]
  %v126 = vld [vmem:[%s1 + $0x17c] sm:$0xf]
  %v127 = vld [vmem:[%s1 + $0x180] sm:$0xf]
  %v128 = vld [vmem:[%s1 + $0x184] sm:$0xf]
  %v129 = vld [vmem:[%s1 + $0x188] sm:$0xf]
  %v130 = vld [vmem:[%s1 + $0x18c] sm:$0xf]
  %v131 = vld [vmem:[%s1 + $0x190] sm:$0xf]
  %v132 = vld [vmem:[%s1 + $0x194] sm:$0xf]
  %v133 = vld [vmem:[%s1 + $0x198] sm:$0xf]
  %v134 = vld [vmem:[%s1 + $0x19c] sm:$0xf]
  %v135 = vld [vmem:[%s1 + $0x1a0] sm:$0xf]
  %v136 = vld [vmem:[%s1 + $0x1a4] sm:$0xf]
  %v137 = vld [vmem:[%s1 + $0x1a8] sm:$0xf]
  %v138 = vld [vmem:[%s1 + $0x1ac] sm:$0xf]
  %v139 = vld [vmem:[%s1 + $0x1b0] sm:$0xf]
  %v140 = vld [vmem:[%s1 + $0x1b4] sm:$0xf]
  %v141 = vld [vmem:[%s1 + $0x1b8] sm:$0xf]
  %v142 = vld [vmem:[%s1 + $0x1bc] sm:$0xf]
  %v143 = vld [vmem:[%s1 + $0x1c0] sm:$0xf]
  %v144 = vld [vmem:[%s1 + $0x1c4] sm:$0xf]
  %v145 = vld [vmem:[%s1 + $0x1c8] sm:$0xf]
  %v146 = vld [vmem:[%s1 + $0x1cc] sm:$0xf]
  %v147 = vld [vmem:[%s1 + $0x1d0] sm:$0xf]
  %v148 = vld [vmem:[%s1 + $0x1d4] sm:$0xf]
  %v149 = vld [vmem:[%s1 + $0x1d8] sm:$0xf]
  %v150 = vld [vmem:[%s1 + $0x1dc] sm:$0xf]
  %v151 = vld [vmem:[%s1 + $0x1e0] sm:$0xf]
  %v152 = vld [vmem:[%s1 + $0x1e4] sm:$0xf]
  %v153 = vld [vmem:[%s1 + $0x1e8] sm:$0xf]
  %v154 = vld [vmem:[%s1 + $0x1ec] sm:$0xf]
  %v155 = vld [vmem:[%s1 + $0x1f0] sm:$0xf]
  %v156 = vld [vmem:[%s1 + $0x1f4] sm:$0xf]
  %v157 = vld [vmem:[%s1 + $0x1f8] sm:$0xf]
  %v158 = vld [vmem:[%s1 + $0x1fc] sm:$0xf]
  %v159 = vld [vmem:[%s1 + $0x200] sm:$0xf]
  %v160 = vld [vmem:[%s1 + $0x204] sm:$0xf]
  %v161 = vld [vmem:[%s1 + $0x208] sm:$0xf]
  %v162 = vld [vmem:[%s1 + $0x20c] sm:$0xf]
  %v163 = vld [vmem:[%s1 + $0x210] sm:$0xf]
  %v164 = vld [vmem:[%s1 + $0x214] sm:$0xf]
  %v165 = vld [vmem:[%s1 + $0x218] sm:$0xf]
  %v166 = vld [vmem:[%s1 + $0x21c] sm:$0xf]
  %v167 = vld [vmem:[%s1 + $0x220] sm:$0xf]
  %v168 = vld [vmem:[%s1 + $0x224] sm:$0xf]
  %v169 = vld [vmem:[%s1 + $0x228] sm:$0xf]
  %v170 = vld [vmem:[%s1 + $0x22c] sm:$0xf]
  %v171 = vld [vmem:[%s1 + $0x230] sm:$0xf]
  %v172 = vld [vmem:[%s1 + $0x234] sm:$0xf]
  %v173 = vld [vmem:[%s1 + $0x238] sm:$0xf]
  %v174 = vld [vmem:[%s1 + $0x23c] sm:$0xf]
  %v175 = vld [vmem:[%s1 + $0x240] sm:$0xf]
  %v176 = vld [vmem:[%s1 + $0x244] sm:$0xf]
  %v177 = vld [vmem:[%s1 + $0x248] sm:$0xf]
  %v178 = vld [vmem:[%s1 + $0x24c] sm:$0xf]
  %v179 = vld [vmem:[%s1 + $0x250] sm:$0xf]
  %v180 = vld [vmem:[%s1 + $0x254] sm:$0xf]
  %v181 = vld [vmem:[%s1 + $0x258] sm:$0xf]
  %v182 = vld [vmem:[%s1 + $0x25c] sm:$0xf]
  %v183 = vld [vmem:[%s1 + $0x260] sm:$0xf]
  %v184 = vld [vmem:[%s1 + $0x264] sm:$0xf]
  %v185 = vld [vmem:[%s1 + $0x268] sm:$0xf]
  %v186 = vld [vmem:[%s1 + $0x26c] sm:$0xf]
  %v187 = vld [vmem:[%s1 + $0x270] sm:$0xf]
  %v188 = vld [vmem:[%s1 + $0x274] sm:$0xf]
  %v189 = vld [vmem:[%s1 + $0x278] sm:$0xf]
  %v190 = vld [vmem:[%s1 + $0x27c] sm:$0xf]
  %v191 = vld [vmem:[%s1 + $0x280] sm:$0xf]
  %v192 = vld [vmem:[%s1 + $0x284] sm:$0xf]
  %v193 = vld [vmem:[%s1 + $0x288] sm:$0xf]
  %v194 = vld [vmem:[%s1 + $0x28c] sm:$0xf]
  %v195 = vld [vmem:[%s1 + $0x290] sm:$0xf]
  %v196 = vld [vmem:[%s1 + $0x294] sm:$0xf]
  %v197 = vld [vmem:[%s1 + $0x298] sm:$0xf]
  %v198 = vld [vmem:[%s1 + $0x29c] sm:$0xf]
  %v199 = vld [vmem:[%s1 + $0x2a0] sm:$0xf]
  %v200 = vld [vmem:[%s1 + $0x2a4] sm:$0xf]
  %v201 = vld [vmem:[%s1 + $0x2a8] sm:$0xf]
  %v202 = vld [vmem:[%s1 + $0x2ac] sm:$0xf]
  %v203 = vld [vmem:[%s1 + $0x2b0] sm:$0xf]
  %v204 = vld [vmem:[%s1 + $0x2b4] sm:$0xf]
  %v205 = vld [vmem:[%s1 + $0x2b8] sm:$0xf]
  %v206 = vld [vmem:[%s1 + $0x2bc] sm:$0xf]
  %v207 = vld [vmem:[%s1 + $0x2c0] sm:$0xf]
  %v208 = vld [vmem:[%s1 + $0x2c4] sm:$0xf]
  %v209 = vld [vmem:[%s1 + $0x2c8] sm:$0xf]
  %v210 = vld [vmem:[%s1 + $0x2cc] sm:$0xf]
  %v211 = vld [vmem:[%s1 + $0x2d0] sm:$0xf]
  %v212 = vld [vmem:[%s1 + $0x2d4] sm:$0xf]
  %v213 = vld [vmem:[%s1 + $0x2d8] sm:$0xf]
  %v214 = vld [vmem:[%s1 + $0x2dc] sm:$0xf]
  %v215 = vld [vmem:[%s1 + $0x2e0] sm:$0xf]
  %v216 = vld [vmem:[%s1 + $0x2e4] sm:$0xf]
  %v217 = vld [vmem:[%s1 + $0x2e8] sm:$0xf]
  %v218 = vld [vmem:[%s1 + $0x2ec] sm:$0xf]
  %v219 = vld [vmem:[%s1 + $0x2f0] sm:$0xf]
  %v220 = vld [vmem:[%s1 + $0x2f4] sm:$0xf]
  %v221 = vld [vmem:[%s1 + $0x2f8] sm:$0xf]
  %v222 = vld [vmem:[%s1 + $0x2fc] sm:$0xf]
  %v223 = vld [vmem:[%s1 + $0x300] sm:$0xf]
  %v224 = vld [vmem:[%s1 + $0x304] sm:$0xf]
  %v225 = vld [vmem:[%s1 + $0x308] sm:$0xf]
  %v226 = vld [vmem:[%s1 + $0x30c] sm:$0xf]
  %v227 = vld [vmem:[%s1 + $0x310] sm:$0xf]
  %v228 = vld [vmem:[%s1 + $0x314] sm:$0xf]
  %v229 = vld [vmem:[%s1 + $0x318] sm:$0xf]
  %v230 = vld [vmem:[%s1 + $0x31c] sm:$0xf]
  %v231 = vld [vmem:[%s1 + $0x320] sm:$0xf]
  %v232 = vld [vmem:[%s1 + $0x324] sm:$0xf]
  %v233 = vld [vmem:[%s1 + $0x328] sm:$0xf]
  %v234 = vld [vmem:[%s1 + $0x32c] sm:$0xf]
  %v235 = vld [vmem:[%s1 + $0x330] sm:$0xf]
  %v236 = vld [vmem:[%s1 + $0x334] sm:$0xf]
  %v237 = vld [vmem:[%s1 + $0x338] sm:$0xf]
  %v238 = vld [vmem:[%s1 + $0x33c] sm:$0xf]
  %v239 = vld [vmem:[%s1 + $0x340] sm:$0xf]
  %v240 = vld [vmem:[%s1 + $0x344] sm:$0xf]
  %v241 = vld [vmem:[%s1 + $0x348] sm:$0xf]
  %v242 = vld [vmem:[%s1 + $0x34c] sm:$0xf]
  %v243 = vld [vmem:[%s1 + $0x350] sm:$0xf]
  %v244 = vld [vmem:[%s1 + $0x354] sm:$0xf]
  %v245 = vld [vmem:[%s1 + $0x358] sm:$0xf]
  %v246 = vld [vmem:[%s1 + $0x35c] sm:$0xf]
  %v247 = vld [vmem:[%s1 + $0x360] sm:$0xf]
  %v248 = vld [vmem:[%s1 + $0x364] sm:$0xf]
  %v249 = vld [vmem:[%s1 + $0x368] sm:$0xf]
  %v250 = vld [vmem:[%s1 + $0x36c] sm:$0xf]
  %v251 = vld [vmem:[%s1 + $0x370] sm:$0xf]
  %v252 = vld [vmem:[%s1 + $0x374] sm:$0xf]
  %v253 = vld [vmem:[%s1 + $0x378] sm:$0xf]
  %v254 = vld [vmem:[%s1 + $0x37c] sm:$0xf]
  %v255 = vld [vmem:[%s1 + $0x380] sm:$0xf]
  %v256 = vld [vmem:[%s1 + $0x384] sm:$0xf]
  %v257 = vld [vmem:[%s1 + $0x388] sm:$0xf]
  %v258 = vld [vmem:[%s1 + $0x38c] sm:$0xf]
  %v259 = vld [vmem:[%s1 + $0x390] sm:$0xf]
  %v260 = vld [vmem:[%s1 + $0x394] sm:$0xf]
  %v261 = vld [vmem:[%s1 + $0x398] sm:$0xf]
  %v262 = vld [vmem:[%s1 + $0x39c] sm:$0xf]
  %v263 = vld [vmem:[%s1 + $0x3a0] sm:$0xf]
  %v264 = vld [vmem:[%s1 + $0x3a4] sm:$0xf]
  %v265 = vld [vmem:[%s1 + $0x3a8] sm:$0xf]
  %v266 = vld [vmem:[%s1 + $0x3ac] sm:$0xf]
  %v267 = vld [vmem:[%s1 + $0x3b0] sm:$0xf]
  %v268 = vld [vmem:[%s1 + $0x3b4] sm:$0xf]
  %v269 = vld [vmem:[%s1 + $0x3b8] sm:$0xf]
  %v270 = vld [vmem:[%s1 + $0x3bc] sm:$0xf]
  %v271 = vld [vmem:[%s1 + $0x3c0] sm:$0xf]
  %v272 = vld [vmem:[%s1 + $0x3c4] sm:$0xf]
  %v273 = vld [vmem:[%s1 + $0x3c8] sm:$0xf]
  %v274 = vld [vmem:[%s1 + $0x3cc] sm:$0xf]
  %v275 = vld [vmem:[%s1 + $0x3d0] sm:$0xf]
  %v276 = vld [vmem:[%s1 + $0x3d4] sm:$0xf]
  %v277 = vld [vmem:[%s1 + $0x3d8] sm:$0xf]
  %v278 = vld [vmem:[%s1 + $0x3dc] sm:$0xf]
  %v279 = vld [vmem:[%s1 + $0x3e0] sm:$0xf]
  %v280 = vld [vmem:[%s1 + $0x3e4] sm:$0xf]
  %v281 = vld [vmem:[%s2] sm:$0x1]
  %v283 = vlaneseq
  %v284 = vshrl.u32 %v283, 7
  %v285 = vsub.s32 0, %v284
  %v286 = vrot.slane %v281, %v285
  %v304 = vunpack.c.l.b16 %v15
  %v305 = vunpack.c.h.b16 %v15
  %v306 = vunpack.c.l.b16 %v16
  %v307 = vunpack.c.h.b16 %v16
  %v308 = vunpack.c.l.b16 %v17
  %v309 = vunpack.c.h.b16 %v17
  %v310 = vunpack.c.l.b16 %v18
  %v311 = vunpack.c.h.b16 %v18
  %v312 = vunpack.c.l.b16 %v19
  %v313 = vunpack.c.h.b16 %v19
  %v314 = vunpack.c.l.b16 %v20
  %v315 = vunpack.c.h.b16 %v20
  %v316 = vunpack.c.l.b16 %v21
  %v317 = vunpack.c.h.b16 %v21
  %v318 = vunpack.c.l.b16 %v22
  %v319 = vunpack.c.h.b16 %v22
  %v320 = vunpack.c.l.b16 %v23
  %v321 = vunpack.c.h.b16 %v23
  %v322 = vunpack.c.l.b16 %v24
  %v323 = vunpack.c.h.b16 %v24
  %v324 = vunpack.c.l.b16 %v25
  %v325 = vunpack.c.h.b16 %v25
  %v326 = vunpack.c.l.b16 %v26
  %v327 = vunpack.c.h.b16 %v26
  %v328 = vunpack.c.l.b16 %v27
  %v329 = vunpack.c.h.b16 %v27
  %v330 = vunpack.c.l.b16 %v28
  %v331 = vunpack.c.h.b16 %v28
  %v332 = vunpack.c.l.b16 %v29
  %v333 = vunpack.c.h.b16 %v29
  %v334 = vunpack.c.l.b16 %v30
  %v335 = vunpack.c.h.b16 %v30
  %v336 = vpack.c.b16 %v320, %v304
  %v337 = vpack.c.b16 %v321, %v305
  %v338 = vpack.c.b16 %v322, %v306
  %v339 = vpack.c.b16 %v323, %v307
  %v340 = vpack.c.b16 %v324, %v308
  %v341 = vpack.c.b16 %v325, %v309
  %v342 = vpack.c.b16 %v326, %v310
  %v343 = vpack.c.b16 %v327, %v311
  %v344 = vpack.c.b16 %v328, %v312
  %v345 = vpack.c.b16 %v329, %v313
  %v346 = vpack.c.b16 %v330, %v314
  %v347 = vpack.c.b16 %v331, %v315
  %v348 = vpack.c.b16 %v332, %v316
  %v349 = vpack.c.b16 %v333, %v317
  %v350 = vpack.c.b16 %v334, %v318
  %v351 = vpack.c.b16 %v335, %v319
  %v617 = vunpack.c.l.b16 %v31
  %v618 = vunpack.c.l.b16 %v32
  %v619 = vunpack.c.l.b16 %v33
  %v620 = vunpack.c.l.b16 %v34
  %v621 = vunpack.c.l.b16 %v35
  %v622 = vunpack.c.l.b16 %v36
  %v623 = vunpack.c.l.b16 %v37
  %v624 = vunpack.c.l.b16 %v38
  %v625 = vunpack.c.l.b16 %v39
  %v626 = vunpack.c.l.b16 %v40
  %v627 = vunpack.c.l.b16 %v41
  %v628 = vunpack.c.l.b16 %v42
  %v629 = vunpack.c.l.b16 %v43
  %v630 = vunpack.c.l.b16 %v44
  %v631 = vunpack.c.l.b16 %v45
  %v632 = vunpack.c.l.b16 %v46
  %v633 = vunpack.c.l.b16 %v47
  %v634 = vunpack.c.l.b16 %v48
  %v635 = vunpack.c.l.b16 %v49
  %v636 = vunpack.c.l.b16 %v50
  %v637 = vunpack.c.l.b16 %v51
  %v638 = vunpack.c.l.b16 %v52
  %v639 = vunpack.c.l.b16 %v53
  %v640 = vunpack.c.l.b16 %v54
  %v641 = vunpack.c.l.b16 %v55
  %v642 = vunpack.c.l.b16 %v56
  %v643 = vunpack.c.l.b16 %v57
  %v644 = vunpack.c.l.b16 %v58
  %v645 = vunpack.c.l.b16 %v59
  %v646 = vunpack.c.l.b16 %v60
  %v647 = vunpack.c.l.b16 %v61
  %v648 = vunpack.c.l.b16 %v62
  %v649 = vunpack.c.l.b16 %v63
  %v650 = vunpack.c.l.b16 %v64
  %v651 = vunpack.c.l.b16 %v65
  %v652 = vunpack.c.l.b16 %v66
  %v653 = vunpack.c.l.b16 %v67
  %v654 = vunpack.c.l.b16 %v68
  %v655 = vunpack.c.l.b16 %v69
  %v656 = vunpack.c.l.b16 %v70
  %v657 = vunpack.c.l.b16 %v71
  %v658 = vunpack.c.l.b16 %v72
  %v659 = vunpack.c.l.b16 %v73
  %v660 = vunpack.c.l.b16 %v74
  %v661 = vunpack.c.l.b16 %v75
  %v662 = vunpack.c.l.b16 %v76
  %v663 = vunpack.c.l.b16 %v77
  %v664 = vunpack.c.l.b16 %v78
  %v665 = vunpack.c.l.b16 %v79
  %v666 = vunpack.c.l.b16 %v80
  %v667 = vunpack.c.l.b16 %v81
  %v668 = vunpack.c.l.b16 %v82
  %v669 = vunpack.c.l.b16 %v83
  %v670 = vunpack.c.l.b16 %v84
  %v671 = vunpack.c.l.b16 %v85
  %v672 = vunpack.c.l.b16 %v86
  %v673 = vunpack.c.l.b16 %v87
  %v674 = vunpack.c.l.b16 %v88
  %v675 = vunpack.c.l.b16 %v89
  %v676 = vunpack.c.l.b16 %v90
  %v677 = vunpack.c.l.b16 %v91
  %v678 = vunpack.c.l.b16 %v92
  %v679 = vunpack.c.l.b16 %v93
  %v680 = vunpack.c.l.b16 %v94
  %v681 = vunpack.c.l.b16 %v95
  %v682 = vunpack.c.l.b16 %v96
  %v683 = vunpack.c.l.b16 %v97
  %v684 = vunpack.c.l.b16 %v98
  %v685 = vunpack.c.l.b16 %v99
  %v686 = vunpack.c.l.b16 %v100
  %v687 = vunpack.c.l.b16 %v101
  %v688 = vunpack.c.l.b16 %v102
  %v689 = vunpack.c.l.b16 %v103
  %v690 = vunpack.c.l.b16 %v104
  %v691 = vunpack.c.l.b16 %v105
  %v692 = vunpack.c.l.b16 %v106
  %v693 = vunpack.c.l.b16 %v107
  %v694 = vunpack.c.l.b16 %v108
  %v695 = vunpack.c.l.b16 %v109
  %v696 = vunpack.c.l.b16 %v110
  %v697 = vunpack.c.l.b16 %v111
  %v698 = vunpack.c.l.b16 %v112
  %v699 = vunpack.c.l.b16 %v113
  %v700 = vunpack.c.l.b16 %v114
  %v701 = vunpack.c.l.b16 %v115
  %v702 = vunpack.c.l.b16 %v116
  %v703 = vunpack.c.l.b16 %v117
  %v704 = vunpack.c.l.b16 %v118
  %v705 = vunpack.c.l.b16 %v119
  %v706 = vunpack.c.l.b16 %v120
  %v707 = vunpack.c.l.b16 %v121
  %v708 = vunpack.c.l.b16 %v122
  %v709 = vunpack.c.l.b16 %v123
  %v710 = vunpack.c.l.b16 %v124
  %v711 = vunpack.c.l.b16 %v125
  %v712 = vunpack.c.l.b16 %v126
  %v713 = vunpack.c.l.b16 %v127
  %v714 = vunpack.c.l.b16 %v128
  %v715 = vunpack.c.l.b16 %v129
  %v716 = vunpack.c.l.b16 %v130
  %v717 = vunpack.c.l.b16 %v131
  %v718 = vunpack.c.l.b16 %v132
  %v719 = vunpack.c.l.b16 %v133
  %v720 = vunpack.c.l.b16 %v134
  %v721 = vunpack.c.l.b16 %v135
  %v722 = vunpack.c.l.b16 %v136
  %v723 = vunpack.c.l.b16 %v137
  %v724 = vunpack.c.l.b16 %v138
  %v725 = vunpack.c.l.b16 %v139
  %v726 = vunpack.c.l.b16 %v140
  %v727 = vunpack.c.l.b16 %v141
  %v728 = vunpack.c.l.b16 %v142
  %v729 = vunpack.c.l.b16 %v143
  %v730 = vunpack.c.l.b16 %v144
  %v731 = vunpack.c.l.b16 %v145
  %v732 = vunpack.c.l.b16 %v146
  %v733 = vunpack.c.l.b16 %v147
  %v734 = vunpack.c.l.b16 %v148
  %v735 = vunpack.c.l.b16 %v149
  %v736 = vunpack.c.l.b16 %v150
  %v737 = vunpack.c.l.b16 %v151
  %v738 = vunpack.c.l.b16 %v152
  %v739 = vunpack.c.l.b16 %v153
  %v740 = vunpack.c.l.b16 %v154
  %v741 = vunpack.c.l.b16 %v155
  %v742 = vunpack.c.l.b16 %v156
  %v743 = vunpack.c.l.b16 %v157
  %v744 = vunpack.c.l.b16 %v158
  %v745 = vunpack.c.l.b16 %v159
  %v746 = vunpack.c.l.b16 %v160
  %v747 = vunpack.c.l.b16 %v161
  %v748 = vunpack.c.l.b16 %v162
  %v749 = vunpack.c.l.b16 %v163
  %v750 = vunpack.c.l.b16 %v164
  %v751 = vunpack.c.l.b16 %v165
  %v752 = vunpack.c.l.b16 %v166
  %v753 = vunpack.c.l.b16 %v167
  %v754 = vunpack.c.l.b16 %v168
  %v755 = vunpack.c.l.b16 %v169
  %v756 = vunpack.c.l.b16 %v170
  %v757 = vunpack.c.l.b16 %v171
  %v758 = vunpack.c.l.b16 %v172
  %v759 = vunpack.c.l.b16 %v173
  %v760 = vunpack.c.l.b16 %v174
  %v761 = vunpack.c.l.b16 %v175
  %v762 = vunpack.c.l.b16 %v176
  %v763 = vunpack.c.l.b16 %v177
  %v764 = vunpack.c.l.b16 %v178
  %v765 = vunpack.c.l.b16 %v179
  %v766 = vunpack.c.l.b16 %v180
  %v767 = vunpack.c.l.b16 %v181
  %v768 = vunpack.c.l.b16 %v182
  %v769 = vunpack.c.l.b16 %v183
  %v770 = vunpack.c.l.b16 %v184
  %v771 = vunpack.c.l.b16 %v185
  %v772 = vunpack.c.l.b16 %v186
  %v773 = vunpack.c.l.b16 %v187
  %v774 = vunpack.c.l.b16 %v188
  %v775 = vunpack.c.l.b16 %v189
  %v776 = vunpack.c.l.b16 %v190
  %v777 = vunpack.c.l.b16 %v191
  %v778 = vunpack.c.l.b16 %v192
  %v779 = vunpack.c.l.b16 %v193
  %v780 = vunpack.c.l.b16 %v194
  %v781 = vunpack.c.l.b16 %v195
  %v782 = vunpack.c.l.b16 %v196
  %v783 = vunpack.c.l.b16 %v197
  %v784 = vunpack.c.l.b16 %v198
  %v785 = vunpack.c.l.b16 %v199
  %v786 = vunpack.c.l.b16 %v200
  %v787 = vunpack.c.l.b16 %v201
  %v788 = vunpack.c.l.b16 %v202
  %v789 = vunpack.c.l.b16 %v203
  %v790 = vunpack.c.l.b16 %v204
  %v791 = vunpack.c.l.b16 %v205
  %v792 = vunpack.c.l.b16 %v206
  %v793 = vunpack.c.l.b16 %v207
  %v794 = vunpack.c.l.b16 %v208
  %v795 = vunpack.c.l.b16 %v209
  %v796 = vunpack.c.l.b16 %v210
  %v797 = vunpack.c.l.b16 %v211
  %v798 = vunpack.c.l.b16 %v212
  %v799 = vunpack.c.l.b16 %v213
  %v800 = vunpack.c.l.b16 %v214
  %v801 = vunpack.c.l.b16 %v215
  %v802 = vunpack.c.l.b16 %v216
  %v803 = vunpack.c.l.b16 %v217
  %v804 = vunpack.c.l.b16 %v218
  %v805 = vunpack.c.l.b16 %v219
  %v806 = vunpack.c.l.b16 %v220
  %v807 = vunpack.c.l.b16 %v221
  %v808 = vunpack.c.l.b16 %v222
  %v809 = vunpack.c.l.b16 %v223
  %v810 = vunpack.c.l.b16 %v224
  %v811 = vunpack.c.l.b16 %v225
  %v812 = vunpack.c.l.b16 %v226
  %v813 = vunpack.c.l.b16 %v227
  %v814 = vunpack.c.l.b16 %v228
  %v815 = vunpack.c.l.b16 %v229
  %v816 = vunpack.c.l.b16 %v230
  %v817 = vunpack.c.l.b16 %v231
  %v818 = vunpack.c.l.b16 %v232
  %v819 = vunpack.c.l.b16 %v233
  %v820 = vunpack.c.l.b16 %v234
  %v821 = vunpack.c.l.b16 %v235
  %v822 = vunpack.c.l.b16 %v236
  %v823 = vunpack.c.l.b16 %v237
  %v824 = vunpack.c.l.b16 %v238
  %v825 = vunpack.c.l.b16 %v239
  %v826 = vunpack.c.l.b16 %v240
  %v827 = vunpack.c.l.b16 %v241
  %v828 = vunpack.c.l.b16 %v242
  %v829 = vunpack.c.l.b16 %v243
  %v830 = vunpack.c.l.b16 %v244
  %v831 = vunpack.c.l.b16 %v245
  %v832 = vunpack.c.l.b16 %v246
  %v833 = vunpack.c.l.b16 %v247
  %v834 = vunpack.c.l.b16 %v248
  %v835 = vunpack.c.l.b16 %v249
  %v836 = vunpack.c.l.b16 %v250
  %v837 = vunpack.c.l.b16 %v251
  %v838 = vunpack.c.l.b16 %v252
  %v839 = vunpack.c.l.b16 %v253
  %v840 = vunpack.c.l.b16 %v254
  %v841 = vunpack.c.l.b16 %v255
  %v842 = vunpack.c.l.b16 %v256
  %v843 = vunpack.c.l.b16 %v257
  %v844 = vunpack.c.l.b16 %v258
  %v845 = vunpack.c.l.b16 %v259
  %v846 = vunpack.c.l.b16 %v260
  %v847 = vunpack.c.l.b16 %v261
  %v848 = vunpack.c.l.b16 %v262
  %v849 = vunpack.c.l.b16 %v263
  %v850 = vunpack.c.l.b16 %v264
  %v851 = vunpack.c.l.b16 %v265
  %v852 = vunpack.c.l.b16 %v266
  %v853 = vunpack.c.l.b16 %v267
  %v854 = vunpack.c.l.b16 %v268
  %v855 = vunpack.c.l.b16 %v269
  %v856 = vunpack.c.l.b16 %v270
  %v857 = vunpack.c.l.b16 %v271
  %v858 = vunpack.c.l.b16 %v272
  %v859 = vunpack.c.l.b16 %v273
  %v860 = vunpack.c.l.b16 %v274
  %v861 = vunpack.c.l.b16 %v275
  %v862 = vunpack.c.l.b16 %v276
  %v863 = vunpack.c.l.b16 %v277
  %v864 = vunpack.c.l.b16 %v278
  %v865 = vunpack.c.l.b16 %v279
  %v866 = vunpack.c.l.b16 %v280
  %v867 = vpack.c.b16 %v618, %v617
  %v868 = vpack.c.b16 %v620, %v619
  %v869 = vpack.c.b16 %v622, %v621
  %v870 = vpack.c.b16 %v624, %v623
  %v871 = vpack.c.b16 %v626, %v625
  %v872 = vpack.c.b16 %v628, %v627
  %v873 = vpack.c.b16 %v630, %v629
  %v874 = vpack.c.b16 %v632, %v631
  %v875 = vpack.c.b16 %v634, %v633
  %v876 = vpack.c.b16 %v636, %v635
  %v877 = vpack.c.b16 %v638, %v637
  %v878 = vpack.c.b16 %v640, %v639
  %v879 = vpack.c.b16 %v642, %v641
  %v880 = vpack.c.b16 %v644, %v643
  %v881 = vpack.c.b16 %v646, %v645
  %v882 = vpack.c.b16 %v648, %v647
  %v883 = vpack.c.b16 %v650, %v649
  %v884 = vpack.c.b16 %v652, %v651
  %v885 = vpack.c.b16 %v654, %v653
  %v886 = vpack.c.b16 %v656, %v655
  %v887 = vpack.c.b16 %v658, %v657
  %v888 = vpack.c.b16 %v660, %v659
  %v889 = vpack.c.b16 %v662, %v661
  %v890 = vpack.c.b16 %v664, %v663
  %v891 = vpack.c.b16 %v666, %v665
  %v892 = vpack.c.b16 %v668, %v667
  %v893 = vpack.c.b16 %v670, %v669
  %v894 = vpack.c.b16 %v672, %v671
  %v895 = vpack.c.b16 %v674, %v673
  %v896 = vpack.c.b16 %v676, %v675
  %v897 = vpack.c.b16 %v678, %v677
  %v898 = vpack.c.b16 %v680, %v679
  %v899 = vpack.c.b16 %v682, %v681
  %v900 = vpack.c.b16 %v684, %v683
  %v901 = vpack.c.b16 %v686, %v685
  %v902 = vpack.c.b16 %v688, %v687
  %v903 = vpack.c.b16 %v690, %v689
  %v904 = vpack.c.b16 %v692, %v691
  %v905 = vpack.c.b16 %v694, %v693
  %v906 = vpack.c.b16 %v696, %v695
  %v907 = vpack.c.b16 %v698, %v697
  %v908 = vpack.c.b16 %v700, %v699
  %v909 = vpack.c.b16 %v702, %v701
  %v910 = vpack.c.b16 %v704, %v703
  %v911 = vpack.c.b16 %v706, %v705
  %v912 = vpack.c.b16 %v708, %v707
  %v913 = vpack.c.b16 %v710, %v709
  %v914 = vpack.c.b16 %v712, %v711
  %v915 = vpack.c.b16 %v714, %v713
  %v916 = vpack.c.b16 %v716, %v715
  %v917 = vpack.c.b16 %v718, %v717
  %v918 = vpack.c.b16 %v720, %v719
  %v919 = vpack.c.b16 %v722, %v721
  %v920 = vpack.c.b16 %v724, %v723
  %v921 = vpack.c.b16 %v726, %v725
  %v922 = vpack.c.b16 %v728, %v727
  %v923 = vpack.c.b16 %v730, %v729
  %v924 = vpack.c.b16 %v732, %v731
  %v925 = vpack.c.b16 %v734, %v733
  %v926 = vpack.c.b16 %v736, %v735
  %v927 = vpack.c.b16 %v738, %v737
  %v928 = vpack.c.b16 %v740, %v739
  %v929 = vpack.c.b16 %v742, %v741
  %v930 = vpack.c.b16 %v744, %v743
  %v931 = vpack.c.b16 %v746, %v745
  %v932 = vpack.c.b16 %v748, %v747
  %v933 = vpack.c.b16 %v750, %v749
  %v934 = vpack.c.b16 %v752, %v751
  %v935 = vpack.c.b16 %v754, %v753
  %v936 = vpack.c.b16 %v756, %v755
  %v937 = vpack.c.b16 %v758, %v757
  %v938 = vpack.c.b16 %v760, %v759
  %v939 = vpack.c.b16 %v762, %v761
  %v940 = vpack.c.b16 %v764, %v763
  %v941 = vpack.c.b16 %v766, %v765
  %v942 = vpack.c.b16 %v768, %v767
  %v943 = vpack.c.b16 %v770, %v769
  %v944 = vpack.c.b16 %v772, %v771
  %v945 = vpack.c.b16 %v774, %v773
  %v946 = vpack.c.b16 %v776, %v775
  %v947 = vpack.c.b16 %v778, %v777
  %v948 = vpack.c.b16 %v780, %v779
  %v949 = vpack.c.b16 %v782, %v781
  %v950 = vpack.c.b16 %v784, %v783
  %v951 = vpack.c.b16 %v786, %v785
  %v952 = vpack.c.b16 %v788, %v787
  %v953 = vpack.c.b16 %v790, %v789
  %v954 = vpack.c.b16 %v792, %v791
  %v955 = vpack.c.b16 %v794, %v793
  %v956 = vpack.c.b16 %v796, %v795
  %v957 = vpack.c.b16 %v798, %v797
  %v958 = vpack.c.b16 %v800, %v799
  %v959 = vpack.c.b16 %v802, %v801
  %v960 = vpack.c.b16 %v804, %v803
  %v961 = vpack.c.b16 %v806, %v805
  %v962 = vpack.c.b16 %v808, %v807
  %v963 = vpack.c.b16 %v810, %v809
  %v964 = vpack.c.b16 %v812, %v811
  %v965 = vpack.c.b16 %v814, %v813
  %v966 = vpack.c.b16 %v816, %v815
  %v967 = vpack.c.b16 %v818, %v817
  %v968 = vpack.c.b16 %v820, %v819
  %v969 = vpack.c.b16 %v822, %v821
  %v970 = vpack.c.b16 %v824, %v823
  %v971 = vpack.c.b16 %v826, %v825
  %v972 = vpack.c.b16 %v828, %v827
  %v973 = vpack.c.b16 %v830, %v829
  %v974 = vpack.c.b16 %v832, %v831
  %v975 = vpack.c.b16 %v834, %v833
  %v976 = vpack.c.b16 %v836, %v835
  %v977 = vpack.c.b16 %v838, %v837
  %v978 = vpack.c.b16 %v840, %v839
  %v979 = vpack.c.b16 %v842, %v841
  %v980 = vpack.c.b16 %v844, %v843
  %v981 = vpack.c.b16 %v846, %v845
  %v982 = vpack.c.b16 %v848, %v847
  %v983 = vpack.c.b16 %v850, %v849
  %v984 = vpack.c.b16 %v852, %v851
  %v985 = vpack.c.b16 %v854, %v853
  %v986 = vpack.c.b16 %v856, %v855
  %v987 = vpack.c.b16 %v858, %v857
  %v988 = vpack.c.b16 %v860, %v859
  %v989 = vpack.c.b16 %v862, %v861
  %v990 = vpack.c.b16 %v864, %v863
  %v991 = vpack.c.b16 %v866, %v865
  %vm1117 = vcmask 654336
  %v1119 = vsel %vm1117, %v351, 0
  %1121 = vmatprep.subr.bf16.mxu0 0
  %1122 = vmatpush1.bf16.msra.mxu0 %v867
  %1123 = vmatprep.subr.bf16.mxu0 0
  %1124 = vmatpush1.bf16.msra.mxu0 %v868
  %1125 = vmatprep.subr.bf16.mxu0 0
  %1126 = vmatpush1.bf16.msra.mxu0 %v869
  %1127 = vmatprep.subr.bf16.mxu0 0
  %1128 = vmatpush1.bf16.msra.mxu0 %v870
  %1129 = vmatprep.subr.bf16.mxu0 0
  %1130 = vmatpush1.bf16.msra.mxu0 %v871
  %1131 = vmatprep.subr.bf16.mxu0 0
  %1132 = vmatpush1.bf16.msra.mxu0 %v872
  %1133 = vmatprep.subr.bf16.mxu0 0
  %1134 = vmatpush1.bf16.msra.mxu0 %v873
  %1135 = vmatprep.subr.bf16.mxu0 0
  %1136 = vmatpush1.bf16.msra.mxu0 %v874
  %1137 = vmatprep.subr.bf16.mxu0 0
  %1138 = vmatpush1.bf16.msra.mxu0 %v875
  %1139 = vmatprep.subr.bf16.mxu0 0
  %1140 = vmatpush1.bf16.msra.mxu0 %v876
  %1141 = vmatprep.subr.bf16.mxu0 0
  %1142 = vmatpush1.bf16.msra.mxu0 %v877
  %1143 = vmatprep.subr.bf16.mxu0 0
  %1144 = vmatpush1.bf16.msra.mxu0 %v878
  %1145 = vmatprep.subr.bf16.mxu0 0
  %1146 = vmatpush1.bf16.msra.mxu0 %v879
  %1147 = vmatprep.subr.bf16.mxu0 0
  %1148 = vmatpush1.bf16.msra.mxu0 %v880
  %1149 = vmatprep.subr.bf16.mxu0 0
  %1150 = vmatpush1.bf16.msra.mxu0 %v881
  %1151 = vmatprep.subr.bf16.mxu0 0
  %1152 = vmatpush1.bf16.msra.mxu0 %v882
  %1153 = vmatprep.mubr.bf16.mxu0 %v337
  %1154 = vmatmul.mubr.bf16.gmra.mrb[0].mxu0 %v336
  %v1155 = vpop.f32.mrb[0].mxu0
  %v1156 = vadd.f32 %v286, %v1155
  %v1157 = vpop.f32.mrb[0].mxu0
  %v1158 = vpop.f32.mrb[0].mxu0
  %v1159 = vadd.f32 %v286, %v1158
  %v1160 = vpop.f32.mrb[0].mxu0
  %1161 = vdwg.mxu0
  %1162 = vmatprep.subr.bf16.mxu0 0
  %1163 = vmatpush1.bf16.msra.mxu0 %v883
  %1164 = vmatprep.subr.bf16.mxu0 0
  %1165 = vmatpush1.bf16.msra.mxu0 %v884
  %1166 = vmatprep.subr.bf16.mxu0 0
  %1167 = vmatpush1.bf16.msra.mxu0 %v885
  %1168 = vmatprep.subr.bf16.mxu0 0
  %1169 = vmatpush1.bf16.msra.mxu0 %v886
  %1170 = vmatprep.subr.bf16.mxu0 0
  %1171 = vmatpush1.bf16.msra.mxu0 %v887
  %1172 = vmatprep.subr.bf16.mxu0 0
  %1173 = vmatpush1.bf16.msra.mxu0 %v888
  %1174 = vmatprep.subr.bf16.mxu0 0
  %1175 = vmatpush1.bf16.msra.mxu0 %v889
  %1176 = vmatprep.subr.bf16.mxu0 0
  %1177 = vmatpush1.bf16.msra.mxu0 %v890
  %1178 = vmatprep.subr.bf16.mxu0 0
  %1179 = vmatpush1.bf16.msra.mxu0 %v891
  %1180 = vmatprep.subr.bf16.mxu0 0
  %1181 = vmatpush1.bf16.msra.mxu0 %v892
  %1182 = vmatprep.subr.bf16.mxu0 0
  %1183 = vmatpush1.bf16.msra.mxu0 %v893
  %1184 = vmatprep.subr.bf16.mxu0 0
  %1185 = vmatpush1.bf16.msra.mxu0 %v894
  %1186 = vmatprep.subr.bf16.mxu0 0
  %1187 = vmatpush1.bf16.msra.mxu0 %v895
  %1188 = vmatprep.subr.bf16.mxu0 0
  %1189 = vmatpush1.bf16.msra.mxu0 %v896
  %1190 = vmatprep.subr.bf16.mxu0 0
  %1191 = vmatpush1.bf16.msra.mxu0 %v897
  %1192 = vmatprep.subr.bf16.mxu0 0
  %1193 = vmatpush1.bf16.msra.mxu0 %v898
  %1194 = vmatprep.mubr.bf16.mxu0 %v339
  %1195 = vmatmul.mubr.bf16.gmra.mrb[0].mxu0 %v338
  %v1196 = vpop.f32.mrb[0].mxu0
  %v1197 = vadd.f32 %v1156, %v1196
  %v1198 = vpop.f32.mrb[0].mxu0
  %v1199 = vpop.f32.mrb[0].mxu0
  %v1200 = vadd.f32 %v1159, %v1199
  %v1201 = vpop.f32.mrb[0].mxu0
  %1202 = vdwg.mxu0
  %1203 = vmatprep.subr.bf16.mxu0 0
  %1204 = vmatpush1.bf16.msra.mxu0 %v899
  %1205 = vmatprep.subr.bf16.mxu0 0
  %1206 = vmatpush1.bf16.msra.mxu0 %v900
  %1207 = vmatprep.subr.bf16.mxu0 0
  %1208 = vmatpush1.bf16.msra.mxu0 %v901
  %1209 = vmatprep.subr.bf16.mxu0 0
  %1210 = vmatpush1.bf16.msra.mxu0 %v902
  %1211 = vmatprep.subr.bf16.mxu0 0
  %1212 = vmatpush1.bf16.msra.mxu0 %v903
  %1213 = vmatprep.subr.bf16.mxu0 0
  %1214 = vmatpush1.bf16.msra.mxu0 %v904
  %1215 = vmatprep.subr.bf16.mxu0 0
  %1216 = vmatpush1.bf16.msra.mxu0 %v905
  %1217 = vmatprep.subr.bf16.mxu0 0
  %1218 = vmatpush1.bf16.msra.mxu0 %v906
  %1219 = vmatprep.subr.bf16.mxu0 0
  %1220 = vmatpush1.bf16.msra.mxu0 %v907
  %1221 = vmatprep.subr.bf16.mxu0 0
  %1222 = vmatpush1.bf16.msra.mxu0 %v908
  %1223 = vmatprep.subr.bf16.mxu0 0
  %1224 = vmatpush1.bf16.msra.mxu0 %v909
  %1225 = vmatprep.subr.bf16.mxu0 0
  %1226 = vmatpush1.bf16.msra.mxu0 %v910
  %1227 = vmatprep.subr.bf16.mxu0 0
  %1228 = vmatpush1.bf16.msra.mxu0 %v911
  %1229 = vmatprep.subr.bf16.mxu0 0
  %1230 = vmatpush1.bf16.msra.mxu0 %v912
  %1231 = vmatprep.subr.bf16.mxu0 0
  %1232 = vmatpush1.bf16.msra.mxu0 %v913
  %1233 = vmatprep.subr.bf16.mxu0 0
  %1234 = vmatpush1.bf16.msra.mxu0 %v914
  %1235 = vmatprep.mubr.bf16.mxu0 %v341
  %1236 = vmatmul.mubr.bf16.gmra.mrb[0].mxu0 %v340
  %v1237 = vpop.f32.mrb[0].mxu0
  %v1238 = vadd.f32 %v1197, %v1237
  %v1239 = vpop.f32.mrb[0].mxu0
  %v1240 = vpop.f32.mrb[0].mxu0
  %v1241 = vadd.f32 %v1200, %v1240
  %v1242 = vpop.f32.mrb[0].mxu0
  %1243 = vdwg.mxu0
  %1244 = vmatprep.subr.bf16.mxu0 0
  %1245 = vmatpush1.bf16.msra.mxu0 %v915
  %1246 = vmatprep.subr.bf16.mxu0 0
  %1247 = vmatpush1.bf16.msra.mxu0 %v916
  %1248 = vmatprep.subr.bf16.mxu0 0
  %1249 = vmatpush1.bf16.msra.mxu0 %v917
  %1250 = vmatprep.subr.bf16.mxu0 0
  %1251 = vmatpush1.bf16.msra.mxu0 %v918
  %1252 = vmatprep.subr.bf16.mxu0 0
  %1253 = vmatpush1.bf16.msra.mxu0 %v919
  %1254 = vmatprep.subr.bf16.mxu0 0
  %1255 = vmatpush1.bf16.msra.mxu0 %v920
  %1256 = vmatprep.subr.bf16.mxu0 0
  %1257 = vmatpush1.bf16.msra.mxu0 %v921
  %1258 = vmatprep.subr.bf16.mxu0 0
  %1259 = vmatpush1.bf16.msra.mxu0 %v922
  %1260 = vmatprep.subr.bf16.mxu0 0
  %1261 = vmatpush1.bf16.msra.mxu0 %v923
  %1262 = vmatprep.subr.bf16.mxu0 0
  %1263 = vmatpush1.bf16.msra.mxu0 %v924
  %1264 = vmatprep.subr.bf16.mxu0 0
  %1265 = vmatpush1.bf16.msra.mxu0 %v925
  %1266 = vmatprep.subr.bf16.mxu0 0
  %1267 = vmatpush1.bf16.msra.mxu0 %v926
  %1268 = vmatprep.subr.bf16.mxu0 0
  %1269 = vmatpush1.bf16.msra.mxu0 %v927
  %1270 = vmatprep.subr.bf16.mxu0 0
  %1271 = vmatpush1.bf16.msra.mxu0 %v928
  %1272 = vmatprep.subr.bf16.mxu0 0
  %1273 = vmatpush1.bf16.msra.mxu0 %v929
  %1274 = vmatprep.subr.bf16.mxu0 0
  %1275 = vmatpush1.bf16.msra.mxu0 %v930
  %1276 = vmatprep.mubr.bf16.mxu0 %v343
  %1277 = vmatmul.mubr.bf16.gmra.mrb[0].mxu0 %v342
  %v1278 = vpop.f32.mrb[0].mxu0
  %v1279 = vadd.f32 %v1238, %v1278
  %v1280 = vpop.f32.mrb[0].mxu0
  %v1281 = vpop.f32.mrb[0].mxu0
  %v1282 = vadd.f32 %v1241, %v1281
  %v1283 = vpop.f32.mrb[0].mxu0
  %1284 = vdwg.mxu0
  %1285 = vmatprep.subr.bf16.mxu0 0
  %1286 = vmatpush1.bf16.msra.mxu0 %v931
  %1287 = vmatprep.subr.bf16.mxu0 0
  %1288 = vmatpush1.bf16.msra.mxu0 %v932
  %1289 = vmatprep.subr.bf16.mxu0 0
  %1290 = vmatpush1.bf16.msra.mxu0 %v933
  %1291 = vmatprep.subr.bf16.mxu0 0
  %1292 = vmatpush1.bf16.msra.mxu0 %v934
  %1293 = vmatprep.subr.bf16.mxu0 0
  %1294 = vmatpush1.bf16.msra.mxu0 %v935
  %1295 = vmatprep.subr.bf16.mxu0 0
  %1296 = vmatpush1.bf16.msra.mxu0 %v936
  %1297 = vmatprep.subr.bf16.mxu0 0
  %1298 = vmatpush1.bf16.msra.mxu0 %v937
  %1299 = vmatprep.subr.bf16.mxu0 0
  %1300 = vmatpush1.bf16.msra.mxu0 %v938
  %1301 = vmatprep.subr.bf16.mxu0 0
  %1302 = vmatpush1.bf16.msra.mxu0 %v939
  %1303 = vmatprep.subr.bf16.mxu0 0
  %1304 = vmatpush1.bf16.msra.mxu0 %v940
  %1305 = vmatprep.subr.bf16.mxu0 0
  %1306 = vmatpush1.bf16.msra.mxu0 %v941
  %1307 = vmatprep.subr.bf16.mxu0 0
  %1308 = vmatpush1.bf16.msra.mxu0 %v942
  %1309 = vmatprep.subr.bf16.mxu0 0
  %1310 = vmatpush1.bf16.msra.mxu0 %v943
  %1311 = vmatprep.subr.bf16.mxu0 0
  %1312 = vmatpush1.bf16.msra.mxu0 %v944
  %1313 = vmatprep.subr.bf16.mxu0 0
  %1314 = vmatpush1.bf16.msra.mxu0 %v945
  %1315 = vmatprep.subr.bf16.mxu0 0
  %1316 = vmatpush1.bf16.msra.mxu0 %v946
  %1317 = vmatprep.mubr.bf16.mxu0 %v345
  %1318 = vmatmul.mubr.bf16.gmra.mrb[0].mxu0 %v344
  %v1319 = vpop.f32.mrb[0].mxu0
  %v1320 = vadd.f32 %v1279, %v1319
  %v1321 = vpop.f32.mrb[0].mxu0
  %v1322 = vpop.f32.mrb[0].mxu0
  %v1323 = vadd.f32 %v1282, %v1322
  %v1324 = vpop.f32.mrb[0].mxu0
  %1325 = vdwg.mxu0
  %1326 = vmatprep.subr.bf16.mxu0 0
  %1327 = vmatpush1.bf16.msra.mxu0 %v947
  %1328 = vmatprep.subr.bf16.mxu0 0
  %1329 = vmatpush1.bf16.msra.mxu0 %v948
  %1330 = vmatprep.subr.bf16.mxu0 0
  %1331 = vmatpush1.bf16.msra.mxu0 %v949
  %1332 = vmatprep.subr.bf16.mxu0 0
  %1333 = vmatpush1.bf16.msra.mxu0 %v950
  %1334 = vmatprep.subr.bf16.mxu0 0
  %1335 = vmatpush1.bf16.msra.mxu0 %v951
  %1336 = vmatprep.subr.bf16.mxu0 0
  %1337 = vmatpush1.bf16.msra.mxu0 %v952
  %1338 = vmatprep.subr.bf16.mxu0 0
  %1339 = vmatpush1.bf16.msra.mxu0 %v953
  %1340 = vmatprep.subr.bf16.mxu0 0
  %1341 = vmatpush1.bf16.msra.mxu0 %v954
  %1342 = vmatprep.subr.bf16.mxu0 0
  %1343 = vmatpush1.bf16.msra.mxu0 %v955
  %1344 = vmatprep.subr.bf16.mxu0 0
  %1345 = vmatpush1.bf16.msra.mxu0 %v956
  %1346 = vmatprep.subr.bf16.mxu0 0
  %1347 = vmatpush1.bf16.msra.mxu0 %v957
  %1348 = vmatprep.subr.bf16.mxu0 0
  %1349 = vmatpush1.bf16.msra.mxu0 %v958
  %1350 = vmatprep.subr.bf16.mxu0 0
  %1351 = vmatpush1.bf16.msra.mxu0 %v959
  %1352 = vmatprep.subr.bf16.mxu0 0
  %1353 = vmatpush1.bf16.msra.mxu0 %v960
  %1354 = vmatprep.subr.bf16.mxu0 0
  %1355 = vmatpush1.bf16.msra.mxu0 %v961
  %1356 = vmatprep.subr.bf16.mxu0 0
  %1357 = vmatpush1.bf16.msra.mxu0 %v962
  %1358 = vmatprep.mubr.bf16.mxu0 %v347
  %1359 = vmatmul.mubr.bf16.gmra.mrb[0].mxu0 %v346
  %v1360 = vpop.f32.mrb[0].mxu0
  %v1361 = vadd.f32 %v1320, %v1360
  %v1362 = vpop.f32.mrb[0].mxu0
  %v1363 = vpop.f32.mrb[0].mxu0
  %v1364 = vadd.f32 %v1323, %v1363
  %v1365 = vpop.f32.mrb[0].mxu0
  %1366 = vdwg.mxu0
  %1367 = vmatprep.subr.bf16.mxu0 0
  %1368 = vmatpush1.bf16.msra.mxu0 %v963
  %1369 = vmatprep.subr.bf16.mxu0 0
  %1370 = vmatpush1.bf16.msra.mxu0 %v964
  %1371 = vmatprep.subr.bf16.mxu0 0
  %1372 = vmatpush1.bf16.msra.mxu0 %v965
  %1373 = vmatprep.subr.bf16.mxu0 0
  %1374 = vmatpush1.bf16.msra.mxu0 %v966
  %1375 = vmatprep.subr.bf16.mxu0 0
  %1376 = vmatpush1.bf16.msra.mxu0 %v967
  %1377 = vmatprep.subr.bf16.mxu0 0
  %1378 = vmatpush1.bf16.msra.mxu0 %v968
  %1379 = vmatprep.subr.bf16.mxu0 0
  %1380 = vmatpush1.bf16.msra.mxu0 %v969
  %1381 = vmatprep.subr.bf16.mxu0 0
  %1382 = vmatpush1.bf16.msra.mxu0 %v970
  %1383 = vmatprep.subr.bf16.mxu0 0
  %1384 = vmatpush1.bf16.msra.mxu0 %v971
  %1385 = vmatprep.subr.bf16.mxu0 0
  %1386 = vmatpush1.bf16.msra.mxu0 %v972
  %1387 = vmatprep.subr.bf16.mxu0 0
  %1388 = vmatpush1.bf16.msra.mxu0 %v973
  %1389 = vmatprep.subr.bf16.mxu0 0
  %1390 = vmatpush1.bf16.msra.mxu0 %v974
  %1391 = vmatprep.subr.bf16.mxu0 0
  %1392 = vmatpush1.bf16.msra.mxu0 %v975
  %1393 = vmatprep.subr.bf16.mxu0 0
  %1394 = vmatpush1.bf16.msra.mxu0 %v976
  %1395 = vmatprep.subr.bf16.mxu0 0
  %1396 = vmatpush1.bf16.msra.mxu0 %v977
  %1397 = vmatprep.subr.bf16.mxu0 0
  %1398 = vmatpush1.bf16.msra.mxu0 %v978
  %1399 = vmatprep.mubr.bf16.mxu0 %v349
  %1400 = vmatmul.mubr.bf16.gmra.mrb[0].mxu0 %v348
  %v1401 = vpop.f32.mrb[0].mxu0
  %v1402 = vadd.f32 %v1361, %v1401
  %v1403 = vpop.f32.mrb[0].mxu0
  %v1404 = vpop.f32.mrb[0].mxu0
  %v1405 = vadd.f32 %v1364, %v1404
  %v1406 = vpop.f32.mrb[0].mxu0
  %1407 = vdwg.mxu0
  %1408 = vmatprep.subr.bf16.mxu0 0
  %1409 = vmatpush1.bf16.msra.mxu0 %v979
  %1410 = vmatprep.subr.bf16.mxu0 0
  %1411 = vmatpush1.bf16.msra.mxu0 %v980
  %1412 = vmatprep.subr.bf16.mxu0 0
  %1413 = vmatpush1.bf16.msra.mxu0 %v981
  %1414 = vmatprep.subr.bf16.mxu0 0
  %1415 = vmatpush1.bf16.msra.mxu0 %v982
  %1416 = vmatprep.subr.bf16.mxu0 0
  %1417 = vmatpush1.bf16.msra.mxu0 %v983
  %1418 = vmatprep.subr.bf16.mxu0 0
  %1419 = vmatpush1.bf16.msra.mxu0 %v984
  %1420 = vmatprep.subr.bf16.mxu0 0
  %1421 = vmatpush1.bf16.msra.mxu0 %v985
  %1422 = vmatprep.subr.bf16.mxu0 0
  %1423 = vmatpush1.bf16.msra.mxu0 %v986
  %1424 = vmatprep.subr.bf16.mxu0 0
  %1425 = vmatpush1.bf16.msra.mxu0 %v987
  %1426 = vmatprep.subr.bf16.mxu0 0
  %1427 = vmatpush1.bf16.msra.mxu0 %v988
  %1428 = vmatprep.subr.bf16.mxu0 0
  %1429 = vmatpush1.bf16.msra.mxu0 %v989
  %1430 = vmatprep.subr.bf16.mxu0 0
  %1431 = vmatpush1.bf16.msra.mxu0 %v990
  %1432 = vmatprep.subr.bf16.mxu0 0
  %1433 = vmatpush1.bf16.msra.mxu0 %v991
  %1434 = vmatprep.subr.bf16.mxu0 0
  %1435 = vmatpush1.bf16.msra.mxu0 0
  %1436 = vmatprep.subr.bf16.mxu0 0
  %1437 = vmatpush1.bf16.msra.mxu0 0
  %1438 = vmatprep.subr.bf16.mxu0 0
  %1439 = vmatpush1.bf16.msra.mxu0 0
  %1440 = vmatprep.mubr.bf16.mxu0 %v1119
  %1441 = vmatmul.mubr.bf16.gmra.mrb[0].mxu0 %v350
  %v1442 = vpop.f32.mrb[0].mxu0
  %v1443 = vadd.f32 %v1402, %v1442
  %v1444 = vpop.f32.mrb[0].mxu0
  %v1445 = vpop.f32.mrb[0].mxu0
  %v1446 = vadd.f32 %v1405, %v1445
  %v1447 = vpop.f32.mrb[0].mxu0
  %1448 = vdwg.mxu0
  %vm1449 = vcmask 326656
  %1450 = vst.msk [vmem:[%s3] sm:$0xff] %vm1449, %v1443
  %1451 = vst.msk [vmem:[%s3 + $0x8] sm:$0xff] %vm1449, %v1446
  // Predicated region
  $region14: #{_lambda_.21} parent=0 // pred_check
    _
  $region15: #{_lambda_.21} parent=0 // pred_check_branch
    %1453 = sbr.rel (0) target = $region17
  $region16: #{_lambda_.21} parent=0 // pred_region
    _
  $region17: #{_lambda_.21} parent=0 // pred_fallthru
    _
  // Predicated region
  $region18: #{_lambda_.21} parent=0 // pred_check
    _
  $region19: #{_lambda_.21} parent=0 // pred_check_branch
    %1455 = sbr.rel (0) target = $region21
  $region20: #{_lambda_.21} parent=0 // pred_region
    _
  $region21: #{_lambda_.21} parent=0 // pred_fallthru
    _

</llo_original>
